<compile_context>
chip_gen: v7x
topology: tpu7x:2x2x1
jax: 0.10.0
libtpu: 0.0.40
codegen_flags: <defaults>
</compile_context>

<pallas_src>
import functools

import jax
import jax.numpy as jnp
from jax.experimental import pallas as pl
from jax.experimental.pallas import tpu as pltpu


def _multi_nobases_kernel(s_ref, o_ref, temb_ref,
                          ws_ref, bs_ref, wo_ref, bo_ref,
                          w1_ref, b1_ref, w2_ref, b2_ref,
                          out_ref, *, H, W):
    """All planes are (B, H*W) f32 values; convs are shifted-plane VPU FMAs."""
    B, Cs, HW = s_ref.shape
    Co = o_ref.shape[1]
    E = temb_ref.shape[1]
    Ch = b1_ref.shape[0]

    # ---- static halo masks, shared by all four convs -----------------------
    # plane index p = h*W + w ; tap (dy,dx) reads pixel (h+dy-1, w+dx-1).
    pidx = jax.lax.broadcasted_iota(jnp.int32, (1, HW), 1)   # flattened position
    wpos = pidx % W                                          # column within row

    def tap_mask(dy, dx):
        parts = []
        if dy == 0:
            parts.append(pidx >= W)                # need h-1 >= 0
        elif dy == 2:
            parts.append(pidx < (H - 1) * W)       # need h+1 <= H-1
        if dx == 0:
            parts.append(wpos >= 1)                # need w-1 >= 0
        elif dx == 2:
            parts.append(wpos <= W - 2)            # need w+1 <= W-1
        m = parts[0]
        for extra in parts[1:]:
            m = m & extra
        return m

    masks = {(dy, dx): tap_mask(dy, dx)
             for dy in range(3) for dx in range(3) if (dy, dx) != (1, 1)}

    def shift(plane, dy, dx):
        # shifted[p] = plane[p + (dy-1)*W + (dx-1)], zero outside the image.
        s = (dy - 1) * W + (dx - 1)
        if s == 0:
            return plane
        rolled = jnp.roll(plane, -s, axis=-1)
        return jnp.where(masks[(dy, dx)], rolled, 0.0)

    def conv3x3(planes, w_ref, b_ref, cout, relu):
        """3x3 'same' conv; weights flat in SMEM as ((dy*3+dx)*cin+ci)*cout+co."""
        cin = len(planes)
        outs = []
        if cout <= cin:
            # contraction-first: combine input channels per tap, shift once.
            for co in range(cout):
                acc = None
                for dy in range(3):
                    for dx in range(3):
                        tap = dy * 3 + dx
                        g = None
                        for ci in range(cin):
                            t = planes[ci] * w_ref[(tap * cin + ci) * cout + co]
                            g = t if g is None else g + t
                        sg = shift(g, dy, dx)
                        acc = sg if acc is None else acc + sg
                acc = acc + b_ref[co]
                outs.append(jnp.maximum(acc, 0.0) if relu else acc)
        else:
            # shift-first: each input plane shifted once per tap, reused by all co.
            shifted = [[shift(planes[ci], dy, dx)
                        for dy in range(3) for dx in range(3)]
                       for ci in range(cin)]
            for co in range(cout):
                acc = None
                for tap in range(9):
                    for ci in range(cin):
                        t = shifted[ci][tap] * w_ref[(tap * cin + ci) * cout + co]
                        acc = t if acc is None else acc + t
                acc = acc + b_ref[co]
                outs.append(jnp.maximum(acc, 0.0) if relu else acc)
        return outs

    s_all = s_ref[...]                                   # (B, Cs, HW)
    o_all = o_ref[...]                                   # (B, Co, HW)
    state_in = [s_all[:, c, :] for c in range(Cs)]
    obj_in = [o_all[:, c, :] for c in range(Co)]

    # state_model stand-in: 3x3 conv (Cs -> 1) + ReLU
    state_out = conv3x3(state_in, ws_ref, bs_ref, 1, relu=True)[0]

    # object_model stand-in: 3x3 conv (Co -> E) + ReLU
    obj_out = conv3x3(obj_in, wo_ref, bo_ref, E, relu=True)

    # heatmap_model stand-in: per-pixel dot with the pooled text embedding
    temb = temb_ref[...]                                 # (B, E)
    heat = None
    for e in range(E):
        t = obj_out[e] * temb[:, e:e + 1]
        heat = t if heat is None else heat + t

    # torch.cat((state_out, heat), 1) -> models.SimpleConv(2)
    hid = conv3x3([state_out, heat], w1_ref, b1_ref, Ch, relu=True)
    out = conv3x3(hid, w2_ref, b2_ref, 1, relu=False)[0]

    out_ref[...] = out                                   # (B, H*W) lane-dense store


def _init_positions(map_dim):
    # Mirrors MultiNoBases.__init_positions (unused by forward, kept for parity).
    row = jnp.tile(jnp.arange(map_dim)[:, None], (1, map_dim))
    col = jnp.tile(jnp.arange(map_dim)[None, :], (map_dim, 1))
    return jnp.stack((row, col))


@jax.jit
def multi_nobases_forward(state, obj, text, params):
    """state/obj: NCHW float32, text: (B, T) int32 tokens -> (B, 1, H, W)."""
    B, Cs, H, W = state.shape
    Co = obj.shape[1]
    HW = H * W

    # glue: heatmap_model's text encoder stand-in (embedding lookup + mean pool).
    # TODO(synk): the original heatmap_model likely uses an LSTM text encoder.
    temb = jnp.take(params["embed"], text, axis=0).mean(axis=1)          # (B, E)

    # Bitcast-only reshapes (NCHW -> (B, C, H*W)); halo handling is in-kernel,
    # so no wrapper-side transpose / pad ops remain.
    s_flat = state.reshape(B, Cs, HW)
    o_flat = obj.reshape(B, Co, HW)

    # Flatten weights / biases to 1-D for cheap SMEM scalar reads.
    ws = params["ws"].reshape(-1)
    bs = params["bs"].reshape(-1)
    wo = params["wo"].reshape(-1)
    bo = params["bo"].reshape(-1)
    w1 = params["w1"].reshape(-1)
    b1 = params["b1"].reshape(-1)
    w2 = params["w2"].reshape(-1)
    b2 = params["b2"].reshape(-1)

    vmem = pl.BlockSpec(memory_space=pltpu.MemorySpace.VMEM)
    smem = pl.BlockSpec(memory_space=pltpu.MemorySpace.SMEM)

    # Single invocation (no grid): the whole problem fits in a handful of vregs.
    # TODO(synk): for large B / map_dim, add a batch grid axis with
    # dimension_semantics=("parallel",) and re-budget tiles for v7x (64 MiB VMEM).
    out_flat = pl.pallas_call(
        functools.partial(_multi_nobases_kernel, H=H, W=W),
        out_shape=jax.ShapeDtypeStruct((B, HW), jnp.float32),
        in_specs=[vmem, vmem, vmem] + [smem] * 8,
        out_specs=vmem,
    )(s_flat, o_flat, temb, ws, bs, wo, bo, w1, b1, w2, b2)

    return out_flat.reshape(B, 1, H, W)                  # NCHW (B, 1, H, W)


if __name__ == "__main__":
    B, Cs, Co = 2, 4, 4
    H = W = 16            # map_dim (module default is 10; 16 chosen for the demo)
    E, Ch = 8, 8          # object-embedding / SimpleConv hidden channels
    V, T = 12, 6          # text vocab size / sequence length

    key = jax.random.PRNGKey(0)
    ks = jax.random.split(key, 12)

    params = {
        "ws":    0.1 * jax.random.normal(ks[0], (3, 3, Cs, 1), jnp.float32),
        "bs":    jnp.zeros((1, 1), jnp.float32),
        "wo":    0.1 * jax.random.normal(ks[1], (3, 3, Co, E), jnp.float32),
        "bo":    jnp.zeros((1, E), jnp.float32),
        "w1":    0.1 * jax.random.normal(ks[2], (3, 3, 2, Ch), jnp.float32),
        "b1":    jnp.zeros((1, Ch), jnp.float32),
        "w2":    0.1 * jax.random.normal(ks[3], (3, 3, Ch, 1), jnp.float32),
        "b2":    jnp.zeros((1, 1), jnp.float32),
        "embed": 0.1 * jax.random.normal(ks[4], (V, E), jnp.float32),
    }

    _positions = _init_positions(H)   # mirrors __init__; unused in forward
    # TODO(synk): utils.meta_rbf(map_dim) (self.rbf) is also unused by forward.

    state = jax.random.normal(ks[5], (B, Cs, H, W), jnp.float32)
    obj = jax.random.normal(ks[6], (B, Co, H, W), jnp.float32)
    text = jax.random.randint(ks[7], (B, T), 0, V, dtype=jnp.int32)

    out = multi_nobases_forward(state, obj, text, params)
    jax.block_until_ready(out)
    assert out.shape == (B, 1, H, W), out.shape
    print("KERNEL_OK")
</pallas_src>

<mosaic_0001>
module attributes {stable_mosaic.version = 11 : i64} {
  func.func @_multi_nobases_kernel(%arg0: memref<2x4x256xf32, #tpu.memory_space<vmem>>, %arg1: memref<2x4x256xf32, #tpu.memory_space<vmem>>, %arg2: memref<2x8xf32, #tpu.memory_space<vmem>>, %arg3: memref<36xf32, #tpu.memory_space<smem>>, %arg4: memref<1xf32, #tpu.memory_space<smem>>, %arg5: memref<288xf32, #tpu.memory_space<smem>>, %arg6: memref<8xf32, #tpu.memory_space<smem>>, %arg7: memref<144xf32, #tpu.memory_space<smem>>, %arg8: memref<8xf32, #tpu.memory_space<smem>>, %arg9: memref<72xf32, #tpu.memory_space<smem>>, %arg10: memref<1xf32, #tpu.memory_space<smem>>, %arg11: memref<2x256xf32, #tpu.memory_space<vmem>>) attributes {dimension_semantics = [], scalar_prefetch = 0 : i64, scratch_operands = 0 : i64, tpu.core_type = #tpu.core_type<tc>} {
    %0 = tpu.iota {dimensions = array<i32: 1>} : vector<1x256xi32>
    %c16_i32 = arith.constant 16 : i32
    %c0_i32 = arith.constant 0 : i32
    %1 = arith.cmpi eq, %c16_i32, %c0_i32 : i32
    %c1_i32 = arith.constant 1 : i32
    %2 = arith.select %1, %c1_i32, %c16_i32 : i32
    %3 = vector.broadcast %2 : i32 to vector<1x256xi32>
    %4 = arith.remsi %0, %3 : vector<1x256xi32>
    %c0_i32_0 = arith.constant 0 : i32
    %5 = vector.broadcast %c0_i32_0 : i32 to vector<1x256xi32>
    %6 = arith.cmpi ne, %4, %5 : vector<1x256xi32>
    %c0_i32_1 = arith.constant 0 : i32
    %7 = vector.broadcast %c0_i32_1 : i32 to vector<1x256xi32>
    %8 = arith.cmpi slt, %4, %7 : vector<1x256xi32>
    %c0_i32_2 = arith.constant 0 : i32
    %9 = arith.cmpi slt, %2, %c0_i32_2 : i32
    %10 = vector.broadcast %9 : i1 to vector<1x256xi1>
    %11 = vector.broadcast %10 : vector<1x256xi1> to vector<1x256xi1>
    %12 = arith.xori %8, %11 : vector<1x256xi1>
    %13 = arith.andi %12, %6 : vector<1x256xi1>
    %14 = vector.broadcast %2 : i32 to vector<1x256xi32>
    %15 = arith.addi %4, %14 : vector<1x256xi32>
    %16 = arith.select %13, %15, %4 : vector<1x256xi1>, vector<1x256xi32>
    %c16_i32_3 = arith.constant 16 : i32
    %17 = vector.broadcast %c16_i32_3 : i32 to vector<1x256xi32>
    %18 = arith.cmpi sge, %0, %17 : vector<1x256xi32>
    %c1_i32_4 = arith.constant 1 : i32
    %19 = vector.broadcast %c1_i32_4 : i32 to vector<1x256xi32>
    %20 = arith.cmpi sge, %16, %19 : vector<1x256xi32>
    %21 = arith.andi %18, %20 : vector<1x256xi1>
    %c16_i32_5 = arith.constant 16 : i32
    %22 = vector.broadcast %c16_i32_5 : i32 to vector<1x256xi32>
    %23 = arith.cmpi sge, %0, %22 : vector<1x256xi32>
    %c16_i32_6 = arith.constant 16 : i32
    %24 = vector.broadcast %c16_i32_6 : i32 to vector<1x256xi32>
    %25 = arith.cmpi sge, %0, %24 : vector<1x256xi32>
    %c14_i32 = arith.constant 14 : i32
    %26 = vector.broadcast %c14_i32 : i32 to vector<1x256xi32>
    %27 = arith.cmpi sle, %16, %26 : vector<1x256xi32>
    %28 = arith.andi %25, %27 : vector<1x256xi1>
    %c1_i32_7 = arith.constant 1 : i32
    %29 = vector.broadcast %c1_i32_7 : i32 to vector<1x256xi32>
    %30 = arith.cmpi sge, %16, %29 : vector<1x256xi32>
    %c14_i32_8 = arith.constant 14 : i32
    %31 = vector.broadcast %c14_i32_8 : i32 to vector<1x256xi32>
    %32 = arith.cmpi sle, %16, %31 : vector<1x256xi32>
    %c240_i32 = arith.constant 240 : i32
    %33 = vector.broadcast %c240_i32 : i32 to vector<1x256xi32>
    %34 = arith.cmpi slt, %0, %33 : vector<1x256xi32>
    %c1_i32_9 = arith.constant 1 : i32
    %35 = vector.broadcast %c1_i32_9 : i32 to vector<1x256xi32>
    %36 = arith.cmpi sge, %16, %35 : vector<1x256xi32>
    %37 = arith.andi %34, %36 : vector<1x256xi1>
    %c240_i32_10 = arith.constant 240 : i32
    %38 = vector.broadcast %c240_i32_10 : i32 to vector<1x256xi32>
    %39 = arith.cmpi slt, %0, %38 : vector<1x256xi32>
    %c240_i32_11 = arith.constant 240 : i32
    %40 = vector.broadcast %c240_i32_11 : i32 to vector<1x256xi32>
    %41 = arith.cmpi slt, %0, %40 : vector<1x256xi32>
    %c14_i32_12 = arith.constant 14 : i32
    %42 = vector.broadcast %c14_i32_12 : i32 to vector<1x256xi32>
    %43 = arith.cmpi sle, %16, %42 : vector<1x256xi32>
    %44 = arith.andi %41, %43 : vector<1x256xi1>
    %c0 = arith.constant 0 : index
    %c0_13 = arith.constant 0 : index
    %c0_14 = arith.constant 0 : index
    %45 = vector.load %arg0[%c0, %c0_13, %c0_14] : memref<2x4x256xf32, #tpu.memory_space<vmem>>, vector<2x4x256xf32>
    %c0_15 = arith.constant 0 : index
    %c0_16 = arith.constant 0 : index
    %c0_17 = arith.constant 0 : index
    %46 = vector.load %arg1[%c0_15, %c0_16, %c0_17] : memref<2x4x256xf32, #tpu.memory_space<vmem>>, vector<2x4x256xf32>
    %47 = vector.extract_strided_slice %45 {offsets = [0, 0, 0], sizes = [2, 1, 256], strides = [1, 1, 1]} : vector<2x4x256xf32> to vector<2x1x256xf32>
    %48 = vector.shape_cast %47 : vector<2x1x256xf32> to vector<2x256xf32>
    %49 = vector.extract_strided_slice %45 {offsets = [0, 1, 0], sizes = [2, 1, 256], strides = [1, 1, 1]} : vector<2x4x256xf32> to vector<2x1x256xf32>
    %50 = vector.shape_cast %49 : vector<2x1x256xf32> to vector<2x256xf32>
    %51 = vector.extract_strided_slice %45 {offsets = [0, 2, 0], sizes = [2, 1, 256], strides = [1, 1, 1]} : vector<2x4x256xf32> to vector<2x1x256xf32>
    %52 = vector.shape_cast %51 : vector<2x1x256xf32> to vector<2x256xf32>
    %53 = vector.extract_strided_slice %45 {offsets = [0, 3, 0], sizes = [2, 1, 256], strides = [1, 1, 1]} : vector<2x4x256xf32> to vector<2x1x256xf32>
    %54 = vector.shape_cast %53 : vector<2x1x256xf32> to vector<2x256xf32>
    %55 = vector.extract_strided_slice %46 {offsets = [0, 0, 0], sizes = [2, 1, 256], strides = [1, 1, 1]} : vector<2x4x256xf32> to vector<2x1x256xf32>
    %56 = vector.shape_cast %55 : vector<2x1x256xf32> to vector<2x256xf32>
    %57 = vector.extract_strided_slice %46 {offsets = [0, 1, 0], sizes = [2, 1, 256], strides = [1, 1, 1]} : vector<2x4x256xf32> to vector<2x1x256xf32>
    %58 = vector.shape_cast %57 : vector<2x1x256xf32> to vector<2x256xf32>
    %59 = vector.extract_strided_slice %46 {offsets = [0, 2, 0], sizes = [2, 1, 256], strides = [1, 1, 1]} : vector<2x4x256xf32> to vector<2x1x256xf32>
    %60 = vector.shape_cast %59 : vector<2x1x256xf32> to vector<2x256xf32>
    %61 = vector.extract_strided_slice %46 {offsets = [0, 3, 0], sizes = [2, 1, 256], strides = [1, 1, 1]} : vector<2x4x256xf32> to vector<2x1x256xf32>
    %62 = vector.shape_cast %61 : vector<2x1x256xf32> to vector<2x256xf32>
    %c0_18 = arith.constant 0 : index
    %63 = memref.load %arg3[%c0_18] : memref<36xf32, #tpu.memory_space<smem>>
    %64 = vector.broadcast %63 : f32 to vector<2x256xf32>
    %65 = arith.mulf %48, %64 : vector<2x256xf32>
    %c1 = arith.constant 1 : index
    %66 = memref.load %arg3[%c1] : memref<36xf32, #tpu.memory_space<smem>>
    %67 = vector.broadcast %66 : f32 to vector<2x256xf32>
    %68 = arith.mulf %50, %67 : vector<2x256xf32>
    %69 = arith.addf %65, %68 : vector<2x256xf32>
    %c2 = arith.constant 2 : index
    %70 = memref.load %arg3[%c2] : memref<36xf32, #tpu.memory_space<smem>>
    %71 = vector.broadcast %70 : f32 to vector<2x256xf32>
    %72 = arith.mulf %52, %71 : vector<2x256xf32>
    %73 = arith.addf %69, %72 : vector<2x256xf32>
    %c3 = arith.constant 3 : index
    %74 = memref.load %arg3[%c3] : memref<36xf32, #tpu.memory_space<smem>>
    %75 = vector.broadcast %74 : f32 to vector<2x256xf32>
    %76 = arith.mulf %54, %75 : vector<2x256xf32>
    %77 = arith.addf %73, %76 : vector<2x256xf32>
    %78 = vector.extract_strided_slice %77 {offsets = [0, 239], sizes = [2, 17], strides = [1, 1]} : vector<2x256xf32> to vector<2x17xf32>
    %79 = vector.extract_strided_slice %77 {offsets = [0, 0], sizes = [2, 239], strides = [1, 1]} : vector<2x256xf32> to vector<2x239xf32>
    %80 = tpu.concatenate %78, %79 in 1 : vector<2x17xf32>, vector<2x239xf32> -> vector<2x256xf32>
    %cst = arith.constant 0.000000e+00 : f32
    %81 = vector.shape_cast %21 : vector<1x256xi1> to vector<1x256xi1>
    %82 = vector.broadcast %81 : vector<1x256xi1> to vector<2x256xi1>
    %83 = vector.broadcast %cst : f32 to vector<2x256xf32>
    %84 = arith.select %82, %80, %83 : vector<2x256xi1>, vector<2x256xf32>
    %c4 = arith.constant 4 : index
    %85 = memref.load %arg3[%c4] : memref<36xf32, #tpu.memory_space<smem>>
    %86 = vector.broadcast %85 : f32 to vector<2x256xf32>
    %87 = arith.mulf %48, %86 : vector<2x256xf32>
    %c5 = arith.constant 5 : index
    %88 = memref.load %arg3[%c5] : memref<36xf32, #tpu.memory_space<smem>>
    %89 = vector.broadcast %88 : f32 to vector<2x256xf32>
    %90 = arith.mulf %50, %89 : vector<2x256xf32>
    %91 = arith.addf %87, %90 : vector<2x256xf32>
    %c6 = arith.constant 6 : index
    %92 = memref.load %arg3[%c6] : memref<36xf32, #tpu.memory_space<smem>>
    %93 = vector.broadcast %92 : f32 to vector<2x256xf32>
    %94 = arith.mulf %52, %93 : vector<2x256xf32>
    %95 = arith.addf %91, %94 : vector<2x256xf32>
    %c7 = arith.constant 7 : index
    %96 = memref.load %arg3[%c7] : memref<36xf32, #tpu.memory_space<smem>>
    %97 = vector.broadcast %96 : f32 to vector<2x256xf32>
    %98 = arith.mulf %54, %97 : vector<2x256xf32>
    %99 = arith.addf %95, %98 : vector<2x256xf32>
    %100 = vector.extract_strided_slice %99 {offsets = [0, 240], sizes = [2, 16], strides = [1, 1]} : vector<2x256xf32> to vector<2x16xf32>
    %101 = vector.extract_strided_slice %99 {offsets = [0, 0], sizes = [2, 240], strides = [1, 1]} : vector<2x256xf32> to vector<2x240xf32>
    %102 = tpu.concatenate %100, %101 in 1 : vector<2x16xf32>, vector<2x240xf32> -> vector<2x256xf32>
    %cst_19 = arith.constant 0.000000e+00 : f32
    %103 = vector.shape_cast %23 : vector<1x256xi1> to vector<1x256xi1>
    %104 = vector.broadcast %103 : vector<1x256xi1> to vector<2x256xi1>
    %105 = vector.broadcast %cst_19 : f32 to vector<2x256xf32>
    %106 = arith.select %104, %102, %105 : vector<2x256xi1>, vector<2x256xf32>
    %107 = arith.addf %84, %106 : vector<2x256xf32>
    %c8 = arith.constant 8 : index
    %108 = memref.load %arg3[%c8] : memref<36xf32, #tpu.memory_space<smem>>
    %109 = vector.broadcast %108 : f32 to vector<2x256xf32>
    %110 = arith.mulf %48, %109 : vector<2x256xf32>
    %c9 = arith.constant 9 : index
    %111 = memref.load %arg3[%c9] : memref<36xf32, #tpu.memory_space<smem>>
    %112 = vector.broadcast %111 : f32 to vector<2x256xf32>
    %113 = arith.mulf %50, %112 : vector<2x256xf32>
    %114 = arith.addf %110, %113 : vector<2x256xf32>
    %c10 = arith.constant 10 : index
    %115 = memref.load %arg3[%c10] : memref<36xf32, #tpu.memory_space<smem>>
    %116 = vector.broadcast %115 : f32 to vector<2x256xf32>
    %117 = arith.mulf %52, %116 : vector<2x256xf32>
    %118 = arith.addf %114, %117 : vector<2x256xf32>
    %c11 = arith.constant 11 : index
    %119 = memref.load %arg3[%c11] : memref<36xf32, #tpu.memory_space<smem>>
    %120 = vector.broadcast %119 : f32 to vector<2x256xf32>
    %121 = arith.mulf %54, %120 : vector<2x256xf32>
    %122 = arith.addf %118, %121 : vector<2x256xf32>
    %123 = vector.extract_strided_slice %122 {offsets = [0, 241], sizes = [2, 15], strides = [1, 1]} : vector<2x256xf32> to vector<2x15xf32>
    %124 = vector.extract_strided_slice %122 {offsets = [0, 0], sizes = [2, 241], strides = [1, 1]} : vector<2x256xf32> to vector<2x241xf32>
    %125 = tpu.concatenate %123, %124 in 1 : vector<2x15xf32>, vector<2x241xf32> -> vector<2x256xf32>
    %cst_20 = arith.constant 0.000000e+00 : f32
    %126 = vector.shape_cast %28 : vector<1x256xi1> to vector<1x256xi1>
    %127 = vector.broadcast %126 : vector<1x256xi1> to vector<2x256xi1>
    %128 = vector.broadcast %cst_20 : f32 to vector<2x256xf32>
    %129 = arith.select %127, %125, %128 : vector<2x256xi1>, vector<2x256xf32>
    %130 = arith.addf %107, %129 : vector<2x256xf32>
    %c12 = arith.constant 12 : index
    %131 = memref.load %arg3[%c12] : memref<36xf32, #tpu.memory_space<smem>>
    %132 = vector.broadcast %131 : f32 to vector<2x256xf32>
    %133 = arith.mulf %48, %132 : vector<2x256xf32>
    %c13 = arith.constant 13 : index
    %134 = memref.load %arg3[%c13] : memref<36xf32, #tpu.memory_space<smem>>
    %135 = vector.broadcast %134 : f32 to vector<2x256xf32>
    %136 = arith.mulf %50, %135 : vector<2x256xf32>
    %137 = arith.addf %133, %136 : vector<2x256xf32>
    %c14 = arith.constant 14 : index
    %138 = memref.load %arg3[%c14] : memref<36xf32, #tpu.memory_space<smem>>
    %139 = vector.broadcast %138 : f32 to vector<2x256xf32>
    %140 = arith.mulf %52, %139 : vector<2x256xf32>
    %141 = arith.addf %137, %140 : vector<2x256xf32>
    %c15 = arith.constant 15 : index
    %142 = memref.load %arg3[%c15] : memref<36xf32, #tpu.memory_space<smem>>
    %143 = vector.broadcast %142 : f32 to vector<2x256xf32>
    %144 = arith.mulf %54, %143 : vector<2x256xf32>
    %145 = arith.addf %141, %144 : vector<2x256xf32>
    %146 = vector.extract_strided_slice %145 {offsets = [0, 255], sizes = [2, 1], strides = [1, 1]} : vector<2x256xf32> to vector<2x1xf32>
    %147 = vector.extract_strided_slice %145 {offsets = [0, 0], sizes = [2, 255], strides = [1, 1]} : vector<2x256xf32> to vector<2x255xf32>
    %148 = tpu.concatenate %146, %147 in 1 : vector<2x1xf32>, vector<2x255xf32> -> vector<2x256xf32>
    %cst_21 = arith.constant 0.000000e+00 : f32
    %149 = vector.shape_cast %30 : vector<1x256xi1> to vector<1x256xi1>
    %150 = vector.broadcast %149 : vector<1x256xi1> to vector<2x256xi1>
    %151 = vector.broadcast %cst_21 : f32 to vector<2x256xf32>
    %152 = arith.select %150, %148, %151 : vector<2x256xi1>, vector<2x256xf32>
    %153 = arith.addf %130, %152 : vector<2x256xf32>
    %c16 = arith.constant 16 : index
    %154 = memref.load %arg3[%c16] : memref<36xf32, #tpu.memory_space<smem>>
    %155 = vector.broadcast %154 : f32 to vector<2x256xf32>
    %156 = arith.mulf %48, %155 : vector<2x256xf32>
    %c17 = arith.constant 17 : index
    %157 = memref.load %arg3[%c17] : memref<36xf32, #tpu.memory_space<smem>>
    %158 = vector.broadcast %157 : f32 to vector<2x256xf32>
    %159 = arith.mulf %50, %158 : vector<2x256xf32>
    %160 = arith.addf %156, %159 : vector<2x256xf32>
    %c18 = arith.constant 18 : index
    %161 = memref.load %arg3[%c18] : memref<36xf32, #tpu.memory_space<smem>>
    %162 = vector.broadcast %161 : f32 to vector<2x256xf32>
    %163 = arith.mulf %52, %162 : vector<2x256xf32>
    %164 = arith.addf %160, %163 : vector<2x256xf32>
    %c19 = arith.constant 19 : index
    %165 = memref.load %arg3[%c19] : memref<36xf32, #tpu.memory_space<smem>>
    %166 = vector.broadcast %165 : f32 to vector<2x256xf32>
    %167 = arith.mulf %54, %166 : vector<2x256xf32>
    %168 = arith.addf %164, %167 : vector<2x256xf32>
    %169 = arith.addf %153, %168 : vector<2x256xf32>
    %c20 = arith.constant 20 : index
    %170 = memref.load %arg3[%c20] : memref<36xf32, #tpu.memory_space<smem>>
    %171 = vector.broadcast %170 : f32 to vector<2x256xf32>
    %172 = arith.mulf %48, %171 : vector<2x256xf32>
    %c21 = arith.constant 21 : index
    %173 = memref.load %arg3[%c21] : memref<36xf32, #tpu.memory_space<smem>>
    %174 = vector.broadcast %173 : f32 to vector<2x256xf32>
    %175 = arith.mulf %50, %174 : vector<2x256xf32>
    %176 = arith.addf %172, %175 : vector<2x256xf32>
    %c22 = arith.constant 22 : index
    %177 = memref.load %arg3[%c22] : memref<36xf32, #tpu.memory_space<smem>>
    %178 = vector.broadcast %177 : f32 to vector<2x256xf32>
    %179 = arith.mulf %52, %178 : vector<2x256xf32>
    %180 = arith.addf %176, %179 : vector<2x256xf32>
    %c23 = arith.constant 23 : index
    %181 = memref.load %arg3[%c23] : memref<36xf32, #tpu.memory_space<smem>>
    %182 = vector.broadcast %181 : f32 to vector<2x256xf32>
    %183 = arith.mulf %54, %182 : vector<2x256xf32>
    %184 = arith.addf %180, %183 : vector<2x256xf32>
    %185 = vector.extract_strided_slice %184 {offsets = [0, 1], sizes = [2, 255], strides = [1, 1]} : vector<2x256xf32> to vector<2x255xf32>
    %186 = vector.extract_strided_slice %184 {offsets = [0, 0], sizes = [2, 1], strides = [1, 1]} : vector<2x256xf32> to vector<2x1xf32>
    %187 = tpu.concatenate %185, %186 in 1 : vector<2x255xf32>, vector<2x1xf32> -> vector<2x256xf32>
    %cst_22 = arith.constant 0.000000e+00 : f32
    %188 = vector.shape_cast %32 : vector<1x256xi1> to vector<1x256xi1>
    %189 = vector.broadcast %188 : vector<1x256xi1> to vector<2x256xi1>
    %190 = vector.broadcast %cst_22 : f32 to vector<2x256xf32>
    %191 = arith.select %189, %187, %190 : vector<2x256xi1>, vector<2x256xf32>
    %192 = arith.addf %169, %191 : vector<2x256xf32>
    %c24 = arith.constant 24 : index
    %193 = memref.load %arg3[%c24] : memref<36xf32, #tpu.memory_space<smem>>
    %194 = vector.broadcast %193 : f32 to vector<2x256xf32>
    %195 = arith.mulf %48, %194 : vector<2x256xf32>
    %c25 = arith.constant 25 : index
    %196 = memref.load %arg3[%c25] : memref<36xf32, #tpu.memory_space<smem>>
    %197 = vector.broadcast %196 : f32 to vector<2x256xf32>
    %198 = arith.mulf %50, %197 : vector<2x256xf32>
    %199 = arith.addf %195, %198 : vector<2x256xf32>
    %c26 = arith.constant 26 : index
    %200 = memref.load %arg3[%c26] : memref<36xf32, #tpu.memory_space<smem>>
    %201 = vector.broadcast %200 : f32 to vector<2x256xf32>
    %202 = arith.mulf %52, %201 : vector<2x256xf32>
    %203 = arith.addf %199, %202 : vector<2x256xf32>
    %c27 = arith.constant 27 : index
    %204 = memref.load %arg3[%c27] : memref<36xf32, #tpu.memory_space<smem>>
    %205 = vector.broadcast %204 : f32 to vector<2x256xf32>
    %206 = arith.mulf %54, %205 : vector<2x256xf32>
    %207 = arith.addf %203, %206 : vector<2x256xf32>
    %208 = vector.extract_strided_slice %207 {offsets = [0, 15], sizes = [2, 241], strides = [1, 1]} : vector<2x256xf32> to vector<2x241xf32>
    %209 = vector.extract_strided_slice %207 {offsets = [0, 0], sizes = [2, 15], strides = [1, 1]} : vector<2x256xf32> to vector<2x15xf32>
    %210 = tpu.concatenate %208, %209 in 1 : vector<2x241xf32>, vector<2x15xf32> -> vector<2x256xf32>
    %cst_23 = arith.constant 0.000000e+00 : f32
    %211 = vector.shape_cast %37 : vector<1x256xi1> to vector<1x256xi1>
    %212 = vector.broadcast %211 : vector<1x256xi1> to vector<2x256xi1>
    %213 = vector.broadcast %cst_23 : f32 to vector<2x256xf32>
    %214 = arith.select %212, %210, %213 : vector<2x256xi1>, vector<2x256xf32>
    %215 = arith.addf %192, %214 : vector<2x256xf32>
    %c28 = arith.constant 28 : index
    %216 = memref.load %arg3[%c28] : memref<36xf32, #tpu.memory_space<smem>>
    %217 = vector.broadcast %216 : f32 to vector<2x256xf32>
    %218 = arith.mulf %48, %217 : vector<2x256xf32>
    %c29 = arith.constant 29 : index
    %219 = memref.load %arg3[%c29] : memref<36xf32, #tpu.memory_space<smem>>
    %220 = vector.broadcast %219 : f32 to vector<2x256xf32>
    %221 = arith.mulf %50, %220 : vector<2x256xf32>
    %222 = arith.addf %218, %221 : vector<2x256xf32>
    %c30 = arith.constant 30 : index
    %223 = memref.load %arg3[%c30] : memref<36xf32, #tpu.memory_space<smem>>
    %224 = vector.broadcast %223 : f32 to vector<2x256xf32>
    %225 = arith.mulf %52, %224 : vector<2x256xf32>
    %226 = arith.addf %222, %225 : vector<2x256xf32>
    %c31 = arith.constant 31 : index
    %227 = memref.load %arg3[%c31] : memref<36xf32, #tpu.memory_space<smem>>
    %228 = vector.broadcast %227 : f32 to vector<2x256xf32>
    %229 = arith.mulf %54, %228 : vector<2x256xf32>
    %230 = arith.addf %226, %229 : vector<2x256xf32>
    %231 = vector.extract_strided_slice %230 {offsets = [0, 16], sizes = [2, 240], strides = [1, 1]} : vector<2x256xf32> to vector<2x240xf32>
    %232 = vector.extract_strided_slice %230 {offsets = [0, 0], sizes = [2, 16], strides = [1, 1]} : vector<2x256xf32> to vector<2x16xf32>
    %233 = tpu.concatenate %231, %232 in 1 : vector<2x240xf32>, vector<2x16xf32> -> vector<2x256xf32>
    %cst_24 = arith.constant 0.000000e+00 : f32
    %234 = vector.shape_cast %39 : vector<1x256xi1> to vector<1x256xi1>
    %235 = vector.broadcast %234 : vector<1x256xi1> to vector<2x256xi1>
    %236 = vector.broadcast %cst_24 : f32 to vector<2x256xf32>
    %237 = arith.select %235, %233, %236 : vector<2x256xi1>, vector<2x256xf32>
    %238 = arith.addf %215, %237 : vector<2x256xf32>
    %c32 = arith.constant 32 : index
    %239 = memref.load %arg3[%c32] : memref<36xf32, #tpu.memory_space<smem>>
    %240 = vector.broadcast %239 : f32 to vector<2x256xf32>
    %241 = arith.mulf %48, %240 : vector<2x256xf32>
    %c33 = arith.constant 33 : index
    %242 = memref.load %arg3[%c33] : memref<36xf32, #tpu.memory_space<smem>>
    %243 = vector.broadcast %242 : f32 to vector<2x256xf32>
    %244 = arith.mulf %50, %243 : vector<2x256xf32>
    %245 = arith.addf %241, %244 : vector<2x256xf32>
    %c34 = arith.constant 34 : index
    %246 = memref.load %arg3[%c34] : memref<36xf32, #tpu.memory_space<smem>>
    %247 = vector.broadcast %246 : f32 to vector<2x256xf32>
    %248 = arith.mulf %52, %247 : vector<2x256xf32>
    %249 = arith.addf %245, %248 : vector<2x256xf32>
    %c35 = arith.constant 35 : index
    %250 = memref.load %arg3[%c35] : memref<36xf32, #tpu.memory_space<smem>>
    %251 = vector.broadcast %250 : f32 to vector<2x256xf32>
    %252 = arith.mulf %54, %251 : vector<2x256xf32>
    %253 = arith.addf %249, %252 : vector<2x256xf32>
    %254 = vector.extract_strided_slice %253 {offsets = [0, 17], sizes = [2, 239], strides = [1, 1]} : vector<2x256xf32> to vector<2x239xf32>
    %255 = vector.extract_strided_slice %253 {offsets = [0, 0], sizes = [2, 17], strides = [1, 1]} : vector<2x256xf32> to vector<2x17xf32>
    %256 = tpu.concatenate %254, %255 in 1 : vector<2x239xf32>, vector<2x17xf32> -> vector<2x256xf32>
    %cst_25 = arith.constant 0.000000e+00 : f32
    %257 = vector.shape_cast %44 : vector<1x256xi1> to vector<1x256xi1>
    %258 = vector.broadcast %257 : vector<1x256xi1> to vector<2x256xi1>
    %259 = vector.broadcast %cst_25 : f32 to vector<2x256xf32>
    %260 = arith.select %258, %256, %259 : vector<2x256xi1>, vector<2x256xf32>
    %261 = arith.addf %238, %260 : vector<2x256xf32>
    %c0_26 = arith.constant 0 : index
    %262 = memref.load %arg4[%c0_26] : memref<1xf32, #tpu.memory_space<smem>>
    %263 = vector.broadcast %262 : f32 to vector<2x256xf32>
    %264 = arith.addf %261, %263 : vector<2x256xf32>
    %cst_27 = arith.constant 0.000000e+00 : f32
    %265 = vector.broadcast %cst_27 : f32 to vector<2x256xf32>
    %266 = arith.maximumf %264, %265 : vector<2x256xf32>
    %267 = vector.extract_strided_slice %56 {offsets = [0, 239], sizes = [2, 17], strides = [1, 1]} : vector<2x256xf32> to vector<2x17xf32>
    %268 = vector.extract_strided_slice %56 {offsets = [0, 0], sizes = [2, 239], strides = [1, 1]} : vector<2x256xf32> to vector<2x239xf32>
    %269 = tpu.concatenate %267, %268 in 1 : vector<2x17xf32>, vector<2x239xf32> -> vector<2x256xf32>
    %cst_28 = arith.constant 0.000000e+00 : f32
    %270 = vector.shape_cast %21 : vector<1x256xi1> to vector<1x256xi1>
    %271 = vector.broadcast %270 : vector<1x256xi1> to vector<2x256xi1>
    %272 = vector.broadcast %cst_28 : f32 to vector<2x256xf32>
    %273 = arith.select %271, %269, %272 : vector<2x256xi1>, vector<2x256xf32>
    %274 = vector.extract_strided_slice %56 {offsets = [0, 240], sizes = [2, 16], strides = [1, 1]} : vector<2x256xf32> to vector<2x16xf32>
    %275 = vector.extract_strided_slice %56 {offsets = [0, 0], sizes = [2, 240], strides = [1, 1]} : vector<2x256xf32> to vector<2x240xf32>
    %276 = tpu.concatenate %274, %275 in 1 : vector<2x16xf32>, vector<2x240xf32> -> vector<2x256xf32>
    %cst_29 = arith.constant 0.000000e+00 : f32
    %277 = vector.shape_cast %23 : vector<1x256xi1> to vector<1x256xi1>
    %278 = vector.broadcast %277 : vector<1x256xi1> to vector<2x256xi1>
    %279 = vector.broadcast %cst_29 : f32 to vector<2x256xf32>
    %280 = arith.select %278, %276, %279 : vector<2x256xi1>, vector<2x256xf32>
    %281 = vector.extract_strided_slice %56 {offsets = [0, 241], sizes = [2, 15], strides = [1, 1]} : vector<2x256xf32> to vector<2x15xf32>
    %282 = vector.extract_strided_slice %56 {offsets = [0, 0], sizes = [2, 241], strides = [1, 1]} : vector<2x256xf32> to vector<2x241xf32>
    %283 = tpu.concatenate %281, %282 in 1 : vector<2x15xf32>, vector<2x241xf32> -> vector<2x256xf32>
    %cst_30 = arith.constant 0.000000e+00 : f32
    %284 = vector.shape_cast %28 : vector<1x256xi1> to vector<1x256xi1>
    %285 = vector.broadcast %284 : vector<1x256xi1> to vector<2x256xi1>
    %286 = vector.broadcast %cst_30 : f32 to vector<2x256xf32>
    %287 = arith.select %285, %283, %286 : vector<2x256xi1>, vector<2x256xf32>
    %288 = vector.extract_strided_slice %56 {offsets = [0, 255], sizes = [2, 1], strides = [1, 1]} : vector<2x256xf32> to vector<2x1xf32>
    %289 = vector.extract_strided_slice %56 {offsets = [0, 0], sizes = [2, 255], strides = [1, 1]} : vector<2x256xf32> to vector<2x255xf32>
    %290 = tpu.concatenate %288, %289 in 1 : vector<2x1xf32>, vector<2x255xf32> -> vector<2x256xf32>
    %cst_31 = arith.constant 0.000000e+00 : f32
    %291 = vector.shape_cast %30 : vector<1x256xi1> to vector<1x256xi1>
    %292 = vector.broadcast %291 : vector<1x256xi1> to vector<2x256xi1>
    %293 = vector.broadcast %cst_31 : f32 to vector<2x256xf32>
    %294 = arith.select %292, %290, %293 : vector<2x256xi1>, vector<2x256xf32>
    %295 = vector.extract_strided_slice %56 {offsets = [0, 1], sizes = [2, 255], strides = [1, 1]} : vector<2x256xf32> to vector<2x255xf32>
    %296 = vector.extract_strided_slice %56 {offsets = [0, 0], sizes = [2, 1], strides = [1, 1]} : vector<2x256xf32> to vector<2x1xf32>
    %297 = tpu.concatenate %295, %296 in 1 : vector<2x255xf32>, vector<2x1xf32> -> vector<2x256xf32>
    %cst_32 = arith.constant 0.000000e+00 : f32
    %298 = vector.shape_cast %32 : vector<1x256xi1> to vector<1x256xi1>
    %299 = vector.broadcast %298 : vector<1x256xi1> to vector<2x256xi1>
    %300 = vector.broadcast %cst_32 : f32 to vector<2x256xf32>
    %301 = arith.select %299, %297, %300 : vector<2x256xi1>, vector<2x256xf32>
    %302 = vector.extract_strided_slice %56 {offsets = [0, 15], sizes = [2, 241], strides = [1, 1]} : vector<2x256xf32> to vector<2x241xf32>
    %303 = vector.extract_strided_slice %56 {offsets = [0, 0], sizes = [2, 15], strides = [1, 1]} : vector<2x256xf32> to vector<2x15xf32>
    %304 = tpu.concatenate %302, %303 in 1 : vector<2x241xf32>, vector<2x15xf32> -> vector<2x256xf32>
    %cst_33 = arith.constant 0.000000e+00 : f32
    %305 = vector.shape_cast %37 : vector<1x256xi1> to vector<1x256xi1>
    %306 = vector.broadcast %305 : vector<1x256xi1> to vector<2x256xi1>
    %307 = vector.broadcast %cst_33 : f32 to vector<2x256xf32>
    %308 = arith.select %306, %304, %307 : vector<2x256xi1>, vector<2x256xf32>
    %309 = vector.extract_strided_slice %56 {offsets = [0, 16], sizes = [2, 240], strides = [1, 1]} : vector<2x256xf32> to vector<2x240xf32>
    %310 = vector.extract_strided_slice %56 {offsets = [0, 0], sizes = [2, 16], strides = [1, 1]} : vector<2x256xf32> to vector<2x16xf32>
    %311 = tpu.concatenate %309, %310 in 1 : vector<2x240xf32>, vector<2x16xf32> -> vector<2x256xf32>
    %cst_34 = arith.constant 0.000000e+00 : f32
    %312 = vector.shape_cast %39 : vector<1x256xi1> to vector<1x256xi1>
    %313 = vector.broadcast %312 : vector<1x256xi1> to vector<2x256xi1>
    %314 = vector.broadcast %cst_34 : f32 to vector<2x256xf32>
    %315 = arith.select %313, %311, %314 : vector<2x256xi1>, vector<2x256xf32>
    %316 = vector.extract_strided_slice %56 {offsets = [0, 17], sizes = [2, 239], strides = [1, 1]} : vector<2x256xf32> to vector<2x239xf32>
    %317 = vector.extract_strided_slice %56 {offsets = [0, 0], sizes = [2, 17], strides = [1, 1]} : vector<2x256xf32> to vector<2x17xf32>
    %318 = tpu.concatenate %316, %317 in 1 : vector<2x239xf32>, vector<2x17xf32> -> vector<2x256xf32>
    %cst_35 = arith.constant 0.000000e+00 : f32
    %319 = vector.shape_cast %44 : vector<1x256xi1> to vector<1x256xi1>
    %320 = vector.broadcast %319 : vector<1x256xi1> to vector<2x256xi1>
    %321 = vector.broadcast %cst_35 : f32 to vector<2x256xf32>
    %322 = arith.select %320, %318, %321 : vector<2x256xi1>, vector<2x256xf32>
    %323 = vector.extract_strided_slice %58 {offsets = [0, 239], sizes = [2, 17], strides = [1, 1]} : vector<2x256xf32> to vector<2x17xf32>
    %324 = vector.extract_strided_slice %58 {offsets = [0, 0], sizes = [2, 239], strides = [1, 1]} : vector<2x256xf32> to vector<2x239xf32>
    %325 = tpu.concatenate %323, %324 in 1 : vector<2x17xf32>, vector<2x239xf32> -> vector<2x256xf32>
    %cst_36 = arith.constant 0.000000e+00 : f32
    %326 = vector.shape_cast %21 : vector<1x256xi1> to vector<1x256xi1>
    %327 = vector.broadcast %326 : vector<1x256xi1> to vector<2x256xi1>
    %328 = vector.broadcast %cst_36 : f32 to vector<2x256xf32>
    %329 = arith.select %327, %325, %328 : vector<2x256xi1>, vector<2x256xf32>
    %330 = vector.extract_strided_slice %58 {offsets = [0, 240], sizes = [2, 16], strides = [1, 1]} : vector<2x256xf32> to vector<2x16xf32>
    %331 = vector.extract_strided_slice %58 {offsets = [0, 0], sizes = [2, 240], strides = [1, 1]} : vector<2x256xf32> to vector<2x240xf32>
    %332 = tpu.concatenate %330, %331 in 1 : vector<2x16xf32>, vector<2x240xf32> -> vector<2x256xf32>
    %cst_37 = arith.constant 0.000000e+00 : f32
    %333 = vector.shape_cast %23 : vector<1x256xi1> to vector<1x256xi1>
    %334 = vector.broadcast %333 : vector<1x256xi1> to vector<2x256xi1>
    %335 = vector.broadcast %cst_37 : f32 to vector<2x256xf32>
    %336 = arith.select %334, %332, %335 : vector<2x256xi1>, vector<2x256xf32>
    %337 = vector.extract_strided_slice %58 {offsets = [0, 241], sizes = [2, 15], strides = [1, 1]} : vector<2x256xf32> to vector<2x15xf32>
    %338 = vector.extract_strided_slice %58 {offsets = [0, 0], sizes = [2, 241], strides = [1, 1]} : vector<2x256xf32> to vector<2x241xf32>
    %339 = tpu.concatenate %337, %338 in 1 : vector<2x15xf32>, vector<2x241xf32> -> vector<2x256xf32>
    %cst_38 = arith.constant 0.000000e+00 : f32
    %340 = vector.shape_cast %28 : vector<1x256xi1> to vector<1x256xi1>
    %341 = vector.broadcast %340 : vector<1x256xi1> to vector<2x256xi1>
    %342 = vector.broadcast %cst_38 : f32 to vector<2x256xf32>
    %343 = arith.select %341, %339, %342 : vector<2x256xi1>, vector<2x256xf32>
    %344 = vector.extract_strided_slice %58 {offsets = [0, 255], sizes = [2, 1], strides = [1, 1]} : vector<2x256xf32> to vector<2x1xf32>
    %345 = vector.extract_strided_slice %58 {offsets = [0, 0], sizes = [2, 255], strides = [1, 1]} : vector<2x256xf32> to vector<2x255xf32>
    %346 = tpu.concatenate %344, %345 in 1 : vector<2x1xf32>, vector<2x255xf32> -> vector<2x256xf32>
    %cst_39 = arith.constant 0.000000e+00 : f32
    %347 = vector.shape_cast %30 : vector<1x256xi1> to vector<1x256xi1>
    %348 = vector.broadcast %347 : vector<1x256xi1> to vector<2x256xi1>
    %349 = vector.broadcast %cst_39 : f32 to vector<2x256xf32>
    %350 = arith.select %348, %346, %349 : vector<2x256xi1>, vector<2x256xf32>
    %351 = vector.extract_strided_slice %58 {offsets = [0, 1], sizes = [2, 255], strides = [1, 1]} : vector<2x256xf32> to vector<2x255xf32>
    %352 = vector.extract_strided_slice %58 {offsets = [0, 0], sizes = [2, 1], strides = [1, 1]} : vector<2x256xf32> to vector<2x1xf32>
    %353 = tpu.concatenate %351, %352 in 1 : vector<2x255xf32>, vector<2x1xf32> -> vector<2x256xf32>
    %cst_40 = arith.constant 0.000000e+00 : f32
    %354 = vector.shape_cast %32 : vector<1x256xi1> to vector<1x256xi1>
    %355 = vector.broadcast %354 : vector<1x256xi1> to vector<2x256xi1>
    %356 = vector.broadcast %cst_40 : f32 to vector<2x256xf32>
    %357 = arith.select %355, %353, %356 : vector<2x256xi1>, vector<2x256xf32>
    %358 = vector.extract_strided_slice %58 {offsets = [0, 15], sizes = [2, 241], strides = [1, 1]} : vector<2x256xf32> to vector<2x241xf32>
    %359 = vector.extract_strided_slice %58 {offsets = [0, 0], sizes = [2, 15], strides = [1, 1]} : vector<2x256xf32> to vector<2x15xf32>
    %360 = tpu.concatenate %358, %359 in 1 : vector<2x241xf32>, vector<2x15xf32> -> vector<2x256xf32>
    %cst_41 = arith.constant 0.000000e+00 : f32
    %361 = vector.shape_cast %37 : vector<1x256xi1> to vector<1x256xi1>
    %362 = vector.broadcast %361 : vector<1x256xi1> to vector<2x256xi1>
    %363 = vector.broadcast %cst_41 : f32 to vector<2x256xf32>
    %364 = arith.select %362, %360, %363 : vector<2x256xi1>, vector<2x256xf32>
    %365 = vector.extract_strided_slice %58 {offsets = [0, 16], sizes = [2, 240], strides = [1, 1]} : vector<2x256xf32> to vector<2x240xf32>
    %366 = vector.extract_strided_slice %58 {offsets = [0, 0], sizes = [2, 16], strides = [1, 1]} : vector<2x256xf32> to vector<2x16xf32>
    %367 = tpu.concatenate %365, %366 in 1 : vector<2x240xf32>, vector<2x16xf32> -> vector<2x256xf32>
    %cst_42 = arith.constant 0.000000e+00 : f32
    %368 = vector.shape_cast %39 : vector<1x256xi1> to vector<1x256xi1>
    %369 = vector.broadcast %368 : vector<1x256xi1> to vector<2x256xi1>
    %370 = vector.broadcast %cst_42 : f32 to vector<2x256xf32>
    %371 = arith.select %369, %367, %370 : vector<2x256xi1>, vector<2x256xf32>
    %372 = vector.extract_strided_slice %58 {offsets = [0, 17], sizes = [2, 239], strides = [1, 1]} : vector<2x256xf32> to vector<2x239xf32>
    %373 = vector.extract_strided_slice %58 {offsets = [0, 0], sizes = [2, 17], strides = [1, 1]} : vector<2x256xf32> to vector<2x17xf32>
    %374 = tpu.concatenate %372, %373 in 1 : vector<2x239xf32>, vector<2x17xf32> -> vector<2x256xf32>
    %cst_43 = arith.constant 0.000000e+00 : f32
    %375 = vector.shape_cast %44 : vector<1x256xi1> to vector<1x256xi1>
    %376 = vector.broadcast %375 : vector<1x256xi1> to vector<2x256xi1>
    %377 = vector.broadcast %cst_43 : f32 to vector<2x256xf32>
    %378 = arith.select %376, %374, %377 : vector<2x256xi1>, vector<2x256xf32>
    %379 = vector.extract_strided_slice %60 {offsets = [0, 239], sizes = [2, 17], strides = [1, 1]} : vector<2x256xf32> to vector<2x17xf32>
    %380 = vector.extract_strided_slice %60 {offsets = [0, 0], sizes = [2, 239], strides = [1, 1]} : vector<2x256xf32> to vector<2x239xf32>
    %381 = tpu.concatenate %379, %380 in 1 : vector<2x17xf32>, vector<2x239xf32> -> vector<2x256xf32>
    %cst_44 = arith.constant 0.000000e+00 : f32
    %382 = vector.shape_cast %21 : vector<1x256xi1> to vector<1x256xi1>
    %383 = vector.broadcast %382 : vector<1x256xi1> to vector<2x256xi1>
    %384 = vector.broadcast %cst_44 : f32 to vector<2x256xf32>
    %385 = arith.select %383, %381, %384 : vector<2x256xi1>, vector<2x256xf32>
    %386 = vector.extract_strided_slice %60 {offsets = [0, 240], sizes = [2, 16], strides = [1, 1]} : vector<2x256xf32> to vector<2x16xf32>
    %387 = vector.extract_strided_slice %60 {offsets = [0, 0], sizes = [2, 240], strides = [1, 1]} : vector<2x256xf32> to vector<2x240xf32>
    %388 = tpu.concatenate %386, %387 in 1 : vector<2x16xf32>, vector<2x240xf32> -> vector<2x256xf32>
    %cst_45 = arith.constant 0.000000e+00 : f32
    %389 = vector.shape_cast %23 : vector<1x256xi1> to vector<1x256xi1>
    %390 = vector.broadcast %389 : vector<1x256xi1> to vector<2x256xi1>
    %391 = vector.broadcast %cst_45 : f32 to vector<2x256xf32>
    %392 = arith.select %390, %388, %391 : vector<2x256xi1>, vector<2x256xf32>
    %393 = vector.extract_strided_slice %60 {offsets = [0, 241], sizes = [2, 15], strides = [1, 1]} : vector<2x256xf32> to vector<2x15xf32>
    %394 = vector.extract_strided_slice %60 {offsets = [0, 0], sizes = [2, 241], strides = [1, 1]} : vector<2x256xf32> to vector<2x241xf32>
    %395 = tpu.concatenate %393, %394 in 1 : vector<2x15xf32>, vector<2x241xf32> -> vector<2x256xf32>
    %cst_46 = arith.constant 0.000000e+00 : f32
    %396 = vector.shape_cast %28 : vector<1x256xi1> to vector<1x256xi1>
    %397 = vector.broadcast %396 : vector<1x256xi1> to vector<2x256xi1>
    %398 = vector.broadcast %cst_46 : f32 to vector<2x256xf32>
    %399 = arith.select %397, %395, %398 : vector<2x256xi1>, vector<2x256xf32>
    %400 = vector.extract_strided_slice %60 {offsets = [0, 255], sizes = [2, 1], strides = [1, 1]} : vector<2x256xf32> to vector<2x1xf32>
    %401 = vector.extract_strided_slice %60 {offsets = [0, 0], sizes = [2, 255], strides = [1, 1]} : vector<2x256xf32> to vector<2x255xf32>
    %402 = tpu.concatenate %400, %401 in 1 : vector<2x1xf32>, vector<2x255xf32> -> vector<2x256xf32>
    %cst_47 = arith.constant 0.000000e+00 : f32
    %403 = vector.shape_cast %30 : vector<1x256xi1> to vector<1x256xi1>
    %404 = vector.broadcast %403 : vector<1x256xi1> to vector<2x256xi1>
    %405 = vector.broadcast %cst_47 : f32 to vector<2x256xf32>
    %406 = arith.select %404, %402, %405 : vector<2x256xi1>, vector<2x256xf32>
    %407 = vector.extract_strided_slice %60 {offsets = [0, 1], sizes = [2, 255], strides = [1, 1]} : vector<2x256xf32> to vector<2x255xf32>
    %408 = vector.extract_strided_slice %60 {offsets = [0, 0], sizes = [2, 1], strides = [1, 1]} : vector<2x256xf32> to vector<2x1xf32>
    %409 = tpu.concatenate %407, %408 in 1 : vector<2x255xf32>, vector<2x1xf32> -> vector<2x256xf32>
    %cst_48 = arith.constant 0.000000e+00 : f32
    %410 = vector.shape_cast %32 : vector<1x256xi1> to vector<1x256xi1>
    %411 = vector.broadcast %410 : vector<1x256xi1> to vector<2x256xi1>
    %412 = vector.broadcast %cst_48 : f32 to vector<2x256xf32>
    %413 = arith.select %411, %409, %412 : vector<2x256xi1>, vector<2x256xf32>
    %414 = vector.extract_strided_slice %60 {offsets = [0, 15], sizes = [2, 241], strides = [1, 1]} : vector<2x256xf32> to vector<2x241xf32>
    %415 = vector.extract_strided_slice %60 {offsets = [0, 0], sizes = [2, 15], strides = [1, 1]} : vector<2x256xf32> to vector<2x15xf32>
    %416 = tpu.concatenate %414, %415 in 1 : vector<2x241xf32>, vector<2x15xf32> -> vector<2x256xf32>
    %cst_49 = arith.constant 0.000000e+00 : f32
    %417 = vector.shape_cast %37 : vector<1x256xi1> to vector<1x256xi1>
    %418 = vector.broadcast %417 : vector<1x256xi1> to vector<2x256xi1>
    %419 = vector.broadcast %cst_49 : f32 to vector<2x256xf32>
    %420 = arith.select %418, %416, %419 : vector<2x256xi1>, vector<2x256xf32>
    %421 = vector.extract_strided_slice %60 {offsets = [0, 16], sizes = [2, 240], strides = [1, 1]} : vector<2x256xf32> to vector<2x240xf32>
    %422 = vector.extract_strided_slice %60 {offsets = [0, 0], sizes = [2, 16], strides = [1, 1]} : vector<2x256xf32> to vector<2x16xf32>
    %423 = tpu.concatenate %421, %422 in 1 : vector<2x240xf32>, vector<2x16xf32> -> vector<2x256xf32>
    %cst_50 = arith.constant 0.000000e+00 : f32
    %424 = vector.shape_cast %39 : vector<1x256xi1> to vector<1x256xi1>
    %425 = vector.broadcast %424 : vector<1x256xi1> to vector<2x256xi1>
    %426 = vector.broadcast %cst_50 : f32 to vector<2x256xf32>
    %427 = arith.select %425, %423, %426 : vector<2x256xi1>, vector<2x256xf32>
    %428 = vector.extract_strided_slice %60 {offsets = [0, 17], sizes = [2, 239], strides = [1, 1]} : vector<2x256xf32> to vector<2x239xf32>
    %429 = vector.extract_strided_slice %60 {offsets = [0, 0], sizes = [2, 17], strides = [1, 1]} : vector<2x256xf32> to vector<2x17xf32>
    %430 = tpu.concatenate %428, %429 in 1 : vector<2x239xf32>, vector<2x17xf32> -> vector<2x256xf32>
    %cst_51 = arith.constant 0.000000e+00 : f32
    %431 = vector.shape_cast %44 : vector<1x256xi1> to vector<1x256xi1>
    %432 = vector.broadcast %431 : vector<1x256xi1> to vector<2x256xi1>
    %433 = vector.broadcast %cst_51 : f32 to vector<2x256xf32>
    %434 = arith.select %432, %430, %433 : vector<2x256xi1>, vector<2x256xf32>
    %435 = vector.extract_strided_slice %62 {offsets = [0, 239], sizes = [2, 17], strides = [1, 1]} : vector<2x256xf32> to vector<2x17xf32>
    %436 = vector.extract_strided_slice %62 {offsets = [0, 0], sizes = [2, 239], strides = [1, 1]} : vector<2x256xf32> to vector<2x239xf32>
    %437 = tpu.concatenate %435, %436 in 1 : vector<2x17xf32>, vector<2x239xf32> -> vector<2x256xf32>
    %cst_52 = arith.constant 0.000000e+00 : f32
    %438 = vector.shape_cast %21 : vector<1x256xi1> to vector<1x256xi1>
    %439 = vector.broadcast %438 : vector<1x256xi1> to vector<2x256xi1>
    %440 = vector.broadcast %cst_52 : f32 to vector<2x256xf32>
    %441 = arith.select %439, %437, %440 : vector<2x256xi1>, vector<2x256xf32>
    %442 = vector.extract_strided_slice %62 {offsets = [0, 240], sizes = [2, 16], strides = [1, 1]} : vector<2x256xf32> to vector<2x16xf32>
    %443 = vector.extract_strided_slice %62 {offsets = [0, 0], sizes = [2, 240], strides = [1, 1]} : vector<2x256xf32> to vector<2x240xf32>
    %444 = tpu.concatenate %442, %443 in 1 : vector<2x16xf32>, vector<2x240xf32> -> vector<2x256xf32>
    %cst_53 = arith.constant 0.000000e+00 : f32
    %445 = vector.shape_cast %23 : vector<1x256xi1> to vector<1x256xi1>
    %446 = vector.broadcast %445 : vector<1x256xi1> to vector<2x256xi1>
    %447 = vector.broadcast %cst_53 : f32 to vector<2x256xf32>
    %448 = arith.select %446, %444, %447 : vector<2x256xi1>, vector<2x256xf32>
    %449 = vector.extract_strided_slice %62 {offsets = [0, 241], sizes = [2, 15], strides = [1, 1]} : vector<2x256xf32> to vector<2x15xf32>
    %450 = vector.extract_strided_slice %62 {offsets = [0, 0], sizes = [2, 241], strides = [1, 1]} : vector<2x256xf32> to vector<2x241xf32>
    %451 = tpu.concatenate %449, %450 in 1 : vector<2x15xf32>, vector<2x241xf32> -> vector<2x256xf32>
    %cst_54 = arith.constant 0.000000e+00 : f32
    %452 = vector.shape_cast %28 : vector<1x256xi1> to vector<1x256xi1>
    %453 = vector.broadcast %452 : vector<1x256xi1> to vector<2x256xi1>
    %454 = vector.broadcast %cst_54 : f32 to vector<2x256xf32>
    %455 = arith.select %453, %451, %454 : vector<2x256xi1>, vector<2x256xf32>
    %456 = vector.extract_strided_slice %62 {offsets = [0, 255], sizes = [2, 1], strides = [1, 1]} : vector<2x256xf32> to vector<2x1xf32>
    %457 = vector.extract_strided_slice %62 {offsets = [0, 0], sizes = [2, 255], strides = [1, 1]} : vector<2x256xf32> to vector<2x255xf32>
    %458 = tpu.concatenate %456, %457 in 1 : vector<2x1xf32>, vector<2x255xf32> -> vector<2x256xf32>
    %cst_55 = arith.constant 0.000000e+00 : f32
    %459 = vector.shape_cast %30 : vector<1x256xi1> to vector<1x256xi1>
    %460 = vector.broadcast %459 : vector<1x256xi1> to vector<2x256xi1>
    %461 = vector.broadcast %cst_55 : f32 to vector<2x256xf32>
    %462 = arith.select %460, %458, %461 : vector<2x256xi1>, vector<2x256xf32>
    %463 = vector.extract_strided_slice %62 {offsets = [0, 1], sizes = [2, 255], strides = [1, 1]} : vector<2x256xf32> to vector<2x255xf32>
    %464 = vector.extract_strided_slice %62 {offsets = [0, 0], sizes = [2, 1], strides = [1, 1]} : vector<2x256xf32> to vector<2x1xf32>
    %465 = tpu.concatenate %463, %464 in 1 : vector<2x255xf32>, vector<2x1xf32> -> vector<2x256xf32>
    %cst_56 = arith.constant 0.000000e+00 : f32
    %466 = vector.shape_cast %32 : vector<1x256xi1> to vector<1x256xi1>
    %467 = vector.broadcast %466 : vector<1x256xi1> to vector<2x256xi1>
    %468 = vector.broadcast %cst_56 : f32 to vector<2x256xf32>
    %469 = arith.select %467, %465, %468 : vector<2x256xi1>, vector<2x256xf32>
    %470 = vector.extract_strided_slice %62 {offsets = [0, 15], sizes = [2, 241], strides = [1, 1]} : vector<2x256xf32> to vector<2x241xf32>
    %471 = vector.extract_strided_slice %62 {offsets = [0, 0], sizes = [2, 15], strides = [1, 1]} : vector<2x256xf32> to vector<2x15xf32>
    %472 = tpu.concatenate %470, %471 in 1 : vector<2x241xf32>, vector<2x15xf32> -> vector<2x256xf32>
    %cst_57 = arith.constant 0.000000e+00 : f32
    %473 = vector.shape_cast %37 : vector<1x256xi1> to vector<1x256xi1>
    %474 = vector.broadcast %473 : vector<1x256xi1> to vector<2x256xi1>
    %475 = vector.broadcast %cst_57 : f32 to vector<2x256xf32>
    %476 = arith.select %474, %472, %475 : vector<2x256xi1>, vector<2x256xf32>
    %477 = vector.extract_strided_slice %62 {offsets = [0, 16], sizes = [2, 240], strides = [1, 1]} : vector<2x256xf32> to vector<2x240xf32>
    %478 = vector.extract_strided_slice %62 {offsets = [0, 0], sizes = [2, 16], strides = [1, 1]} : vector<2x256xf32> to vector<2x16xf32>
    %479 = tpu.concatenate %477, %478 in 1 : vector<2x240xf32>, vector<2x16xf32> -> vector<2x256xf32>
    %cst_58 = arith.constant 0.000000e+00 : f32
    %480 = vector.shape_cast %39 : vector<1x256xi1> to vector<1x256xi1>
    %481 = vector.broadcast %480 : vector<1x256xi1> to vector<2x256xi1>
    %482 = vector.broadcast %cst_58 : f32 to vector<2x256xf32>
    %483 = arith.select %481, %479, %482 : vector<2x256xi1>, vector<2x256xf32>
    %484 = vector.extract_strided_slice %62 {offsets = [0, 17], sizes = [2, 239], strides = [1, 1]} : vector<2x256xf32> to vector<2x239xf32>
    %485 = vector.extract_strided_slice %62 {offsets = [0, 0], sizes = [2, 17], strides = [1, 1]} : vector<2x256xf32> to vector<2x17xf32>
    %486 = tpu.concatenate %484, %485 in 1 : vector<2x239xf32>, vector<2x17xf32> -> vector<2x256xf32>
    %cst_59 = arith.constant 0.000000e+00 : f32
    %487 = vector.shape_cast %44 : vector<1x256xi1> to vector<1x256xi1>
    %488 = vector.broadcast %487 : vector<1x256xi1> to vector<2x256xi1>
    %489 = vector.broadcast %cst_59 : f32 to vector<2x256xf32>
    %490 = arith.select %488, %486, %489 : vector<2x256xi1>, vector<2x256xf32>
    %c0_60 = arith.constant 0 : index
    %491 = memref.load %arg5[%c0_60] : memref<288xf32, #tpu.memory_space<smem>>
    %492 = vector.broadcast %491 : f32 to vector<2x256xf32>
    %493 = arith.mulf %273, %492 : vector<2x256xf32>
    %c8_61 = arith.constant 8 : index
    %494 = memref.load %arg5[%c8_61] : memref<288xf32, #tpu.memory_space<smem>>
    %495 = vector.broadcast %494 : f32 to vector<2x256xf32>
    %496 = arith.mulf %329, %495 : vector<2x256xf32>
    %497 = arith.addf %493, %496 : vector<2x256xf32>
    %c16_62 = arith.constant 16 : index
    %498 = memref.load %arg5[%c16_62] : memref<288xf32, #tpu.memory_space<smem>>
    %499 = vector.broadcast %498 : f32 to vector<2x256xf32>
    %500 = arith.mulf %385, %499 : vector<2x256xf32>
    %501 = arith.addf %497, %500 : vector<2x256xf32>
    %c24_63 = arith.constant 24 : index
    %502 = memref.load %arg5[%c24_63] : memref<288xf32, #tpu.memory_space<smem>>
    %503 = vector.broadcast %502 : f32 to vector<2x256xf32>
    %504 = arith.mulf %441, %503 : vector<2x256xf32>
    %505 = arith.addf %501, %504 : vector<2x256xf32>
    %c32_64 = arith.constant 32 : index
    %506 = memref.load %arg5[%c32_64] : memref<288xf32, #tpu.memory_space<smem>>
    %507 = vector.broadcast %506 : f32 to vector<2x256xf32>
    %508 = arith.mulf %280, %507 : vector<2x256xf32>
    %509 = arith.addf %505, %508 : vector<2x256xf32>
    %c40 = arith.constant 40 : index
    %510 = memref.load %arg5[%c40] : memref<288xf32, #tpu.memory_space<smem>>
    %511 = vector.broadcast %510 : f32 to vector<2x256xf32>
    %512 = arith.mulf %336, %511 : vector<2x256xf32>
    %513 = arith.addf %509, %512 : vector<2x256xf32>
    %c48 = arith.constant 48 : index
    %514 = memref.load %arg5[%c48] : memref<288xf32, #tpu.memory_space<smem>>
    %515 = vector.broadcast %514 : f32 to vector<2x256xf32>
    %516 = arith.mulf %392, %515 : vector<2x256xf32>
    %517 = arith.addf %513, %516 : vector<2x256xf32>
    %c56 = arith.constant 56 : index
    %518 = memref.load %arg5[%c56] : memref<288xf32, #tpu.memory_space<smem>>
    %519 = vector.broadcast %518 : f32 to vector<2x256xf32>
    %520 = arith.mulf %448, %519 : vector<2x256xf32>
    %521 = arith.addf %517, %520 : vector<2x256xf32>
    %c64 = arith.constant 64 : index
    %522 = memref.load %arg5[%c64] : memref<288xf32, #tpu.memory_space<smem>>
    %523 = vector.broadcast %522 : f32 to vector<2x256xf32>
    %524 = arith.mulf %287, %523 : vector<2x256xf32>
    %525 = arith.addf %521, %524 : vector<2x256xf32>
    %c72 = arith.constant 72 : index
    %526 = memref.load %arg5[%c72] : memref<288xf32, #tpu.memory_space<smem>>
    %527 = vector.broadcast %526 : f32 to vector<2x256xf32>
    %528 = arith.mulf %343, %527 : vector<2x256xf32>
    %529 = arith.addf %525, %528 : vector<2x256xf32>
    %c80 = arith.constant 80 : index
    %530 = memref.load %arg5[%c80] : memref<288xf32, #tpu.memory_space<smem>>
    %531 = vector.broadcast %530 : f32 to vector<2x256xf32>
    %532 = arith.mulf %399, %531 : vector<2x256xf32>
    %533 = arith.addf %529, %532 : vector<2x256xf32>
    %c88 = arith.constant 88 : index
    %534 = memref.load %arg5[%c88] : memref<288xf32, #tpu.memory_space<smem>>
    %535 = vector.broadcast %534 : f32 to vector<2x256xf32>
    %536 = arith.mulf %455, %535 : vector<2x256xf32>
    %537 = arith.addf %533, %536 : vector<2x256xf32>
    %c96 = arith.constant 96 : index
    %538 = memref.load %arg5[%c96] : memref<288xf32, #tpu.memory_space<smem>>
    %539 = vector.broadcast %538 : f32 to vector<2x256xf32>
    %540 = arith.mulf %294, %539 : vector<2x256xf32>
    %541 = arith.addf %537, %540 : vector<2x256xf32>
    %c104 = arith.constant 104 : index
    %542 = memref.load %arg5[%c104] : memref<288xf32, #tpu.memory_space<smem>>
    %543 = vector.broadcast %542 : f32 to vector<2x256xf32>
    %544 = arith.mulf %350, %543 : vector<2x256xf32>
    %545 = arith.addf %541, %544 : vector<2x256xf32>
    %c112 = arith.constant 112 : index
    %546 = memref.load %arg5[%c112] : memref<288xf32, #tpu.memory_space<smem>>
    %547 = vector.broadcast %546 : f32 to vector<2x256xf32>
    %548 = arith.mulf %406, %547 : vector<2x256xf32>
    %549 = arith.addf %545, %548 : vector<2x256xf32>
    %c120 = arith.constant 120 : index
    %550 = memref.load %arg5[%c120] : memref<288xf32, #tpu.memory_space<smem>>
    %551 = vector.broadcast %550 : f32 to vector<2x256xf32>
    %552 = arith.mulf %462, %551 : vector<2x256xf32>
    %553 = arith.addf %549, %552 : vector<2x256xf32>
    %c128 = arith.constant 128 : index
    %554 = memref.load %arg5[%c128] : memref<288xf32, #tpu.memory_space<smem>>
    %555 = vector.broadcast %554 : f32 to vector<2x256xf32>
    %556 = arith.mulf %56, %555 : vector<2x256xf32>
    %557 = arith.addf %553, %556 : vector<2x256xf32>
    %c136 = arith.constant 136 : index
    %558 = memref.load %arg5[%c136] : memref<288xf32, #tpu.memory_space<smem>>
    %559 = vector.broadcast %558 : f32 to vector<2x256xf32>
    %560 = arith.mulf %58, %559 : vector<2x256xf32>
    %561 = arith.addf %557, %560 : vector<2x256xf32>
    %c144 = arith.constant 144 : index
    %562 = memref.load %arg5[%c144] : memref<288xf32, #tpu.memory_space<smem>>
    %563 = vector.broadcast %562 : f32 to vector<2x256xf32>
    %564 = arith.mulf %60, %563 : vector<2x256xf32>
    %565 = arith.addf %561, %564 : vector<2x256xf32>
    %c152 = arith.constant 152 : index
    %566 = memref.load %arg5[%c152] : memref<288xf32, #tpu.memory_space<smem>>
    %567 = vector.broadcast %566 : f32 to vector<2x256xf32>
    %568 = arith.mulf %62, %567 : vector<2x256xf32>
    %569 = arith.addf %565, %568 : vector<2x256xf32>
    %c160 = arith.constant 160 : index
    %570 = memref.load %arg5[%c160] : memref<288xf32, #tpu.memory_space<smem>>
    %571 = vector.broadcast %570 : f32 to vector<2x256xf32>
    %572 = arith.mulf %301, %571 : vector<2x256xf32>
    %573 = arith.addf %569, %572 : vector<2x256xf32>
    %c168 = arith.constant 168 : index
    %574 = memref.load %arg5[%c168] : memref<288xf32, #tpu.memory_space<smem>>
    %575 = vector.broadcast %574 : f32 to vector<2x256xf32>
    %576 = arith.mulf %357, %575 : vector<2x256xf32>
    %577 = arith.addf %573, %576 : vector<2x256xf32>
    %c176 = arith.constant 176 : index
    %578 = memref.load %arg5[%c176] : memref<288xf32, #tpu.memory_space<smem>>
    %579 = vector.broadcast %578 : f32 to vector<2x256xf32>
    %580 = arith.mulf %413, %579 : vector<2x256xf32>
    %581 = arith.addf %577, %580 : vector<2x256xf32>
    %c184 = arith.constant 184 : index
    %582 = memref.load %arg5[%c184] : memref<288xf32, #tpu.memory_space<smem>>
    %583 = vector.broadcast %582 : f32 to vector<2x256xf32>
    %584 = arith.mulf %469, %583 : vector<2x256xf32>
    %585 = arith.addf %581, %584 : vector<2x256xf32>
    %c192 = arith.constant 192 : index
    %586 = memref.load %arg5[%c192] : memref<288xf32, #tpu.memory_space<smem>>
    %587 = vector.broadcast %586 : f32 to vector<2x256xf32>
    %588 = arith.mulf %308, %587 : vector<2x256xf32>
    %589 = arith.addf %585, %588 : vector<2x256xf32>
    %c200 = arith.constant 200 : index
    %590 = memref.load %arg5[%c200] : memref<288xf32, #tpu.memory_space<smem>>
    %591 = vector.broadcast %590 : f32 to vector<2x256xf32>
    %592 = arith.mulf %364, %591 : vector<2x256xf32>
    %593 = arith.addf %589, %592 : vector<2x256xf32>
    %c208 = arith.constant 208 : index
    %594 = memref.load %arg5[%c208] : memref<288xf32, #tpu.memory_space<smem>>
    %595 = vector.broadcast %594 : f32 to vector<2x256xf32>
    %596 = arith.mulf %420, %595 : vector<2x256xf32>
    %597 = arith.addf %593, %596 : vector<2x256xf32>
    %c216 = arith.constant 216 : index
    %598 = memref.load %arg5[%c216] : memref<288xf32, #tpu.memory_space<smem>>
    %599 = vector.broadcast %598 : f32 to vector<2x256xf32>
    %600 = arith.mulf %476, %599 : vector<2x256xf32>
    %601 = arith.addf %597, %600 : vector<2x256xf32>
    %c224 = arith.constant 224 : index
    %602 = memref.load %arg5[%c224] : memref<288xf32, #tpu.memory_space<smem>>
    %603 = vector.broadcast %602 : f32 to vector<2x256xf32>
    %604 = arith.mulf %315, %603 : vector<2x256xf32>
    %605 = arith.addf %601, %604 : vector<2x256xf32>
    %c232 = arith.constant 232 : index
    %606 = memref.load %arg5[%c232] : memref<288xf32, #tpu.memory_space<smem>>
    %607 = vector.broadcast %606 : f32 to vector<2x256xf32>
    %608 = arith.mulf %371, %607 : vector<2x256xf32>
    %609 = arith.addf %605, %608 : vector<2x256xf32>
    %c240 = arith.constant 240 : index
    %610 = memref.load %arg5[%c240] : memref<288xf32, #tpu.memory_space<smem>>
    %611 = vector.broadcast %610 : f32 to vector<2x256xf32>
    %612 = arith.mulf %427, %611 : vector<2x256xf32>
    %613 = arith.addf %609, %612 : vector<2x256xf32>
    %c248 = arith.constant 248 : index
    %614 = memref.load %arg5[%c248] : memref<288xf32, #tpu.memory_space<smem>>
    %615 = vector.broadcast %614 : f32 to vector<2x256xf32>
    %616 = arith.mulf %483, %615 : vector<2x256xf32>
    %617 = arith.addf %613, %616 : vector<2x256xf32>
    %c256 = arith.constant 256 : index
    %618 = memref.load %arg5[%c256] : memref<288xf32, #tpu.memory_space<smem>>
    %619 = vector.broadcast %618 : f32 to vector<2x256xf32>
    %620 = arith.mulf %322, %619 : vector<2x256xf32>
    %621 = arith.addf %617, %620 : vector<2x256xf32>
    %c264 = arith.constant 264 : index
    %622 = memref.load %arg5[%c264] : memref<288xf32, #tpu.memory_space<smem>>
    %623 = vector.broadcast %622 : f32 to vector<2x256xf32>
    %624 = arith.mulf %378, %623 : vector<2x256xf32>
    %625 = arith.addf %621, %624 : vector<2x256xf32>
    %c272 = arith.constant 272 : index
    %626 = memref.load %arg5[%c272] : memref<288xf32, #tpu.memory_space<smem>>
    %627 = vector.broadcast %626 : f32 to vector<2x256xf32>
    %628 = arith.mulf %434, %627 : vector<2x256xf32>
    %629 = arith.addf %625, %628 : vector<2x256xf32>
    %c280 = arith.constant 280 : index
    %630 = memref.load %arg5[%c280] : memref<288xf32, #tpu.memory_space<smem>>
    %631 = vector.broadcast %630 : f32 to vector<2x256xf32>
    %632 = arith.mulf %490, %631 : vector<2x256xf32>
    %633 = arith.addf %629, %632 : vector<2x256xf32>
    %c0_65 = arith.constant 0 : index
    %634 = memref.load %arg6[%c0_65] : memref<8xf32, #tpu.memory_space<smem>>
    %635 = vector.broadcast %634 : f32 to vector<2x256xf32>
    %636 = arith.addf %633, %635 : vector<2x256xf32>
    %cst_66 = arith.constant 0.000000e+00 : f32
    %637 = vector.broadcast %cst_66 : f32 to vector<2x256xf32>
    %638 = arith.maximumf %636, %637 : vector<2x256xf32>
    %c1_67 = arith.constant 1 : index
    %639 = memref.load %arg5[%c1_67] : memref<288xf32, #tpu.memory_space<smem>>
    %640 = vector.broadcast %639 : f32 to vector<2x256xf32>
    %641 = arith.mulf %273, %640 : vector<2x256xf32>
    %c9_68 = arith.constant 9 : index
    %642 = memref.load %arg5[%c9_68] : memref<288xf32, #tpu.memory_space<smem>>
    %643 = vector.broadcast %642 : f32 to vector<2x256xf32>
    %644 = arith.mulf %329, %643 : vector<2x256xf32>
    %645 = arith.addf %641, %644 : vector<2x256xf32>
    %c17_69 = arith.constant 17 : index
    %646 = memref.load %arg5[%c17_69] : memref<288xf32, #tpu.memory_space<smem>>
    %647 = vector.broadcast %646 : f32 to vector<2x256xf32>
    %648 = arith.mulf %385, %647 : vector<2x256xf32>
    %649 = arith.addf %645, %648 : vector<2x256xf32>
    %c25_70 = arith.constant 25 : index
    %650 = memref.load %arg5[%c25_70] : memref<288xf32, #tpu.memory_space<smem>>
    %651 = vector.broadcast %650 : f32 to vector<2x256xf32>
    %652 = arith.mulf %441, %651 : vector<2x256xf32>
    %653 = arith.addf %649, %652 : vector<2x256xf32>
    %c33_71 = arith.constant 33 : index
    %654 = memref.load %arg5[%c33_71] : memref<288xf32, #tpu.memory_space<smem>>
    %655 = vector.broadcast %654 : f32 to vector<2x256xf32>
    %656 = arith.mulf %280, %655 : vector<2x256xf32>
    %657 = arith.addf %653, %656 : vector<2x256xf32>
    %c41 = arith.constant 41 : index
    %658 = memref.load %arg5[%c41] : memref<288xf32, #tpu.memory_space<smem>>
    %659 = vector.broadcast %658 : f32 to vector<2x256xf32>
    %660 = arith.mulf %336, %659 : vector<2x256xf32>
    %661 = arith.addf %657, %660 : vector<2x256xf32>
    %c49 = arith.constant 49 : index
    %662 = memref.load %arg5[%c49] : memref<288xf32, #tpu.memory_space<smem>>
    %663 = vector.broadcast %662 : f32 to vector<2x256xf32>
    %664 = arith.mulf %392, %663 : vector<2x256xf32>
    %665 = arith.addf %661, %664 : vector<2x256xf32>
    %c57 = arith.constant 57 : index
    %666 = memref.load %arg5[%c57] : memref<288xf32, #tpu.memory_space<smem>>
    %667 = vector.broadcast %666 : f32 to vector<2x256xf32>
    %668 = arith.mulf %448, %667 : vector<2x256xf32>
    %669 = arith.addf %665, %668 : vector<2x256xf32>
    %c65 = arith.constant 65 : index
    %670 = memref.load %arg5[%c65] : memref<288xf32, #tpu.memory_space<smem>>
    %671 = vector.broadcast %670 : f32 to vector<2x256xf32>
    %672 = arith.mulf %287, %671 : vector<2x256xf32>
    %673 = arith.addf %669, %672 : vector<2x256xf32>
    %c73 = arith.constant 73 : index
    %674 = memref.load %arg5[%c73] : memref<288xf32, #tpu.memory_space<smem>>
    %675 = vector.broadcast %674 : f32 to vector<2x256xf32>
    %676 = arith.mulf %343, %675 : vector<2x256xf32>
    %677 = arith.addf %673, %676 : vector<2x256xf32>
    %c81 = arith.constant 81 : index
    %678 = memref.load %arg5[%c81] : memref<288xf32, #tpu.memory_space<smem>>
    %679 = vector.broadcast %678 : f32 to vector<2x256xf32>
    %680 = arith.mulf %399, %679 : vector<2x256xf32>
    %681 = arith.addf %677, %680 : vector<2x256xf32>
    %c89 = arith.constant 89 : index
    %682 = memref.load %arg5[%c89] : memref<288xf32, #tpu.memory_space<smem>>
    %683 = vector.broadcast %682 : f32 to vector<2x256xf32>
    %684 = arith.mulf %455, %683 : vector<2x256xf32>
    %685 = arith.addf %681, %684 : vector<2x256xf32>
    %c97 = arith.constant 97 : index
    %686 = memref.load %arg5[%c97] : memref<288xf32, #tpu.memory_space<smem>>
    %687 = vector.broadcast %686 : f32 to vector<2x256xf32>
    %688 = arith.mulf %294, %687 : vector<2x256xf32>
    %689 = arith.addf %685, %688 : vector<2x256xf32>
    %c105 = arith.constant 105 : index
    %690 = memref.load %arg5[%c105] : memref<288xf32, #tpu.memory_space<smem>>
    %691 = vector.broadcast %690 : f32 to vector<2x256xf32>
    %692 = arith.mulf %350, %691 : vector<2x256xf32>
    %693 = arith.addf %689, %692 : vector<2x256xf32>
    %c113 = arith.constant 113 : index
    %694 = memref.load %arg5[%c113] : memref<288xf32, #tpu.memory_space<smem>>
    %695 = vector.broadcast %694 : f32 to vector<2x256xf32>
    %696 = arith.mulf %406, %695 : vector<2x256xf32>
    %697 = arith.addf %693, %696 : vector<2x256xf32>
    %c121 = arith.constant 121 : index
    %698 = memref.load %arg5[%c121] : memref<288xf32, #tpu.memory_space<smem>>
    %699 = vector.broadcast %698 : f32 to vector<2x256xf32>
    %700 = arith.mulf %462, %699 : vector<2x256xf32>
    %701 = arith.addf %697, %700 : vector<2x256xf32>
    %c129 = arith.constant 129 : index
    %702 = memref.load %arg5[%c129] : memref<288xf32, #tpu.memory_space<smem>>
    %703 = vector.broadcast %702 : f32 to vector<2x256xf32>
    %704 = arith.mulf %56, %703 : vector<2x256xf32>
    %705 = arith.addf %701, %704 : vector<2x256xf32>
    %c137 = arith.constant 137 : index
    %706 = memref.load %arg5[%c137] : memref<288xf32, #tpu.memory_space<smem>>
    %707 = vector.broadcast %706 : f32 to vector<2x256xf32>
    %708 = arith.mulf %58, %707 : vector<2x256xf32>
    %709 = arith.addf %705, %708 : vector<2x256xf32>
    %c145 = arith.constant 145 : index
    %710 = memref.load %arg5[%c145] : memref<288xf32, #tpu.memory_space<smem>>
    %711 = vector.broadcast %710 : f32 to vector<2x256xf32>
    %712 = arith.mulf %60, %711 : vector<2x256xf32>
    %713 = arith.addf %709, %712 : vector<2x256xf32>
    %c153 = arith.constant 153 : index
    %714 = memref.load %arg5[%c153] : memref<288xf32, #tpu.memory_space<smem>>
    %715 = vector.broadcast %714 : f32 to vector<2x256xf32>
    %716 = arith.mulf %62, %715 : vector<2x256xf32>
    %717 = arith.addf %713, %716 : vector<2x256xf32>
    %c161 = arith.constant 161 : index
    %718 = memref.load %arg5[%c161] : memref<288xf32, #tpu.memory_space<smem>>
    %719 = vector.broadcast %718 : f32 to vector<2x256xf32>
    %720 = arith.mulf %301, %719 : vector<2x256xf32>
    %721 = arith.addf %717, %720 : vector<2x256xf32>
    %c169 = arith.constant 169 : index
    %722 = memref.load %arg5[%c169] : memref<288xf32, #tpu.memory_space<smem>>
    %723 = vector.broadcast %722 : f32 to vector<2x256xf32>
    %724 = arith.mulf %357, %723 : vector<2x256xf32>
    %725 = arith.addf %721, %724 : vector<2x256xf32>
    %c177 = arith.constant 177 : index
    %726 = memref.load %arg5[%c177] : memref<288xf32, #tpu.memory_space<smem>>
    %727 = vector.broadcast %726 : f32 to vector<2x256xf32>
    %728 = arith.mulf %413, %727 : vector<2x256xf32>
    %729 = arith.addf %725, %728 : vector<2x256xf32>
    %c185 = arith.constant 185 : index
    %730 = memref.load %arg5[%c185] : memref<288xf32, #tpu.memory_space<smem>>
    %731 = vector.broadcast %730 : f32 to vector<2x256xf32>
    %732 = arith.mulf %469, %731 : vector<2x256xf32>
    %733 = arith.addf %729, %732 : vector<2x256xf32>
    %c193 = arith.constant 193 : index
    %734 = memref.load %arg5[%c193] : memref<288xf32, #tpu.memory_space<smem>>
    %735 = vector.broadcast %734 : f32 to vector<2x256xf32>
    %736 = arith.mulf %308, %735 : vector<2x256xf32>
    %737 = arith.addf %733, %736 : vector<2x256xf32>
    %c201 = arith.constant 201 : index
    %738 = memref.load %arg5[%c201] : memref<288xf32, #tpu.memory_space<smem>>
    %739 = vector.broadcast %738 : f32 to vector<2x256xf32>
    %740 = arith.mulf %364, %739 : vector<2x256xf32>
    %741 = arith.addf %737, %740 : vector<2x256xf32>
    %c209 = arith.constant 209 : index
    %742 = memref.load %arg5[%c209] : memref<288xf32, #tpu.memory_space<smem>>
    %743 = vector.broadcast %742 : f32 to vector<2x256xf32>
    %744 = arith.mulf %420, %743 : vector<2x256xf32>
    %745 = arith.addf %741, %744 : vector<2x256xf32>
    %c217 = arith.constant 217 : index
    %746 = memref.load %arg5[%c217] : memref<288xf32, #tpu.memory_space<smem>>
    %747 = vector.broadcast %746 : f32 to vector<2x256xf32>
    %748 = arith.mulf %476, %747 : vector<2x256xf32>
    %749 = arith.addf %745, %748 : vector<2x256xf32>
    %c225 = arith.constant 225 : index
    %750 = memref.load %arg5[%c225] : memref<288xf32, #tpu.memory_space<smem>>
    %751 = vector.broadcast %750 : f32 to vector<2x256xf32>
    %752 = arith.mulf %315, %751 : vector<2x256xf32>
    %753 = arith.addf %749, %752 : vector<2x256xf32>
    %c233 = arith.constant 233 : index
    %754 = memref.load %arg5[%c233] : memref<288xf32, #tpu.memory_space<smem>>
    %755 = vector.broadcast %754 : f32 to vector<2x256xf32>
    %756 = arith.mulf %371, %755 : vector<2x256xf32>
    %757 = arith.addf %753, %756 : vector<2x256xf32>
    %c241 = arith.constant 241 : index
    %758 = memref.load %arg5[%c241] : memref<288xf32, #tpu.memory_space<smem>>
    %759 = vector.broadcast %758 : f32 to vector<2x256xf32>
    %760 = arith.mulf %427, %759 : vector<2x256xf32>
    %761 = arith.addf %757, %760 : vector<2x256xf32>
    %c249 = arith.constant 249 : index
    %762 = memref.load %arg5[%c249] : memref<288xf32, #tpu.memory_space<smem>>
    %763 = vector.broadcast %762 : f32 to vector<2x256xf32>
    %764 = arith.mulf %483, %763 : vector<2x256xf32>
    %765 = arith.addf %761, %764 : vector<2x256xf32>
    %c257 = arith.constant 257 : index
    %766 = memref.load %arg5[%c257] : memref<288xf32, #tpu.memory_space<smem>>
    %767 = vector.broadcast %766 : f32 to vector<2x256xf32>
    %768 = arith.mulf %322, %767 : vector<2x256xf32>
    %769 = arith.addf %765, %768 : vector<2x256xf32>
    %c265 = arith.constant 265 : index
    %770 = memref.load %arg5[%c265] : memref<288xf32, #tpu.memory_space<smem>>
    %771 = vector.broadcast %770 : f32 to vector<2x256xf32>
    %772 = arith.mulf %378, %771 : vector<2x256xf32>
    %773 = arith.addf %769, %772 : vector<2x256xf32>
    %c273 = arith.constant 273 : index
    %774 = memref.load %arg5[%c273] : memref<288xf32, #tpu.memory_space<smem>>
    %775 = vector.broadcast %774 : f32 to vector<2x256xf32>
    %776 = arith.mulf %434, %775 : vector<2x256xf32>
    %777 = arith.addf %773, %776 : vector<2x256xf32>
    %c281 = arith.constant 281 : index
    %778 = memref.load %arg5[%c281] : memref<288xf32, #tpu.memory_space<smem>>
    %779 = vector.broadcast %778 : f32 to vector<2x256xf32>
    %780 = arith.mulf %490, %779 : vector<2x256xf32>
    %781 = arith.addf %777, %780 : vector<2x256xf32>
    %c1_72 = arith.constant 1 : index
    %782 = memref.load %arg6[%c1_72] : memref<8xf32, #tpu.memory_space<smem>>
    %783 = vector.broadcast %782 : f32 to vector<2x256xf32>
    %784 = arith.addf %781, %783 : vector<2x256xf32>
    %cst_73 = arith.constant 0.000000e+00 : f32
    %785 = vector.broadcast %cst_73 : f32 to vector<2x256xf32>
    %786 = arith.maximumf %784, %785 : vector<2x256xf32>
    %c2_74 = arith.constant 2 : index
    %787 = memref.load %arg5[%c2_74] : memref<288xf32, #tpu.memory_space<smem>>
    %788 = vector.broadcast %787 : f32 to vector<2x256xf32>
    %789 = arith.mulf %273, %788 : vector<2x256xf32>
    %c10_75 = arith.constant 10 : index
    %790 = memref.load %arg5[%c10_75] : memref<288xf32, #tpu.memory_space<smem>>
    %791 = vector.broadcast %790 : f32 to vector<2x256xf32>
    %792 = arith.mulf %329, %791 : vector<2x256xf32>
    %793 = arith.addf %789, %792 : vector<2x256xf32>
    %c18_76 = arith.constant 18 : index
    %794 = memref.load %arg5[%c18_76] : memref<288xf32, #tpu.memory_space<smem>>
    %795 = vector.broadcast %794 : f32 to vector<2x256xf32>
    %796 = arith.mulf %385, %795 : vector<2x256xf32>
    %797 = arith.addf %793, %796 : vector<2x256xf32>
    %c26_77 = arith.constant 26 : index
    %798 = memref.load %arg5[%c26_77] : memref<288xf32, #tpu.memory_space<smem>>
    %799 = vector.broadcast %798 : f32 to vector<2x256xf32>
    %800 = arith.mulf %441, %799 : vector<2x256xf32>
    %801 = arith.addf %797, %800 : vector<2x256xf32>
    %c34_78 = arith.constant 34 : index
    %802 = memref.load %arg5[%c34_78] : memref<288xf32, #tpu.memory_space<smem>>
    %803 = vector.broadcast %802 : f32 to vector<2x256xf32>
    %804 = arith.mulf %280, %803 : vector<2x256xf32>
    %805 = arith.addf %801, %804 : vector<2x256xf32>
    %c42 = arith.constant 42 : index
    %806 = memref.load %arg5[%c42] : memref<288xf32, #tpu.memory_space<smem>>
    %807 = vector.broadcast %806 : f32 to vector<2x256xf32>
    %808 = arith.mulf %336, %807 : vector<2x256xf32>
    %809 = arith.addf %805, %808 : vector<2x256xf32>
    %c50 = arith.constant 50 : index
    %810 = memref.load %arg5[%c50] : memref<288xf32, #tpu.memory_space<smem>>
    %811 = vector.broadcast %810 : f32 to vector<2x256xf32>
    %812 = arith.mulf %392, %811 : vector<2x256xf32>
    %813 = arith.addf %809, %812 : vector<2x256xf32>
    %c58 = arith.constant 58 : index
    %814 = memref.load %arg5[%c58] : memref<288xf32, #tpu.memory_space<smem>>
    %815 = vector.broadcast %814 : f32 to vector<2x256xf32>
    %816 = arith.mulf %448, %815 : vector<2x256xf32>
    %817 = arith.addf %813, %816 : vector<2x256xf32>
    %c66 = arith.constant 66 : index
    %818 = memref.load %arg5[%c66] : memref<288xf32, #tpu.memory_space<smem>>
    %819 = vector.broadcast %818 : f32 to vector<2x256xf32>
    %820 = arith.mulf %287, %819 : vector<2x256xf32>
    %821 = arith.addf %817, %820 : vector<2x256xf32>
    %c74 = arith.constant 74 : index
    %822 = memref.load %arg5[%c74] : memref<288xf32, #tpu.memory_space<smem>>
    %823 = vector.broadcast %822 : f32 to vector<2x256xf32>
    %824 = arith.mulf %343, %823 : vector<2x256xf32>
    %825 = arith.addf %821, %824 : vector<2x256xf32>
    %c82 = arith.constant 82 : index
    %826 = memref.load %arg5[%c82] : memref<288xf32, #tpu.memory_space<smem>>
    %827 = vector.broadcast %826 : f32 to vector<2x256xf32>
    %828 = arith.mulf %399, %827 : vector<2x256xf32>
    %829 = arith.addf %825, %828 : vector<2x256xf32>
    %c90 = arith.constant 90 : index
    %830 = memref.load %arg5[%c90] : memref<288xf32, #tpu.memory_space<smem>>
    %831 = vector.broadcast %830 : f32 to vector<2x256xf32>
    %832 = arith.mulf %455, %831 : vector<2x256xf32>
    %833 = arith.addf %829, %832 : vector<2x256xf32>
    %c98 = arith.constant 98 : index
    %834 = memref.load %arg5[%c98] : memref<288xf32, #tpu.memory_space<smem>>
    %835 = vector.broadcast %834 : f32 to vector<2x256xf32>
    %836 = arith.mulf %294, %835 : vector<2x256xf32>
    %837 = arith.addf %833, %836 : vector<2x256xf32>
    %c106 = arith.constant 106 : index
    %838 = memref.load %arg5[%c106] : memref<288xf32, #tpu.memory_space<smem>>
    %839 = vector.broadcast %838 : f32 to vector<2x256xf32>
    %840 = arith.mulf %350, %839 : vector<2x256xf32>
    %841 = arith.addf %837, %840 : vector<2x256xf32>
    %c114 = arith.constant 114 : index
    %842 = memref.load %arg5[%c114] : memref<288xf32, #tpu.memory_space<smem>>
    %843 = vector.broadcast %842 : f32 to vector<2x256xf32>
    %844 = arith.mulf %406, %843 : vector<2x256xf32>
    %845 = arith.addf %841, %844 : vector<2x256xf32>
    %c122 = arith.constant 122 : index
    %846 = memref.load %arg5[%c122] : memref<288xf32, #tpu.memory_space<smem>>
    %847 = vector.broadcast %846 : f32 to vector<2x256xf32>
    %848 = arith.mulf %462, %847 : vector<2x256xf32>
    %849 = arith.addf %845, %848 : vector<2x256xf32>
    %c130 = arith.constant 130 : index
    %850 = memref.load %arg5[%c130] : memref<288xf32, #tpu.memory_space<smem>>
    %851 = vector.broadcast %850 : f32 to vector<2x256xf32>
    %852 = arith.mulf %56, %851 : vector<2x256xf32>
    %853 = arith.addf %849, %852 : vector<2x256xf32>
    %c138 = arith.constant 138 : index
    %854 = memref.load %arg5[%c138] : memref<288xf32, #tpu.memory_space<smem>>
    %855 = vector.broadcast %854 : f32 to vector<2x256xf32>
    %856 = arith.mulf %58, %855 : vector<2x256xf32>
    %857 = arith.addf %853, %856 : vector<2x256xf32>
    %c146 = arith.constant 146 : index
    %858 = memref.load %arg5[%c146] : memref<288xf32, #tpu.memory_space<smem>>
    %859 = vector.broadcast %858 : f32 to vector<2x256xf32>
    %860 = arith.mulf %60, %859 : vector<2x256xf32>
    %861 = arith.addf %857, %860 : vector<2x256xf32>
    %c154 = arith.constant 154 : index
    %862 = memref.load %arg5[%c154] : memref<288xf32, #tpu.memory_space<smem>>
    %863 = vector.broadcast %862 : f32 to vector<2x256xf32>
    %864 = arith.mulf %62, %863 : vector<2x256xf32>
    %865 = arith.addf %861, %864 : vector<2x256xf32>
    %c162 = arith.constant 162 : index
    %866 = memref.load %arg5[%c162] : memref<288xf32, #tpu.memory_space<smem>>
    %867 = vector.broadcast %866 : f32 to vector<2x256xf32>
    %868 = arith.mulf %301, %867 : vector<2x256xf32>
    %869 = arith.addf %865, %868 : vector<2x256xf32>
    %c170 = arith.constant 170 : index
    %870 = memref.load %arg5[%c170] : memref<288xf32, #tpu.memory_space<smem>>
    %871 = vector.broadcast %870 : f32 to vector<2x256xf32>
    %872 = arith.mulf %357, %871 : vector<2x256xf32>
    %873 = arith.addf %869, %872 : vector<2x256xf32>
    %c178 = arith.constant 178 : index
    %874 = memref.load %arg5[%c178] : memref<288xf32, #tpu.memory_space<smem>>
    %875 = vector.broadcast %874 : f32 to vector<2x256xf32>
    %876 = arith.mulf %413, %875 : vector<2x256xf32>
    %877 = arith.addf %873, %876 : vector<2x256xf32>
    %c186 = arith.constant 186 : index
    %878 = memref.load %arg5[%c186] : memref<288xf32, #tpu.memory_space<smem>>
    %879 = vector.broadcast %878 : f32 to vector<2x256xf32>
    %880 = arith.mulf %469, %879 : vector<2x256xf32>
    %881 = arith.addf %877, %880 : vector<2x256xf32>
    %c194 = arith.constant 194 : index
    %882 = memref.load %arg5[%c194] : memref<288xf32, #tpu.memory_space<smem>>
    %883 = vector.broadcast %882 : f32 to vector<2x256xf32>
    %884 = arith.mulf %308, %883 : vector<2x256xf32>
    %885 = arith.addf %881, %884 : vector<2x256xf32>
    %c202 = arith.constant 202 : index
    %886 = memref.load %arg5[%c202] : memref<288xf32, #tpu.memory_space<smem>>
    %887 = vector.broadcast %886 : f32 to vector<2x256xf32>
    %888 = arith.mulf %364, %887 : vector<2x256xf32>
    %889 = arith.addf %885, %888 : vector<2x256xf32>
    %c210 = arith.constant 210 : index
    %890 = memref.load %arg5[%c210] : memref<288xf32, #tpu.memory_space<smem>>
    %891 = vector.broadcast %890 : f32 to vector<2x256xf32>
    %892 = arith.mulf %420, %891 : vector<2x256xf32>
    %893 = arith.addf %889, %892 : vector<2x256xf32>
    %c218 = arith.constant 218 : index
    %894 = memref.load %arg5[%c218] : memref<288xf32, #tpu.memory_space<smem>>
    %895 = vector.broadcast %894 : f32 to vector<2x256xf32>
    %896 = arith.mulf %476, %895 : vector<2x256xf32>
    %897 = arith.addf %893, %896 : vector<2x256xf32>
    %c226 = arith.constant 226 : index
    %898 = memref.load %arg5[%c226] : memref<288xf32, #tpu.memory_space<smem>>
    %899 = vector.broadcast %898 : f32 to vector<2x256xf32>
    %900 = arith.mulf %315, %899 : vector<2x256xf32>
    %901 = arith.addf %897, %900 : vector<2x256xf32>
    %c234 = arith.constant 234 : index
    %902 = memref.load %arg5[%c234] : memref<288xf32, #tpu.memory_space<smem>>
    %903 = vector.broadcast %902 : f32 to vector<2x256xf32>
    %904 = arith.mulf %371, %903 : vector<2x256xf32>
    %905 = arith.addf %901, %904 : vector<2x256xf32>
    %c242 = arith.constant 242 : index
    %906 = memref.load %arg5[%c242] : memref<288xf32, #tpu.memory_space<smem>>
    %907 = vector.broadcast %906 : f32 to vector<2x256xf32>
    %908 = arith.mulf %427, %907 : vector<2x256xf32>
    %909 = arith.addf %905, %908 : vector<2x256xf32>
    %c250 = arith.constant 250 : index
    %910 = memref.load %arg5[%c250] : memref<288xf32, #tpu.memory_space<smem>>
    %911 = vector.broadcast %910 : f32 to vector<2x256xf32>
    %912 = arith.mulf %483, %911 : vector<2x256xf32>
    %913 = arith.addf %909, %912 : vector<2x256xf32>
    %c258 = arith.constant 258 : index
    %914 = memref.load %arg5[%c258] : memref<288xf32, #tpu.memory_space<smem>>
    %915 = vector.broadcast %914 : f32 to vector<2x256xf32>
    %916 = arith.mulf %322, %915 : vector<2x256xf32>
    %917 = arith.addf %913, %916 : vector<2x256xf32>
    %c266 = arith.constant 266 : index
    %918 = memref.load %arg5[%c266] : memref<288xf32, #tpu.memory_space<smem>>
    %919 = vector.broadcast %918 : f32 to vector<2x256xf32>
    %920 = arith.mulf %378, %919 : vector<2x256xf32>
    %921 = arith.addf %917, %920 : vector<2x256xf32>
    %c274 = arith.constant 274 : index
    %922 = memref.load %arg5[%c274] : memref<288xf32, #tpu.memory_space<smem>>
    %923 = vector.broadcast %922 : f32 to vector<2x256xf32>
    %924 = arith.mulf %434, %923 : vector<2x256xf32>
    %925 = arith.addf %921, %924 : vector<2x256xf32>
    %c282 = arith.constant 282 : index
    %926 = memref.load %arg5[%c282] : memref<288xf32, #tpu.memory_space<smem>>
    %927 = vector.broadcast %926 : f32 to vector<2x256xf32>
    %928 = arith.mulf %490, %927 : vector<2x256xf32>
    %929 = arith.addf %925, %928 : vector<2x256xf32>
    %c2_79 = arith.constant 2 : index
    %930 = memref.load %arg6[%c2_79] : memref<8xf32, #tpu.memory_space<smem>>
    %931 = vector.broadcast %930 : f32 to vector<2x256xf32>
    %932 = arith.addf %929, %931 : vector<2x256xf32>
    %cst_80 = arith.constant 0.000000e+00 : f32
    %933 = vector.broadcast %cst_80 : f32 to vector<2x256xf32>
    %934 = arith.maximumf %932, %933 : vector<2x256xf32>
    %c3_81 = arith.constant 3 : index
    %935 = memref.load %arg5[%c3_81] : memref<288xf32, #tpu.memory_space<smem>>
    %936 = vector.broadcast %935 : f32 to vector<2x256xf32>
    %937 = arith.mulf %273, %936 : vector<2x256xf32>
    %c11_82 = arith.constant 11 : index
    %938 = memref.load %arg5[%c11_82] : memref<288xf32, #tpu.memory_space<smem>>
    %939 = vector.broadcast %938 : f32 to vector<2x256xf32>
    %940 = arith.mulf %329, %939 : vector<2x256xf32>
    %941 = arith.addf %937, %940 : vector<2x256xf32>
    %c19_83 = arith.constant 19 : index
    %942 = memref.load %arg5[%c19_83] : memref<288xf32, #tpu.memory_space<smem>>
    %943 = vector.broadcast %942 : f32 to vector<2x256xf32>
    %944 = arith.mulf %385, %943 : vector<2x256xf32>
    %945 = arith.addf %941, %944 : vector<2x256xf32>
    %c27_84 = arith.constant 27 : index
    %946 = memref.load %arg5[%c27_84] : memref<288xf32, #tpu.memory_space<smem>>
    %947 = vector.broadcast %946 : f32 to vector<2x256xf32>
    %948 = arith.mulf %441, %947 : vector<2x256xf32>
    %949 = arith.addf %945, %948 : vector<2x256xf32>
    %c35_85 = arith.constant 35 : index
    %950 = memref.load %arg5[%c35_85] : memref<288xf32, #tpu.memory_space<smem>>
    %951 = vector.broadcast %950 : f32 to vector<2x256xf32>
    %952 = arith.mulf %280, %951 : vector<2x256xf32>
    %953 = arith.addf %949, %952 : vector<2x256xf32>
    %c43 = arith.constant 43 : index
    %954 = memref.load %arg5[%c43] : memref<288xf32, #tpu.memory_space<smem>>
    %955 = vector.broadcast %954 : f32 to vector<2x256xf32>
    %956 = arith.mulf %336, %955 : vector<2x256xf32>
    %957 = arith.addf %953, %956 : vector<2x256xf32>
    %c51 = arith.constant 51 : index
    %958 = memref.load %arg5[%c51] : memref<288xf32, #tpu.memory_space<smem>>
    %959 = vector.broadcast %958 : f32 to vector<2x256xf32>
    %960 = arith.mulf %392, %959 : vector<2x256xf32>
    %961 = arith.addf %957, %960 : vector<2x256xf32>
    %c59 = arith.constant 59 : index
    %962 = memref.load %arg5[%c59] : memref<288xf32, #tpu.memory_space<smem>>
    %963 = vector.broadcast %962 : f32 to vector<2x256xf32>
    %964 = arith.mulf %448, %963 : vector<2x256xf32>
    %965 = arith.addf %961, %964 : vector<2x256xf32>
    %c67 = arith.constant 67 : index
    %966 = memref.load %arg5[%c67] : memref<288xf32, #tpu.memory_space<smem>>
    %967 = vector.broadcast %966 : f32 to vector<2x256xf32>
    %968 = arith.mulf %287, %967 : vector<2x256xf32>
    %969 = arith.addf %965, %968 : vector<2x256xf32>
    %c75 = arith.constant 75 : index
    %970 = memref.load %arg5[%c75] : memref<288xf32, #tpu.memory_space<smem>>
    %971 = vector.broadcast %970 : f32 to vector<2x256xf32>
    %972 = arith.mulf %343, %971 : vector<2x256xf32>
    %973 = arith.addf %969, %972 : vector<2x256xf32>
    %c83 = arith.constant 83 : index
    %974 = memref.load %arg5[%c83] : memref<288xf32, #tpu.memory_space<smem>>
    %975 = vector.broadcast %974 : f32 to vector<2x256xf32>
    %976 = arith.mulf %399, %975 : vector<2x256xf32>
    %977 = arith.addf %973, %976 : vector<2x256xf32>
    %c91 = arith.constant 91 : index
    %978 = memref.load %arg5[%c91] : memref<288xf32, #tpu.memory_space<smem>>
    %979 = vector.broadcast %978 : f32 to vector<2x256xf32>
    %980 = arith.mulf %455, %979 : vector<2x256xf32>
    %981 = arith.addf %977, %980 : vector<2x256xf32>
    %c99 = arith.constant 99 : index
    %982 = memref.load %arg5[%c99] : memref<288xf32, #tpu.memory_space<smem>>
    %983 = vector.broadcast %982 : f32 to vector<2x256xf32>
    %984 = arith.mulf %294, %983 : vector<2x256xf32>
    %985 = arith.addf %981, %984 : vector<2x256xf32>
    %c107 = arith.constant 107 : index
    %986 = memref.load %arg5[%c107] : memref<288xf32, #tpu.memory_space<smem>>
    %987 = vector.broadcast %986 : f32 to vector<2x256xf32>
    %988 = arith.mulf %350, %987 : vector<2x256xf32>
    %989 = arith.addf %985, %988 : vector<2x256xf32>
    %c115 = arith.constant 115 : index
    %990 = memref.load %arg5[%c115] : memref<288xf32, #tpu.memory_space<smem>>
    %991 = vector.broadcast %990 : f32 to vector<2x256xf32>
    %992 = arith.mulf %406, %991 : vector<2x256xf32>
    %993 = arith.addf %989, %992 : vector<2x256xf32>
    %c123 = arith.constant 123 : index
    %994 = memref.load %arg5[%c123] : memref<288xf32, #tpu.memory_space<smem>>
    %995 = vector.broadcast %994 : f32 to vector<2x256xf32>
    %996 = arith.mulf %462, %995 : vector<2x256xf32>
    %997 = arith.addf %993, %996 : vector<2x256xf32>
    %c131 = arith.constant 131 : index
    %998 = memref.load %arg5[%c131] : memref<288xf32, #tpu.memory_space<smem>>
    %999 = vector.broadcast %998 : f32 to vector<2x256xf32>
    %1000 = arith.mulf %56, %999 : vector<2x256xf32>
    %1001 = arith.addf %997, %1000 : vector<2x256xf32>
    %c139 = arith.constant 139 : index
    %1002 = memref.load %arg5[%c139] : memref<288xf32, #tpu.memory_space<smem>>
    %1003 = vector.broadcast %1002 : f32 to vector<2x256xf32>
    %1004 = arith.mulf %58, %1003 : vector<2x256xf32>
    %1005 = arith.addf %1001, %1004 : vector<2x256xf32>
    %c147 = arith.constant 147 : index
    %1006 = memref.load %arg5[%c147] : memref<288xf32, #tpu.memory_space<smem>>
    %1007 = vector.broadcast %1006 : f32 to vector<2x256xf32>
    %1008 = arith.mulf %60, %1007 : vector<2x256xf32>
    %1009 = arith.addf %1005, %1008 : vector<2x256xf32>
    %c155 = arith.constant 155 : index
    %1010 = memref.load %arg5[%c155] : memref<288xf32, #tpu.memory_space<smem>>
    %1011 = vector.broadcast %1010 : f32 to vector<2x256xf32>
    %1012 = arith.mulf %62, %1011 : vector<2x256xf32>
    %1013 = arith.addf %1009, %1012 : vector<2x256xf32>
    %c163 = arith.constant 163 : index
    %1014 = memref.load %arg5[%c163] : memref<288xf32, #tpu.memory_space<smem>>
    %1015 = vector.broadcast %1014 : f32 to vector<2x256xf32>
    %1016 = arith.mulf %301, %1015 : vector<2x256xf32>
    %1017 = arith.addf %1013, %1016 : vector<2x256xf32>
    %c171 = arith.constant 171 : index
    %1018 = memref.load %arg5[%c171] : memref<288xf32, #tpu.memory_space<smem>>
    %1019 = vector.broadcast %1018 : f32 to vector<2x256xf32>
    %1020 = arith.mulf %357, %1019 : vector<2x256xf32>
    %1021 = arith.addf %1017, %1020 : vector<2x256xf32>
    %c179 = arith.constant 179 : index
    %1022 = memref.load %arg5[%c179] : memref<288xf32, #tpu.memory_space<smem>>
    %1023 = vector.broadcast %1022 : f32 to vector<2x256xf32>
    %1024 = arith.mulf %413, %1023 : vector<2x256xf32>
    %1025 = arith.addf %1021, %1024 : vector<2x256xf32>
    %c187 = arith.constant 187 : index
    %1026 = memref.load %arg5[%c187] : memref<288xf32, #tpu.memory_space<smem>>
    %1027 = vector.broadcast %1026 : f32 to vector<2x256xf32>
    %1028 = arith.mulf %469, %1027 : vector<2x256xf32>
    %1029 = arith.addf %1025, %1028 : vector<2x256xf32>
    %c195 = arith.constant 195 : index
    %1030 = memref.load %arg5[%c195] : memref<288xf32, #tpu.memory_space<smem>>
    %1031 = vector.broadcast %1030 : f32 to vector<2x256xf32>
    %1032 = arith.mulf %308, %1031 : vector<2x256xf32>
    %1033 = arith.addf %1029, %1032 : vector<2x256xf32>
    %c203 = arith.constant 203 : index
    %1034 = memref.load %arg5[%c203] : memref<288xf32, #tpu.memory_space<smem>>
    %1035 = vector.broadcast %1034 : f32 to vector<2x256xf32>
    %1036 = arith.mulf %364, %1035 : vector<2x256xf32>
    %1037 = arith.addf %1033, %1036 : vector<2x256xf32>
    %c211 = arith.constant 211 : index
    %1038 = memref.load %arg5[%c211] : memref<288xf32, #tpu.memory_space<smem>>
    %1039 = vector.broadcast %1038 : f32 to vector<2x256xf32>
    %1040 = arith.mulf %420, %1039 : vector<2x256xf32>
    %1041 = arith.addf %1037, %1040 : vector<2x256xf32>
    %c219 = arith.constant 219 : index
    %1042 = memref.load %arg5[%c219] : memref<288xf32, #tpu.memory_space<smem>>
    %1043 = vector.broadcast %1042 : f32 to vector<2x256xf32>
    %1044 = arith.mulf %476, %1043 : vector<2x256xf32>
    %1045 = arith.addf %1041, %1044 : vector<2x256xf32>
    %c227 = arith.constant 227 : index
    %1046 = memref.load %arg5[%c227] : memref<288xf32, #tpu.memory_space<smem>>
    %1047 = vector.broadcast %1046 : f32 to vector<2x256xf32>
    %1048 = arith.mulf %315, %1047 : vector<2x256xf32>
    %1049 = arith.addf %1045, %1048 : vector<2x256xf32>
    %c235 = arith.constant 235 : index
    %1050 = memref.load %arg5[%c235] : memref<288xf32, #tpu.memory_space<smem>>
    %1051 = vector.broadcast %1050 : f32 to vector<2x256xf32>
    %1052 = arith.mulf %371, %1051 : vector<2x256xf32>
    %1053 = arith.addf %1049, %1052 : vector<2x256xf32>
    %c243 = arith.constant 243 : index
    %1054 = memref.load %arg5[%c243] : memref<288xf32, #tpu.memory_space<smem>>
    %1055 = vector.broadcast %1054 : f32 to vector<2x256xf32>
    %1056 = arith.mulf %427, %1055 : vector<2x256xf32>
    %1057 = arith.addf %1053, %1056 : vector<2x256xf32>
    %c251 = arith.constant 251 : index
    %1058 = memref.load %arg5[%c251] : memref<288xf32, #tpu.memory_space<smem>>
    %1059 = vector.broadcast %1058 : f32 to vector<2x256xf32>
    %1060 = arith.mulf %483, %1059 : vector<2x256xf32>
    %1061 = arith.addf %1057, %1060 : vector<2x256xf32>
    %c259 = arith.constant 259 : index
    %1062 = memref.load %arg5[%c259] : memref<288xf32, #tpu.memory_space<smem>>
    %1063 = vector.broadcast %1062 : f32 to vector<2x256xf32>
    %1064 = arith.mulf %322, %1063 : vector<2x256xf32>
    %1065 = arith.addf %1061, %1064 : vector<2x256xf32>
    %c267 = arith.constant 267 : index
    %1066 = memref.load %arg5[%c267] : memref<288xf32, #tpu.memory_space<smem>>
    %1067 = vector.broadcast %1066 : f32 to vector<2x256xf32>
    %1068 = arith.mulf %378, %1067 : vector<2x256xf32>
    %1069 = arith.addf %1065, %1068 : vector<2x256xf32>
    %c275 = arith.constant 275 : index
    %1070 = memref.load %arg5[%c275] : memref<288xf32, #tpu.memory_space<smem>>
    %1071 = vector.broadcast %1070 : f32 to vector<2x256xf32>
    %1072 = arith.mulf %434, %1071 : vector<2x256xf32>
    %1073 = arith.addf %1069, %1072 : vector<2x256xf32>
    %c283 = arith.constant 283 : index
    %1074 = memref.load %arg5[%c283] : memref<288xf32, #tpu.memory_space<smem>>
    %1075 = vector.broadcast %1074 : f32 to vector<2x256xf32>
    %1076 = arith.mulf %490, %1075 : vector<2x256xf32>
    %1077 = arith.addf %1073, %1076 : vector<2x256xf32>
    %c3_86 = arith.constant 3 : index
    %1078 = memref.load %arg6[%c3_86] : memref<8xf32, #tpu.memory_space<smem>>
    %1079 = vector.broadcast %1078 : f32 to vector<2x256xf32>
    %1080 = arith.addf %1077, %1079 : vector<2x256xf32>
    %cst_87 = arith.constant 0.000000e+00 : f32
    %1081 = vector.broadcast %cst_87 : f32 to vector<2x256xf32>
    %1082 = arith.maximumf %1080, %1081 : vector<2x256xf32>
    %c4_88 = arith.constant 4 : index
    %1083 = memref.load %arg5[%c4_88] : memref<288xf32, #tpu.memory_space<smem>>
    %1084 = vector.broadcast %1083 : f32 to vector<2x256xf32>
    %1085 = arith.mulf %273, %1084 : vector<2x256xf32>
    %c12_89 = arith.constant 12 : index
    %1086 = memref.load %arg5[%c12_89] : memref<288xf32, #tpu.memory_space<smem>>
    %1087 = vector.broadcast %1086 : f32 to vector<2x256xf32>
    %1088 = arith.mulf %329, %1087 : vector<2x256xf32>
    %1089 = arith.addf %1085, %1088 : vector<2x256xf32>
    %c20_90 = arith.constant 20 : index
    %1090 = memref.load %arg5[%c20_90] : memref<288xf32, #tpu.memory_space<smem>>
    %1091 = vector.broadcast %1090 : f32 to vector<2x256xf32>
    %1092 = arith.mulf %385, %1091 : vector<2x256xf32>
    %1093 = arith.addf %1089, %1092 : vector<2x256xf32>
    %c28_91 = arith.constant 28 : index
    %1094 = memref.load %arg5[%c28_91] : memref<288xf32, #tpu.memory_space<smem>>
    %1095 = vector.broadcast %1094 : f32 to vector<2x256xf32>
    %1096 = arith.mulf %441, %1095 : vector<2x256xf32>
    %1097 = arith.addf %1093, %1096 : vector<2x256xf32>
    %c36 = arith.constant 36 : index
    %1098 = memref.load %arg5[%c36] : memref<288xf32, #tpu.memory_space<smem>>
    %1099 = vector.broadcast %1098 : f32 to vector<2x256xf32>
    %1100 = arith.mulf %280, %1099 : vector<2x256xf32>
    %1101 = arith.addf %1097, %1100 : vector<2x256xf32>
    %c44 = arith.constant 44 : index
    %1102 = memref.load %arg5[%c44] : memref<288xf32, #tpu.memory_space<smem>>
    %1103 = vector.broadcast %1102 : f32 to vector<2x256xf32>
    %1104 = arith.mulf %336, %1103 : vector<2x256xf32>
    %1105 = arith.addf %1101, %1104 : vector<2x256xf32>
    %c52 = arith.constant 52 : index
    %1106 = memref.load %arg5[%c52] : memref<288xf32, #tpu.memory_space<smem>>
    %1107 = vector.broadcast %1106 : f32 to vector<2x256xf32>
    %1108 = arith.mulf %392, %1107 : vector<2x256xf32>
    %1109 = arith.addf %1105, %1108 : vector<2x256xf32>
    %c60 = arith.constant 60 : index
    %1110 = memref.load %arg5[%c60] : memref<288xf32, #tpu.memory_space<smem>>
    %1111 = vector.broadcast %1110 : f32 to vector<2x256xf32>
    %1112 = arith.mulf %448, %1111 : vector<2x256xf32>
    %1113 = arith.addf %1109, %1112 : vector<2x256xf32>
    %c68 = arith.constant 68 : index
    %1114 = memref.load %arg5[%c68] : memref<288xf32, #tpu.memory_space<smem>>
    %1115 = vector.broadcast %1114 : f32 to vector<2x256xf32>
    %1116 = arith.mulf %287, %1115 : vector<2x256xf32>
    %1117 = arith.addf %1113, %1116 : vector<2x256xf32>
    %c76 = arith.constant 76 : index
    %1118 = memref.load %arg5[%c76] : memref<288xf32, #tpu.memory_space<smem>>
    %1119 = vector.broadcast %1118 : f32 to vector<2x256xf32>
    %1120 = arith.mulf %343, %1119 : vector<2x256xf32>
    %1121 = arith.addf %1117, %1120 : vector<2x256xf32>
    %c84 = arith.constant 84 : index
    %1122 = memref.load %arg5[%c84] : memref<288xf32, #tpu.memory_space<smem>>
    %1123 = vector.broadcast %1122 : f32 to vector<2x256xf32>
    %1124 = arith.mulf %399, %1123 : vector<2x256xf32>
    %1125 = arith.addf %1121, %1124 : vector<2x256xf32>
    %c92 = arith.constant 92 : index
    %1126 = memref.load %arg5[%c92] : memref<288xf32, #tpu.memory_space<smem>>
    %1127 = vector.broadcast %1126 : f32 to vector<2x256xf32>
    %1128 = arith.mulf %455, %1127 : vector<2x256xf32>
    %1129 = arith.addf %1125, %1128 : vector<2x256xf32>
    %c100 = arith.constant 100 : index
    %1130 = memref.load %arg5[%c100] : memref<288xf32, #tpu.memory_space<smem>>
    %1131 = vector.broadcast %1130 : f32 to vector<2x256xf32>
    %1132 = arith.mulf %294, %1131 : vector<2x256xf32>
    %1133 = arith.addf %1129, %1132 : vector<2x256xf32>
    %c108 = arith.constant 108 : index
    %1134 = memref.load %arg5[%c108] : memref<288xf32, #tpu.memory_space<smem>>
    %1135 = vector.broadcast %1134 : f32 to vector<2x256xf32>
    %1136 = arith.mulf %350, %1135 : vector<2x256xf32>
    %1137 = arith.addf %1133, %1136 : vector<2x256xf32>
    %c116 = arith.constant 116 : index
    %1138 = memref.load %arg5[%c116] : memref<288xf32, #tpu.memory_space<smem>>
    %1139 = vector.broadcast %1138 : f32 to vector<2x256xf32>
    %1140 = arith.mulf %406, %1139 : vector<2x256xf32>
    %1141 = arith.addf %1137, %1140 : vector<2x256xf32>
    %c124 = arith.constant 124 : index
    %1142 = memref.load %arg5[%c124] : memref<288xf32, #tpu.memory_space<smem>>
    %1143 = vector.broadcast %1142 : f32 to vector<2x256xf32>
    %1144 = arith.mulf %462, %1143 : vector<2x256xf32>
    %1145 = arith.addf %1141, %1144 : vector<2x256xf32>
    %c132 = arith.constant 132 : index
    %1146 = memref.load %arg5[%c132] : memref<288xf32, #tpu.memory_space<smem>>
    %1147 = vector.broadcast %1146 : f32 to vector<2x256xf32>
    %1148 = arith.mulf %56, %1147 : vector<2x256xf32>
    %1149 = arith.addf %1145, %1148 : vector<2x256xf32>
    %c140 = arith.constant 140 : index
    %1150 = memref.load %arg5[%c140] : memref<288xf32, #tpu.memory_space<smem>>
    %1151 = vector.broadcast %1150 : f32 to vector<2x256xf32>
    %1152 = arith.mulf %58, %1151 : vector<2x256xf32>
    %1153 = arith.addf %1149, %1152 : vector<2x256xf32>
    %c148 = arith.constant 148 : index
    %1154 = memref.load %arg5[%c148] : memref<288xf32, #tpu.memory_space<smem>>
    %1155 = vector.broadcast %1154 : f32 to vector<2x256xf32>
    %1156 = arith.mulf %60, %1155 : vector<2x256xf32>
    %1157 = arith.addf %1153, %1156 : vector<2x256xf32>
    %c156 = arith.constant 156 : index
    %1158 = memref.load %arg5[%c156] : memref<288xf32, #tpu.memory_space<smem>>
    %1159 = vector.broadcast %1158 : f32 to vector<2x256xf32>
    %1160 = arith.mulf %62, %1159 : vector<2x256xf32>
    %1161 = arith.addf %1157, %1160 : vector<2x256xf32>
    %c164 = arith.constant 164 : index
    %1162 = memref.load %arg5[%c164] : memref<288xf32, #tpu.memory_space<smem>>
    %1163 = vector.broadcast %1162 : f32 to vector<2x256xf32>
    %1164 = arith.mulf %301, %1163 : vector<2x256xf32>
    %1165 = arith.addf %1161, %1164 : vector<2x256xf32>
    %c172 = arith.constant 172 : index
    %1166 = memref.load %arg5[%c172] : memref<288xf32, #tpu.memory_space<smem>>
    %1167 = vector.broadcast %1166 : f32 to vector<2x256xf32>
    %1168 = arith.mulf %357, %1167 : vector<2x256xf32>
    %1169 = arith.addf %1165, %1168 : vector<2x256xf32>
    %c180 = arith.constant 180 : index
    %1170 = memref.load %arg5[%c180] : memref<288xf32, #tpu.memory_space<smem>>
    %1171 = vector.broadcast %1170 : f32 to vector<2x256xf32>
    %1172 = arith.mulf %413, %1171 : vector<2x256xf32>
    %1173 = arith.addf %1169, %1172 : vector<2x256xf32>
    %c188 = arith.constant 188 : index
    %1174 = memref.load %arg5[%c188] : memref<288xf32, #tpu.memory_space<smem>>
    %1175 = vector.broadcast %1174 : f32 to vector<2x256xf32>
    %1176 = arith.mulf %469, %1175 : vector<2x256xf32>
    %1177 = arith.addf %1173, %1176 : vector<2x256xf32>
    %c196 = arith.constant 196 : index
    %1178 = memref.load %arg5[%c196] : memref<288xf32, #tpu.memory_space<smem>>
    %1179 = vector.broadcast %1178 : f32 to vector<2x256xf32>
    %1180 = arith.mulf %308, %1179 : vector<2x256xf32>
    %1181 = arith.addf %1177, %1180 : vector<2x256xf32>
    %c204 = arith.constant 204 : index
    %1182 = memref.load %arg5[%c204] : memref<288xf32, #tpu.memory_space<smem>>
    %1183 = vector.broadcast %1182 : f32 to vector<2x256xf32>
    %1184 = arith.mulf %364, %1183 : vector<2x256xf32>
    %1185 = arith.addf %1181, %1184 : vector<2x256xf32>
    %c212 = arith.constant 212 : index
    %1186 = memref.load %arg5[%c212] : memref<288xf32, #tpu.memory_space<smem>>
    %1187 = vector.broadcast %1186 : f32 to vector<2x256xf32>
    %1188 = arith.mulf %420, %1187 : vector<2x256xf32>
    %1189 = arith.addf %1185, %1188 : vector<2x256xf32>
    %c220 = arith.constant 220 : index
    %1190 = memref.load %arg5[%c220] : memref<288xf32, #tpu.memory_space<smem>>
    %1191 = vector.broadcast %1190 : f32 to vector<2x256xf32>
    %1192 = arith.mulf %476, %1191 : vector<2x256xf32>
    %1193 = arith.addf %1189, %1192 : vector<2x256xf32>
    %c228 = arith.constant 228 : index
    %1194 = memref.load %arg5[%c228] : memref<288xf32, #tpu.memory_space<smem>>
    %1195 = vector.broadcast %1194 : f32 to vector<2x256xf32>
    %1196 = arith.mulf %315, %1195 : vector<2x256xf32>
    %1197 = arith.addf %1193, %1196 : vector<2x256xf32>
    %c236 = arith.constant 236 : index
    %1198 = memref.load %arg5[%c236] : memref<288xf32, #tpu.memory_space<smem>>
    %1199 = vector.broadcast %1198 : f32 to vector<2x256xf32>
    %1200 = arith.mulf %371, %1199 : vector<2x256xf32>
    %1201 = arith.addf %1197, %1200 : vector<2x256xf32>
    %c244 = arith.constant 244 : index
    %1202 = memref.load %arg5[%c244] : memref<288xf32, #tpu.memory_space<smem>>
    %1203 = vector.broadcast %1202 : f32 to vector<2x256xf32>
    %1204 = arith.mulf %427, %1203 : vector<2x256xf32>
    %1205 = arith.addf %1201, %1204 : vector<2x256xf32>
    %c252 = arith.constant 252 : index
    %1206 = memref.load %arg5[%c252] : memref<288xf32, #tpu.memory_space<smem>>
    %1207 = vector.broadcast %1206 : f32 to vector<2x256xf32>
    %1208 = arith.mulf %483, %1207 : vector<2x256xf32>
    %1209 = arith.addf %1205, %1208 : vector<2x256xf32>
    %c260 = arith.constant 260 : index
    %1210 = memref.load %arg5[%c260] : memref<288xf32, #tpu.memory_space<smem>>
    %1211 = vector.broadcast %1210 : f32 to vector<2x256xf32>
    %1212 = arith.mulf %322, %1211 : vector<2x256xf32>
    %1213 = arith.addf %1209, %1212 : vector<2x256xf32>
    %c268 = arith.constant 268 : index
    %1214 = memref.load %arg5[%c268] : memref<288xf32, #tpu.memory_space<smem>>
    %1215 = vector.broadcast %1214 : f32 to vector<2x256xf32>
    %1216 = arith.mulf %378, %1215 : vector<2x256xf32>
    %1217 = arith.addf %1213, %1216 : vector<2x256xf32>
    %c276 = arith.constant 276 : index
    %1218 = memref.load %arg5[%c276] : memref<288xf32, #tpu.memory_space<smem>>
    %1219 = vector.broadcast %1218 : f32 to vector<2x256xf32>
    %1220 = arith.mulf %434, %1219 : vector<2x256xf32>
    %1221 = arith.addf %1217, %1220 : vector<2x256xf32>
    %c284 = arith.constant 284 : index
    %1222 = memref.load %arg5[%c284] : memref<288xf32, #tpu.memory_space<smem>>
    %1223 = vector.broadcast %1222 : f32 to vector<2x256xf32>
    %1224 = arith.mulf %490, %1223 : vector<2x256xf32>
    %1225 = arith.addf %1221, %1224 : vector<2x256xf32>
    %c4_92 = arith.constant 4 : index
    %1226 = memref.load %arg6[%c4_92] : memref<8xf32, #tpu.memory_space<smem>>
    %1227 = vector.broadcast %1226 : f32 to vector<2x256xf32>
    %1228 = arith.addf %1225, %1227 : vector<2x256xf32>
    %cst_93 = arith.constant 0.000000e+00 : f32
    %1229 = vector.broadcast %cst_93 : f32 to vector<2x256xf32>
    %1230 = arith.maximumf %1228, %1229 : vector<2x256xf32>
    %c5_94 = arith.constant 5 : index
    %1231 = memref.load %arg5[%c5_94] : memref<288xf32, #tpu.memory_space<smem>>
    %1232 = vector.broadcast %1231 : f32 to vector<2x256xf32>
    %1233 = arith.mulf %273, %1232 : vector<2x256xf32>
    %c13_95 = arith.constant 13 : index
    %1234 = memref.load %arg5[%c13_95] : memref<288xf32, #tpu.memory_space<smem>>
    %1235 = vector.broadcast %1234 : f32 to vector<2x256xf32>
    %1236 = arith.mulf %329, %1235 : vector<2x256xf32>
    %1237 = arith.addf %1233, %1236 : vector<2x256xf32>
    %c21_96 = arith.constant 21 : index
    %1238 = memref.load %arg5[%c21_96] : memref<288xf32, #tpu.memory_space<smem>>
    %1239 = vector.broadcast %1238 : f32 to vector<2x256xf32>
    %1240 = arith.mulf %385, %1239 : vector<2x256xf32>
    %1241 = arith.addf %1237, %1240 : vector<2x256xf32>
    %c29_97 = arith.constant 29 : index
    %1242 = memref.load %arg5[%c29_97] : memref<288xf32, #tpu.memory_space<smem>>
    %1243 = vector.broadcast %1242 : f32 to vector<2x256xf32>
    %1244 = arith.mulf %441, %1243 : vector<2x256xf32>
    %1245 = arith.addf %1241, %1244 : vector<2x256xf32>
    %c37 = arith.constant 37 : index
    %1246 = memref.load %arg5[%c37] : memref<288xf32, #tpu.memory_space<smem>>
    %1247 = vector.broadcast %1246 : f32 to vector<2x256xf32>
    %1248 = arith.mulf %280, %1247 : vector<2x256xf32>
    %1249 = arith.addf %1245, %1248 : vector<2x256xf32>
    %c45 = arith.constant 45 : index
    %1250 = memref.load %arg5[%c45] : memref<288xf32, #tpu.memory_space<smem>>
    %1251 = vector.broadcast %1250 : f32 to vector<2x256xf32>
    %1252 = arith.mulf %336, %1251 : vector<2x256xf32>
    %1253 = arith.addf %1249, %1252 : vector<2x256xf32>
    %c53 = arith.constant 53 : index
    %1254 = memref.load %arg5[%c53] : memref<288xf32, #tpu.memory_space<smem>>
    %1255 = vector.broadcast %1254 : f32 to vector<2x256xf32>
    %1256 = arith.mulf %392, %1255 : vector<2x256xf32>
    %1257 = arith.addf %1253, %1256 : vector<2x256xf32>
    %c61 = arith.constant 61 : index
    %1258 = memref.load %arg5[%c61] : memref<288xf32, #tpu.memory_space<smem>>
    %1259 = vector.broadcast %1258 : f32 to vector<2x256xf32>
    %1260 = arith.mulf %448, %1259 : vector<2x256xf32>
    %1261 = arith.addf %1257, %1260 : vector<2x256xf32>
    %c69 = arith.constant 69 : index
    %1262 = memref.load %arg5[%c69] : memref<288xf32, #tpu.memory_space<smem>>
    %1263 = vector.broadcast %1262 : f32 to vector<2x256xf32>
    %1264 = arith.mulf %287, %1263 : vector<2x256xf32>
    %1265 = arith.addf %1261, %1264 : vector<2x256xf32>
    %c77 = arith.constant 77 : index
    %1266 = memref.load %arg5[%c77] : memref<288xf32, #tpu.memory_space<smem>>
    %1267 = vector.broadcast %1266 : f32 to vector<2x256xf32>
    %1268 = arith.mulf %343, %1267 : vector<2x256xf32>
    %1269 = arith.addf %1265, %1268 : vector<2x256xf32>
    %c85 = arith.constant 85 : index
    %1270 = memref.load %arg5[%c85] : memref<288xf32, #tpu.memory_space<smem>>
    %1271 = vector.broadcast %1270 : f32 to vector<2x256xf32>
    %1272 = arith.mulf %399, %1271 : vector<2x256xf32>
    %1273 = arith.addf %1269, %1272 : vector<2x256xf32>
    %c93 = arith.constant 93 : index
    %1274 = memref.load %arg5[%c93] : memref<288xf32, #tpu.memory_space<smem>>
    %1275 = vector.broadcast %1274 : f32 to vector<2x256xf32>
    %1276 = arith.mulf %455, %1275 : vector<2x256xf32>
    %1277 = arith.addf %1273, %1276 : vector<2x256xf32>
    %c101 = arith.constant 101 : index
    %1278 = memref.load %arg5[%c101] : memref<288xf32, #tpu.memory_space<smem>>
    %1279 = vector.broadcast %1278 : f32 to vector<2x256xf32>
    %1280 = arith.mulf %294, %1279 : vector<2x256xf32>
    %1281 = arith.addf %1277, %1280 : vector<2x256xf32>
    %c109 = arith.constant 109 : index
    %1282 = memref.load %arg5[%c109] : memref<288xf32, #tpu.memory_space<smem>>
    %1283 = vector.broadcast %1282 : f32 to vector<2x256xf32>
    %1284 = arith.mulf %350, %1283 : vector<2x256xf32>
    %1285 = arith.addf %1281, %1284 : vector<2x256xf32>
    %c117 = arith.constant 117 : index
    %1286 = memref.load %arg5[%c117] : memref<288xf32, #tpu.memory_space<smem>>
    %1287 = vector.broadcast %1286 : f32 to vector<2x256xf32>
    %1288 = arith.mulf %406, %1287 : vector<2x256xf32>
    %1289 = arith.addf %1285, %1288 : vector<2x256xf32>
    %c125 = arith.constant 125 : index
    %1290 = memref.load %arg5[%c125] : memref<288xf32, #tpu.memory_space<smem>>
    %1291 = vector.broadcast %1290 : f32 to vector<2x256xf32>
    %1292 = arith.mulf %462, %1291 : vector<2x256xf32>
    %1293 = arith.addf %1289, %1292 : vector<2x256xf32>
    %c133 = arith.constant 133 : index
    %1294 = memref.load %arg5[%c133] : memref<288xf32, #tpu.memory_space<smem>>
    %1295 = vector.broadcast %1294 : f32 to vector<2x256xf32>
    %1296 = arith.mulf %56, %1295 : vector<2x256xf32>
    %1297 = arith.addf %1293, %1296 : vector<2x256xf32>
    %c141 = arith.constant 141 : index
    %1298 = memref.load %arg5[%c141] : memref<288xf32, #tpu.memory_space<smem>>
    %1299 = vector.broadcast %1298 : f32 to vector<2x256xf32>
    %1300 = arith.mulf %58, %1299 : vector<2x256xf32>
    %1301 = arith.addf %1297, %1300 : vector<2x256xf32>
    %c149 = arith.constant 149 : index
    %1302 = memref.load %arg5[%c149] : memref<288xf32, #tpu.memory_space<smem>>
    %1303 = vector.broadcast %1302 : f32 to vector<2x256xf32>
    %1304 = arith.mulf %60, %1303 : vector<2x256xf32>
    %1305 = arith.addf %1301, %1304 : vector<2x256xf32>
    %c157 = arith.constant 157 : index
    %1306 = memref.load %arg5[%c157] : memref<288xf32, #tpu.memory_space<smem>>
    %1307 = vector.broadcast %1306 : f32 to vector<2x256xf32>
    %1308 = arith.mulf %62, %1307 : vector<2x256xf32>
    %1309 = arith.addf %1305, %1308 : vector<2x256xf32>
    %c165 = arith.constant 165 : index
    %1310 = memref.load %arg5[%c165] : memref<288xf32, #tpu.memory_space<smem>>
    %1311 = vector.broadcast %1310 : f32 to vector<2x256xf32>
    %1312 = arith.mulf %301, %1311 : vector<2x256xf32>
    %1313 = arith.addf %1309, %1312 : vector<2x256xf32>
    %c173 = arith.constant 173 : index
    %1314 = memref.load %arg5[%c173] : memref<288xf32, #tpu.memory_space<smem>>
    %1315 = vector.broadcast %1314 : f32 to vector<2x256xf32>
    %1316 = arith.mulf %357, %1315 : vector<2x256xf32>
    %1317 = arith.addf %1313, %1316 : vector<2x256xf32>
    %c181 = arith.constant 181 : index
    %1318 = memref.load %arg5[%c181] : memref<288xf32, #tpu.memory_space<smem>>
    %1319 = vector.broadcast %1318 : f32 to vector<2x256xf32>
    %1320 = arith.mulf %413, %1319 : vector<2x256xf32>
    %1321 = arith.addf %1317, %1320 : vector<2x256xf32>
    %c189 = arith.constant 189 : index
    %1322 = memref.load %arg5[%c189] : memref<288xf32, #tpu.memory_space<smem>>
    %1323 = vector.broadcast %1322 : f32 to vector<2x256xf32>
    %1324 = arith.mulf %469, %1323 : vector<2x256xf32>
    %1325 = arith.addf %1321, %1324 : vector<2x256xf32>
    %c197 = arith.constant 197 : index
    %1326 = memref.load %arg5[%c197] : memref<288xf32, #tpu.memory_space<smem>>
    %1327 = vector.broadcast %1326 : f32 to vector<2x256xf32>
    %1328 = arith.mulf %308, %1327 : vector<2x256xf32>
    %1329 = arith.addf %1325, %1328 : vector<2x256xf32>
    %c205 = arith.constant 205 : index
    %1330 = memref.load %arg5[%c205] : memref<288xf32, #tpu.memory_space<smem>>
    %1331 = vector.broadcast %1330 : f32 to vector<2x256xf32>
    %1332 = arith.mulf %364, %1331 : vector<2x256xf32>
    %1333 = arith.addf %1329, %1332 : vector<2x256xf32>
    %c213 = arith.constant 213 : index
    %1334 = memref.load %arg5[%c213] : memref<288xf32, #tpu.memory_space<smem>>
    %1335 = vector.broadcast %1334 : f32 to vector<2x256xf32>
    %1336 = arith.mulf %420, %1335 : vector<2x256xf32>
    %1337 = arith.addf %1333, %1336 : vector<2x256xf32>
    %c221 = arith.constant 221 : index
    %1338 = memref.load %arg5[%c221] : memref<288xf32, #tpu.memory_space<smem>>
    %1339 = vector.broadcast %1338 : f32 to vector<2x256xf32>
    %1340 = arith.mulf %476, %1339 : vector<2x256xf32>
    %1341 = arith.addf %1337, %1340 : vector<2x256xf32>
    %c229 = arith.constant 229 : index
    %1342 = memref.load %arg5[%c229] : memref<288xf32, #tpu.memory_space<smem>>
    %1343 = vector.broadcast %1342 : f32 to vector<2x256xf32>
    %1344 = arith.mulf %315, %1343 : vector<2x256xf32>
    %1345 = arith.addf %1341, %1344 : vector<2x256xf32>
    %c237 = arith.constant 237 : index
    %1346 = memref.load %arg5[%c237] : memref<288xf32, #tpu.memory_space<smem>>
    %1347 = vector.broadcast %1346 : f32 to vector<2x256xf32>
    %1348 = arith.mulf %371, %1347 : vector<2x256xf32>
    %1349 = arith.addf %1345, %1348 : vector<2x256xf32>
    %c245 = arith.constant 245 : index
    %1350 = memref.load %arg5[%c245] : memref<288xf32, #tpu.memory_space<smem>>
    %1351 = vector.broadcast %1350 : f32 to vector<2x256xf32>
    %1352 = arith.mulf %427, %1351 : vector<2x256xf32>
    %1353 = arith.addf %1349, %1352 : vector<2x256xf32>
    %c253 = arith.constant 253 : index
    %1354 = memref.load %arg5[%c253] : memref<288xf32, #tpu.memory_space<smem>>
    %1355 = vector.broadcast %1354 : f32 to vector<2x256xf32>
    %1356 = arith.mulf %483, %1355 : vector<2x256xf32>
    %1357 = arith.addf %1353, %1356 : vector<2x256xf32>
    %c261 = arith.constant 261 : index
    %1358 = memref.load %arg5[%c261] : memref<288xf32, #tpu.memory_space<smem>>
    %1359 = vector.broadcast %1358 : f32 to vector<2x256xf32>
    %1360 = arith.mulf %322, %1359 : vector<2x256xf32>
    %1361 = arith.addf %1357, %1360 : vector<2x256xf32>
    %c269 = arith.constant 269 : index
    %1362 = memref.load %arg5[%c269] : memref<288xf32, #tpu.memory_space<smem>>
    %1363 = vector.broadcast %1362 : f32 to vector<2x256xf32>
    %1364 = arith.mulf %378, %1363 : vector<2x256xf32>
    %1365 = arith.addf %1361, %1364 : vector<2x256xf32>
    %c277 = arith.constant 277 : index
    %1366 = memref.load %arg5[%c277] : memref<288xf32, #tpu.memory_space<smem>>
    %1367 = vector.broadcast %1366 : f32 to vector<2x256xf32>
    %1368 = arith.mulf %434, %1367 : vector<2x256xf32>
    %1369 = arith.addf %1365, %1368 : vector<2x256xf32>
    %c285 = arith.constant 285 : index
    %1370 = memref.load %arg5[%c285] : memref<288xf32, #tpu.memory_space<smem>>
    %1371 = vector.broadcast %1370 : f32 to vector<2x256xf32>
    %1372 = arith.mulf %490, %1371 : vector<2x256xf32>
    %1373 = arith.addf %1369, %1372 : vector<2x256xf32>
    %c5_98 = arith.constant 5 : index
    %1374 = memref.load %arg6[%c5_98] : memref<8xf32, #tpu.memory_space<smem>>
    %1375 = vector.broadcast %1374 : f32 to vector<2x256xf32>
    %1376 = arith.addf %1373, %1375 : vector<2x256xf32>
    %cst_99 = arith.constant 0.000000e+00 : f32
    %1377 = vector.broadcast %cst_99 : f32 to vector<2x256xf32>
    %1378 = arith.maximumf %1376, %1377 : vector<2x256xf32>
    %c6_100 = arith.constant 6 : index
    %1379 = memref.load %arg5[%c6_100] : memref<288xf32, #tpu.memory_space<smem>>
    %1380 = vector.broadcast %1379 : f32 to vector<2x256xf32>
    %1381 = arith.mulf %273, %1380 : vector<2x256xf32>
    %c14_101 = arith.constant 14 : index
    %1382 = memref.load %arg5[%c14_101] : memref<288xf32, #tpu.memory_space<smem>>
    %1383 = vector.broadcast %1382 : f32 to vector<2x256xf32>
    %1384 = arith.mulf %329, %1383 : vector<2x256xf32>
    %1385 = arith.addf %1381, %1384 : vector<2x256xf32>
    %c22_102 = arith.constant 22 : index
    %1386 = memref.load %arg5[%c22_102] : memref<288xf32, #tpu.memory_space<smem>>
    %1387 = vector.broadcast %1386 : f32 to vector<2x256xf32>
    %1388 = arith.mulf %385, %1387 : vector<2x256xf32>
    %1389 = arith.addf %1385, %1388 : vector<2x256xf32>
    %c30_103 = arith.constant 30 : index
    %1390 = memref.load %arg5[%c30_103] : memref<288xf32, #tpu.memory_space<smem>>
    %1391 = vector.broadcast %1390 : f32 to vector<2x256xf32>
    %1392 = arith.mulf %441, %1391 : vector<2x256xf32>
    %1393 = arith.addf %1389, %1392 : vector<2x256xf32>
    %c38 = arith.constant 38 : index
    %1394 = memref.load %arg5[%c38] : memref<288xf32, #tpu.memory_space<smem>>
    %1395 = vector.broadcast %1394 : f32 to vector<2x256xf32>
    %1396 = arith.mulf %280, %1395 : vector<2x256xf32>
    %1397 = arith.addf %1393, %1396 : vector<2x256xf32>
    %c46 = arith.constant 46 : index
    %1398 = memref.load %arg5[%c46] : memref<288xf32, #tpu.memory_space<smem>>
    %1399 = vector.broadcast %1398 : f32 to vector<2x256xf32>
    %1400 = arith.mulf %336, %1399 : vector<2x256xf32>
    %1401 = arith.addf %1397, %1400 : vector<2x256xf32>
    %c54 = arith.constant 54 : index
    %1402 = memref.load %arg5[%c54] : memref<288xf32, #tpu.memory_space<smem>>
    %1403 = vector.broadcast %1402 : f32 to vector<2x256xf32>
    %1404 = arith.mulf %392, %1403 : vector<2x256xf32>
    %1405 = arith.addf %1401, %1404 : vector<2x256xf32>
    %c62 = arith.constant 62 : index
    %1406 = memref.load %arg5[%c62] : memref<288xf32, #tpu.memory_space<smem>>
    %1407 = vector.broadcast %1406 : f32 to vector<2x256xf32>
    %1408 = arith.mulf %448, %1407 : vector<2x256xf32>
    %1409 = arith.addf %1405, %1408 : vector<2x256xf32>
    %c70 = arith.constant 70 : index
    %1410 = memref.load %arg5[%c70] : memref<288xf32, #tpu.memory_space<smem>>
    %1411 = vector.broadcast %1410 : f32 to vector<2x256xf32>
    %1412 = arith.mulf %287, %1411 : vector<2x256xf32>
    %1413 = arith.addf %1409, %1412 : vector<2x256xf32>
    %c78 = arith.constant 78 : index
    %1414 = memref.load %arg5[%c78] : memref<288xf32, #tpu.memory_space<smem>>
    %1415 = vector.broadcast %1414 : f32 to vector<2x256xf32>
    %1416 = arith.mulf %343, %1415 : vector<2x256xf32>
    %1417 = arith.addf %1413, %1416 : vector<2x256xf32>
    %c86 = arith.constant 86 : index
    %1418 = memref.load %arg5[%c86] : memref<288xf32, #tpu.memory_space<smem>>
    %1419 = vector.broadcast %1418 : f32 to vector<2x256xf32>
    %1420 = arith.mulf %399, %1419 : vector<2x256xf32>
    %1421 = arith.addf %1417, %1420 : vector<2x256xf32>
    %c94 = arith.constant 94 : index
    %1422 = memref.load %arg5[%c94] : memref<288xf32, #tpu.memory_space<smem>>
    %1423 = vector.broadcast %1422 : f32 to vector<2x256xf32>
    %1424 = arith.mulf %455, %1423 : vector<2x256xf32>
    %1425 = arith.addf %1421, %1424 : vector<2x256xf32>
    %c102 = arith.constant 102 : index
    %1426 = memref.load %arg5[%c102] : memref<288xf32, #tpu.memory_space<smem>>
    %1427 = vector.broadcast %1426 : f32 to vector<2x256xf32>
    %1428 = arith.mulf %294, %1427 : vector<2x256xf32>
    %1429 = arith.addf %1425, %1428 : vector<2x256xf32>
    %c110 = arith.constant 110 : index
    %1430 = memref.load %arg5[%c110] : memref<288xf32, #tpu.memory_space<smem>>
    %1431 = vector.broadcast %1430 : f32 to vector<2x256xf32>
    %1432 = arith.mulf %350, %1431 : vector<2x256xf32>
    %1433 = arith.addf %1429, %1432 : vector<2x256xf32>
    %c118 = arith.constant 118 : index
    %1434 = memref.load %arg5[%c118] : memref<288xf32, #tpu.memory_space<smem>>
    %1435 = vector.broadcast %1434 : f32 to vector<2x256xf32>
    %1436 = arith.mulf %406, %1435 : vector<2x256xf32>
    %1437 = arith.addf %1433, %1436 : vector<2x256xf32>
    %c126 = arith.constant 126 : index
    %1438 = memref.load %arg5[%c126] : memref<288xf32, #tpu.memory_space<smem>>
    %1439 = vector.broadcast %1438 : f32 to vector<2x256xf32>
    %1440 = arith.mulf %462, %1439 : vector<2x256xf32>
    %1441 = arith.addf %1437, %1440 : vector<2x256xf32>
    %c134 = arith.constant 134 : index
    %1442 = memref.load %arg5[%c134] : memref<288xf32, #tpu.memory_space<smem>>
    %1443 = vector.broadcast %1442 : f32 to vector<2x256xf32>
    %1444 = arith.mulf %56, %1443 : vector<2x256xf32>
    %1445 = arith.addf %1441, %1444 : vector<2x256xf32>
    %c142 = arith.constant 142 : index
    %1446 = memref.load %arg5[%c142] : memref<288xf32, #tpu.memory_space<smem>>
    %1447 = vector.broadcast %1446 : f32 to vector<2x256xf32>
    %1448 = arith.mulf %58, %1447 : vector<2x256xf32>
    %1449 = arith.addf %1445, %1448 : vector<2x256xf32>
    %c150 = arith.constant 150 : index
    %1450 = memref.load %arg5[%c150] : memref<288xf32, #tpu.memory_space<smem>>
    %1451 = vector.broadcast %1450 : f32 to vector<2x256xf32>
    %1452 = arith.mulf %60, %1451 : vector<2x256xf32>
    %1453 = arith.addf %1449, %1452 : vector<2x256xf32>
    %c158 = arith.constant 158 : index
    %1454 = memref.load %arg5[%c158] : memref<288xf32, #tpu.memory_space<smem>>
    %1455 = vector.broadcast %1454 : f32 to vector<2x256xf32>
    %1456 = arith.mulf %62, %1455 : vector<2x256xf32>
    %1457 = arith.addf %1453, %1456 : vector<2x256xf32>
    %c166 = arith.constant 166 : index
    %1458 = memref.load %arg5[%c166] : memref<288xf32, #tpu.memory_space<smem>>
    %1459 = vector.broadcast %1458 : f32 to vector<2x256xf32>
    %1460 = arith.mulf %301, %1459 : vector<2x256xf32>
    %1461 = arith.addf %1457, %1460 : vector<2x256xf32>
    %c174 = arith.constant 174 : index
    %1462 = memref.load %arg5[%c174] : memref<288xf32, #tpu.memory_space<smem>>
    %1463 = vector.broadcast %1462 : f32 to vector<2x256xf32>
    %1464 = arith.mulf %357, %1463 : vector<2x256xf32>
    %1465 = arith.addf %1461, %1464 : vector<2x256xf32>
    %c182 = arith.constant 182 : index
    %1466 = memref.load %arg5[%c182] : memref<288xf32, #tpu.memory_space<smem>>
    %1467 = vector.broadcast %1466 : f32 to vector<2x256xf32>
    %1468 = arith.mulf %413, %1467 : vector<2x256xf32>
    %1469 = arith.addf %1465, %1468 : vector<2x256xf32>
    %c190 = arith.constant 190 : index
    %1470 = memref.load %arg5[%c190] : memref<288xf32, #tpu.memory_space<smem>>
    %1471 = vector.broadcast %1470 : f32 to vector<2x256xf32>
    %1472 = arith.mulf %469, %1471 : vector<2x256xf32>
    %1473 = arith.addf %1469, %1472 : vector<2x256xf32>
    %c198 = arith.constant 198 : index
    %1474 = memref.load %arg5[%c198] : memref<288xf32, #tpu.memory_space<smem>>
    %1475 = vector.broadcast %1474 : f32 to vector<2x256xf32>
    %1476 = arith.mulf %308, %1475 : vector<2x256xf32>
    %1477 = arith.addf %1473, %1476 : vector<2x256xf32>
    %c206 = arith.constant 206 : index
    %1478 = memref.load %arg5[%c206] : memref<288xf32, #tpu.memory_space<smem>>
    %1479 = vector.broadcast %1478 : f32 to vector<2x256xf32>
    %1480 = arith.mulf %364, %1479 : vector<2x256xf32>
    %1481 = arith.addf %1477, %1480 : vector<2x256xf32>
    %c214 = arith.constant 214 : index
    %1482 = memref.load %arg5[%c214] : memref<288xf32, #tpu.memory_space<smem>>
    %1483 = vector.broadcast %1482 : f32 to vector<2x256xf32>
    %1484 = arith.mulf %420, %1483 : vector<2x256xf32>
    %1485 = arith.addf %1481, %1484 : vector<2x256xf32>
    %c222 = arith.constant 222 : index
    %1486 = memref.load %arg5[%c222] : memref<288xf32, #tpu.memory_space<smem>>
    %1487 = vector.broadcast %1486 : f32 to vector<2x256xf32>
    %1488 = arith.mulf %476, %1487 : vector<2x256xf32>
    %1489 = arith.addf %1485, %1488 : vector<2x256xf32>
    %c230 = arith.constant 230 : index
    %1490 = memref.load %arg5[%c230] : memref<288xf32, #tpu.memory_space<smem>>
    %1491 = vector.broadcast %1490 : f32 to vector<2x256xf32>
    %1492 = arith.mulf %315, %1491 : vector<2x256xf32>
    %1493 = arith.addf %1489, %1492 : vector<2x256xf32>
    %c238 = arith.constant 238 : index
    %1494 = memref.load %arg5[%c238] : memref<288xf32, #tpu.memory_space<smem>>
    %1495 = vector.broadcast %1494 : f32 to vector<2x256xf32>
    %1496 = arith.mulf %371, %1495 : vector<2x256xf32>
    %1497 = arith.addf %1493, %1496 : vector<2x256xf32>
    %c246 = arith.constant 246 : index
    %1498 = memref.load %arg5[%c246] : memref<288xf32, #tpu.memory_space<smem>>
    %1499 = vector.broadcast %1498 : f32 to vector<2x256xf32>
    %1500 = arith.mulf %427, %1499 : vector<2x256xf32>
    %1501 = arith.addf %1497, %1500 : vector<2x256xf32>
    %c254 = arith.constant 254 : index
    %1502 = memref.load %arg5[%c254] : memref<288xf32, #tpu.memory_space<smem>>
    %1503 = vector.broadcast %1502 : f32 to vector<2x256xf32>
    %1504 = arith.mulf %483, %1503 : vector<2x256xf32>
    %1505 = arith.addf %1501, %1504 : vector<2x256xf32>
    %c262 = arith.constant 262 : index
    %1506 = memref.load %arg5[%c262] : memref<288xf32, #tpu.memory_space<smem>>
    %1507 = vector.broadcast %1506 : f32 to vector<2x256xf32>
    %1508 = arith.mulf %322, %1507 : vector<2x256xf32>
    %1509 = arith.addf %1505, %1508 : vector<2x256xf32>
    %c270 = arith.constant 270 : index
    %1510 = memref.load %arg5[%c270] : memref<288xf32, #tpu.memory_space<smem>>
    %1511 = vector.broadcast %1510 : f32 to vector<2x256xf32>
    %1512 = arith.mulf %378, %1511 : vector<2x256xf32>
    %1513 = arith.addf %1509, %1512 : vector<2x256xf32>
    %c278 = arith.constant 278 : index
    %1514 = memref.load %arg5[%c278] : memref<288xf32, #tpu.memory_space<smem>>
    %1515 = vector.broadcast %1514 : f32 to vector<2x256xf32>
    %1516 = arith.mulf %434, %1515 : vector<2x256xf32>
    %1517 = arith.addf %1513, %1516 : vector<2x256xf32>
    %c286 = arith.constant 286 : index
    %1518 = memref.load %arg5[%c286] : memref<288xf32, #tpu.memory_space<smem>>
    %1519 = vector.broadcast %1518 : f32 to vector<2x256xf32>
    %1520 = arith.mulf %490, %1519 : vector<2x256xf32>
    %1521 = arith.addf %1517, %1520 : vector<2x256xf32>
    %c6_104 = arith.constant 6 : index
    %1522 = memref.load %arg6[%c6_104] : memref<8xf32, #tpu.memory_space<smem>>
    %1523 = vector.broadcast %1522 : f32 to vector<2x256xf32>
    %1524 = arith.addf %1521, %1523 : vector<2x256xf32>
    %cst_105 = arith.constant 0.000000e+00 : f32
    %1525 = vector.broadcast %cst_105 : f32 to vector<2x256xf32>
    %1526 = arith.maximumf %1524, %1525 : vector<2x256xf32>
    %c7_106 = arith.constant 7 : index
    %1527 = memref.load %arg5[%c7_106] : memref<288xf32, #tpu.memory_space<smem>>
    %1528 = vector.broadcast %1527 : f32 to vector<2x256xf32>
    %1529 = arith.mulf %273, %1528 : vector<2x256xf32>
    %c15_107 = arith.constant 15 : index
    %1530 = memref.load %arg5[%c15_107] : memref<288xf32, #tpu.memory_space<smem>>
    %1531 = vector.broadcast %1530 : f32 to vector<2x256xf32>
    %1532 = arith.mulf %329, %1531 : vector<2x256xf32>
    %1533 = arith.addf %1529, %1532 : vector<2x256xf32>
    %c23_108 = arith.constant 23 : index
    %1534 = memref.load %arg5[%c23_108] : memref<288xf32, #tpu.memory_space<smem>>
    %1535 = vector.broadcast %1534 : f32 to vector<2x256xf32>
    %1536 = arith.mulf %385, %1535 : vector<2x256xf32>
    %1537 = arith.addf %1533, %1536 : vector<2x256xf32>
    %c31_109 = arith.constant 31 : index
    %1538 = memref.load %arg5[%c31_109] : memref<288xf32, #tpu.memory_space<smem>>
    %1539 = vector.broadcast %1538 : f32 to vector<2x256xf32>
    %1540 = arith.mulf %441, %1539 : vector<2x256xf32>
    %1541 = arith.addf %1537, %1540 : vector<2x256xf32>
    %c39 = arith.constant 39 : index
    %1542 = memref.load %arg5[%c39] : memref<288xf32, #tpu.memory_space<smem>>
    %1543 = vector.broadcast %1542 : f32 to vector<2x256xf32>
    %1544 = arith.mulf %280, %1543 : vector<2x256xf32>
    %1545 = arith.addf %1541, %1544 : vector<2x256xf32>
    %c47 = arith.constant 47 : index
    %1546 = memref.load %arg5[%c47] : memref<288xf32, #tpu.memory_space<smem>>
    %1547 = vector.broadcast %1546 : f32 to vector<2x256xf32>
    %1548 = arith.mulf %336, %1547 : vector<2x256xf32>
    %1549 = arith.addf %1545, %1548 : vector<2x256xf32>
    %c55 = arith.constant 55 : index
    %1550 = memref.load %arg5[%c55] : memref<288xf32, #tpu.memory_space<smem>>
    %1551 = vector.broadcast %1550 : f32 to vector<2x256xf32>
    %1552 = arith.mulf %392, %1551 : vector<2x256xf32>
    %1553 = arith.addf %1549, %1552 : vector<2x256xf32>
    %c63 = arith.constant 63 : index
    %1554 = memref.load %arg5[%c63] : memref<288xf32, #tpu.memory_space<smem>>
    %1555 = vector.broadcast %1554 : f32 to vector<2x256xf32>
    %1556 = arith.mulf %448, %1555 : vector<2x256xf32>
    %1557 = arith.addf %1553, %1556 : vector<2x256xf32>
    %c71 = arith.constant 71 : index
    %1558 = memref.load %arg5[%c71] : memref<288xf32, #tpu.memory_space<smem>>
    %1559 = vector.broadcast %1558 : f32 to vector<2x256xf32>
    %1560 = arith.mulf %287, %1559 : vector<2x256xf32>
    %1561 = arith.addf %1557, %1560 : vector<2x256xf32>
    %c79 = arith.constant 79 : index
    %1562 = memref.load %arg5[%c79] : memref<288xf32, #tpu.memory_space<smem>>
    %1563 = vector.broadcast %1562 : f32 to vector<2x256xf32>
    %1564 = arith.mulf %343, %1563 : vector<2x256xf32>
    %1565 = arith.addf %1561, %1564 : vector<2x256xf32>
    %c87 = arith.constant 87 : index
    %1566 = memref.load %arg5[%c87] : memref<288xf32, #tpu.memory_space<smem>>
    %1567 = vector.broadcast %1566 : f32 to vector<2x256xf32>
    %1568 = arith.mulf %399, %1567 : vector<2x256xf32>
    %1569 = arith.addf %1565, %1568 : vector<2x256xf32>
    %c95 = arith.constant 95 : index
    %1570 = memref.load %arg5[%c95] : memref<288xf32, #tpu.memory_space<smem>>
    %1571 = vector.broadcast %1570 : f32 to vector<2x256xf32>
    %1572 = arith.mulf %455, %1571 : vector<2x256xf32>
    %1573 = arith.addf %1569, %1572 : vector<2x256xf32>
    %c103 = arith.constant 103 : index
    %1574 = memref.load %arg5[%c103] : memref<288xf32, #tpu.memory_space<smem>>
    %1575 = vector.broadcast %1574 : f32 to vector<2x256xf32>
    %1576 = arith.mulf %294, %1575 : vector<2x256xf32>
    %1577 = arith.addf %1573, %1576 : vector<2x256xf32>
    %c111 = arith.constant 111 : index
    %1578 = memref.load %arg5[%c111] : memref<288xf32, #tpu.memory_space<smem>>
    %1579 = vector.broadcast %1578 : f32 to vector<2x256xf32>
    %1580 = arith.mulf %350, %1579 : vector<2x256xf32>
    %1581 = arith.addf %1577, %1580 : vector<2x256xf32>
    %c119 = arith.constant 119 : index
    %1582 = memref.load %arg5[%c119] : memref<288xf32, #tpu.memory_space<smem>>
    %1583 = vector.broadcast %1582 : f32 to vector<2x256xf32>
    %1584 = arith.mulf %406, %1583 : vector<2x256xf32>
    %1585 = arith.addf %1581, %1584 : vector<2x256xf32>
    %c127 = arith.constant 127 : index
    %1586 = memref.load %arg5[%c127] : memref<288xf32, #tpu.memory_space<smem>>
    %1587 = vector.broadcast %1586 : f32 to vector<2x256xf32>
    %1588 = arith.mulf %462, %1587 : vector<2x256xf32>
    %1589 = arith.addf %1585, %1588 : vector<2x256xf32>
    %c135 = arith.constant 135 : index
    %1590 = memref.load %arg5[%c135] : memref<288xf32, #tpu.memory_space<smem>>
    %1591 = vector.broadcast %1590 : f32 to vector<2x256xf32>
    %1592 = arith.mulf %56, %1591 : vector<2x256xf32>
    %1593 = arith.addf %1589, %1592 : vector<2x256xf32>
    %c143 = arith.constant 143 : index
    %1594 = memref.load %arg5[%c143] : memref<288xf32, #tpu.memory_space<smem>>
    %1595 = vector.broadcast %1594 : f32 to vector<2x256xf32>
    %1596 = arith.mulf %58, %1595 : vector<2x256xf32>
    %1597 = arith.addf %1593, %1596 : vector<2x256xf32>
    %c151 = arith.constant 151 : index
    %1598 = memref.load %arg5[%c151] : memref<288xf32, #tpu.memory_space<smem>>
    %1599 = vector.broadcast %1598 : f32 to vector<2x256xf32>
    %1600 = arith.mulf %60, %1599 : vector<2x256xf32>
    %1601 = arith.addf %1597, %1600 : vector<2x256xf32>
    %c159 = arith.constant 159 : index
    %1602 = memref.load %arg5[%c159] : memref<288xf32, #tpu.memory_space<smem>>
    %1603 = vector.broadcast %1602 : f32 to vector<2x256xf32>
    %1604 = arith.mulf %62, %1603 : vector<2x256xf32>
    %1605 = arith.addf %1601, %1604 : vector<2x256xf32>
    %c167 = arith.constant 167 : index
    %1606 = memref.load %arg5[%c167] : memref<288xf32, #tpu.memory_space<smem>>
    %1607 = vector.broadcast %1606 : f32 to vector<2x256xf32>
    %1608 = arith.mulf %301, %1607 : vector<2x256xf32>
    %1609 = arith.addf %1605, %1608 : vector<2x256xf32>
    %c175 = arith.constant 175 : index
    %1610 = memref.load %arg5[%c175] : memref<288xf32, #tpu.memory_space<smem>>
    %1611 = vector.broadcast %1610 : f32 to vector<2x256xf32>
    %1612 = arith.mulf %357, %1611 : vector<2x256xf32>
    %1613 = arith.addf %1609, %1612 : vector<2x256xf32>
    %c183 = arith.constant 183 : index
    %1614 = memref.load %arg5[%c183] : memref<288xf32, #tpu.memory_space<smem>>
    %1615 = vector.broadcast %1614 : f32 to vector<2x256xf32>
    %1616 = arith.mulf %413, %1615 : vector<2x256xf32>
    %1617 = arith.addf %1613, %1616 : vector<2x256xf32>
    %c191 = arith.constant 191 : index
    %1618 = memref.load %arg5[%c191] : memref<288xf32, #tpu.memory_space<smem>>
    %1619 = vector.broadcast %1618 : f32 to vector<2x256xf32>
    %1620 = arith.mulf %469, %1619 : vector<2x256xf32>
    %1621 = arith.addf %1617, %1620 : vector<2x256xf32>
    %c199 = arith.constant 199 : index
    %1622 = memref.load %arg5[%c199] : memref<288xf32, #tpu.memory_space<smem>>
    %1623 = vector.broadcast %1622 : f32 to vector<2x256xf32>
    %1624 = arith.mulf %308, %1623 : vector<2x256xf32>
    %1625 = arith.addf %1621, %1624 : vector<2x256xf32>
    %c207 = arith.constant 207 : index
    %1626 = memref.load %arg5[%c207] : memref<288xf32, #tpu.memory_space<smem>>
    %1627 = vector.broadcast %1626 : f32 to vector<2x256xf32>
    %1628 = arith.mulf %364, %1627 : vector<2x256xf32>
    %1629 = arith.addf %1625, %1628 : vector<2x256xf32>
    %c215 = arith.constant 215 : index
    %1630 = memref.load %arg5[%c215] : memref<288xf32, #tpu.memory_space<smem>>
    %1631 = vector.broadcast %1630 : f32 to vector<2x256xf32>
    %1632 = arith.mulf %420, %1631 : vector<2x256xf32>
    %1633 = arith.addf %1629, %1632 : vector<2x256xf32>
    %c223 = arith.constant 223 : index
    %1634 = memref.load %arg5[%c223] : memref<288xf32, #tpu.memory_space<smem>>
    %1635 = vector.broadcast %1634 : f32 to vector<2x256xf32>
    %1636 = arith.mulf %476, %1635 : vector<2x256xf32>
    %1637 = arith.addf %1633, %1636 : vector<2x256xf32>
    %c231 = arith.constant 231 : index
    %1638 = memref.load %arg5[%c231] : memref<288xf32, #tpu.memory_space<smem>>
    %1639 = vector.broadcast %1638 : f32 to vector<2x256xf32>
    %1640 = arith.mulf %315, %1639 : vector<2x256xf32>
    %1641 = arith.addf %1637, %1640 : vector<2x256xf32>
    %c239 = arith.constant 239 : index
    %1642 = memref.load %arg5[%c239] : memref<288xf32, #tpu.memory_space<smem>>
    %1643 = vector.broadcast %1642 : f32 to vector<2x256xf32>
    %1644 = arith.mulf %371, %1643 : vector<2x256xf32>
    %1645 = arith.addf %1641, %1644 : vector<2x256xf32>
    %c247 = arith.constant 247 : index
    %1646 = memref.load %arg5[%c247] : memref<288xf32, #tpu.memory_space<smem>>
    %1647 = vector.broadcast %1646 : f32 to vector<2x256xf32>
    %1648 = arith.mulf %427, %1647 : vector<2x256xf32>
    %1649 = arith.addf %1645, %1648 : vector<2x256xf32>
    %c255 = arith.constant 255 : index
    %1650 = memref.load %arg5[%c255] : memref<288xf32, #tpu.memory_space<smem>>
    %1651 = vector.broadcast %1650 : f32 to vector<2x256xf32>
    %1652 = arith.mulf %483, %1651 : vector<2x256xf32>
    %1653 = arith.addf %1649, %1652 : vector<2x256xf32>
    %c263 = arith.constant 263 : index
    %1654 = memref.load %arg5[%c263] : memref<288xf32, #tpu.memory_space<smem>>
    %1655 = vector.broadcast %1654 : f32 to vector<2x256xf32>
    %1656 = arith.mulf %322, %1655 : vector<2x256xf32>
    %1657 = arith.addf %1653, %1656 : vector<2x256xf32>
    %c271 = arith.constant 271 : index
    %1658 = memref.load %arg5[%c271] : memref<288xf32, #tpu.memory_space<smem>>
    %1659 = vector.broadcast %1658 : f32 to vector<2x256xf32>
    %1660 = arith.mulf %378, %1659 : vector<2x256xf32>
    %1661 = arith.addf %1657, %1660 : vector<2x256xf32>
    %c279 = arith.constant 279 : index
    %1662 = memref.load %arg5[%c279] : memref<288xf32, #tpu.memory_space<smem>>
    %1663 = vector.broadcast %1662 : f32 to vector<2x256xf32>
    %1664 = arith.mulf %434, %1663 : vector<2x256xf32>
    %1665 = arith.addf %1661, %1664 : vector<2x256xf32>
    %c287 = arith.constant 287 : index
    %1666 = memref.load %arg5[%c287] : memref<288xf32, #tpu.memory_space<smem>>
    %1667 = vector.broadcast %1666 : f32 to vector<2x256xf32>
    %1668 = arith.mulf %490, %1667 : vector<2x256xf32>
    %1669 = arith.addf %1665, %1668 : vector<2x256xf32>
    %c7_110 = arith.constant 7 : index
    %1670 = memref.load %arg6[%c7_110] : memref<8xf32, #tpu.memory_space<smem>>
    %1671 = vector.broadcast %1670 : f32 to vector<2x256xf32>
    %1672 = arith.addf %1669, %1671 : vector<2x256xf32>
    %cst_111 = arith.constant 0.000000e+00 : f32
    %1673 = vector.broadcast %cst_111 : f32 to vector<2x256xf32>
    %1674 = arith.maximumf %1672, %1673 : vector<2x256xf32>
    %c0_112 = arith.constant 0 : index
    %c0_113 = arith.constant 0 : index
    %1675 = vector.load %arg2[%c0_112, %c0_113] : memref<2x8xf32, #tpu.memory_space<vmem>>, vector<2x8xf32>
    %1676 = vector.extract_strided_slice %1675 {offsets = [0, 0], sizes = [2, 1], strides = [1, 1]} : vector<2x8xf32> to vector<2x1xf32>
    %1677 = vector.broadcast %1676 : vector<2x1xf32> to vector<2x256xf32>
    %1678 = arith.mulf %638, %1677 : vector<2x256xf32>
    %1679 = vector.extract_strided_slice %1675 {offsets = [0, 1], sizes = [2, 1], strides = [1, 1]} : vector<2x8xf32> to vector<2x1xf32>
    %1680 = vector.broadcast %1679 : vector<2x1xf32> to vector<2x256xf32>
    %1681 = arith.mulf %786, %1680 : vector<2x256xf32>
    %1682 = arith.addf %1678, %1681 : vector<2x256xf32>
    %1683 = vector.extract_strided_slice %1675 {offsets = [0, 2], sizes = [2, 1], strides = [1, 1]} : vector<2x8xf32> to vector<2x1xf32>
    %1684 = vector.broadcast %1683 : vector<2x1xf32> to vector<2x256xf32>
    %1685 = arith.mulf %934, %1684 : vector<2x256xf32>
    %1686 = arith.addf %1682, %1685 : vector<2x256xf32>
    %1687 = vector.extract_strided_slice %1675 {offsets = [0, 3], sizes = [2, 1], strides = [1, 1]} : vector<2x8xf32> to vector<2x1xf32>
    %1688 = vector.broadcast %1687 : vector<2x1xf32> to vector<2x256xf32>
    %1689 = arith.mulf %1082, %1688 : vector<2x256xf32>
    %1690 = arith.addf %1686, %1689 : vector<2x256xf32>
    %1691 = vector.extract_strided_slice %1675 {offsets = [0, 4], sizes = [2, 1], strides = [1, 1]} : vector<2x8xf32> to vector<2x1xf32>
    %1692 = vector.broadcast %1691 : vector<2x1xf32> to vector<2x256xf32>
    %1693 = arith.mulf %1230, %1692 : vector<2x256xf32>
    %1694 = arith.addf %1690, %1693 : vector<2x256xf32>
    %1695 = vector.extract_strided_slice %1675 {offsets = [0, 5], sizes = [2, 1], strides = [1, 1]} : vector<2x8xf32> to vector<2x1xf32>
    %1696 = vector.broadcast %1695 : vector<2x1xf32> to vector<2x256xf32>
    %1697 = arith.mulf %1378, %1696 : vector<2x256xf32>
    %1698 = arith.addf %1694, %1697 : vector<2x256xf32>
    %1699 = vector.extract_strided_slice %1675 {offsets = [0, 6], sizes = [2, 1], strides = [1, 1]} : vector<2x8xf32> to vector<2x1xf32>
    %1700 = vector.broadcast %1699 : vector<2x1xf32> to vector<2x256xf32>
    %1701 = arith.mulf %1526, %1700 : vector<2x256xf32>
    %1702 = arith.addf %1698, %1701 : vector<2x256xf32>
    %1703 = vector.extract_strided_slice %1675 {offsets = [0, 7], sizes = [2, 1], strides = [1, 1]} : vector<2x8xf32> to vector<2x1xf32>
    %1704 = vector.broadcast %1703 : vector<2x1xf32> to vector<2x256xf32>
    %1705 = arith.mulf %1674, %1704 : vector<2x256xf32>
    %1706 = arith.addf %1702, %1705 : vector<2x256xf32>
    %1707 = vector.extract_strided_slice %266 {offsets = [0, 239], sizes = [2, 17], strides = [1, 1]} : vector<2x256xf32> to vector<2x17xf32>
    %1708 = vector.extract_strided_slice %266 {offsets = [0, 0], sizes = [2, 239], strides = [1, 1]} : vector<2x256xf32> to vector<2x239xf32>
    %1709 = tpu.concatenate %1707, %1708 in 1 : vector<2x17xf32>, vector<2x239xf32> -> vector<2x256xf32>
    %cst_114 = arith.constant 0.000000e+00 : f32
    %1710 = vector.shape_cast %21 : vector<1x256xi1> to vector<1x256xi1>
    %1711 = vector.broadcast %1710 : vector<1x256xi1> to vector<2x256xi1>
    %1712 = vector.broadcast %cst_114 : f32 to vector<2x256xf32>
    %1713 = arith.select %1711, %1709, %1712 : vector<2x256xi1>, vector<2x256xf32>
    %1714 = vector.extract_strided_slice %266 {offsets = [0, 240], sizes = [2, 16], strides = [1, 1]} : vector<2x256xf32> to vector<2x16xf32>
    %1715 = vector.extract_strided_slice %266 {offsets = [0, 0], sizes = [2, 240], strides = [1, 1]} : vector<2x256xf32> to vector<2x240xf32>
    %1716 = tpu.concatenate %1714, %1715 in 1 : vector<2x16xf32>, vector<2x240xf32> -> vector<2x256xf32>
    %cst_115 = arith.constant 0.000000e+00 : f32
    %1717 = vector.shape_cast %23 : vector<1x256xi1> to vector<1x256xi1>
    %1718 = vector.broadcast %1717 : vector<1x256xi1> to vector<2x256xi1>
    %1719 = vector.broadcast %cst_115 : f32 to vector<2x256xf32>
    %1720 = arith.select %1718, %1716, %1719 : vector<2x256xi1>, vector<2x256xf32>
    %1721 = vector.extract_strided_slice %266 {offsets = [0, 241], sizes = [2, 15], strides = [1, 1]} : vector<2x256xf32> to vector<2x15xf32>
    %1722 = vector.extract_strided_slice %266 {offsets = [0, 0], sizes = [2, 241], strides = [1, 1]} : vector<2x256xf32> to vector<2x241xf32>
    %1723 = tpu.concatenate %1721, %1722 in 1 : vector<2x15xf32>, vector<2x241xf32> -> vector<2x256xf32>
    %cst_116 = arith.constant 0.000000e+00 : f32
    %1724 = vector.shape_cast %28 : vector<1x256xi1> to vector<1x256xi1>
    %1725 = vector.broadcast %1724 : vector<1x256xi1> to vector<2x256xi1>
    %1726 = vector.broadcast %cst_116 : f32 to vector<2x256xf32>
    %1727 = arith.select %1725, %1723, %1726 : vector<2x256xi1>, vector<2x256xf32>
    %1728 = vector.extract_strided_slice %266 {offsets = [0, 255], sizes = [2, 1], strides = [1, 1]} : vector<2x256xf32> to vector<2x1xf32>
    %1729 = vector.extract_strided_slice %266 {offsets = [0, 0], sizes = [2, 255], strides = [1, 1]} : vector<2x256xf32> to vector<2x255xf32>
    %1730 = tpu.concatenate %1728, %1729 in 1 : vector<2x1xf32>, vector<2x255xf32> -> vector<2x256xf32>
    %cst_117 = arith.constant 0.000000e+00 : f32
    %1731 = vector.shape_cast %30 : vector<1x256xi1> to vector<1x256xi1>
    %1732 = vector.broadcast %1731 : vector<1x256xi1> to vector<2x256xi1>
    %1733 = vector.broadcast %cst_117 : f32 to vector<2x256xf32>
    %1734 = arith.select %1732, %1730, %1733 : vector<2x256xi1>, vector<2x256xf32>
    %1735 = vector.extract_strided_slice %266 {offsets = [0, 1], sizes = [2, 255], strides = [1, 1]} : vector<2x256xf32> to vector<2x255xf32>
    %1736 = vector.extract_strided_slice %266 {offsets = [0, 0], sizes = [2, 1], strides = [1, 1]} : vector<2x256xf32> to vector<2x1xf32>
    %1737 = tpu.concatenate %1735, %1736 in 1 : vector<2x255xf32>, vector<2x1xf32> -> vector<2x256xf32>
    %cst_118 = arith.constant 0.000000e+00 : f32
    %1738 = vector.shape_cast %32 : vector<1x256xi1> to vector<1x256xi1>
    %1739 = vector.broadcast %1738 : vector<1x256xi1> to vector<2x256xi1>
    %1740 = vector.broadcast %cst_118 : f32 to vector<2x256xf32>
    %1741 = arith.select %1739, %1737, %1740 : vector<2x256xi1>, vector<2x256xf32>
    %1742 = vector.extract_strided_slice %266 {offsets = [0, 15], sizes = [2, 241], strides = [1, 1]} : vector<2x256xf32> to vector<2x241xf32>
    %1743 = vector.extract_strided_slice %266 {offsets = [0, 0], sizes = [2, 15], strides = [1, 1]} : vector<2x256xf32> to vector<2x15xf32>
    %1744 = tpu.concatenate %1742, %1743 in 1 : vector<2x241xf32>, vector<2x15xf32> -> vector<2x256xf32>
    %cst_119 = arith.constant 0.000000e+00 : f32
    %1745 = vector.shape_cast %37 : vector<1x256xi1> to vector<1x256xi1>
    %1746 = vector.broadcast %1745 : vector<1x256xi1> to vector<2x256xi1>
    %1747 = vector.broadcast %cst_119 : f32 to vector<2x256xf32>
    %1748 = arith.select %1746, %1744, %1747 : vector<2x256xi1>, vector<2x256xf32>
    %1749 = vector.extract_strided_slice %266 {offsets = [0, 16], sizes = [2, 240], strides = [1, 1]} : vector<2x256xf32> to vector<2x240xf32>
    %1750 = vector.extract_strided_slice %266 {offsets = [0, 0], sizes = [2, 16], strides = [1, 1]} : vector<2x256xf32> to vector<2x16xf32>
    %1751 = tpu.concatenate %1749, %1750 in 1 : vector<2x240xf32>, vector<2x16xf32> -> vector<2x256xf32>
    %cst_120 = arith.constant 0.000000e+00 : f32
    %1752 = vector.shape_cast %39 : vector<1x256xi1> to vector<1x256xi1>
    %1753 = vector.broadcast %1752 : vector<1x256xi1> to vector<2x256xi1>
    %1754 = vector.broadcast %cst_120 : f32 to vector<2x256xf32>
    %1755 = arith.select %1753, %1751, %1754 : vector<2x256xi1>, vector<2x256xf32>
    %1756 = vector.extract_strided_slice %266 {offsets = [0, 17], sizes = [2, 239], strides = [1, 1]} : vector<2x256xf32> to vector<2x239xf32>
    %1757 = vector.extract_strided_slice %266 {offsets = [0, 0], sizes = [2, 17], strides = [1, 1]} : vector<2x256xf32> to vector<2x17xf32>
    %1758 = tpu.concatenate %1756, %1757 in 1 : vector<2x239xf32>, vector<2x17xf32> -> vector<2x256xf32>
    %cst_121 = arith.constant 0.000000e+00 : f32
    %1759 = vector.shape_cast %44 : vector<1x256xi1> to vector<1x256xi1>
    %1760 = vector.broadcast %1759 : vector<1x256xi1> to vector<2x256xi1>
    %1761 = vector.broadcast %cst_121 : f32 to vector<2x256xf32>
    %1762 = arith.select %1760, %1758, %1761 : vector<2x256xi1>, vector<2x256xf32>
    %1763 = vector.extract_strided_slice %1706 {offsets = [0, 239], sizes = [2, 17], strides = [1, 1]} : vector<2x256xf32> to vector<2x17xf32>
    %1764 = vector.extract_strided_slice %1706 {offsets = [0, 0], sizes = [2, 239], strides = [1, 1]} : vector<2x256xf32> to vector<2x239xf32>
    %1765 = tpu.concatenate %1763, %1764 in 1 : vector<2x17xf32>, vector<2x239xf32> -> vector<2x256xf32>
    %cst_122 = arith.constant 0.000000e+00 : f32
    %1766 = vector.shape_cast %21 : vector<1x256xi1> to vector<1x256xi1>
    %1767 = vector.broadcast %1766 : vector<1x256xi1> to vector<2x256xi1>
    %1768 = vector.broadcast %cst_122 : f32 to vector<2x256xf32>
    %1769 = arith.select %1767, %1765, %1768 : vector<2x256xi1>, vector<2x256xf32>
    %1770 = vector.extract_strided_slice %1706 {offsets = [0, 240], sizes = [2, 16], strides = [1, 1]} : vector<2x256xf32> to vector<2x16xf32>
    %1771 = vector.extract_strided_slice %1706 {offsets = [0, 0], sizes = [2, 240], strides = [1, 1]} : vector<2x256xf32> to vector<2x240xf32>
    %1772 = tpu.concatenate %1770, %1771 in 1 : vector<2x16xf32>, vector<2x240xf32> -> vector<2x256xf32>
    %cst_123 = arith.constant 0.000000e+00 : f32
    %1773 = vector.shape_cast %23 : vector<1x256xi1> to vector<1x256xi1>
    %1774 = vector.broadcast %1773 : vector<1x256xi1> to vector<2x256xi1>
    %1775 = vector.broadcast %cst_123 : f32 to vector<2x256xf32>
    %1776 = arith.select %1774, %1772, %1775 : vector<2x256xi1>, vector<2x256xf32>
    %1777 = vector.extract_strided_slice %1706 {offsets = [0, 241], sizes = [2, 15], strides = [1, 1]} : vector<2x256xf32> to vector<2x15xf32>
    %1778 = vector.extract_strided_slice %1706 {offsets = [0, 0], sizes = [2, 241], strides = [1, 1]} : vector<2x256xf32> to vector<2x241xf32>
    %1779 = tpu.concatenate %1777, %1778 in 1 : vector<2x15xf32>, vector<2x241xf32> -> vector<2x256xf32>
    %cst_124 = arith.constant 0.000000e+00 : f32
    %1780 = vector.shape_cast %28 : vector<1x256xi1> to vector<1x256xi1>
    %1781 = vector.broadcast %1780 : vector<1x256xi1> to vector<2x256xi1>
    %1782 = vector.broadcast %cst_124 : f32 to vector<2x256xf32>
    %1783 = arith.select %1781, %1779, %1782 : vector<2x256xi1>, vector<2x256xf32>
    %1784 = vector.extract_strided_slice %1706 {offsets = [0, 255], sizes = [2, 1], strides = [1, 1]} : vector<2x256xf32> to vector<2x1xf32>
    %1785 = vector.extract_strided_slice %1706 {offsets = [0, 0], sizes = [2, 255], strides = [1, 1]} : vector<2x256xf32> to vector<2x255xf32>
    %1786 = tpu.concatenate %1784, %1785 in 1 : vector<2x1xf32>, vector<2x255xf32> -> vector<2x256xf32>
    %cst_125 = arith.constant 0.000000e+00 : f32
    %1787 = vector.shape_cast %30 : vector<1x256xi1> to vector<1x256xi1>
    %1788 = vector.broadcast %1787 : vector<1x256xi1> to vector<2x256xi1>
    %1789 = vector.broadcast %cst_125 : f32 to vector<2x256xf32>
    %1790 = arith.select %1788, %1786, %1789 : vector<2x256xi1>, vector<2x256xf32>
    %1791 = vector.extract_strided_slice %1706 {offsets = [0, 1], sizes = [2, 255], strides = [1, 1]} : vector<2x256xf32> to vector<2x255xf32>
    %1792 = vector.extract_strided_slice %1706 {offsets = [0, 0], sizes = [2, 1], strides = [1, 1]} : vector<2x256xf32> to vector<2x1xf32>
    %1793 = tpu.concatenate %1791, %1792 in 1 : vector<2x255xf32>, vector<2x1xf32> -> vector<2x256xf32>
    %cst_126 = arith.constant 0.000000e+00 : f32
    %1794 = vector.shape_cast %32 : vector<1x256xi1> to vector<1x256xi1>
    %1795 = vector.broadcast %1794 : vector<1x256xi1> to vector<2x256xi1>
    %1796 = vector.broadcast %cst_126 : f32 to vector<2x256xf32>
    %1797 = arith.select %1795, %1793, %1796 : vector<2x256xi1>, vector<2x256xf32>
    %1798 = vector.extract_strided_slice %1706 {offsets = [0, 15], sizes = [2, 241], strides = [1, 1]} : vector<2x256xf32> to vector<2x241xf32>
    %1799 = vector.extract_strided_slice %1706 {offsets = [0, 0], sizes = [2, 15], strides = [1, 1]} : vector<2x256xf32> to vector<2x15xf32>
    %1800 = tpu.concatenate %1798, %1799 in 1 : vector<2x241xf32>, vector<2x15xf32> -> vector<2x256xf32>
    %cst_127 = arith.constant 0.000000e+00 : f32
    %1801 = vector.shape_cast %37 : vector<1x256xi1> to vector<1x256xi1>
    %1802 = vector.broadcast %1801 : vector<1x256xi1> to vector<2x256xi1>
    %1803 = vector.broadcast %cst_127 : f32 to vector<2x256xf32>
    %1804 = arith.select %1802, %1800, %1803 : vector<2x256xi1>, vector<2x256xf32>
    %1805 = vector.extract_strided_slice %1706 {offsets = [0, 16], sizes = [2, 240], strides = [1, 1]} : vector<2x256xf32> to vector<2x240xf32>
    %1806 = vector.extract_strided_slice %1706 {offsets = [0, 0], sizes = [2, 16], strides = [1, 1]} : vector<2x256xf32> to vector<2x16xf32>
    %1807 = tpu.concatenate %1805, %1806 in 1 : vector<2x240xf32>, vector<2x16xf32> -> vector<2x256xf32>
    %cst_128 = arith.constant 0.000000e+00 : f32
    %1808 = vector.shape_cast %39 : vector<1x256xi1> to vector<1x256xi1>
    %1809 = vector.broadcast %1808 : vector<1x256xi1> to vector<2x256xi1>
    %1810 = vector.broadcast %cst_128 : f32 to vector<2x256xf32>
    %1811 = arith.select %1809, %1807, %1810 : vector<2x256xi1>, vector<2x256xf32>
    %1812 = vector.extract_strided_slice %1706 {offsets = [0, 17], sizes = [2, 239], strides = [1, 1]} : vector<2x256xf32> to vector<2x239xf32>
    %1813 = vector.extract_strided_slice %1706 {offsets = [0, 0], sizes = [2, 17], strides = [1, 1]} : vector<2x256xf32> to vector<2x17xf32>
    %1814 = tpu.concatenate %1812, %1813 in 1 : vector<2x239xf32>, vector<2x17xf32> -> vector<2x256xf32>
    %cst_129 = arith.constant 0.000000e+00 : f32
    %1815 = vector.shape_cast %44 : vector<1x256xi1> to vector<1x256xi1>
    %1816 = vector.broadcast %1815 : vector<1x256xi1> to vector<2x256xi1>
    %1817 = vector.broadcast %cst_129 : f32 to vector<2x256xf32>
    %1818 = arith.select %1816, %1814, %1817 : vector<2x256xi1>, vector<2x256xf32>
    %c0_130 = arith.constant 0 : index
    %1819 = memref.load %arg7[%c0_130] : memref<144xf32, #tpu.memory_space<smem>>
    %1820 = vector.broadcast %1819 : f32 to vector<2x256xf32>
    %1821 = arith.mulf %1713, %1820 : vector<2x256xf32>
    %c8_131 = arith.constant 8 : index
    %1822 = memref.load %arg7[%c8_131] : memref<144xf32, #tpu.memory_space<smem>>
    %1823 = vector.broadcast %1822 : f32 to vector<2x256xf32>
    %1824 = arith.mulf %1769, %1823 : vector<2x256xf32>
    %1825 = arith.addf %1821, %1824 : vector<2x256xf32>
    %c16_132 = arith.constant 16 : index
    %1826 = memref.load %arg7[%c16_132] : memref<144xf32, #tpu.memory_space<smem>>
    %1827 = vector.broadcast %1826 : f32 to vector<2x256xf32>
    %1828 = arith.mulf %1720, %1827 : vector<2x256xf32>
    %1829 = arith.addf %1825, %1828 : vector<2x256xf32>
    %c24_133 = arith.constant 24 : index
    %1830 = memref.load %arg7[%c24_133] : memref<144xf32, #tpu.memory_space<smem>>
    %1831 = vector.broadcast %1830 : f32 to vector<2x256xf32>
    %1832 = arith.mulf %1776, %1831 : vector<2x256xf32>
    %1833 = arith.addf %1829, %1832 : vector<2x256xf32>
    %c32_134 = arith.constant 32 : index
    %1834 = memref.load %arg7[%c32_134] : memref<144xf32, #tpu.memory_space<smem>>
    %1835 = vector.broadcast %1834 : f32 to vector<2x256xf32>
    %1836 = arith.mulf %1727, %1835 : vector<2x256xf32>
    %1837 = arith.addf %1833, %1836 : vector<2x256xf32>
    %c40_135 = arith.constant 40 : index
    %1838 = memref.load %arg7[%c40_135] : memref<144xf32, #tpu.memory_space<smem>>
    %1839 = vector.broadcast %1838 : f32 to vector<2x256xf32>
    %1840 = arith.mulf %1783, %1839 : vector<2x256xf32>
    %1841 = arith.addf %1837, %1840 : vector<2x256xf32>
    %c48_136 = arith.constant 48 : index
    %1842 = memref.load %arg7[%c48_136] : memref<144xf32, #tpu.memory_space<smem>>
    %1843 = vector.broadcast %1842 : f32 to vector<2x256xf32>
    %1844 = arith.mulf %1734, %1843 : vector<2x256xf32>
    %1845 = arith.addf %1841, %1844 : vector<2x256xf32>
    %c56_137 = arith.constant 56 : index
    %1846 = memref.load %arg7[%c56_137] : memref<144xf32, #tpu.memory_space<smem>>
    %1847 = vector.broadcast %1846 : f32 to vector<2x256xf32>
    %1848 = arith.mulf %1790, %1847 : vector<2x256xf32>
    %1849 = arith.addf %1845, %1848 : vector<2x256xf32>
    %c64_138 = arith.constant 64 : index
    %1850 = memref.load %arg7[%c64_138] : memref<144xf32, #tpu.memory_space<smem>>
    %1851 = vector.broadcast %1850 : f32 to vector<2x256xf32>
    %1852 = arith.mulf %266, %1851 : vector<2x256xf32>
    %1853 = arith.addf %1849, %1852 : vector<2x256xf32>
    %c72_139 = arith.constant 72 : index
    %1854 = memref.load %arg7[%c72_139] : memref<144xf32, #tpu.memory_space<smem>>
    %1855 = vector.broadcast %1854 : f32 to vector<2x256xf32>
    %1856 = arith.mulf %1706, %1855 : vector<2x256xf32>
    %1857 = arith.addf %1853, %1856 : vector<2x256xf32>
    %c80_140 = arith.constant 80 : index
    %1858 = memref.load %arg7[%c80_140] : memref<144xf32, #tpu.memory_space<smem>>
    %1859 = vector.broadcast %1858 : f32 to vector<2x256xf32>
    %1860 = arith.mulf %1741, %1859 : vector<2x256xf32>
    %1861 = arith.addf %1857, %1860 : vector<2x256xf32>
    %c88_141 = arith.constant 88 : index
    %1862 = memref.load %arg7[%c88_141] : memref<144xf32, #tpu.memory_space<smem>>
    %1863 = vector.broadcast %1862 : f32 to vector<2x256xf32>
    %1864 = arith.mulf %1797, %1863 : vector<2x256xf32>
    %1865 = arith.addf %1861, %1864 : vector<2x256xf32>
    %c96_142 = arith.constant 96 : index
    %1866 = memref.load %arg7[%c96_142] : memref<144xf32, #tpu.memory_space<smem>>
    %1867 = vector.broadcast %1866 : f32 to vector<2x256xf32>
    %1868 = arith.mulf %1748, %1867 : vector<2x256xf32>
    %1869 = arith.addf %1865, %1868 : vector<2x256xf32>
    %c104_143 = arith.constant 104 : index
    %1870 = memref.load %arg7[%c104_143] : memref<144xf32, #tpu.memory_space<smem>>
    %1871 = vector.broadcast %1870 : f32 to vector<2x256xf32>
    %1872 = arith.mulf %1804, %1871 : vector<2x256xf32>
    %1873 = arith.addf %1869, %1872 : vector<2x256xf32>
    %c112_144 = arith.constant 112 : index
    %1874 = memref.load %arg7[%c112_144] : memref<144xf32, #tpu.memory_space<smem>>
    %1875 = vector.broadcast %1874 : f32 to vector<2x256xf32>
    %1876 = arith.mulf %1755, %1875 : vector<2x256xf32>
    %1877 = arith.addf %1873, %1876 : vector<2x256xf32>
    %c120_145 = arith.constant 120 : index
    %1878 = memref.load %arg7[%c120_145] : memref<144xf32, #tpu.memory_space<smem>>
    %1879 = vector.broadcast %1878 : f32 to vector<2x256xf32>
    %1880 = arith.mulf %1811, %1879 : vector<2x256xf32>
    %1881 = arith.addf %1877, %1880 : vector<2x256xf32>
    %c128_146 = arith.constant 128 : index
    %1882 = memref.load %arg7[%c128_146] : memref<144xf32, #tpu.memory_space<smem>>
    %1883 = vector.broadcast %1882 : f32 to vector<2x256xf32>
    %1884 = arith.mulf %1762, %1883 : vector<2x256xf32>
    %1885 = arith.addf %1881, %1884 : vector<2x256xf32>
    %c136_147 = arith.constant 136 : index
    %1886 = memref.load %arg7[%c136_147] : memref<144xf32, #tpu.memory_space<smem>>
    %1887 = vector.broadcast %1886 : f32 to vector<2x256xf32>
    %1888 = arith.mulf %1818, %1887 : vector<2x256xf32>
    %1889 = arith.addf %1885, %1888 : vector<2x256xf32>
    %c0_148 = arith.constant 0 : index
    %1890 = memref.load %arg8[%c0_148] : memref<8xf32, #tpu.memory_space<smem>>
    %1891 = vector.broadcast %1890 : f32 to vector<2x256xf32>
    %1892 = arith.addf %1889, %1891 : vector<2x256xf32>
    %cst_149 = arith.constant 0.000000e+00 : f32
    %1893 = vector.broadcast %cst_149 : f32 to vector<2x256xf32>
    %1894 = arith.maximumf %1892, %1893 : vector<2x256xf32>
    %c1_150 = arith.constant 1 : index
    %1895 = memref.load %arg7[%c1_150] : memref<144xf32, #tpu.memory_space<smem>>
    %1896 = vector.broadcast %1895 : f32 to vector<2x256xf32>
    %1897 = arith.mulf %1713, %1896 : vector<2x256xf32>
    %c9_151 = arith.constant 9 : index
    %1898 = memref.load %arg7[%c9_151] : memref<144xf32, #tpu.memory_space<smem>>
    %1899 = vector.broadcast %1898 : f32 to vector<2x256xf32>
    %1900 = arith.mulf %1769, %1899 : vector<2x256xf32>
    %1901 = arith.addf %1897, %1900 : vector<2x256xf32>
    %c17_152 = arith.constant 17 : index
    %1902 = memref.load %arg7[%c17_152] : memref<144xf32, #tpu.memory_space<smem>>
    %1903 = vector.broadcast %1902 : f32 to vector<2x256xf32>
    %1904 = arith.mulf %1720, %1903 : vector<2x256xf32>
    %1905 = arith.addf %1901, %1904 : vector<2x256xf32>
    %c25_153 = arith.constant 25 : index
    %1906 = memref.load %arg7[%c25_153] : memref<144xf32, #tpu.memory_space<smem>>
    %1907 = vector.broadcast %1906 : f32 to vector<2x256xf32>
    %1908 = arith.mulf %1776, %1907 : vector<2x256xf32>
    %1909 = arith.addf %1905, %1908 : vector<2x256xf32>
    %c33_154 = arith.constant 33 : index
    %1910 = memref.load %arg7[%c33_154] : memref<144xf32, #tpu.memory_space<smem>>
    %1911 = vector.broadcast %1910 : f32 to vector<2x256xf32>
    %1912 = arith.mulf %1727, %1911 : vector<2x256xf32>
    %1913 = arith.addf %1909, %1912 : vector<2x256xf32>
    %c41_155 = arith.constant 41 : index
    %1914 = memref.load %arg7[%c41_155] : memref<144xf32, #tpu.memory_space<smem>>
    %1915 = vector.broadcast %1914 : f32 to vector<2x256xf32>
    %1916 = arith.mulf %1783, %1915 : vector<2x256xf32>
    %1917 = arith.addf %1913, %1916 : vector<2x256xf32>
    %c49_156 = arith.constant 49 : index
    %1918 = memref.load %arg7[%c49_156] : memref<144xf32, #tpu.memory_space<smem>>
    %1919 = vector.broadcast %1918 : f32 to vector<2x256xf32>
    %1920 = arith.mulf %1734, %1919 : vector<2x256xf32>
    %1921 = arith.addf %1917, %1920 : vector<2x256xf32>
    %c57_157 = arith.constant 57 : index
    %1922 = memref.load %arg7[%c57_157] : memref<144xf32, #tpu.memory_space<smem>>
    %1923 = vector.broadcast %1922 : f32 to vector<2x256xf32>
    %1924 = arith.mulf %1790, %1923 : vector<2x256xf32>
    %1925 = arith.addf %1921, %1924 : vector<2x256xf32>
    %c65_158 = arith.constant 65 : index
    %1926 = memref.load %arg7[%c65_158] : memref<144xf32, #tpu.memory_space<smem>>
    %1927 = vector.broadcast %1926 : f32 to vector<2x256xf32>
    %1928 = arith.mulf %266, %1927 : vector<2x256xf32>
    %1929 = arith.addf %1925, %1928 : vector<2x256xf32>
    %c73_159 = arith.constant 73 : index
    %1930 = memref.load %arg7[%c73_159] : memref<144xf32, #tpu.memory_space<smem>>
    %1931 = vector.broadcast %1930 : f32 to vector<2x256xf32>
    %1932 = arith.mulf %1706, %1931 : vector<2x256xf32>
    %1933 = arith.addf %1929, %1932 : vector<2x256xf32>
    %c81_160 = arith.constant 81 : index
    %1934 = memref.load %arg7[%c81_160] : memref<144xf32, #tpu.memory_space<smem>>
    %1935 = vector.broadcast %1934 : f32 to vector<2x256xf32>
    %1936 = arith.mulf %1741, %1935 : vector<2x256xf32>
    %1937 = arith.addf %1933, %1936 : vector<2x256xf32>
    %c89_161 = arith.constant 89 : index
    %1938 = memref.load %arg7[%c89_161] : memref<144xf32, #tpu.memory_space<smem>>
    %1939 = vector.broadcast %1938 : f32 to vector<2x256xf32>
    %1940 = arith.mulf %1797, %1939 : vector<2x256xf32>
    %1941 = arith.addf %1937, %1940 : vector<2x256xf32>
    %c97_162 = arith.constant 97 : index
    %1942 = memref.load %arg7[%c97_162] : memref<144xf32, #tpu.memory_space<smem>>
    %1943 = vector.broadcast %1942 : f32 to vector<2x256xf32>
    %1944 = arith.mulf %1748, %1943 : vector<2x256xf32>
    %1945 = arith.addf %1941, %1944 : vector<2x256xf32>
    %c105_163 = arith.constant 105 : index
    %1946 = memref.load %arg7[%c105_163] : memref<144xf32, #tpu.memory_space<smem>>
    %1947 = vector.broadcast %1946 : f32 to vector<2x256xf32>
    %1948 = arith.mulf %1804, %1947 : vector<2x256xf32>
    %1949 = arith.addf %1945, %1948 : vector<2x256xf32>
    %c113_164 = arith.constant 113 : index
    %1950 = memref.load %arg7[%c113_164] : memref<144xf32, #tpu.memory_space<smem>>
    %1951 = vector.broadcast %1950 : f32 to vector<2x256xf32>
    %1952 = arith.mulf %1755, %1951 : vector<2x256xf32>
    %1953 = arith.addf %1949, %1952 : vector<2x256xf32>
    %c121_165 = arith.constant 121 : index
    %1954 = memref.load %arg7[%c121_165] : memref<144xf32, #tpu.memory_space<smem>>
    %1955 = vector.broadcast %1954 : f32 to vector<2x256xf32>
    %1956 = arith.mulf %1811, %1955 : vector<2x256xf32>
    %1957 = arith.addf %1953, %1956 : vector<2x256xf32>
    %c129_166 = arith.constant 129 : index
    %1958 = memref.load %arg7[%c129_166] : memref<144xf32, #tpu.memory_space<smem>>
    %1959 = vector.broadcast %1958 : f32 to vector<2x256xf32>
    %1960 = arith.mulf %1762, %1959 : vector<2x256xf32>
    %1961 = arith.addf %1957, %1960 : vector<2x256xf32>
    %c137_167 = arith.constant 137 : index
    %1962 = memref.load %arg7[%c137_167] : memref<144xf32, #tpu.memory_space<smem>>
    %1963 = vector.broadcast %1962 : f32 to vector<2x256xf32>
    %1964 = arith.mulf %1818, %1963 : vector<2x256xf32>
    %1965 = arith.addf %1961, %1964 : vector<2x256xf32>
    %c1_168 = arith.constant 1 : index
    %1966 = memref.load %arg8[%c1_168] : memref<8xf32, #tpu.memory_space<smem>>
    %1967 = vector.broadcast %1966 : f32 to vector<2x256xf32>
    %1968 = arith.addf %1965, %1967 : vector<2x256xf32>
    %cst_169 = arith.constant 0.000000e+00 : f32
    %1969 = vector.broadcast %cst_169 : f32 to vector<2x256xf32>
    %1970 = arith.maximumf %1968, %1969 : vector<2x256xf32>
    %c2_170 = arith.constant 2 : index
    %1971 = memref.load %arg7[%c2_170] : memref<144xf32, #tpu.memory_space<smem>>
    %1972 = vector.broadcast %1971 : f32 to vector<2x256xf32>
    %1973 = arith.mulf %1713, %1972 : vector<2x256xf32>
    %c10_171 = arith.constant 10 : index
    %1974 = memref.load %arg7[%c10_171] : memref<144xf32, #tpu.memory_space<smem>>
    %1975 = vector.broadcast %1974 : f32 to vector<2x256xf32>
    %1976 = arith.mulf %1769, %1975 : vector<2x256xf32>
    %1977 = arith.addf %1973, %1976 : vector<2x256xf32>
    %c18_172 = arith.constant 18 : index
    %1978 = memref.load %arg7[%c18_172] : memref<144xf32, #tpu.memory_space<smem>>
    %1979 = vector.broadcast %1978 : f32 to vector<2x256xf32>
    %1980 = arith.mulf %1720, %1979 : vector<2x256xf32>
    %1981 = arith.addf %1977, %1980 : vector<2x256xf32>
    %c26_173 = arith.constant 26 : index
    %1982 = memref.load %arg7[%c26_173] : memref<144xf32, #tpu.memory_space<smem>>
    %1983 = vector.broadcast %1982 : f32 to vector<2x256xf32>
    %1984 = arith.mulf %1776, %1983 : vector<2x256xf32>
    %1985 = arith.addf %1981, %1984 : vector<2x256xf32>
    %c34_174 = arith.constant 34 : index
    %1986 = memref.load %arg7[%c34_174] : memref<144xf32, #tpu.memory_space<smem>>
    %1987 = vector.broadcast %1986 : f32 to vector<2x256xf32>
    %1988 = arith.mulf %1727, %1987 : vector<2x256xf32>
    %1989 = arith.addf %1985, %1988 : vector<2x256xf32>
    %c42_175 = arith.constant 42 : index
    %1990 = memref.load %arg7[%c42_175] : memref<144xf32, #tpu.memory_space<smem>>
    %1991 = vector.broadcast %1990 : f32 to vector<2x256xf32>
    %1992 = arith.mulf %1783, %1991 : vector<2x256xf32>
    %1993 = arith.addf %1989, %1992 : vector<2x256xf32>
    %c50_176 = arith.constant 50 : index
    %1994 = memref.load %arg7[%c50_176] : memref<144xf32, #tpu.memory_space<smem>>
    %1995 = vector.broadcast %1994 : f32 to vector<2x256xf32>
    %1996 = arith.mulf %1734, %1995 : vector<2x256xf32>
    %1997 = arith.addf %1993, %1996 : vector<2x256xf32>
    %c58_177 = arith.constant 58 : index
    %1998 = memref.load %arg7[%c58_177] : memref<144xf32, #tpu.memory_space<smem>>
    %1999 = vector.broadcast %1998 : f32 to vector<2x256xf32>
    %2000 = arith.mulf %1790, %1999 : vector<2x256xf32>
    %2001 = arith.addf %1997, %2000 : vector<2x256xf32>
    %c66_178 = arith.constant 66 : index
    %2002 = memref.load %arg7[%c66_178] : memref<144xf32, #tpu.memory_space<smem>>
    %2003 = vector.broadcast %2002 : f32 to vector<2x256xf32>
    %2004 = arith.mulf %266, %2003 : vector<2x256xf32>
    %2005 = arith.addf %2001, %2004 : vector<2x256xf32>
    %c74_179 = arith.constant 74 : index
    %2006 = memref.load %arg7[%c74_179] : memref<144xf32, #tpu.memory_space<smem>>
    %2007 = vector.broadcast %2006 : f32 to vector<2x256xf32>
    %2008 = arith.mulf %1706, %2007 : vector<2x256xf32>
    %2009 = arith.addf %2005, %2008 : vector<2x256xf32>
    %c82_180 = arith.constant 82 : index
    %2010 = memref.load %arg7[%c82_180] : memref<144xf32, #tpu.memory_space<smem>>
    %2011 = vector.broadcast %2010 : f32 to vector<2x256xf32>
    %2012 = arith.mulf %1741, %2011 : vector<2x256xf32>
    %2013 = arith.addf %2009, %2012 : vector<2x256xf32>
    %c90_181 = arith.constant 90 : index
    %2014 = memref.load %arg7[%c90_181] : memref<144xf32, #tpu.memory_space<smem>>
    %2015 = vector.broadcast %2014 : f32 to vector<2x256xf32>
    %2016 = arith.mulf %1797, %2015 : vector<2x256xf32>
    %2017 = arith.addf %2013, %2016 : vector<2x256xf32>
    %c98_182 = arith.constant 98 : index
    %2018 = memref.load %arg7[%c98_182] : memref<144xf32, #tpu.memory_space<smem>>
    %2019 = vector.broadcast %2018 : f32 to vector<2x256xf32>
    %2020 = arith.mulf %1748, %2019 : vector<2x256xf32>
    %2021 = arith.addf %2017, %2020 : vector<2x256xf32>
    %c106_183 = arith.constant 106 : index
    %2022 = memref.load %arg7[%c106_183] : memref<144xf32, #tpu.memory_space<smem>>
    %2023 = vector.broadcast %2022 : f32 to vector<2x256xf32>
    %2024 = arith.mulf %1804, %2023 : vector<2x256xf32>
    %2025 = arith.addf %2021, %2024 : vector<2x256xf32>
    %c114_184 = arith.constant 114 : index
    %2026 = memref.load %arg7[%c114_184] : memref<144xf32, #tpu.memory_space<smem>>
    %2027 = vector.broadcast %2026 : f32 to vector<2x256xf32>
    %2028 = arith.mulf %1755, %2027 : vector<2x256xf32>
    %2029 = arith.addf %2025, %2028 : vector<2x256xf32>
    %c122_185 = arith.constant 122 : index
    %2030 = memref.load %arg7[%c122_185] : memref<144xf32, #tpu.memory_space<smem>>
    %2031 = vector.broadcast %2030 : f32 to vector<2x256xf32>
    %2032 = arith.mulf %1811, %2031 : vector<2x256xf32>
    %2033 = arith.addf %2029, %2032 : vector<2x256xf32>
    %c130_186 = arith.constant 130 : index
    %2034 = memref.load %arg7[%c130_186] : memref<144xf32, #tpu.memory_space<smem>>
    %2035 = vector.broadcast %2034 : f32 to vector<2x256xf32>
    %2036 = arith.mulf %1762, %2035 : vector<2x256xf32>
    %2037 = arith.addf %2033, %2036 : vector<2x256xf32>
    %c138_187 = arith.constant 138 : index
    %2038 = memref.load %arg7[%c138_187] : memref<144xf32, #tpu.memory_space<smem>>
    %2039 = vector.broadcast %2038 : f32 to vector<2x256xf32>
    %2040 = arith.mulf %1818, %2039 : vector<2x256xf32>
    %2041 = arith.addf %2037, %2040 : vector<2x256xf32>
    %c2_188 = arith.constant 2 : index
    %2042 = memref.load %arg8[%c2_188] : memref<8xf32, #tpu.memory_space<smem>>
    %2043 = vector.broadcast %2042 : f32 to vector<2x256xf32>
    %2044 = arith.addf %2041, %2043 : vector<2x256xf32>
    %cst_189 = arith.constant 0.000000e+00 : f32
    %2045 = vector.broadcast %cst_189 : f32 to vector<2x256xf32>
    %2046 = arith.maximumf %2044, %2045 : vector<2x256xf32>
    %c3_190 = arith.constant 3 : index
    %2047 = memref.load %arg7[%c3_190] : memref<144xf32, #tpu.memory_space<smem>>
    %2048 = vector.broadcast %2047 : f32 to vector<2x256xf32>
    %2049 = arith.mulf %1713, %2048 : vector<2x256xf32>
    %c11_191 = arith.constant 11 : index
    %2050 = memref.load %arg7[%c11_191] : memref<144xf32, #tpu.memory_space<smem>>
    %2051 = vector.broadcast %2050 : f32 to vector<2x256xf32>
    %2052 = arith.mulf %1769, %2051 : vector<2x256xf32>
    %2053 = arith.addf %2049, %2052 : vector<2x256xf32>
    %c19_192 = arith.constant 19 : index
    %2054 = memref.load %arg7[%c19_192] : memref<144xf32, #tpu.memory_space<smem>>
    %2055 = vector.broadcast %2054 : f32 to vector<2x256xf32>
    %2056 = arith.mulf %1720, %2055 : vector<2x256xf32>
    %2057 = arith.addf %2053, %2056 : vector<2x256xf32>
    %c27_193 = arith.constant 27 : index
    %2058 = memref.load %arg7[%c27_193] : memref<144xf32, #tpu.memory_space<smem>>
    %2059 = vector.broadcast %2058 : f32 to vector<2x256xf32>
    %2060 = arith.mulf %1776, %2059 : vector<2x256xf32>
    %2061 = arith.addf %2057, %2060 : vector<2x256xf32>
    %c35_194 = arith.constant 35 : index
    %2062 = memref.load %arg7[%c35_194] : memref<144xf32, #tpu.memory_space<smem>>
    %2063 = vector.broadcast %2062 : f32 to vector<2x256xf32>
    %2064 = arith.mulf %1727, %2063 : vector<2x256xf32>
    %2065 = arith.addf %2061, %2064 : vector<2x256xf32>
    %c43_195 = arith.constant 43 : index
    %2066 = memref.load %arg7[%c43_195] : memref<144xf32, #tpu.memory_space<smem>>
    %2067 = vector.broadcast %2066 : f32 to vector<2x256xf32>
    %2068 = arith.mulf %1783, %2067 : vector<2x256xf32>
    %2069 = arith.addf %2065, %2068 : vector<2x256xf32>
    %c51_196 = arith.constant 51 : index
    %2070 = memref.load %arg7[%c51_196] : memref<144xf32, #tpu.memory_space<smem>>
    %2071 = vector.broadcast %2070 : f32 to vector<2x256xf32>
    %2072 = arith.mulf %1734, %2071 : vector<2x256xf32>
    %2073 = arith.addf %2069, %2072 : vector<2x256xf32>
    %c59_197 = arith.constant 59 : index
    %2074 = memref.load %arg7[%c59_197] : memref<144xf32, #tpu.memory_space<smem>>
    %2075 = vector.broadcast %2074 : f32 to vector<2x256xf32>
    %2076 = arith.mulf %1790, %2075 : vector<2x256xf32>
    %2077 = arith.addf %2073, %2076 : vector<2x256xf32>
    %c67_198 = arith.constant 67 : index
    %2078 = memref.load %arg7[%c67_198] : memref<144xf32, #tpu.memory_space<smem>>
    %2079 = vector.broadcast %2078 : f32 to vector<2x256xf32>
    %2080 = arith.mulf %266, %2079 : vector<2x256xf32>
    %2081 = arith.addf %2077, %2080 : vector<2x256xf32>
    %c75_199 = arith.constant 75 : index
    %2082 = memref.load %arg7[%c75_199] : memref<144xf32, #tpu.memory_space<smem>>
    %2083 = vector.broadcast %2082 : f32 to vector<2x256xf32>
    %2084 = arith.mulf %1706, %2083 : vector<2x256xf32>
    %2085 = arith.addf %2081, %2084 : vector<2x256xf32>
    %c83_200 = arith.constant 83 : index
    %2086 = memref.load %arg7[%c83_200] : memref<144xf32, #tpu.memory_space<smem>>
    %2087 = vector.broadcast %2086 : f32 to vector<2x256xf32>
    %2088 = arith.mulf %1741, %2087 : vector<2x256xf32>
    %2089 = arith.addf %2085, %2088 : vector<2x256xf32>
    %c91_201 = arith.constant 91 : index
    %2090 = memref.load %arg7[%c91_201] : memref<144xf32, #tpu.memory_space<smem>>
    %2091 = vector.broadcast %2090 : f32 to vector<2x256xf32>
    %2092 = arith.mulf %1797, %2091 : vector<2x256xf32>
    %2093 = arith.addf %2089, %2092 : vector<2x256xf32>
    %c99_202 = arith.constant 99 : index
    %2094 = memref.load %arg7[%c99_202] : memref<144xf32, #tpu.memory_space<smem>>
    %2095 = vector.broadcast %2094 : f32 to vector<2x256xf32>
    %2096 = arith.mulf %1748, %2095 : vector<2x256xf32>
    %2097 = arith.addf %2093, %2096 : vector<2x256xf32>
    %c107_203 = arith.constant 107 : index
    %2098 = memref.load %arg7[%c107_203] : memref<144xf32, #tpu.memory_space<smem>>
    %2099 = vector.broadcast %2098 : f32 to vector<2x256xf32>
    %2100 = arith.mulf %1804, %2099 : vector<2x256xf32>
    %2101 = arith.addf %2097, %2100 : vector<2x256xf32>
    %c115_204 = arith.constant 115 : index
    %2102 = memref.load %arg7[%c115_204] : memref<144xf32, #tpu.memory_space<smem>>
    %2103 = vector.broadcast %2102 : f32 to vector<2x256xf32>
    %2104 = arith.mulf %1755, %2103 : vector<2x256xf32>
    %2105 = arith.addf %2101, %2104 : vector<2x256xf32>
    %c123_205 = arith.constant 123 : index
    %2106 = memref.load %arg7[%c123_205] : memref<144xf32, #tpu.memory_space<smem>>
    %2107 = vector.broadcast %2106 : f32 to vector<2x256xf32>
    %2108 = arith.mulf %1811, %2107 : vector<2x256xf32>
    %2109 = arith.addf %2105, %2108 : vector<2x256xf32>
    %c131_206 = arith.constant 131 : index
    %2110 = memref.load %arg7[%c131_206] : memref<144xf32, #tpu.memory_space<smem>>
    %2111 = vector.broadcast %2110 : f32 to vector<2x256xf32>
    %2112 = arith.mulf %1762, %2111 : vector<2x256xf32>
    %2113 = arith.addf %2109, %2112 : vector<2x256xf32>
    %c139_207 = arith.constant 139 : index
    %2114 = memref.load %arg7[%c139_207] : memref<144xf32, #tpu.memory_space<smem>>
    %2115 = vector.broadcast %2114 : f32 to vector<2x256xf32>
    %2116 = arith.mulf %1818, %2115 : vector<2x256xf32>
    %2117 = arith.addf %2113, %2116 : vector<2x256xf32>
    %c3_208 = arith.constant 3 : index
    %2118 = memref.load %arg8[%c3_208] : memref<8xf32, #tpu.memory_space<smem>>
    %2119 = vector.broadcast %2118 : f32 to vector<2x256xf32>
    %2120 = arith.addf %2117, %2119 : vector<2x256xf32>
    %cst_209 = arith.constant 0.000000e+00 : f32
    %2121 = vector.broadcast %cst_209 : f32 to vector<2x256xf32>
    %2122 = arith.maximumf %2120, %2121 : vector<2x256xf32>
    %c4_210 = arith.constant 4 : index
    %2123 = memref.load %arg7[%c4_210] : memref<144xf32, #tpu.memory_space<smem>>
    %2124 = vector.broadcast %2123 : f32 to vector<2x256xf32>
    %2125 = arith.mulf %1713, %2124 : vector<2x256xf32>
    %c12_211 = arith.constant 12 : index
    %2126 = memref.load %arg7[%c12_211] : memref<144xf32, #tpu.memory_space<smem>>
    %2127 = vector.broadcast %2126 : f32 to vector<2x256xf32>
    %2128 = arith.mulf %1769, %2127 : vector<2x256xf32>
    %2129 = arith.addf %2125, %2128 : vector<2x256xf32>
    %c20_212 = arith.constant 20 : index
    %2130 = memref.load %arg7[%c20_212] : memref<144xf32, #tpu.memory_space<smem>>
    %2131 = vector.broadcast %2130 : f32 to vector<2x256xf32>
    %2132 = arith.mulf %1720, %2131 : vector<2x256xf32>
    %2133 = arith.addf %2129, %2132 : vector<2x256xf32>
    %c28_213 = arith.constant 28 : index
    %2134 = memref.load %arg7[%c28_213] : memref<144xf32, #tpu.memory_space<smem>>
    %2135 = vector.broadcast %2134 : f32 to vector<2x256xf32>
    %2136 = arith.mulf %1776, %2135 : vector<2x256xf32>
    %2137 = arith.addf %2133, %2136 : vector<2x256xf32>
    %c36_214 = arith.constant 36 : index
    %2138 = memref.load %arg7[%c36_214] : memref<144xf32, #tpu.memory_space<smem>>
    %2139 = vector.broadcast %2138 : f32 to vector<2x256xf32>
    %2140 = arith.mulf %1727, %2139 : vector<2x256xf32>
    %2141 = arith.addf %2137, %2140 : vector<2x256xf32>
    %c44_215 = arith.constant 44 : index
    %2142 = memref.load %arg7[%c44_215] : memref<144xf32, #tpu.memory_space<smem>>
    %2143 = vector.broadcast %2142 : f32 to vector<2x256xf32>
    %2144 = arith.mulf %1783, %2143 : vector<2x256xf32>
    %2145 = arith.addf %2141, %2144 : vector<2x256xf32>
    %c52_216 = arith.constant 52 : index
    %2146 = memref.load %arg7[%c52_216] : memref<144xf32, #tpu.memory_space<smem>>
    %2147 = vector.broadcast %2146 : f32 to vector<2x256xf32>
    %2148 = arith.mulf %1734, %2147 : vector<2x256xf32>
    %2149 = arith.addf %2145, %2148 : vector<2x256xf32>
    %c60_217 = arith.constant 60 : index
    %2150 = memref.load %arg7[%c60_217] : memref<144xf32, #tpu.memory_space<smem>>
    %2151 = vector.broadcast %2150 : f32 to vector<2x256xf32>
    %2152 = arith.mulf %1790, %2151 : vector<2x256xf32>
    %2153 = arith.addf %2149, %2152 : vector<2x256xf32>
    %c68_218 = arith.constant 68 : index
    %2154 = memref.load %arg7[%c68_218] : memref<144xf32, #tpu.memory_space<smem>>
    %2155 = vector.broadcast %2154 : f32 to vector<2x256xf32>
    %2156 = arith.mulf %266, %2155 : vector<2x256xf32>
    %2157 = arith.addf %2153, %2156 : vector<2x256xf32>
    %c76_219 = arith.constant 76 : index
    %2158 = memref.load %arg7[%c76_219] : memref<144xf32, #tpu.memory_space<smem>>
    %2159 = vector.broadcast %2158 : f32 to vector<2x256xf32>
    %2160 = arith.mulf %1706, %2159 : vector<2x256xf32>
    %2161 = arith.addf %2157, %2160 : vector<2x256xf32>
    %c84_220 = arith.constant 84 : index
    %2162 = memref.load %arg7[%c84_220] : memref<144xf32, #tpu.memory_space<smem>>
    %2163 = vector.broadcast %2162 : f32 to vector<2x256xf32>
    %2164 = arith.mulf %1741, %2163 : vector<2x256xf32>
    %2165 = arith.addf %2161, %2164 : vector<2x256xf32>
    %c92_221 = arith.constant 92 : index
    %2166 = memref.load %arg7[%c92_221] : memref<144xf32, #tpu.memory_space<smem>>
    %2167 = vector.broadcast %2166 : f32 to vector<2x256xf32>
    %2168 = arith.mulf %1797, %2167 : vector<2x256xf32>
    %2169 = arith.addf %2165, %2168 : vector<2x256xf32>
    %c100_222 = arith.constant 100 : index
    %2170 = memref.load %arg7[%c100_222] : memref<144xf32, #tpu.memory_space<smem>>
    %2171 = vector.broadcast %2170 : f32 to vector<2x256xf32>
    %2172 = arith.mulf %1748, %2171 : vector<2x256xf32>
    %2173 = arith.addf %2169, %2172 : vector<2x256xf32>
    %c108_223 = arith.constant 108 : index
    %2174 = memref.load %arg7[%c108_223] : memref<144xf32, #tpu.memory_space<smem>>
    %2175 = vector.broadcast %2174 : f32 to vector<2x256xf32>
    %2176 = arith.mulf %1804, %2175 : vector<2x256xf32>
    %2177 = arith.addf %2173, %2176 : vector<2x256xf32>
    %c116_224 = arith.constant 116 : index
    %2178 = memref.load %arg7[%c116_224] : memref<144xf32, #tpu.memory_space<smem>>
    %2179 = vector.broadcast %2178 : f32 to vector<2x256xf32>
    %2180 = arith.mulf %1755, %2179 : vector<2x256xf32>
    %2181 = arith.addf %2177, %2180 : vector<2x256xf32>
    %c124_225 = arith.constant 124 : index
    %2182 = memref.load %arg7[%c124_225] : memref<144xf32, #tpu.memory_space<smem>>
    %2183 = vector.broadcast %2182 : f32 to vector<2x256xf32>
    %2184 = arith.mulf %1811, %2183 : vector<2x256xf32>
    %2185 = arith.addf %2181, %2184 : vector<2x256xf32>
    %c132_226 = arith.constant 132 : index
    %2186 = memref.load %arg7[%c132_226] : memref<144xf32, #tpu.memory_space<smem>>
    %2187 = vector.broadcast %2186 : f32 to vector<2x256xf32>
    %2188 = arith.mulf %1762, %2187 : vector<2x256xf32>
    %2189 = arith.addf %2185, %2188 : vector<2x256xf32>
    %c140_227 = arith.constant 140 : index
    %2190 = memref.load %arg7[%c140_227] : memref<144xf32, #tpu.memory_space<smem>>
    %2191 = vector.broadcast %2190 : f32 to vector<2x256xf32>
    %2192 = arith.mulf %1818, %2191 : vector<2x256xf32>
    %2193 = arith.addf %2189, %2192 : vector<2x256xf32>
    %c4_228 = arith.constant 4 : index
    %2194 = memref.load %arg8[%c4_228] : memref<8xf32, #tpu.memory_space<smem>>
    %2195 = vector.broadcast %2194 : f32 to vector<2x256xf32>
    %2196 = arith.addf %2193, %2195 : vector<2x256xf32>
    %cst_229 = arith.constant 0.000000e+00 : f32
    %2197 = vector.broadcast %cst_229 : f32 to vector<2x256xf32>
    %2198 = arith.maximumf %2196, %2197 : vector<2x256xf32>
    %c5_230 = arith.constant 5 : index
    %2199 = memref.load %arg7[%c5_230] : memref<144xf32, #tpu.memory_space<smem>>
    %2200 = vector.broadcast %2199 : f32 to vector<2x256xf32>
    %2201 = arith.mulf %1713, %2200 : vector<2x256xf32>
    %c13_231 = arith.constant 13 : index
    %2202 = memref.load %arg7[%c13_231] : memref<144xf32, #tpu.memory_space<smem>>
    %2203 = vector.broadcast %2202 : f32 to vector<2x256xf32>
    %2204 = arith.mulf %1769, %2203 : vector<2x256xf32>
    %2205 = arith.addf %2201, %2204 : vector<2x256xf32>
    %c21_232 = arith.constant 21 : index
    %2206 = memref.load %arg7[%c21_232] : memref<144xf32, #tpu.memory_space<smem>>
    %2207 = vector.broadcast %2206 : f32 to vector<2x256xf32>
    %2208 = arith.mulf %1720, %2207 : vector<2x256xf32>
    %2209 = arith.addf %2205, %2208 : vector<2x256xf32>
    %c29_233 = arith.constant 29 : index
    %2210 = memref.load %arg7[%c29_233] : memref<144xf32, #tpu.memory_space<smem>>
    %2211 = vector.broadcast %2210 : f32 to vector<2x256xf32>
    %2212 = arith.mulf %1776, %2211 : vector<2x256xf32>
    %2213 = arith.addf %2209, %2212 : vector<2x256xf32>
    %c37_234 = arith.constant 37 : index
    %2214 = memref.load %arg7[%c37_234] : memref<144xf32, #tpu.memory_space<smem>>
    %2215 = vector.broadcast %2214 : f32 to vector<2x256xf32>
    %2216 = arith.mulf %1727, %2215 : vector<2x256xf32>
    %2217 = arith.addf %2213, %2216 : vector<2x256xf32>
    %c45_235 = arith.constant 45 : index
    %2218 = memref.load %arg7[%c45_235] : memref<144xf32, #tpu.memory_space<smem>>
    %2219 = vector.broadcast %2218 : f32 to vector<2x256xf32>
    %2220 = arith.mulf %1783, %2219 : vector<2x256xf32>
    %2221 = arith.addf %2217, %2220 : vector<2x256xf32>
    %c53_236 = arith.constant 53 : index
    %2222 = memref.load %arg7[%c53_236] : memref<144xf32, #tpu.memory_space<smem>>
    %2223 = vector.broadcast %2222 : f32 to vector<2x256xf32>
    %2224 = arith.mulf %1734, %2223 : vector<2x256xf32>
    %2225 = arith.addf %2221, %2224 : vector<2x256xf32>
    %c61_237 = arith.constant 61 : index
    %2226 = memref.load %arg7[%c61_237] : memref<144xf32, #tpu.memory_space<smem>>
    %2227 = vector.broadcast %2226 : f32 to vector<2x256xf32>
    %2228 = arith.mulf %1790, %2227 : vector<2x256xf32>
    %2229 = arith.addf %2225, %2228 : vector<2x256xf32>
    %c69_238 = arith.constant 69 : index
    %2230 = memref.load %arg7[%c69_238] : memref<144xf32, #tpu.memory_space<smem>>
    %2231 = vector.broadcast %2230 : f32 to vector<2x256xf32>
    %2232 = arith.mulf %266, %2231 : vector<2x256xf32>
    %2233 = arith.addf %2229, %2232 : vector<2x256xf32>
    %c77_239 = arith.constant 77 : index
    %2234 = memref.load %arg7[%c77_239] : memref<144xf32, #tpu.memory_space<smem>>
    %2235 = vector.broadcast %2234 : f32 to vector<2x256xf32>
    %2236 = arith.mulf %1706, %2235 : vector<2x256xf32>
    %2237 = arith.addf %2233, %2236 : vector<2x256xf32>
    %c85_240 = arith.constant 85 : index
    %2238 = memref.load %arg7[%c85_240] : memref<144xf32, #tpu.memory_space<smem>>
    %2239 = vector.broadcast %2238 : f32 to vector<2x256xf32>
    %2240 = arith.mulf %1741, %2239 : vector<2x256xf32>
    %2241 = arith.addf %2237, %2240 : vector<2x256xf32>
    %c93_241 = arith.constant 93 : index
    %2242 = memref.load %arg7[%c93_241] : memref<144xf32, #tpu.memory_space<smem>>
    %2243 = vector.broadcast %2242 : f32 to vector<2x256xf32>
    %2244 = arith.mulf %1797, %2243 : vector<2x256xf32>
    %2245 = arith.addf %2241, %2244 : vector<2x256xf32>
    %c101_242 = arith.constant 101 : index
    %2246 = memref.load %arg7[%c101_242] : memref<144xf32, #tpu.memory_space<smem>>
    %2247 = vector.broadcast %2246 : f32 to vector<2x256xf32>
    %2248 = arith.mulf %1748, %2247 : vector<2x256xf32>
    %2249 = arith.addf %2245, %2248 : vector<2x256xf32>
    %c109_243 = arith.constant 109 : index
    %2250 = memref.load %arg7[%c109_243] : memref<144xf32, #tpu.memory_space<smem>>
    %2251 = vector.broadcast %2250 : f32 to vector<2x256xf32>
    %2252 = arith.mulf %1804, %2251 : vector<2x256xf32>
    %2253 = arith.addf %2249, %2252 : vector<2x256xf32>
    %c117_244 = arith.constant 117 : index
    %2254 = memref.load %arg7[%c117_244] : memref<144xf32, #tpu.memory_space<smem>>
    %2255 = vector.broadcast %2254 : f32 to vector<2x256xf32>
    %2256 = arith.mulf %1755, %2255 : vector<2x256xf32>
    %2257 = arith.addf %2253, %2256 : vector<2x256xf32>
    %c125_245 = arith.constant 125 : index
    %2258 = memref.load %arg7[%c125_245] : memref<144xf32, #tpu.memory_space<smem>>
    %2259 = vector.broadcast %2258 : f32 to vector<2x256xf32>
    %2260 = arith.mulf %1811, %2259 : vector<2x256xf32>
    %2261 = arith.addf %2257, %2260 : vector<2x256xf32>
    %c133_246 = arith.constant 133 : index
    %2262 = memref.load %arg7[%c133_246] : memref<144xf32, #tpu.memory_space<smem>>
    %2263 = vector.broadcast %2262 : f32 to vector<2x256xf32>
    %2264 = arith.mulf %1762, %2263 : vector<2x256xf32>
    %2265 = arith.addf %2261, %2264 : vector<2x256xf32>
    %c141_247 = arith.constant 141 : index
    %2266 = memref.load %arg7[%c141_247] : memref<144xf32, #tpu.memory_space<smem>>
    %2267 = vector.broadcast %2266 : f32 to vector<2x256xf32>
    %2268 = arith.mulf %1818, %2267 : vector<2x256xf32>
    %2269 = arith.addf %2265, %2268 : vector<2x256xf32>
    %c5_248 = arith.constant 5 : index
    %2270 = memref.load %arg8[%c5_248] : memref<8xf32, #tpu.memory_space<smem>>
    %2271 = vector.broadcast %2270 : f32 to vector<2x256xf32>
    %2272 = arith.addf %2269, %2271 : vector<2x256xf32>
    %cst_249 = arith.constant 0.000000e+00 : f32
    %2273 = vector.broadcast %cst_249 : f32 to vector<2x256xf32>
    %2274 = arith.maximumf %2272, %2273 : vector<2x256xf32>
    %c6_250 = arith.constant 6 : index
    %2275 = memref.load %arg7[%c6_250] : memref<144xf32, #tpu.memory_space<smem>>
    %2276 = vector.broadcast %2275 : f32 to vector<2x256xf32>
    %2277 = arith.mulf %1713, %2276 : vector<2x256xf32>
    %c14_251 = arith.constant 14 : index
    %2278 = memref.load %arg7[%c14_251] : memref<144xf32, #tpu.memory_space<smem>>
    %2279 = vector.broadcast %2278 : f32 to vector<2x256xf32>
    %2280 = arith.mulf %1769, %2279 : vector<2x256xf32>
    %2281 = arith.addf %2277, %2280 : vector<2x256xf32>
    %c22_252 = arith.constant 22 : index
    %2282 = memref.load %arg7[%c22_252] : memref<144xf32, #tpu.memory_space<smem>>
    %2283 = vector.broadcast %2282 : f32 to vector<2x256xf32>
    %2284 = arith.mulf %1720, %2283 : vector<2x256xf32>
    %2285 = arith.addf %2281, %2284 : vector<2x256xf32>
    %c30_253 = arith.constant 30 : index
    %2286 = memref.load %arg7[%c30_253] : memref<144xf32, #tpu.memory_space<smem>>
    %2287 = vector.broadcast %2286 : f32 to vector<2x256xf32>
    %2288 = arith.mulf %1776, %2287 : vector<2x256xf32>
    %2289 = arith.addf %2285, %2288 : vector<2x256xf32>
    %c38_254 = arith.constant 38 : index
    %2290 = memref.load %arg7[%c38_254] : memref<144xf32, #tpu.memory_space<smem>>
    %2291 = vector.broadcast %2290 : f32 to vector<2x256xf32>
    %2292 = arith.mulf %1727, %2291 : vector<2x256xf32>
    %2293 = arith.addf %2289, %2292 : vector<2x256xf32>
    %c46_255 = arith.constant 46 : index
    %2294 = memref.load %arg7[%c46_255] : memref<144xf32, #tpu.memory_space<smem>>
    %2295 = vector.broadcast %2294 : f32 to vector<2x256xf32>
    %2296 = arith.mulf %1783, %2295 : vector<2x256xf32>
    %2297 = arith.addf %2293, %2296 : vector<2x256xf32>
    %c54_256 = arith.constant 54 : index
    %2298 = memref.load %arg7[%c54_256] : memref<144xf32, #tpu.memory_space<smem>>
    %2299 = vector.broadcast %2298 : f32 to vector<2x256xf32>
    %2300 = arith.mulf %1734, %2299 : vector<2x256xf32>
    %2301 = arith.addf %2297, %2300 : vector<2x256xf32>
    %c62_257 = arith.constant 62 : index
    %2302 = memref.load %arg7[%c62_257] : memref<144xf32, #tpu.memory_space<smem>>
    %2303 = vector.broadcast %2302 : f32 to vector<2x256xf32>
    %2304 = arith.mulf %1790, %2303 : vector<2x256xf32>
    %2305 = arith.addf %2301, %2304 : vector<2x256xf32>
    %c70_258 = arith.constant 70 : index
    %2306 = memref.load %arg7[%c70_258] : memref<144xf32, #tpu.memory_space<smem>>
    %2307 = vector.broadcast %2306 : f32 to vector<2x256xf32>
    %2308 = arith.mulf %266, %2307 : vector<2x256xf32>
    %2309 = arith.addf %2305, %2308 : vector<2x256xf32>
    %c78_259 = arith.constant 78 : index
    %2310 = memref.load %arg7[%c78_259] : memref<144xf32, #tpu.memory_space<smem>>
    %2311 = vector.broadcast %2310 : f32 to vector<2x256xf32>
    %2312 = arith.mulf %1706, %2311 : vector<2x256xf32>
    %2313 = arith.addf %2309, %2312 : vector<2x256xf32>
    %c86_260 = arith.constant 86 : index
    %2314 = memref.load %arg7[%c86_260] : memref<144xf32, #tpu.memory_space<smem>>
    %2315 = vector.broadcast %2314 : f32 to vector<2x256xf32>
    %2316 = arith.mulf %1741, %2315 : vector<2x256xf32>
    %2317 = arith.addf %2313, %2316 : vector<2x256xf32>
    %c94_261 = arith.constant 94 : index
    %2318 = memref.load %arg7[%c94_261] : memref<144xf32, #tpu.memory_space<smem>>
    %2319 = vector.broadcast %2318 : f32 to vector<2x256xf32>
    %2320 = arith.mulf %1797, %2319 : vector<2x256xf32>
    %2321 = arith.addf %2317, %2320 : vector<2x256xf32>
    %c102_262 = arith.constant 102 : index
    %2322 = memref.load %arg7[%c102_262] : memref<144xf32, #tpu.memory_space<smem>>
    %2323 = vector.broadcast %2322 : f32 to vector<2x256xf32>
    %2324 = arith.mulf %1748, %2323 : vector<2x256xf32>
    %2325 = arith.addf %2321, %2324 : vector<2x256xf32>
    %c110_263 = arith.constant 110 : index
    %2326 = memref.load %arg7[%c110_263] : memref<144xf32, #tpu.memory_space<smem>>
    %2327 = vector.broadcast %2326 : f32 to vector<2x256xf32>
    %2328 = arith.mulf %1804, %2327 : vector<2x256xf32>
    %2329 = arith.addf %2325, %2328 : vector<2x256xf32>
    %c118_264 = arith.constant 118 : index
    %2330 = memref.load %arg7[%c118_264] : memref<144xf32, #tpu.memory_space<smem>>
    %2331 = vector.broadcast %2330 : f32 to vector<2x256xf32>
    %2332 = arith.mulf %1755, %2331 : vector<2x256xf32>
    %2333 = arith.addf %2329, %2332 : vector<2x256xf32>
    %c126_265 = arith.constant 126 : index
    %2334 = memref.load %arg7[%c126_265] : memref<144xf32, #tpu.memory_space<smem>>
    %2335 = vector.broadcast %2334 : f32 to vector<2x256xf32>
    %2336 = arith.mulf %1811, %2335 : vector<2x256xf32>
    %2337 = arith.addf %2333, %2336 : vector<2x256xf32>
    %c134_266 = arith.constant 134 : index
    %2338 = memref.load %arg7[%c134_266] : memref<144xf32, #tpu.memory_space<smem>>
    %2339 = vector.broadcast %2338 : f32 to vector<2x256xf32>
    %2340 = arith.mulf %1762, %2339 : vector<2x256xf32>
    %2341 = arith.addf %2337, %2340 : vector<2x256xf32>
    %c142_267 = arith.constant 142 : index
    %2342 = memref.load %arg7[%c142_267] : memref<144xf32, #tpu.memory_space<smem>>
    %2343 = vector.broadcast %2342 : f32 to vector<2x256xf32>
    %2344 = arith.mulf %1818, %2343 : vector<2x256xf32>
    %2345 = arith.addf %2341, %2344 : vector<2x256xf32>
    %c6_268 = arith.constant 6 : index
    %2346 = memref.load %arg8[%c6_268] : memref<8xf32, #tpu.memory_space<smem>>
    %2347 = vector.broadcast %2346 : f32 to vector<2x256xf32>
    %2348 = arith.addf %2345, %2347 : vector<2x256xf32>
    %cst_269 = arith.constant 0.000000e+00 : f32
    %2349 = vector.broadcast %cst_269 : f32 to vector<2x256xf32>
    %2350 = arith.maximumf %2348, %2349 : vector<2x256xf32>
    %c7_270 = arith.constant 7 : index
    %2351 = memref.load %arg7[%c7_270] : memref<144xf32, #tpu.memory_space<smem>>
    %2352 = vector.broadcast %2351 : f32 to vector<2x256xf32>
    %2353 = arith.mulf %1713, %2352 : vector<2x256xf32>
    %c15_271 = arith.constant 15 : index
    %2354 = memref.load %arg7[%c15_271] : memref<144xf32, #tpu.memory_space<smem>>
    %2355 = vector.broadcast %2354 : f32 to vector<2x256xf32>
    %2356 = arith.mulf %1769, %2355 : vector<2x256xf32>
    %2357 = arith.addf %2353, %2356 : vector<2x256xf32>
    %c23_272 = arith.constant 23 : index
    %2358 = memref.load %arg7[%c23_272] : memref<144xf32, #tpu.memory_space<smem>>
    %2359 = vector.broadcast %2358 : f32 to vector<2x256xf32>
    %2360 = arith.mulf %1720, %2359 : vector<2x256xf32>
    %2361 = arith.addf %2357, %2360 : vector<2x256xf32>
    %c31_273 = arith.constant 31 : index
    %2362 = memref.load %arg7[%c31_273] : memref<144xf32, #tpu.memory_space<smem>>
    %2363 = vector.broadcast %2362 : f32 to vector<2x256xf32>
    %2364 = arith.mulf %1776, %2363 : vector<2x256xf32>
    %2365 = arith.addf %2361, %2364 : vector<2x256xf32>
    %c39_274 = arith.constant 39 : index
    %2366 = memref.load %arg7[%c39_274] : memref<144xf32, #tpu.memory_space<smem>>
    %2367 = vector.broadcast %2366 : f32 to vector<2x256xf32>
    %2368 = arith.mulf %1727, %2367 : vector<2x256xf32>
    %2369 = arith.addf %2365, %2368 : vector<2x256xf32>
    %c47_275 = arith.constant 47 : index
    %2370 = memref.load %arg7[%c47_275] : memref<144xf32, #tpu.memory_space<smem>>
    %2371 = vector.broadcast %2370 : f32 to vector<2x256xf32>
    %2372 = arith.mulf %1783, %2371 : vector<2x256xf32>
    %2373 = arith.addf %2369, %2372 : vector<2x256xf32>
    %c55_276 = arith.constant 55 : index
    %2374 = memref.load %arg7[%c55_276] : memref<144xf32, #tpu.memory_space<smem>>
    %2375 = vector.broadcast %2374 : f32 to vector<2x256xf32>
    %2376 = arith.mulf %1734, %2375 : vector<2x256xf32>
    %2377 = arith.addf %2373, %2376 : vector<2x256xf32>
    %c63_277 = arith.constant 63 : index
    %2378 = memref.load %arg7[%c63_277] : memref<144xf32, #tpu.memory_space<smem>>
    %2379 = vector.broadcast %2378 : f32 to vector<2x256xf32>
    %2380 = arith.mulf %1790, %2379 : vector<2x256xf32>
    %2381 = arith.addf %2377, %2380 : vector<2x256xf32>
    %c71_278 = arith.constant 71 : index
    %2382 = memref.load %arg7[%c71_278] : memref<144xf32, #tpu.memory_space<smem>>
    %2383 = vector.broadcast %2382 : f32 to vector<2x256xf32>
    %2384 = arith.mulf %266, %2383 : vector<2x256xf32>
    %2385 = arith.addf %2381, %2384 : vector<2x256xf32>
    %c79_279 = arith.constant 79 : index
    %2386 = memref.load %arg7[%c79_279] : memref<144xf32, #tpu.memory_space<smem>>
    %2387 = vector.broadcast %2386 : f32 to vector<2x256xf32>
    %2388 = arith.mulf %1706, %2387 : vector<2x256xf32>
    %2389 = arith.addf %2385, %2388 : vector<2x256xf32>
    %c87_280 = arith.constant 87 : index
    %2390 = memref.load %arg7[%c87_280] : memref<144xf32, #tpu.memory_space<smem>>
    %2391 = vector.broadcast %2390 : f32 to vector<2x256xf32>
    %2392 = arith.mulf %1741, %2391 : vector<2x256xf32>
    %2393 = arith.addf %2389, %2392 : vector<2x256xf32>
    %c95_281 = arith.constant 95 : index
    %2394 = memref.load %arg7[%c95_281] : memref<144xf32, #tpu.memory_space<smem>>
    %2395 = vector.broadcast %2394 : f32 to vector<2x256xf32>
    %2396 = arith.mulf %1797, %2395 : vector<2x256xf32>
    %2397 = arith.addf %2393, %2396 : vector<2x256xf32>
    %c103_282 = arith.constant 103 : index
    %2398 = memref.load %arg7[%c103_282] : memref<144xf32, #tpu.memory_space<smem>>
    %2399 = vector.broadcast %2398 : f32 to vector<2x256xf32>
    %2400 = arith.mulf %1748, %2399 : vector<2x256xf32>
    %2401 = arith.addf %2397, %2400 : vector<2x256xf32>
    %c111_283 = arith.constant 111 : index
    %2402 = memref.load %arg7[%c111_283] : memref<144xf32, #tpu.memory_space<smem>>
    %2403 = vector.broadcast %2402 : f32 to vector<2x256xf32>
    %2404 = arith.mulf %1804, %2403 : vector<2x256xf32>
    %2405 = arith.addf %2401, %2404 : vector<2x256xf32>
    %c119_284 = arith.constant 119 : index
    %2406 = memref.load %arg7[%c119_284] : memref<144xf32, #tpu.memory_space<smem>>
    %2407 = vector.broadcast %2406 : f32 to vector<2x256xf32>
    %2408 = arith.mulf %1755, %2407 : vector<2x256xf32>
    %2409 = arith.addf %2405, %2408 : vector<2x256xf32>
    %c127_285 = arith.constant 127 : index
    %2410 = memref.load %arg7[%c127_285] : memref<144xf32, #tpu.memory_space<smem>>
    %2411 = vector.broadcast %2410 : f32 to vector<2x256xf32>
    %2412 = arith.mulf %1811, %2411 : vector<2x256xf32>
    %2413 = arith.addf %2409, %2412 : vector<2x256xf32>
    %c135_286 = arith.constant 135 : index
    %2414 = memref.load %arg7[%c135_286] : memref<144xf32, #tpu.memory_space<smem>>
    %2415 = vector.broadcast %2414 : f32 to vector<2x256xf32>
    %2416 = arith.mulf %1762, %2415 : vector<2x256xf32>
    %2417 = arith.addf %2413, %2416 : vector<2x256xf32>
    %c143_287 = arith.constant 143 : index
    %2418 = memref.load %arg7[%c143_287] : memref<144xf32, #tpu.memory_space<smem>>
    %2419 = vector.broadcast %2418 : f32 to vector<2x256xf32>
    %2420 = arith.mulf %1818, %2419 : vector<2x256xf32>
    %2421 = arith.addf %2417, %2420 : vector<2x256xf32>
    %c7_288 = arith.constant 7 : index
    %2422 = memref.load %arg8[%c7_288] : memref<8xf32, #tpu.memory_space<smem>>
    %2423 = vector.broadcast %2422 : f32 to vector<2x256xf32>
    %2424 = arith.addf %2421, %2423 : vector<2x256xf32>
    %cst_289 = arith.constant 0.000000e+00 : f32
    %2425 = vector.broadcast %cst_289 : f32 to vector<2x256xf32>
    %2426 = arith.maximumf %2424, %2425 : vector<2x256xf32>
    %c0_290 = arith.constant 0 : index
    %2427 = memref.load %arg9[%c0_290] : memref<72xf32, #tpu.memory_space<smem>>
    %2428 = vector.broadcast %2427 : f32 to vector<2x256xf32>
    %2429 = arith.mulf %1894, %2428 : vector<2x256xf32>
    %c1_291 = arith.constant 1 : index
    %2430 = memref.load %arg9[%c1_291] : memref<72xf32, #tpu.memory_space<smem>>
    %2431 = vector.broadcast %2430 : f32 to vector<2x256xf32>
    %2432 = arith.mulf %1970, %2431 : vector<2x256xf32>
    %2433 = arith.addf %2429, %2432 : vector<2x256xf32>
    %c2_292 = arith.constant 2 : index
    %2434 = memref.load %arg9[%c2_292] : memref<72xf32, #tpu.memory_space<smem>>
    %2435 = vector.broadcast %2434 : f32 to vector<2x256xf32>
    %2436 = arith.mulf %2046, %2435 : vector<2x256xf32>
    %2437 = arith.addf %2433, %2436 : vector<2x256xf32>
    %c3_293 = arith.constant 3 : index
    %2438 = memref.load %arg9[%c3_293] : memref<72xf32, #tpu.memory_space<smem>>
    %2439 = vector.broadcast %2438 : f32 to vector<2x256xf32>
    %2440 = arith.mulf %2122, %2439 : vector<2x256xf32>
    %2441 = arith.addf %2437, %2440 : vector<2x256xf32>
    %c4_294 = arith.constant 4 : index
    %2442 = memref.load %arg9[%c4_294] : memref<72xf32, #tpu.memory_space<smem>>
    %2443 = vector.broadcast %2442 : f32 to vector<2x256xf32>
    %2444 = arith.mulf %2198, %2443 : vector<2x256xf32>
    %2445 = arith.addf %2441, %2444 : vector<2x256xf32>
    %c5_295 = arith.constant 5 : index
    %2446 = memref.load %arg9[%c5_295] : memref<72xf32, #tpu.memory_space<smem>>
    %2447 = vector.broadcast %2446 : f32 to vector<2x256xf32>
    %2448 = arith.mulf %2274, %2447 : vector<2x256xf32>
    %2449 = arith.addf %2445, %2448 : vector<2x256xf32>
    %c6_296 = arith.constant 6 : index
    %2450 = memref.load %arg9[%c6_296] : memref<72xf32, #tpu.memory_space<smem>>
    %2451 = vector.broadcast %2450 : f32 to vector<2x256xf32>
    %2452 = arith.mulf %2350, %2451 : vector<2x256xf32>
    %2453 = arith.addf %2449, %2452 : vector<2x256xf32>
    %c7_297 = arith.constant 7 : index
    %2454 = memref.load %arg9[%c7_297] : memref<72xf32, #tpu.memory_space<smem>>
    %2455 = vector.broadcast %2454 : f32 to vector<2x256xf32>
    %2456 = arith.mulf %2426, %2455 : vector<2x256xf32>
    %2457 = arith.addf %2453, %2456 : vector<2x256xf32>
    %2458 = vector.extract_strided_slice %2457 {offsets = [0, 239], sizes = [2, 17], strides = [1, 1]} : vector<2x256xf32> to vector<2x17xf32>
    %2459 = vector.extract_strided_slice %2457 {offsets = [0, 0], sizes = [2, 239], strides = [1, 1]} : vector<2x256xf32> to vector<2x239xf32>
    %2460 = tpu.concatenate %2458, %2459 in 1 : vector<2x17xf32>, vector<2x239xf32> -> vector<2x256xf32>
    %cst_298 = arith.constant 0.000000e+00 : f32
    %2461 = vector.shape_cast %21 : vector<1x256xi1> to vector<1x256xi1>
    %2462 = vector.broadcast %2461 : vector<1x256xi1> to vector<2x256xi1>
    %2463 = vector.broadcast %cst_298 : f32 to vector<2x256xf32>
    %2464 = arith.select %2462, %2460, %2463 : vector<2x256xi1>, vector<2x256xf32>
    %c8_299 = arith.constant 8 : index
    %2465 = memref.load %arg9[%c8_299] : memref<72xf32, #tpu.memory_space<smem>>
    %2466 = vector.broadcast %2465 : f32 to vector<2x256xf32>
    %2467 = arith.mulf %1894, %2466 : vector<2x256xf32>
    %c9_300 = arith.constant 9 : index
    %2468 = memref.load %arg9[%c9_300] : memref<72xf32, #tpu.memory_space<smem>>
    %2469 = vector.broadcast %2468 : f32 to vector<2x256xf32>
    %2470 = arith.mulf %1970, %2469 : vector<2x256xf32>
    %2471 = arith.addf %2467, %2470 : vector<2x256xf32>
    %c10_301 = arith.constant 10 : index
    %2472 = memref.load %arg9[%c10_301] : memref<72xf32, #tpu.memory_space<smem>>
    %2473 = vector.broadcast %2472 : f32 to vector<2x256xf32>
    %2474 = arith.mulf %2046, %2473 : vector<2x256xf32>
    %2475 = arith.addf %2471, %2474 : vector<2x256xf32>
    %c11_302 = arith.constant 11 : index
    %2476 = memref.load %arg9[%c11_302] : memref<72xf32, #tpu.memory_space<smem>>
    %2477 = vector.broadcast %2476 : f32 to vector<2x256xf32>
    %2478 = arith.mulf %2122, %2477 : vector<2x256xf32>
    %2479 = arith.addf %2475, %2478 : vector<2x256xf32>
    %c12_303 = arith.constant 12 : index
    %2480 = memref.load %arg9[%c12_303] : memref<72xf32, #tpu.memory_space<smem>>
    %2481 = vector.broadcast %2480 : f32 to vector<2x256xf32>
    %2482 = arith.mulf %2198, %2481 : vector<2x256xf32>
    %2483 = arith.addf %2479, %2482 : vector<2x256xf32>
    %c13_304 = arith.constant 13 : index
    %2484 = memref.load %arg9[%c13_304] : memref<72xf32, #tpu.memory_space<smem>>
    %2485 = vector.broadcast %2484 : f32 to vector<2x256xf32>
    %2486 = arith.mulf %2274, %2485 : vector<2x256xf32>
    %2487 = arith.addf %2483, %2486 : vector<2x256xf32>
    %c14_305 = arith.constant 14 : index
    %2488 = memref.load %arg9[%c14_305] : memref<72xf32, #tpu.memory_space<smem>>
    %2489 = vector.broadcast %2488 : f32 to vector<2x256xf32>
    %2490 = arith.mulf %2350, %2489 : vector<2x256xf32>
    %2491 = arith.addf %2487, %2490 : vector<2x256xf32>
    %c15_306 = arith.constant 15 : index
    %2492 = memref.load %arg9[%c15_306] : memref<72xf32, #tpu.memory_space<smem>>
    %2493 = vector.broadcast %2492 : f32 to vector<2x256xf32>
    %2494 = arith.mulf %2426, %2493 : vector<2x256xf32>
    %2495 = arith.addf %2491, %2494 : vector<2x256xf32>
    %2496 = vector.extract_strided_slice %2495 {offsets = [0, 240], sizes = [2, 16], strides = [1, 1]} : vector<2x256xf32> to vector<2x16xf32>
    %2497 = vector.extract_strided_slice %2495 {offsets = [0, 0], sizes = [2, 240], strides = [1, 1]} : vector<2x256xf32> to vector<2x240xf32>
    %2498 = tpu.concatenate %2496, %2497 in 1 : vector<2x16xf32>, vector<2x240xf32> -> vector<2x256xf32>
    %cst_307 = arith.constant 0.000000e+00 : f32
    %2499 = vector.shape_cast %23 : vector<1x256xi1> to vector<1x256xi1>
    %2500 = vector.broadcast %2499 : vector<1x256xi1> to vector<2x256xi1>
    %2501 = vector.broadcast %cst_307 : f32 to vector<2x256xf32>
    %2502 = arith.select %2500, %2498, %2501 : vector<2x256xi1>, vector<2x256xf32>
    %2503 = arith.addf %2464, %2502 : vector<2x256xf32>
    %c16_308 = arith.constant 16 : index
    %2504 = memref.load %arg9[%c16_308] : memref<72xf32, #tpu.memory_space<smem>>
    %2505 = vector.broadcast %2504 : f32 to vector<2x256xf32>
    %2506 = arith.mulf %1894, %2505 : vector<2x256xf32>
    %c17_309 = arith.constant 17 : index
    %2507 = memref.load %arg9[%c17_309] : memref<72xf32, #tpu.memory_space<smem>>
    %2508 = vector.broadcast %2507 : f32 to vector<2x256xf32>
    %2509 = arith.mulf %1970, %2508 : vector<2x256xf32>
    %2510 = arith.addf %2506, %2509 : vector<2x256xf32>
    %c18_310 = arith.constant 18 : index
    %2511 = memref.load %arg9[%c18_310] : memref<72xf32, #tpu.memory_space<smem>>
    %2512 = vector.broadcast %2511 : f32 to vector<2x256xf32>
    %2513 = arith.mulf %2046, %2512 : vector<2x256xf32>
    %2514 = arith.addf %2510, %2513 : vector<2x256xf32>
    %c19_311 = arith.constant 19 : index
    %2515 = memref.load %arg9[%c19_311] : memref<72xf32, #tpu.memory_space<smem>>
    %2516 = vector.broadcast %2515 : f32 to vector<2x256xf32>
    %2517 = arith.mulf %2122, %2516 : vector<2x256xf32>
    %2518 = arith.addf %2514, %2517 : vector<2x256xf32>
    %c20_312 = arith.constant 20 : index
    %2519 = memref.load %arg9[%c20_312] : memref<72xf32, #tpu.memory_space<smem>>
    %2520 = vector.broadcast %2519 : f32 to vector<2x256xf32>
    %2521 = arith.mulf %2198, %2520 : vector<2x256xf32>
    %2522 = arith.addf %2518, %2521 : vector<2x256xf32>
    %c21_313 = arith.constant 21 : index
    %2523 = memref.load %arg9[%c21_313] : memref<72xf32, #tpu.memory_space<smem>>
    %2524 = vector.broadcast %2523 : f32 to vector<2x256xf32>
    %2525 = arith.mulf %2274, %2524 : vector<2x256xf32>
    %2526 = arith.addf %2522, %2525 : vector<2x256xf32>
    %c22_314 = arith.constant 22 : index
    %2527 = memref.load %arg9[%c22_314] : memref<72xf32, #tpu.memory_space<smem>>
    %2528 = vector.broadcast %2527 : f32 to vector<2x256xf32>
    %2529 = arith.mulf %2350, %2528 : vector<2x256xf32>
    %2530 = arith.addf %2526, %2529 : vector<2x256xf32>
    %c23_315 = arith.constant 23 : index
    %2531 = memref.load %arg9[%c23_315] : memref<72xf32, #tpu.memory_space<smem>>
    %2532 = vector.broadcast %2531 : f32 to vector<2x256xf32>
    %2533 = arith.mulf %2426, %2532 : vector<2x256xf32>
    %2534 = arith.addf %2530, %2533 : vector<2x256xf32>
    %2535 = vector.extract_strided_slice %2534 {offsets = [0, 241], sizes = [2, 15], strides = [1, 1]} : vector<2x256xf32> to vector<2x15xf32>
    %2536 = vector.extract_strided_slice %2534 {offsets = [0, 0], sizes = [2, 241], strides = [1, 1]} : vector<2x256xf32> to vector<2x241xf32>
    %2537 = tpu.concatenate %2535, %2536 in 1 : vector<2x15xf32>, vector<2x241xf32> -> vector<2x256xf32>
    %cst_316 = arith.constant 0.000000e+00 : f32
    %2538 = vector.shape_cast %28 : vector<1x256xi1> to vector<1x256xi1>
    %2539 = vector.broadcast %2538 : vector<1x256xi1> to vector<2x256xi1>
    %2540 = vector.broadcast %cst_316 : f32 to vector<2x256xf32>
    %2541 = arith.select %2539, %2537, %2540 : vector<2x256xi1>, vector<2x256xf32>
    %2542 = arith.addf %2503, %2541 : vector<2x256xf32>
    %c24_317 = arith.constant 24 : index
    %2543 = memref.load %arg9[%c24_317] : memref<72xf32, #tpu.memory_space<smem>>
    %2544 = vector.broadcast %2543 : f32 to vector<2x256xf32>
    %2545 = arith.mulf %1894, %2544 : vector<2x256xf32>
    %c25_318 = arith.constant 25 : index
    %2546 = memref.load %arg9[%c25_318] : memref<72xf32, #tpu.memory_space<smem>>
    %2547 = vector.broadcast %2546 : f32 to vector<2x256xf32>
    %2548 = arith.mulf %1970, %2547 : vector<2x256xf32>
    %2549 = arith.addf %2545, %2548 : vector<2x256xf32>
    %c26_319 = arith.constant 26 : index
    %2550 = memref.load %arg9[%c26_319] : memref<72xf32, #tpu.memory_space<smem>>
    %2551 = vector.broadcast %2550 : f32 to vector<2x256xf32>
    %2552 = arith.mulf %2046, %2551 : vector<2x256xf32>
    %2553 = arith.addf %2549, %2552 : vector<2x256xf32>
    %c27_320 = arith.constant 27 : index
    %2554 = memref.load %arg9[%c27_320] : memref<72xf32, #tpu.memory_space<smem>>
    %2555 = vector.broadcast %2554 : f32 to vector<2x256xf32>
    %2556 = arith.mulf %2122, %2555 : vector<2x256xf32>
    %2557 = arith.addf %2553, %2556 : vector<2x256xf32>
    %c28_321 = arith.constant 28 : index
    %2558 = memref.load %arg9[%c28_321] : memref<72xf32, #tpu.memory_space<smem>>
    %2559 = vector.broadcast %2558 : f32 to vector<2x256xf32>
    %2560 = arith.mulf %2198, %2559 : vector<2x256xf32>
    %2561 = arith.addf %2557, %2560 : vector<2x256xf32>
    %c29_322 = arith.constant 29 : index
    %2562 = memref.load %arg9[%c29_322] : memref<72xf32, #tpu.memory_space<smem>>
    %2563 = vector.broadcast %2562 : f32 to vector<2x256xf32>
    %2564 = arith.mulf %2274, %2563 : vector<2x256xf32>
    %2565 = arith.addf %2561, %2564 : vector<2x256xf32>
    %c30_323 = arith.constant 30 : index
    %2566 = memref.load %arg9[%c30_323] : memref<72xf32, #tpu.memory_space<smem>>
    %2567 = vector.broadcast %2566 : f32 to vector<2x256xf32>
    %2568 = arith.mulf %2350, %2567 : vector<2x256xf32>
    %2569 = arith.addf %2565, %2568 : vector<2x256xf32>
    %c31_324 = arith.constant 31 : index
    %2570 = memref.load %arg9[%c31_324] : memref<72xf32, #tpu.memory_space<smem>>
    %2571 = vector.broadcast %2570 : f32 to vector<2x256xf32>
    %2572 = arith.mulf %2426, %2571 : vector<2x256xf32>
    %2573 = arith.addf %2569, %2572 : vector<2x256xf32>
    %2574 = vector.extract_strided_slice %2573 {offsets = [0, 255], sizes = [2, 1], strides = [1, 1]} : vector<2x256xf32> to vector<2x1xf32>
    %2575 = vector.extract_strided_slice %2573 {offsets = [0, 0], sizes = [2, 255], strides = [1, 1]} : vector<2x256xf32> to vector<2x255xf32>
    %2576 = tpu.concatenate %2574, %2575 in 1 : vector<2x1xf32>, vector<2x255xf32> -> vector<2x256xf32>
    %cst_325 = arith.constant 0.000000e+00 : f32
    %2577 = vector.shape_cast %30 : vector<1x256xi1> to vector<1x256xi1>
    %2578 = vector.broadcast %2577 : vector<1x256xi1> to vector<2x256xi1>
    %2579 = vector.broadcast %cst_325 : f32 to vector<2x256xf32>
    %2580 = arith.select %2578, %2576, %2579 : vector<2x256xi1>, vector<2x256xf32>
    %2581 = arith.addf %2542, %2580 : vector<2x256xf32>
    %c32_326 = arith.constant 32 : index
    %2582 = memref.load %arg9[%c32_326] : memref<72xf32, #tpu.memory_space<smem>>
    %2583 = vector.broadcast %2582 : f32 to vector<2x256xf32>
    %2584 = arith.mulf %1894, %2583 : vector<2x256xf32>
    %c33_327 = arith.constant 33 : index
    %2585 = memref.load %arg9[%c33_327] : memref<72xf32, #tpu.memory_space<smem>>
    %2586 = vector.broadcast %2585 : f32 to vector<2x256xf32>
    %2587 = arith.mulf %1970, %2586 : vector<2x256xf32>
    %2588 = arith.addf %2584, %2587 : vector<2x256xf32>
    %c34_328 = arith.constant 34 : index
    %2589 = memref.load %arg9[%c34_328] : memref<72xf32, #tpu.memory_space<smem>>
    %2590 = vector.broadcast %2589 : f32 to vector<2x256xf32>
    %2591 = arith.mulf %2046, %2590 : vector<2x256xf32>
    %2592 = arith.addf %2588, %2591 : vector<2x256xf32>
    %c35_329 = arith.constant 35 : index
    %2593 = memref.load %arg9[%c35_329] : memref<72xf32, #tpu.memory_space<smem>>
    %2594 = vector.broadcast %2593 : f32 to vector<2x256xf32>
    %2595 = arith.mulf %2122, %2594 : vector<2x256xf32>
    %2596 = arith.addf %2592, %2595 : vector<2x256xf32>
    %c36_330 = arith.constant 36 : index
    %2597 = memref.load %arg9[%c36_330] : memref<72xf32, #tpu.memory_space<smem>>
    %2598 = vector.broadcast %2597 : f32 to vector<2x256xf32>
    %2599 = arith.mulf %2198, %2598 : vector<2x256xf32>
    %2600 = arith.addf %2596, %2599 : vector<2x256xf32>
    %c37_331 = arith.constant 37 : index
    %2601 = memref.load %arg9[%c37_331] : memref<72xf32, #tpu.memory_space<smem>>
    %2602 = vector.broadcast %2601 : f32 to vector<2x256xf32>
    %2603 = arith.mulf %2274, %2602 : vector<2x256xf32>
    %2604 = arith.addf %2600, %2603 : vector<2x256xf32>
    %c38_332 = arith.constant 38 : index
    %2605 = memref.load %arg9[%c38_332] : memref<72xf32, #tpu.memory_space<smem>>
    %2606 = vector.broadcast %2605 : f32 to vector<2x256xf32>
    %2607 = arith.mulf %2350, %2606 : vector<2x256xf32>
    %2608 = arith.addf %2604, %2607 : vector<2x256xf32>
    %c39_333 = arith.constant 39 : index
    %2609 = memref.load %arg9[%c39_333] : memref<72xf32, #tpu.memory_space<smem>>
    %2610 = vector.broadcast %2609 : f32 to vector<2x256xf32>
    %2611 = arith.mulf %2426, %2610 : vector<2x256xf32>
    %2612 = arith.addf %2608, %2611 : vector<2x256xf32>
    %2613 = arith.addf %2581, %2612 : vector<2x256xf32>
    %c40_334 = arith.constant 40 : index
    %2614 = memref.load %arg9[%c40_334] : memref<72xf32, #tpu.memory_space<smem>>
    %2615 = vector.broadcast %2614 : f32 to vector<2x256xf32>
    %2616 = arith.mulf %1894, %2615 : vector<2x256xf32>
    %c41_335 = arith.constant 41 : index
    %2617 = memref.load %arg9[%c41_335] : memref<72xf32, #tpu.memory_space<smem>>
    %2618 = vector.broadcast %2617 : f32 to vector<2x256xf32>
    %2619 = arith.mulf %1970, %2618 : vector<2x256xf32>
    %2620 = arith.addf %2616, %2619 : vector<2x256xf32>
    %c42_336 = arith.constant 42 : index
    %2621 = memref.load %arg9[%c42_336] : memref<72xf32, #tpu.memory_space<smem>>
    %2622 = vector.broadcast %2621 : f32 to vector<2x256xf32>
    %2623 = arith.mulf %2046, %2622 : vector<2x256xf32>
    %2624 = arith.addf %2620, %2623 : vector<2x256xf32>
    %c43_337 = arith.constant 43 : index
    %2625 = memref.load %arg9[%c43_337] : memref<72xf32, #tpu.memory_space<smem>>
    %2626 = vector.broadcast %2625 : f32 to vector<2x256xf32>
    %2627 = arith.mulf %2122, %2626 : vector<2x256xf32>
    %2628 = arith.addf %2624, %2627 : vector<2x256xf32>
    %c44_338 = arith.constant 44 : index
    %2629 = memref.load %arg9[%c44_338] : memref<72xf32, #tpu.memory_space<smem>>
    %2630 = vector.broadcast %2629 : f32 to vector<2x256xf32>
    %2631 = arith.mulf %2198, %2630 : vector<2x256xf32>
    %2632 = arith.addf %2628, %2631 : vector<2x256xf32>
    %c45_339 = arith.constant 45 : index
    %2633 = memref.load %arg9[%c45_339] : memref<72xf32, #tpu.memory_space<smem>>
    %2634 = vector.broadcast %2633 : f32 to vector<2x256xf32>
    %2635 = arith.mulf %2274, %2634 : vector<2x256xf32>
    %2636 = arith.addf %2632, %2635 : vector<2x256xf32>
    %c46_340 = arith.constant 46 : index
    %2637 = memref.load %arg9[%c46_340] : memref<72xf32, #tpu.memory_space<smem>>
    %2638 = vector.broadcast %2637 : f32 to vector<2x256xf32>
    %2639 = arith.mulf %2350, %2638 : vector<2x256xf32>
    %2640 = arith.addf %2636, %2639 : vector<2x256xf32>
    %c47_341 = arith.constant 47 : index
    %2641 = memref.load %arg9[%c47_341] : memref<72xf32, #tpu.memory_space<smem>>
    %2642 = vector.broadcast %2641 : f32 to vector<2x256xf32>
    %2643 = arith.mulf %2426, %2642 : vector<2x256xf32>
    %2644 = arith.addf %2640, %2643 : vector<2x256xf32>
    %2645 = vector.extract_strided_slice %2644 {offsets = [0, 1], sizes = [2, 255], strides = [1, 1]} : vector<2x256xf32> to vector<2x255xf32>
    %2646 = vector.extract_strided_slice %2644 {offsets = [0, 0], sizes = [2, 1], strides = [1, 1]} : vector<2x256xf32> to vector<2x1xf32>
    %2647 = tpu.concatenate %2645, %2646 in 1 : vector<2x255xf32>, vector<2x1xf32> -> vector<2x256xf32>
    %cst_342 = arith.constant 0.000000e+00 : f32
    %2648 = vector.shape_cast %32 : vector<1x256xi1> to vector<1x256xi1>
    %2649 = vector.broadcast %2648 : vector<1x256xi1> to vector<2x256xi1>
    %2650 = vector.broadcast %cst_342 : f32 to vector<2x256xf32>
    %2651 = arith.select %2649, %2647, %2650 : vector<2x256xi1>, vector<2x256xf32>
    %2652 = arith.addf %2613, %2651 : vector<2x256xf32>
    %c48_343 = arith.constant 48 : index
    %2653 = memref.load %arg9[%c48_343] : memref<72xf32, #tpu.memory_space<smem>>
    %2654 = vector.broadcast %2653 : f32 to vector<2x256xf32>
    %2655 = arith.mulf %1894, %2654 : vector<2x256xf32>
    %c49_344 = arith.constant 49 : index
    %2656 = memref.load %arg9[%c49_344] : memref<72xf32, #tpu.memory_space<smem>>
    %2657 = vector.broadcast %2656 : f32 to vector<2x256xf32>
    %2658 = arith.mulf %1970, %2657 : vector<2x256xf32>
    %2659 = arith.addf %2655, %2658 : vector<2x256xf32>
    %c50_345 = arith.constant 50 : index
    %2660 = memref.load %arg9[%c50_345] : memref<72xf32, #tpu.memory_space<smem>>
    %2661 = vector.broadcast %2660 : f32 to vector<2x256xf32>
    %2662 = arith.mulf %2046, %2661 : vector<2x256xf32>
    %2663 = arith.addf %2659, %2662 : vector<2x256xf32>
    %c51_346 = arith.constant 51 : index
    %2664 = memref.load %arg9[%c51_346] : memref<72xf32, #tpu.memory_space<smem>>
    %2665 = vector.broadcast %2664 : f32 to vector<2x256xf32>
    %2666 = arith.mulf %2122, %2665 : vector<2x256xf32>
    %2667 = arith.addf %2663, %2666 : vector<2x256xf32>
    %c52_347 = arith.constant 52 : index
    %2668 = memref.load %arg9[%c52_347] : memref<72xf32, #tpu.memory_space<smem>>
    %2669 = vector.broadcast %2668 : f32 to vector<2x256xf32>
    %2670 = arith.mulf %2198, %2669 : vector<2x256xf32>
    %2671 = arith.addf %2667, %2670 : vector<2x256xf32>
    %c53_348 = arith.constant 53 : index
    %2672 = memref.load %arg9[%c53_348] : memref<72xf32, #tpu.memory_space<smem>>
    %2673 = vector.broadcast %2672 : f32 to vector<2x256xf32>
    %2674 = arith.mulf %2274, %2673 : vector<2x256xf32>
    %2675 = arith.addf %2671, %2674 : vector<2x256xf32>
    %c54_349 = arith.constant 54 : index
    %2676 = memref.load %arg9[%c54_349] : memref<72xf32, #tpu.memory_space<smem>>
    %2677 = vector.broadcast %2676 : f32 to vector<2x256xf32>
    %2678 = arith.mulf %2350, %2677 : vector<2x256xf32>
    %2679 = arith.addf %2675, %2678 : vector<2x256xf32>
    %c55_350 = arith.constant 55 : index
    %2680 = memref.load %arg9[%c55_350] : memref<72xf32, #tpu.memory_space<smem>>
    %2681 = vector.broadcast %2680 : f32 to vector<2x256xf32>
    %2682 = arith.mulf %2426, %2681 : vector<2x256xf32>
    %2683 = arith.addf %2679, %2682 : vector<2x256xf32>
    %2684 = vector.extract_strided_slice %2683 {offsets = [0, 15], sizes = [2, 241], strides = [1, 1]} : vector<2x256xf32> to vector<2x241xf32>
    %2685 = vector.extract_strided_slice %2683 {offsets = [0, 0], sizes = [2, 15], strides = [1, 1]} : vector<2x256xf32> to vector<2x15xf32>
    %2686 = tpu.concatenate %2684, %2685 in 1 : vector<2x241xf32>, vector<2x15xf32> -> vector<2x256xf32>
    %cst_351 = arith.constant 0.000000e+00 : f32
    %2687 = vector.shape_cast %37 : vector<1x256xi1> to vector<1x256xi1>
    %2688 = vector.broadcast %2687 : vector<1x256xi1> to vector<2x256xi1>
    %2689 = vector.broadcast %cst_351 : f32 to vector<2x256xf32>
    %2690 = arith.select %2688, %2686, %2689 : vector<2x256xi1>, vector<2x256xf32>
    %2691 = arith.addf %2652, %2690 : vector<2x256xf32>
    %c56_352 = arith.constant 56 : index
    %2692 = memref.load %arg9[%c56_352] : memref<72xf32, #tpu.memory_space<smem>>
    %2693 = vector.broadcast %2692 : f32 to vector<2x256xf32>
    %2694 = arith.mulf %1894, %2693 : vector<2x256xf32>
    %c57_353 = arith.constant 57 : index
    %2695 = memref.load %arg9[%c57_353] : memref<72xf32, #tpu.memory_space<smem>>
    %2696 = vector.broadcast %2695 : f32 to vector<2x256xf32>
    %2697 = arith.mulf %1970, %2696 : vector<2x256xf32>
    %2698 = arith.addf %2694, %2697 : vector<2x256xf32>
    %c58_354 = arith.constant 58 : index
    %2699 = memref.load %arg9[%c58_354] : memref<72xf32, #tpu.memory_space<smem>>
    %2700 = vector.broadcast %2699 : f32 to vector<2x256xf32>
    %2701 = arith.mulf %2046, %2700 : vector<2x256xf32>
    %2702 = arith.addf %2698, %2701 : vector<2x256xf32>
    %c59_355 = arith.constant 59 : index
    %2703 = memref.load %arg9[%c59_355] : memref<72xf32, #tpu.memory_space<smem>>
    %2704 = vector.broadcast %2703 : f32 to vector<2x256xf32>
    %2705 = arith.mulf %2122, %2704 : vector<2x256xf32>
    %2706 = arith.addf %2702, %2705 : vector<2x256xf32>
    %c60_356 = arith.constant 60 : index
    %2707 = memref.load %arg9[%c60_356] : memref<72xf32, #tpu.memory_space<smem>>
    %2708 = vector.broadcast %2707 : f32 to vector<2x256xf32>
    %2709 = arith.mulf %2198, %2708 : vector<2x256xf32>
    %2710 = arith.addf %2706, %2709 : vector<2x256xf32>
    %c61_357 = arith.constant 61 : index
    %2711 = memref.load %arg9[%c61_357] : memref<72xf32, #tpu.memory_space<smem>>
    %2712 = vector.broadcast %2711 : f32 to vector<2x256xf32>
    %2713 = arith.mulf %2274, %2712 : vector<2x256xf32>
    %2714 = arith.addf %2710, %2713 : vector<2x256xf32>
    %c62_358 = arith.constant 62 : index
    %2715 = memref.load %arg9[%c62_358] : memref<72xf32, #tpu.memory_space<smem>>
    %2716 = vector.broadcast %2715 : f32 to vector<2x256xf32>
    %2717 = arith.mulf %2350, %2716 : vector<2x256xf32>
    %2718 = arith.addf %2714, %2717 : vector<2x256xf32>
    %c63_359 = arith.constant 63 : index
    %2719 = memref.load %arg9[%c63_359] : memref<72xf32, #tpu.memory_space<smem>>
    %2720 = vector.broadcast %2719 : f32 to vector<2x256xf32>
    %2721 = arith.mulf %2426, %2720 : vector<2x256xf32>
    %2722 = arith.addf %2718, %2721 : vector<2x256xf32>
    %2723 = vector.extract_strided_slice %2722 {offsets = [0, 16], sizes = [2, 240], strides = [1, 1]} : vector<2x256xf32> to vector<2x240xf32>
    %2724 = vector.extract_strided_slice %2722 {offsets = [0, 0], sizes = [2, 16], strides = [1, 1]} : vector<2x256xf32> to vector<2x16xf32>
    %2725 = tpu.concatenate %2723, %2724 in 1 : vector<2x240xf32>, vector<2x16xf32> -> vector<2x256xf32>
    %cst_360 = arith.constant 0.000000e+00 : f32
    %2726 = vector.shape_cast %39 : vector<1x256xi1> to vector<1x256xi1>
    %2727 = vector.broadcast %2726 : vector<1x256xi1> to vector<2x256xi1>
    %2728 = vector.broadcast %cst_360 : f32 to vector<2x256xf32>
    %2729 = arith.select %2727, %2725, %2728 : vector<2x256xi1>, vector<2x256xf32>
    %2730 = arith.addf %2691, %2729 : vector<2x256xf32>
    %c64_361 = arith.constant 64 : index
    %2731 = memref.load %arg9[%c64_361] : memref<72xf32, #tpu.memory_space<smem>>
    %2732 = vector.broadcast %2731 : f32 to vector<2x256xf32>
    %2733 = arith.mulf %1894, %2732 : vector<2x256xf32>
    %c65_362 = arith.constant 65 : index
    %2734 = memref.load %arg9[%c65_362] : memref<72xf32, #tpu.memory_space<smem>>
    %2735 = vector.broadcast %2734 : f32 to vector<2x256xf32>
    %2736 = arith.mulf %1970, %2735 : vector<2x256xf32>
    %2737 = arith.addf %2733, %2736 : vector<2x256xf32>
    %c66_363 = arith.constant 66 : index
    %2738 = memref.load %arg9[%c66_363] : memref<72xf32, #tpu.memory_space<smem>>
    %2739 = vector.broadcast %2738 : f32 to vector<2x256xf32>
    %2740 = arith.mulf %2046, %2739 : vector<2x256xf32>
    %2741 = arith.addf %2737, %2740 : vector<2x256xf32>
    %c67_364 = arith.constant 67 : index
    %2742 = memref.load %arg9[%c67_364] : memref<72xf32, #tpu.memory_space<smem>>
    %2743 = vector.broadcast %2742 : f32 to vector<2x256xf32>
    %2744 = arith.mulf %2122, %2743 : vector<2x256xf32>
    %2745 = arith.addf %2741, %2744 : vector<2x256xf32>
    %c68_365 = arith.constant 68 : index
    %2746 = memref.load %arg9[%c68_365] : memref<72xf32, #tpu.memory_space<smem>>
    %2747 = vector.broadcast %2746 : f32 to vector<2x256xf32>
    %2748 = arith.mulf %2198, %2747 : vector<2x256xf32>
    %2749 = arith.addf %2745, %2748 : vector<2x256xf32>
    %c69_366 = arith.constant 69 : index
    %2750 = memref.load %arg9[%c69_366] : memref<72xf32, #tpu.memory_space<smem>>
    %2751 = vector.broadcast %2750 : f32 to vector<2x256xf32>
    %2752 = arith.mulf %2274, %2751 : vector<2x256xf32>
    %2753 = arith.addf %2749, %2752 : vector<2x256xf32>
    %c70_367 = arith.constant 70 : index
    %2754 = memref.load %arg9[%c70_367] : memref<72xf32, #tpu.memory_space<smem>>
    %2755 = vector.broadcast %2754 : f32 to vector<2x256xf32>
    %2756 = arith.mulf %2350, %2755 : vector<2x256xf32>
    %2757 = arith.addf %2753, %2756 : vector<2x256xf32>
    %c71_368 = arith.constant 71 : index
    %2758 = memref.load %arg9[%c71_368] : memref<72xf32, #tpu.memory_space<smem>>
    %2759 = vector.broadcast %2758 : f32 to vector<2x256xf32>
    %2760 = arith.mulf %2426, %2759 : vector<2x256xf32>
    %2761 = arith.addf %2757, %2760 : vector<2x256xf32>
    %2762 = vector.extract_strided_slice %2761 {offsets = [0, 17], sizes = [2, 239], strides = [1, 1]} : vector<2x256xf32> to vector<2x239xf32>
    %2763 = vector.extract_strided_slice %2761 {offsets = [0, 0], sizes = [2, 17], strides = [1, 1]} : vector<2x256xf32> to vector<2x17xf32>
    %2764 = tpu.concatenate %2762, %2763 in 1 : vector<2x239xf32>, vector<2x17xf32> -> vector<2x256xf32>
    %cst_369 = arith.constant 0.000000e+00 : f32
    %2765 = vector.shape_cast %44 : vector<1x256xi1> to vector<1x256xi1>
    %2766 = vector.broadcast %2765 : vector<1x256xi1> to vector<2x256xi1>
    %2767 = vector.broadcast %cst_369 : f32 to vector<2x256xf32>
    %2768 = arith.select %2766, %2764, %2767 : vector<2x256xi1>, vector<2x256xf32>
    %2769 = arith.addf %2730, %2768 : vector<2x256xf32>
    %c0_370 = arith.constant 0 : index
    %2770 = memref.load %arg10[%c0_370] : memref<1xf32, #tpu.memory_space<smem>>
    %2771 = vector.broadcast %2770 : f32 to vector<2x256xf32>
    %2772 = arith.addf %2769, %2771 : vector<2x256xf32>
    %c0_371 = arith.constant 0 : index
    %c0_372 = arith.constant 0 : index
    %2773 = vector.load %arg11[%c0_371, %c0_372] : memref<2x256xf32, #tpu.memory_space<vmem>>, vector<2x256xf32>
    tpu.vector_store %arg11[%c0_371, %c0_372], %2772 {strides = array<i32>} : memref<2x256xf32, #tpu.memory_space<vmem>>, vector<2x256xf32>,
    return
  }
}

</mosaic_0001>

<llo_original>
// kernel: multi_nobases_forward.1
$region0: #{multi_nobases_forward.1}
  #allocation0 [shape = 'u32[]', space=smem, size = 0x4, offset = 0x4, fixed_abs, tag = 'smem constant byte address 0x4 - core index']
  #allocation1 [shape = 'u32[144,128]{1,0:T(1,128)}', space=vmem, size = 0x12000, scoped, tag = 'internal scratch']
  #allocation2 [shape = 'f32[1]{0:T(128)S(6)}', space=smem, size = 0x200, scoped, tag = 'scoped memory for multi_nobases_forward.1']
  #allocation3 [shape = 'f32[1]{0:T(128)S(6)}', space=smem, size = 0x200, scoped, tag = 'scoped memory for multi_nobases_forward.1']
  %s0 = inlined_call_operand.vmem [shape: f32[2,4,256], index: 0, kind: input, shape index: {}]
  %s1 = inlined_call_operand.vmem [shape: f32[2,4,256], index: 1, kind: input, shape index: {}]
  %s2 = inlined_call_operand.vmem [shape: f32[2,8], index: 2, kind: input, shape index: {}]
  %s3 = inlined_call_operand.vmem [shape: f32[36], index: 3, kind: input, shape index: {}]
  %s4 = inlined_call_operand.<no memory space> [shape: f32[1], index: 4, kind: input, shape index: {}]
  %s5 = inlined_call_operand.vmem [shape: f32[288], index: 5, kind: input, shape index: {}]
  %s6 = inlined_call_operand.vmem [shape: f32[8], index: 6, kind: input, shape index: {}]
  %s7 = inlined_call_operand.vmem [shape: f32[144], index: 7, kind: input, shape index: {}]
  %s8 = inlined_call_operand.vmem [shape: f32[8], index: 8, kind: input, shape index: {}]
  %s9 = inlined_call_operand.vmem [shape: f32[72], index: 9, kind: input, shape index: {}]
  %s10 = inlined_call_operand.<no memory space> [shape: f32[1], index: 10, kind: input, shape index: {}]
  %s11 = inlined_call_operand.vmem [shape: f32[2,256], index: 11, kind: output, shape index: {}]
  %s12 = sld [smem:[#allocation0]]
  $region78: #{multi_nobases_forward.1} parent=0
    _
  %s14 = ssub.s32 1, %s12
  %s15 = scalar_select 0, %s14, %s12
  %16 = sst [smem:[#allocation2]] %s4
  %17 = sst [smem:[#allocation3]] %s10
  $region1: #{multi_nobases_forward.1} parent=0
    #allocation4 [shape = 'u8[512]{0}', space=smem, size = 0x200, scoped, tag = 'input window, operand 3, single buffered']
    #allocation5 [shape = 's32[1]{0}', space=sflag, size = 0x4, scoped, tag = 'scoped memory for multi_nobases_forward.1']
    #allocation6 [shape = 'u8[1536]{0}', space=smem, size = 0x600, scoped, tag = 'input window, operand 5, single buffered']
    #allocation7 [shape = 's32[1]{0}', space=sflag, size = 0x4, scoped, tag = 'scoped memory for multi_nobases_forward.1']
    #allocation8 [shape = 'u8[512]{0}', space=smem, size = 0x200, scoped, tag = 'input window, operand 6, single buffered']
    #allocation9 [shape = 'u8[1024]{0}', space=smem, size = 0x400, scoped, tag = 'input window, operand 7, single buffered']
    #allocation10 [shape = 's32[1]{0}', space=sflag, size = 0x4, scoped, tag = 'scoped memory for multi_nobases_forward.1']
    #allocation11 [shape = 'u8[512]{0}', space=smem, size = 0x200, scoped, tag = 'input window, operand 8, single buffered']
    #allocation12 [shape = 'u8[512]{0}', space=smem, size = 0x200, scoped, tag = 'input window, operand 9, single buffered']
    #allocation13 [shape = 's32[1]{0}', space=sflag, size = 0x4, scoped, tag = 'scoped memory for multi_nobases_forward.1']
    %18 = vsyncpa [#allocation5], 0
    %19 = vsyncpa [#allocation7], 0
    %20 = vsyncpa [#allocation10], 0
    %21 = vsyncpa [#allocation13], 0
    // Predicated region
    $region2: #{multi_nobases_forward.1} parent=1 // pred_check
      _
    $region3: #{multi_nobases_forward.1} parent=1 // pred_check_branch
      %23 = sbr.rel (0) target = $region5
    $region4: #{multi_nobases_forward.1} parent=1 // pred_region
      _
    $region5: #{multi_nobases_forward.1} parent=1 // pred_fallthru
      _
    // Predicated region
    $region6: #{multi_nobases_forward.1} parent=1 // pred_check
      _
    $region7: #{multi_nobases_forward.1} parent=1 // pred_check_branch
      %25 = sbr.rel (0) target = $region9
    $region8: #{multi_nobases_forward.1} parent=1 // pred_region
      _
    $region9: #{multi_nobases_forward.1} parent=1 // pred_fallthru
      _
    // Predicated region
    $region10: #{multi_nobases_forward.1} parent=1 // pred_check
      _
    $region11: #{multi_nobases_forward.1} parent=1 // pred_check_branch
      %27 = sbr.rel (0) target = $region13
    $region12: #{multi_nobases_forward.1} parent=1 // pred_region
      _
    $region13: #{multi_nobases_forward.1} parent=1 // pred_fallthru
      _
    // Predicated region
    $region14: #{multi_nobases_forward.1} parent=1 // pred_check
      _
    $region15: #{multi_nobases_forward.1} parent=1 // pred_check_branch
      %29 = sbr.rel (0) target = $region17
    $region16: #{multi_nobases_forward.1} parent=1 // pred_region
      %s31 = ssub.s32 16, 16
      %32 = vsyncadd [#allocation5], %s31
      %s34 = sshll.u32 %s3, 4
      %s35 = int_to_ptr.vmem [resolvable:$true] %s34
      %37 = dma.vmem_to_smem %s35, 16, [#allocation4], [#allocation5]
    $region17: #{multi_nobases_forward.1} parent=1 // pred_fallthru
      _
    // Predicated region
    $region18: #{multi_nobases_forward.1} parent=1 // pred_check
      _
    $region19: #{multi_nobases_forward.1} parent=1 // pred_check_branch
      %39 = sbr.rel (0) target = $region21
    $region20: #{multi_nobases_forward.1} parent=1 // pred_region
      _
    $region21: #{multi_nobases_forward.1} parent=1 // pred_fallthru
      _
    // Predicated region
    $region22: #{multi_nobases_forward.1} parent=1 // pred_check
      _
    $region23: #{multi_nobases_forward.1} parent=1 // pred_check_branch
      %41 = sbr.rel (0) target = $region25
    $region24: #{multi_nobases_forward.1} parent=1 // pred_region
      %s43 = ssub.s32 48, 48
      %44 = vsyncadd [#allocation7], %s43
      %s46 = sshll.u32 %s5, 4
      %s47 = int_to_ptr.vmem [resolvable:$true] %s46
      %49 = dma.vmem_to_smem %s47, 48, [#allocation6], [#allocation7]
    $region25: #{multi_nobases_forward.1} parent=1 // pred_fallthru
      _
    // Predicated region
    $region26: #{multi_nobases_forward.1} parent=1 // pred_check
      _
    $region27: #{multi_nobases_forward.1} parent=1 // pred_check_branch
      %51 = sbr.rel (0) target = $region29
    $region28: #{multi_nobases_forward.1} parent=1 // pred_region
      %s53 = ssub.s32 16, 16
      %54 = vsyncadd [#allocation7], %s53
      %s56 = sshll.u32 %s6, 4
      %s57 = int_to_ptr.vmem [resolvable:$true] %s56
      %59 = dma.vmem_to_smem %s57, 16, [#allocation8], [#allocation7]
    $region29: #{multi_nobases_forward.1} parent=1 // pred_fallthru
      _
    // Predicated region
    $region30: #{multi_nobases_forward.1} parent=1 // pred_check
      _
    $region31: #{multi_nobases_forward.1} parent=1 // pred_check_branch
      %61 = sbr.rel (0) target = $region33
    $region32: #{multi_nobases_forward.1} parent=1 // pred_region
      %s63 = ssub.s32 32, 32
      %64 = vsyncadd [#allocation10], %s63
      %s66 = sshll.u32 %s7, 4
      %s67 = int_to_ptr.vmem [resolvable:$true] %s66
      %69 = dma.vmem_to_smem %s67, 32, [#allocation9], [#allocation10]
    $region33: #{multi_nobases_forward.1} parent=1 // pred_fallthru
      _
    // Predicated region
    $region34: #{multi_nobases_forward.1} parent=1 // pred_check
      _
    $region35: #{multi_nobases_forward.1} parent=1 // pred_check_branch
      %71 = sbr.rel (0) target = $region37
    $region36: #{multi_nobases_forward.1} parent=1 // pred_region
      %s73 = ssub.s32 16, 16
      %74 = vsyncadd [#allocation10], %s73
      %s76 = sshll.u32 %s8, 4
      %s77 = int_to_ptr.vmem [resolvable:$true] %s76
      %79 = dma.vmem_to_smem %s77, 16, [#allocation11], [#allocation10]
    $region37: #{multi_nobases_forward.1} parent=1 // pred_fallthru
      _
    // Predicated region
    $region38: #{multi_nobases_forward.1} parent=1 // pred_check
      _
    $region39: #{multi_nobases_forward.1} parent=1 // pred_check_branch
      %81 = sbr.rel (0) target = $region41
    $region40: #{multi_nobases_forward.1} parent=1 // pred_region
      %s83 = ssub.s32 16, 16
      %84 = vsyncadd [#allocation13], %s83
      %s86 = sshll.u32 %s9, 4
      %s87 = int_to_ptr.vmem [resolvable:$true] %s86
      %89 = dma.vmem_to_smem %s87, 16, [#allocation12], [#allocation13]
    $region41: #{multi_nobases_forward.1} parent=1 // pred_fallthru
      _
    // Predicated region
    $region42: #{multi_nobases_forward.1} parent=1 // pred_check
      _
    $region43: #{multi_nobases_forward.1} parent=1 // pred_check_branch
      %91 = sbr.rel (0) target = $region45
    $region44: #{multi_nobases_forward.1} parent=1 // pred_region
      _
    $region45: #{multi_nobases_forward.1} parent=1 // pred_fallthru
      _
    // Predicated region
    $region46: #{multi_nobases_forward.1} parent=1 // pred_check
      _
    $region47: #{multi_nobases_forward.1} parent=1 // pred_check_branch
      %93 = sbr.rel (0) target = $region49
    $region48: #{multi_nobases_forward.1} parent=1 // pred_region
      %94 = dma.done [#allocation5], 16
    $region49: #{multi_nobases_forward.1} parent=1 // pred_fallthru
      _
    // Predicated region
    $region50: #{multi_nobases_forward.1} parent=1 // pred_check
      _
    $region51: #{multi_nobases_forward.1} parent=1 // pred_check_branch
      %96 = sbr.rel (0) target = $region53
    $region52: #{multi_nobases_forward.1} parent=1 // pred_region
      %97 = dma.done [#allocation7], 48
    $region53: #{multi_nobases_forward.1} parent=1 // pred_fallthru
      _
    // Predicated region
    $region54: #{multi_nobases_forward.1} parent=1 // pred_check
      _
    $region55: #{multi_nobases_forward.1} parent=1 // pred_check_branch
      %99 = sbr.rel (0) target = $region57
    $region56: #{multi_nobases_forward.1} parent=1 // pred_region
      %100 = dma.done [#allocation7], 16
    $region57: #{multi_nobases_forward.1} parent=1 // pred_fallthru
      _
    // Predicated region
    $region58: #{multi_nobases_forward.1} parent=1 // pred_check
      _
    $region59: #{multi_nobases_forward.1} parent=1 // pred_check_branch
      %102 = sbr.rel (0) target = $region61
    $region60: #{multi_nobases_forward.1} parent=1 // pred_region
      %103 = dma.done [#allocation10], 32
    $region61: #{multi_nobases_forward.1} parent=1 // pred_fallthru
      _
    // Predicated region
    $region62: #{multi_nobases_forward.1} parent=1 // pred_check
      _
    $region63: #{multi_nobases_forward.1} parent=1 // pred_check_branch
      %105 = sbr.rel (0) target = $region65
    $region64: #{multi_nobases_forward.1} parent=1 // pred_region
      %106 = dma.done [#allocation10], 16
    $region65: #{multi_nobases_forward.1} parent=1 // pred_fallthru
      _
    // Predicated region
    $region66: #{multi_nobases_forward.1} parent=1 // pred_check
      _
    $region67: #{multi_nobases_forward.1} parent=1 // pred_check_branch
      %108 = sbr.rel (0) target = $region69
    $region68: #{multi_nobases_forward.1} parent=1 // pred_region
      %109 = dma.done [#allocation13], 16
    $region69: #{multi_nobases_forward.1} parent=1 // pred_fallthru
      _
    %110 = sfence
    %v111 = vlaneseq
    %v112 = vand.u32 %v111, 127
    %v113 = vadd.s32 %v112, 128
    %vm114 = vcmp.lt.s32.totalorder %v112, 0
    %v115 = vsub.s32 0, %v112
    %v116 = vsel %vm114, %v115, %v112
    %v117 = vshrl.u32 %v116, 4
    %v118 = vand.u32 %v116, 15
    %v119 = vsub.s32 0, %v118
    %v120 = vsel %vm114, %v119, %v118
    %vm121 = vcmp.lt.s32.totalorder %v113, 0
    %v122 = vsub.s32 0, %v113
    %v123 = vsel %vm121, %v122, %v113
    %v124 = vshrl.u32 %v123, 4
    %v125 = vand.u32 %v123, 15
    %v126 = vsub.s32 0, %v125
    %v127 = vsel %vm121, %v126, %v125
    %vm128 = vcmp.ne.s32.totalorder %v120, 0
    %vm129 = vcmp.ne.s32.totalorder %v127, 0
    %vm130 = vcmp.lt.s32.totalorder %v120, 0
    %vm131 = vcmp.lt.s32.totalorder %v127, 0
    %vm132 = vmand %vm130, %vm128
    %vm133 = vmand %vm131, %vm129
    %v134 = vadd.s32 %v120, 16
    %v135 = vadd.s32 %v127, 16
    %v136 = vsel %vm132, %v134, %v120
    %v137 = vsel %vm133, %v135, %v127
    %vm138 = vcmp.ge.s32.totalorder %v112, 16
    %vm139 = vcmp.ge.s32.totalorder %v113, 16
    %vm140 = vcmp.ge.s32.totalorder %v136, 1
    %vm141 = vcmp.ge.s32.totalorder %v137, 1
    %vm142 = vmand %vm138, %vm140
    %vm143 = vmand %vm139, %vm141
    %vm144 = vcmp.le.s32.totalorder %v136, 14
    %vm145 = vcmp.le.s32.totalorder %v137, 14
    %vm146 = vmand %vm138, %vm144
    %vm147 = vmand %vm139, %vm145
    %vm148 = vcmp.lt.s32.totalorder %v112, 240
    %vm149 = vcmp.lt.s32.totalorder %v113, 240
    %vm150 = vmand %vm148, %vm140
    %vm151 = vmand %vm149, %vm141
    %vm152 = vmand %vm148, %vm144
    %vm153 = vmand %vm149, %vm145
    %v154 = vld [vmem:[%s0] sm:$0xff]
    %v155 = vld [vmem:[%s0 + $0x8] sm:$0xff]
    %v156 = vld [vmem:[%s1] sm:$0xff]
    %v157 = vld [vmem:[%s1 + $0x8] sm:$0xff]
    %s158 = sld [smem:[#allocation4]]
    %v159 = vstv %s158
    %v160 = vmul.f32 %v154, %v159
    %v161 = vmul.f32 %v155, %v159
    %s162 = sld [smem:[#allocation4 + $0x1]]
    %v163 = vstv %s162
    %v164 = vmul.f32 %v154, %v163
    %v165 = vmul.f32 %v155, %v163
    %v168 = vrot.slane %v164, 5
    %v169 = vrot.slane %v168, 4
    %v170 = vrot.slane %v165, 5
    %v171 = vrot.slane %v170, 4
    %v174 = vadd.f32 %v160, %v169
    %v175 = vadd.f32 %v161, %v171
    %s176 = sld [smem:[#allocation4 + $0x2]]
    %v177 = vstv %s176
    %v178 = vmul.f32 %v154, %v177
    %v179 = vmul.f32 %v155, %v177
    %v182 = vrot.slane %v178, 6
    %v183 = vrot.slane %v182, 4
    %v184 = vrot.slane %v179, 6
    %v185 = vrot.slane %v184, 4
    %v188 = vadd.f32 %v174, %v183
    %v189 = vadd.f32 %v175, %v185
    %s190 = sld [smem:[#allocation4 + $0x3]]
    %v191 = vstv %s190
    %v192 = vmul.f32 %v154, %v191
    %v193 = vmul.f32 %v155, %v191
    %v196 = vrot.slane %v192, 7
    %v197 = vrot.slane %v196, 4
    %v198 = vrot.slane %v193, 7
    %v199 = vrot.slane %v198, 4
    %v202 = vadd.f32 %v188, %v197
    %v203 = vadd.f32 %v189, %v199
    %v206 = vlaneseq
    %v207 = vshrl.u32 %v206, 7
    %v208 = vsub.s32 4, %v207
    %v209 = vrot.slane %v202, %v208
    %v210 = vlaneseq
    %v211 = vshrl.u32 %v210, 7
    %v212 = vsub.s32 4, %v211
    %v213 = vrot.slane %v203, %v212
    %vm214 = vcmask 1041409
    %v215 = vsel %vm214, %v213, %v209
    %216 = vrot.lane.b32.xlu0 %v215, 17
    %v217 = vpop.permute.xlu0 %216
    %v219 = vlaneseq
    %v220 = vshrl.u32 %v219, 7
    %v221 = vsub.s32 0, %v220
    %v222 = vrot.slane %v202, %v221
    %v223 = vlaneseq
    %v224 = vshrl.u32 %v223, 7
    %v225 = vsub.s32 0, %v224
    %v226 = vrot.slane %v203, %v225
    %v227 = vsel %vm214, %v226, %v222
    %228 = vrot.lane.b32.xlu0 %v227, 17
    %v229 = vpop.permute.xlu0 %228
    %vm230 = vcmask 138240
    %v231 = vsel %vm230, %v229, %v217
    %v234 = vsel %vm230, %v217, %v229
    %v235 = vsel %vm142, 1, 0
    %v236 = vsel %vm143, 1, 0
    %vm237 = vcmp.eq.s32.totalorder %v235, 1
    %vm238 = vcmp.eq.s32.totalorder %v236, 1
    %v239 = vsel %vm237, %v234, 0.0
    %v240 = vsel %vm238, %v231, 0.0
    %s241 = sld [smem:[#allocation4 + $0x4]]
    %v242 = vstv %s241
    %v243 = vmul.f32 %v154, %v242
    %v244 = vmul.f32 %v155, %v242
    %s245 = sld [smem:[#allocation4 + $0x5]]
    %v246 = vstv %s245
    %v247 = vmul.f32 %v154, %v246
    %v248 = vmul.f32 %v155, %v246
    %v251 = vrot.slane %v247, 5
    %v252 = vrot.slane %v251, 4
    %v253 = vrot.slane %v248, 5
    %v254 = vrot.slane %v253, 4
    %v257 = vadd.f32 %v243, %v252
    %v258 = vadd.f32 %v244, %v254
    %s259 = sld [smem:[#allocation4 + $0x6]]
    %v260 = vstv %s259
    %v261 = vmul.f32 %v154, %v260
    %v262 = vmul.f32 %v155, %v260
    %v265 = vrot.slane %v261, 6
    %v266 = vrot.slane %v265, 4
    %v267 = vrot.slane %v262, 6
    %v268 = vrot.slane %v267, 4
    %v271 = vadd.f32 %v257, %v266
    %v272 = vadd.f32 %v258, %v268
    %s273 = sld [smem:[#allocation4 + $0x7]]
    %v274 = vstv %s273
    %v275 = vmul.f32 %v154, %v274
    %v276 = vmul.f32 %v155, %v274
    %v279 = vrot.slane %v275, 7
    %v280 = vrot.slane %v279, 4
    %v281 = vrot.slane %v276, 7
    %v282 = vrot.slane %v281, 4
    %v285 = vadd.f32 %v271, %v280
    %v286 = vadd.f32 %v272, %v282
    %v289 = vlaneseq
    %v290 = vshrl.u32 %v289, 7
    %v291 = vsub.s32 4, %v290
    %v292 = vrot.slane %v285, %v291
    %v293 = vlaneseq
    %v294 = vshrl.u32 %v293, 7
    %v295 = vsub.s32 4, %v294
    %v296 = vrot.slane %v286, %v295
    %v297 = vsel %vm214, %v296, %v292
    %298 = vrot.lane.b32.xlu0 %v297, 16
    %v299 = vpop.permute.xlu0 %298
    %v301 = vlaneseq
    %v302 = vshrl.u32 %v301, 7
    %v303 = vsub.s32 0, %v302
    %v304 = vrot.slane %v285, %v303
    %v305 = vlaneseq
    %v306 = vshrl.u32 %v305, 7
    %v307 = vsub.s32 0, %v306
    %v308 = vrot.slane %v286, %v307
    %v309 = vsel %vm214, %v308, %v304
    %310 = vrot.lane.b32.xlu0 %v309, 16
    %v311 = vpop.permute.xlu0 %310
    %vm312 = vcmask 130048
    %v313 = vsel %vm312, %v311, %v299
    %v316 = vsel %vm312, %v299, %v311
    %v317 = vsel %vm138, 1, 0
    %v318 = vsel %vm139, 1, 0
    %vm319 = vcmp.eq.s32.totalorder %v317, 1
    %vm320 = vcmp.eq.s32.totalorder %v318, 1
    %v321 = vsel %vm319, %v316, 0.0
    %v322 = vsel %vm320, %v313, 0.0
    %v323 = vadd.f32 %v239, %v321
    %v324 = vadd.f32 %v240, %v322
    %s325 = sld [smem:[#allocation4 + $0x8]]
    %v326 = vstv %s325
    %v327 = vmul.f32 %v154, %v326
    %v328 = vmul.f32 %v155, %v326
    %s329 = sld [smem:[#allocation4 + $0x9]]
    %v330 = vstv %s329
    %v331 = vmul.f32 %v154, %v330
    %v332 = vmul.f32 %v155, %v330
    %v335 = vrot.slane %v331, 5
    %v336 = vrot.slane %v335, 4
    %v337 = vrot.slane %v332, 5
    %v338 = vrot.slane %v337, 4
    %v341 = vadd.f32 %v327, %v336
    %v342 = vadd.f32 %v328, %v338
    %s343 = sld [smem:[#allocation4 + $0xa]]
    %v344 = vstv %s343
    %v345 = vmul.f32 %v154, %v344
    %v346 = vmul.f32 %v155, %v344
    %v349 = vrot.slane %v345, 6
    %v350 = vrot.slane %v349, 4
    %v351 = vrot.slane %v346, 6
    %v352 = vrot.slane %v351, 4
    %v355 = vadd.f32 %v341, %v350
    %v356 = vadd.f32 %v342, %v352
    %s357 = sld [smem:[#allocation4 + $0xb]]
    %v358 = vstv %s357
    %v359 = vmul.f32 %v154, %v358
    %v360 = vmul.f32 %v155, %v358
    %v363 = vrot.slane %v359, 7
    %v364 = vrot.slane %v363, 4
    %v365 = vrot.slane %v360, 7
    %v366 = vrot.slane %v365, 4
    %v369 = vadd.f32 %v355, %v364
    %v370 = vadd.f32 %v356, %v366
    %v373 = vlaneseq
    %v374 = vshrl.u32 %v373, 7
    %v375 = vsub.s32 4, %v374
    %v376 = vrot.slane %v369, %v375
    %v377 = vlaneseq
    %v378 = vshrl.u32 %v377, 7
    %v379 = vsub.s32 4, %v378
    %v380 = vrot.slane %v370, %v379
    %v381 = vsel %vm214, %v380, %v376
    %382 = vrot.lane.b32.xlu0 %v381, 15
    %v383 = vpop.permute.xlu0 %382
    %v385 = vlaneseq
    %v386 = vshrl.u32 %v385, 7
    %v387 = vsub.s32 0, %v386
    %v388 = vrot.slane %v369, %v387
    %v389 = vlaneseq
    %v390 = vshrl.u32 %v389, 7
    %v391 = vsub.s32 0, %v390
    %v392 = vrot.slane %v370, %v391
    %v393 = vsel %vm214, %v392, %v388
    %394 = vrot.lane.b32.xlu0 %v393, 15
    %v395 = vpop.permute.xlu0 %394
    %vm396 = vcmask 121856
    %v397 = vsel %vm396, %v395, %v383
    %v400 = vsel %vm396, %v383, %v395
    %v401 = vsel %vm146, 1, 0
    %v402 = vsel %vm147, 1, 0
    %vm403 = vcmp.eq.s32.totalorder %v401, 1
    %vm404 = vcmp.eq.s32.totalorder %v402, 1
    %v405 = vsel %vm403, %v400, 0.0
    %v406 = vsel %vm404, %v397, 0.0
    %v407 = vadd.f32 %v323, %v405
    %v408 = vadd.f32 %v324, %v406
    %s409 = sld [smem:[#allocation4 + $0xc]]
    %v410 = vstv %s409
    %v411 = vmul.f32 %v154, %v410
    %v412 = vmul.f32 %v155, %v410
    %s413 = sld [smem:[#allocation4 + $0xd]]
    %v414 = vstv %s413
    %v415 = vmul.f32 %v154, %v414
    %v416 = vmul.f32 %v155, %v414
    %v419 = vrot.slane %v415, 5
    %v420 = vrot.slane %v419, 4
    %v421 = vrot.slane %v416, 5
    %v422 = vrot.slane %v421, 4
    %v425 = vadd.f32 %v411, %v420
    %v426 = vadd.f32 %v412, %v422
    %s427 = sld [smem:[#allocation4 + $0xe]]
    %v428 = vstv %s427
    %v429 = vmul.f32 %v154, %v428
    %v430 = vmul.f32 %v155, %v428
    %v433 = vrot.slane %v429, 6
    %v434 = vrot.slane %v433, 4
    %v435 = vrot.slane %v430, 6
    %v436 = vrot.slane %v435, 4
    %v439 = vadd.f32 %v425, %v434
    %v440 = vadd.f32 %v426, %v436
    %s441 = sld [smem:[#allocation4 + $0xf]]
    %v442 = vstv %s441
    %v443 = vmul.f32 %v154, %v442
    %v444 = vmul.f32 %v155, %v442
    %v447 = vrot.slane %v443, 7
    %v448 = vrot.slane %v447, 4
    %v449 = vrot.slane %v444, 7
    %v450 = vrot.slane %v449, 4
    %v453 = vadd.f32 %v439, %v448
    %v454 = vadd.f32 %v440, %v450
    %v457 = vlaneseq
    %v458 = vshrl.u32 %v457, 7
    %v459 = vsub.s32 4, %v458
    %v460 = vrot.slane %v453, %v459
    %v461 = vlaneseq
    %v462 = vshrl.u32 %v461, 7
    %v463 = vsub.s32 4, %v462
    %v464 = vrot.slane %v454, %v463
    %v465 = vsel %vm214, %v464, %v460
    %466 = vrot.lane.b32.xlu0 %v465, 1
    %v467 = vpop.permute.xlu0 %466
    %v469 = vlaneseq
    %v470 = vshrl.u32 %v469, 7
    %v471 = vsub.s32 0, %v470
    %v472 = vrot.slane %v453, %v471
    %v473 = vlaneseq
    %v474 = vshrl.u32 %v473, 7
    %v475 = vsub.s32 0, %v474
    %v476 = vrot.slane %v454, %v475
    %v477 = vsel %vm214, %v476, %v472
    %478 = vrot.lane.b32.xlu0 %v477, 1
    %v479 = vpop.permute.xlu0 %478
    %vm480 = vcmask 7168
    %v481 = vsel %vm480, %v479, %v467
    %v484 = vsel %vm480, %v467, %v479
    %v485 = vsel %vm140, 1, 0
    %v486 = vsel %vm141, 1, 0
    %vm487 = vcmp.eq.s32.totalorder %v485, 1
    %vm488 = vcmp.eq.s32.totalorder %v486, 1
    %v489 = vsel %vm487, %v484, 0.0
    %v490 = vsel %vm488, %v481, 0.0
    %v491 = vadd.f32 %v407, %v489
    %v492 = vadd.f32 %v408, %v490
    %s493 = sld [smem:[#allocation4 + $0x10]]
    %v494 = vstv %s493
    %v495 = vmul.f32 %v154, %v494
    %v496 = vmul.f32 %v155, %v494
    %s497 = sld [smem:[#allocation4 + $0x11]]
    %v498 = vstv %s497
    %v499 = vmul.f32 %v154, %v498
    %v500 = vmul.f32 %v155, %v498
    %v503 = vrot.slane %v499, 5
    %v504 = vrot.slane %v503, 4
    %v505 = vrot.slane %v500, 5
    %v506 = vrot.slane %v505, 4
    %v509 = vadd.f32 %v495, %v504
    %v510 = vadd.f32 %v496, %v506
    %s511 = sld [smem:[#allocation4 + $0x12]]
    %v512 = vstv %s511
    %v513 = vmul.f32 %v154, %v512
    %v514 = vmul.f32 %v155, %v512
    %v517 = vrot.slane %v513, 6
    %v518 = vrot.slane %v517, 4
    %v519 = vrot.slane %v514, 6
    %v520 = vrot.slane %v519, 4
    %v523 = vadd.f32 %v509, %v518
    %v524 = vadd.f32 %v510, %v520
    %s525 = sld [smem:[#allocation4 + $0x13]]
    %v526 = vstv %s525
    %v527 = vmul.f32 %v154, %v526
    %v528 = vmul.f32 %v155, %v526
    %v531 = vrot.slane %v527, 7
    %v532 = vrot.slane %v531, 4
    %v533 = vrot.slane %v528, 7
    %v534 = vrot.slane %v533, 4
    %v537 = vadd.f32 %v523, %v532
    %v538 = vadd.f32 %v524, %v534
    %v541 = vlaneseq
    %v542 = vshrl.u32 %v541, 7
    %v543 = vsub.s32 0, %v542
    %v544 = vrot.slane %v537, %v543
    %v545 = vlaneseq
    %v546 = vshrl.u32 %v545, 7
    %v547 = vsub.s32 4, %v546
    %v548 = vrot.slane %v537, %v547
    %v549 = vlaneseq
    %v550 = vshrl.u32 %v549, 7
    %v551 = vsub.s32 0, %v550
    %v552 = vrot.slane %v538, %v551
    %v553 = vlaneseq
    %v554 = vshrl.u32 %v553, 7
    %v555 = vsub.s32 4, %v554
    %v556 = vrot.slane %v538, %v555
    %v557 = vsel %vm214, %v552, %v544
    %v558 = vsel %vm214, %v556, %v548
    %v561 = vadd.f32 %v491, %v557
    %v562 = vadd.f32 %v492, %v558
    %s563 = sld [smem:[#allocation4 + $0x14]]
    %v564 = vstv %s563
    %v565 = vmul.f32 %v154, %v564
    %v566 = vmul.f32 %v155, %v564
    %s567 = sld [smem:[#allocation4 + $0x15]]
    %v568 = vstv %s567
    %v569 = vmul.f32 %v154, %v568
    %v570 = vmul.f32 %v155, %v568
    %v573 = vrot.slane %v569, 5
    %v574 = vrot.slane %v573, 4
    %v575 = vrot.slane %v570, 5
    %v576 = vrot.slane %v575, 4
    %v579 = vadd.f32 %v565, %v574
    %v580 = vadd.f32 %v566, %v576
    %s581 = sld [smem:[#allocation4 + $0x16]]
    %v582 = vstv %s581
    %v583 = vmul.f32 %v154, %v582
    %v584 = vmul.f32 %v155, %v582
    %v587 = vrot.slane %v583, 6
    %v588 = vrot.slane %v587, 4
    %v589 = vrot.slane %v584, 6
    %v590 = vrot.slane %v589, 4
    %v593 = vadd.f32 %v579, %v588
    %v594 = vadd.f32 %v580, %v590
    %s595 = sld [smem:[#allocation4 + $0x17]]
    %v596 = vstv %s595
    %v597 = vmul.f32 %v154, %v596
    %v598 = vmul.f32 %v155, %v596
    %v601 = vrot.slane %v597, 7
    %v602 = vrot.slane %v601, 4
    %v603 = vrot.slane %v598, 7
    %v604 = vrot.slane %v603, 4
    %v607 = vadd.f32 %v593, %v602
    %v608 = vadd.f32 %v594, %v604
    %v611 = vlaneseq
    %v612 = vshrl.u32 %v611, 7
    %v613 = vsub.s32 0, %v612
    %v614 = vrot.slane %v607, %v613
    %v615 = vlaneseq
    %v616 = vshrl.u32 %v615, 7
    %v617 = vsub.s32 4, %v616
    %v618 = vrot.slane %v607, %v617
    %v619 = vlaneseq
    %v620 = vshrl.u32 %v619, 7
    %v621 = vsub.s32 0, %v620
    %v622 = vrot.slane %v608, %v621
    %v623 = vlaneseq
    %v624 = vshrl.u32 %v623, 7
    %v625 = vsub.s32 4, %v624
    %v626 = vrot.slane %v608, %v625
    %v627 = vsel %vm214, %v622, %v614
    %v628 = vsel %vm214, %v626, %v618
    %629 = vrot.lane.b32.xlu0 %v627, 127
    %v630 = vpop.permute.xlu0 %629
    %631 = vrot.lane.b32.xlu0 %v628, 127
    %v632 = vpop.permute.xlu0 %631
    %vm633 = vcmask 1039360
    %v634 = vsel %vm633, %v630, %v632
    %v638 = vsel %vm633, %v632, %v630
    %v639 = vsel %vm144, 1, 0
    %v640 = vsel %vm145, 1, 0
    %vm641 = vcmp.eq.s32.totalorder %v639, 1
    %vm642 = vcmp.eq.s32.totalorder %v640, 1
    %v643 = vsel %vm641, %v634, 0.0
    %v644 = vsel %vm642, %v638, 0.0
    %v645 = vadd.f32 %v561, %v643
    %v646 = vadd.f32 %v562, %v644
    %s647 = sld [smem:[#allocation4 + $0x18]]
    %v648 = vstv %s647
    %v649 = vmul.f32 %v154, %v648
    %v650 = vmul.f32 %v155, %v648
    %s651 = sld [smem:[#allocation4 + $0x19]]
    %v652 = vstv %s651
    %v653 = vmul.f32 %v154, %v652
    %v654 = vmul.f32 %v155, %v652
    %v657 = vrot.slane %v653, 5
    %v658 = vrot.slane %v657, 4
    %v659 = vrot.slane %v654, 5
    %v660 = vrot.slane %v659, 4
    %v663 = vadd.f32 %v649, %v658
    %v664 = vadd.f32 %v650, %v660
    %s665 = sld [smem:[#allocation4 + $0x1a]]
    %v666 = vstv %s665
    %v667 = vmul.f32 %v154, %v666
    %v668 = vmul.f32 %v155, %v666
    %v671 = vrot.slane %v667, 6
    %v672 = vrot.slane %v671, 4
    %v673 = vrot.slane %v668, 6
    %v674 = vrot.slane %v673, 4
    %v677 = vadd.f32 %v663, %v672
    %v678 = vadd.f32 %v664, %v674
    %s679 = sld [smem:[#allocation4 + $0x1b]]
    %v680 = vstv %s679
    %v681 = vmul.f32 %v154, %v680
    %v682 = vmul.f32 %v155, %v680
    %v685 = vrot.slane %v681, 7
    %v686 = vrot.slane %v685, 4
    %v687 = vrot.slane %v682, 7
    %v688 = vrot.slane %v687, 4
    %v691 = vadd.f32 %v677, %v686
    %v692 = vadd.f32 %v678, %v688
    %v695 = vlaneseq
    %v696 = vshrl.u32 %v695, 7
    %v697 = vsub.s32 0, %v696
    %v698 = vrot.slane %v691, %v697
    %v699 = vlaneseq
    %v700 = vshrl.u32 %v699, 7
    %v701 = vsub.s32 4, %v700
    %v702 = vrot.slane %v691, %v701
    %v703 = vlaneseq
    %v704 = vshrl.u32 %v703, 7
    %v705 = vsub.s32 0, %v704
    %v706 = vrot.slane %v692, %v705
    %v707 = vlaneseq
    %v708 = vshrl.u32 %v707, 7
    %v709 = vsub.s32 4, %v708
    %v710 = vrot.slane %v692, %v709
    %v711 = vsel %vm214, %v706, %v698
    %v712 = vsel %vm214, %v710, %v702
    %713 = vrot.lane.b32.xlu0 %v711, 113
    %v714 = vpop.permute.xlu0 %713
    %715 = vrot.lane.b32.xlu0 %v712, 113
    %v716 = vpop.permute.xlu0 %715
    %vm717 = vcmask 924672
    %v718 = vsel %vm717, %v714, %v716
    %v722 = vsel %vm717, %v716, %v714
    %v723 = vsel %vm150, 1, 0
    %v724 = vsel %vm151, 1, 0
    %vm725 = vcmp.eq.s32.totalorder %v723, 1
    %vm726 = vcmp.eq.s32.totalorder %v724, 1
    %v727 = vsel %vm725, %v718, 0.0
    %v728 = vsel %vm726, %v722, 0.0
    %v729 = vadd.f32 %v645, %v727
    %v730 = vadd.f32 %v646, %v728
    %s731 = sld [smem:[#allocation4 + $0x1c]]
    %v732 = vstv %s731
    %v733 = vmul.f32 %v154, %v732
    %v734 = vmul.f32 %v155, %v732
    %s735 = sld [smem:[#allocation4 + $0x1d]]
    %v736 = vstv %s735
    %v737 = vmul.f32 %v154, %v736
    %v738 = vmul.f32 %v155, %v736
    %v741 = vrot.slane %v737, 5
    %v742 = vrot.slane %v741, 4
    %v743 = vrot.slane %v738, 5
    %v744 = vrot.slane %v743, 4
    %v747 = vadd.f32 %v733, %v742
    %v748 = vadd.f32 %v734, %v744
    %s749 = sld [smem:[#allocation4 + $0x1e]]
    %v750 = vstv %s749
    %v751 = vmul.f32 %v154, %v750
    %v752 = vmul.f32 %v155, %v750
    %v755 = vrot.slane %v751, 6
    %v756 = vrot.slane %v755, 4
    %v757 = vrot.slane %v752, 6
    %v758 = vrot.slane %v757, 4
    %v761 = vadd.f32 %v747, %v756
    %v762 = vadd.f32 %v748, %v758
    %s763 = sld [smem:[#allocation4 + $0x1f]]
    %v764 = vstv %s763
    %v765 = vmul.f32 %v154, %v764
    %v766 = vmul.f32 %v155, %v764
    %v769 = vrot.slane %v765, 7
    %v770 = vrot.slane %v769, 4
    %v771 = vrot.slane %v766, 7
    %v772 = vrot.slane %v771, 4
    %v775 = vadd.f32 %v761, %v770
    %v776 = vadd.f32 %v762, %v772
    %v779 = vlaneseq
    %v780 = vshrl.u32 %v779, 7
    %v781 = vsub.s32 0, %v780
    %v782 = vrot.slane %v775, %v781
    %v783 = vlaneseq
    %v784 = vshrl.u32 %v783, 7
    %v785 = vsub.s32 4, %v784
    %v786 = vrot.slane %v775, %v785
    %v787 = vlaneseq
    %v788 = vshrl.u32 %v787, 7
    %v789 = vsub.s32 0, %v788
    %v790 = vrot.slane %v776, %v789
    %v791 = vlaneseq
    %v792 = vshrl.u32 %v791, 7
    %v793 = vsub.s32 4, %v792
    %v794 = vrot.slane %v776, %v793
    %v795 = vsel %vm214, %v790, %v782
    %v796 = vsel %vm214, %v794, %v786
    %797 = vrot.lane.b32.xlu0 %v795, 112
    %v798 = vpop.permute.xlu0 %797
    %799 = vrot.lane.b32.xlu0 %v796, 112
    %v800 = vpop.permute.xlu0 %799
    %vm801 = vcmask 916480
    %v802 = vsel %vm801, %v798, %v800
    %v806 = vsel %vm801, %v800, %v798
    %v807 = vsel %vm148, 1, 0
    %v808 = vsel %vm149, 1, 0
    %vm809 = vcmp.eq.s32.totalorder %v807, 1
    %vm810 = vcmp.eq.s32.totalorder %v808, 1
    %v811 = vsel %vm809, %v802, 0.0
    %v812 = vsel %vm810, %v806, 0.0
    %v813 = vadd.f32 %v729, %v811
    %v814 = vadd.f32 %v730, %v812
    %s815 = sld [smem:[#allocation4 + $0x20]]
    %v816 = vstv %s815
    %v817 = vmul.f32 %v154, %v816
    %v818 = vmul.f32 %v155, %v816
    %s819 = sld [smem:[#allocation4 + $0x21]]
    %v820 = vstv %s819
    %v821 = vmul.f32 %v154, %v820
    %v822 = vmul.f32 %v155, %v820
    %v825 = vrot.slane %v821, 5
    %v826 = vrot.slane %v825, 4
    %v827 = vrot.slane %v822, 5
    %v828 = vrot.slane %v827, 4
    %v831 = vadd.f32 %v817, %v826
    %v832 = vadd.f32 %v818, %v828
    %s833 = sld [smem:[#allocation4 + $0x22]]
    %v834 = vstv %s833
    %v835 = vmul.f32 %v154, %v834
    %v836 = vmul.f32 %v155, %v834
    %v839 = vrot.slane %v835, 6
    %v840 = vrot.slane %v839, 4
    %v841 = vrot.slane %v836, 6
    %v842 = vrot.slane %v841, 4
    %v845 = vadd.f32 %v831, %v840
    %v846 = vadd.f32 %v832, %v842
    %s847 = sld [smem:[#allocation4 + $0x23]]
    %v848 = vstv %s847
    %v849 = vmul.f32 %v154, %v848
    %v850 = vmul.f32 %v155, %v848
    %v853 = vrot.slane %v849, 7
    %v854 = vrot.slane %v853, 4
    %v855 = vrot.slane %v850, 7
    %v856 = vrot.slane %v855, 4
    %v859 = vadd.f32 %v845, %v854
    %v860 = vadd.f32 %v846, %v856
    %v863 = vlaneseq
    %v864 = vshrl.u32 %v863, 7
    %v865 = vsub.s32 0, %v864
    %v866 = vrot.slane %v859, %v865
    %v867 = vlaneseq
    %v868 = vshrl.u32 %v867, 7
    %v869 = vsub.s32 4, %v868
    %v870 = vrot.slane %v859, %v869
    %v871 = vlaneseq
    %v872 = vshrl.u32 %v871, 7
    %v873 = vsub.s32 0, %v872
    %v874 = vrot.slane %v860, %v873
    %v875 = vlaneseq
    %v876 = vshrl.u32 %v875, 7
    %v877 = vsub.s32 4, %v876
    %v878 = vrot.slane %v860, %v877
    %v879 = vsel %vm214, %v874, %v866
    %v880 = vsel %vm214, %v878, %v870
    %881 = vrot.lane.b32.xlu0 %v879, 111
    %v882 = vpop.permute.xlu0 %881
    %883 = vrot.lane.b32.xlu0 %v880, 111
    %v884 = vpop.permute.xlu0 %883
    %vm885 = vcmask 908288
    %v886 = vsel %vm885, %v882, %v884
    %v890 = vsel %vm885, %v884, %v882
    %v891 = vsel %vm152, 1, 0
    %v892 = vsel %vm153, 1, 0
    %vm893 = vcmp.eq.s32.totalorder %v891, 1
    %vm894 = vcmp.eq.s32.totalorder %v892, 1
    %v895 = vsel %vm893, %v886, 0.0
    %v896 = vsel %vm894, %v890, 0.0
    %v897 = vadd.f32 %v813, %v895
    %v898 = vadd.f32 %v814, %v896
    %s899 = sld [smem:[#allocation2]]
    %v900 = vstv %s899
    %v901 = vadd.f32 %v897, %v900
    %v902 = vadd.f32 %v898, %v900
    %v903 = vmax.f32 %v901, 0.0
    %v904 = vmax.f32 %v902, 0.0
    %v907 = vlaneseq
    %v908 = vshrl.u32 %v907, 7
    %v909 = vsub.s32 4, %v908
    %v910 = vrot.slane %v156, %v909
    %v911 = vlaneseq
    %v912 = vshrl.u32 %v911, 7
    %v913 = vsub.s32 4, %v912
    %v914 = vrot.slane %v157, %v913
    %v915 = vsel %vm214, %v914, %v910
    %916 = vrot.lane.b32.xlu0 %v915, 17
    %v917 = vpop.permute.xlu0 %916
    %v919 = vlaneseq
    %v920 = vshrl.u32 %v919, 7
    %v921 = vsub.s32 0, %v920
    %v922 = vrot.slane %v156, %v921
    %v923 = vlaneseq
    %v924 = vshrl.u32 %v923, 7
    %v925 = vsub.s32 0, %v924
    %v926 = vrot.slane %v157, %v925
    %v927 = vsel %vm214, %v926, %v922
    %928 = vrot.lane.b32.xlu0 %v927, 17
    %v929 = vpop.permute.xlu0 %928
    %v930 = vsel %vm230, %v929, %v917
    %v933 = vsel %vm230, %v917, %v929
    %v934 = vsel %vm237, %v933, 0.0
    %v935 = vsel %vm238, %v930, 0.0
    %936 = vrot.lane.b32.xlu0 %v915, 16
    %v937 = vpop.permute.xlu0 %936
    %939 = vrot.lane.b32.xlu0 %v927, 16
    %v940 = vpop.permute.xlu0 %939
    %v941 = vsel %vm312, %v940, %v937
    %v944 = vsel %vm312, %v937, %v940
    %v945 = vsel %vm319, %v944, 0.0
    %v946 = vsel %vm320, %v941, 0.0
    %947 = vrot.lane.b32.xlu0 %v915, 15
    %v948 = vpop.permute.xlu0 %947
    %950 = vrot.lane.b32.xlu0 %v927, 15
    %v951 = vpop.permute.xlu0 %950
    %v952 = vsel %vm396, %v951, %v948
    %v955 = vsel %vm396, %v948, %v951
    %v956 = vsel %vm403, %v955, 0.0
    %v957 = vsel %vm404, %v952, 0.0
    %958 = vrot.lane.b32.xlu0 %v915, 1
    %v959 = vpop.permute.xlu0 %958
    %961 = vrot.lane.b32.xlu0 %v927, 1
    %v962 = vpop.permute.xlu0 %961
    %v963 = vsel %vm480, %v962, %v959
    %v966 = vsel %vm480, %v959, %v962
    %v967 = vsel %vm487, %v966, 0.0
    %v968 = vsel %vm488, %v963, 0.0
    %969 = vrot.lane.b32.xlu0 %v927, 127
    %v970 = vpop.permute.xlu0 %969
    %971 = vrot.lane.b32.xlu0 %v915, 127
    %v972 = vpop.permute.xlu0 %971
    %v973 = vsel %vm633, %v970, %v972
    %v977 = vsel %vm633, %v972, %v970
    %v978 = vsel %vm641, %v973, 0.0
    %v979 = vsel %vm642, %v977, 0.0
    %980 = vrot.lane.b32.xlu0 %v927, 113
    %v981 = vpop.permute.xlu0 %980
    %982 = vrot.lane.b32.xlu0 %v915, 113
    %v983 = vpop.permute.xlu0 %982
    %v984 = vsel %vm717, %v981, %v983
    %v988 = vsel %vm717, %v983, %v981
    %v989 = vsel %vm725, %v984, 0.0
    %v990 = vsel %vm726, %v988, 0.0
    %991 = vrot.lane.b32.xlu0 %v927, 112
    %v992 = vpop.permute.xlu0 %991
    %993 = vrot.lane.b32.xlu0 %v915, 112
    %v994 = vpop.permute.xlu0 %993
    %v995 = vsel %vm801, %v992, %v994
    %v999 = vsel %vm801, %v994, %v992
    %v1000 = vsel %vm809, %v995, 0.0
    %v1001 = vsel %vm810, %v999, 0.0
    %1002 = vrot.lane.b32.xlu0 %v927, 111
    %v1003 = vpop.permute.xlu0 %1002
    %1004 = vrot.lane.b32.xlu0 %v915, 111
    %v1005 = vpop.permute.xlu0 %1004
    %v1006 = vsel %vm885, %v1003, %v1005
    %v1010 = vsel %vm885, %v1005, %v1003
    %v1011 = vsel %vm893, %v1006, 0.0
    %v1012 = vsel %vm894, %v1010, 0.0
    %v1013 = vlaneseq
    %v1014 = vshrl.u32 %v1013, 7
    %v1015 = vsub.s32 5, %v1014
    %v1016 = vrot.slane %v156, %v1015
    %v1017 = vlaneseq
    %v1018 = vshrl.u32 %v1017, 7
    %v1019 = vsub.s32 5, %v1018
    %v1020 = vrot.slane %v157, %v1019
    %vm1021 = vcmask 1042434
    %v1022 = vsel %vm1021, %v1020, %v1016
    %1023 = vrot.lane.b32.xlu0 %v1022, 17
    %v1024 = vpop.permute.xlu0 %1023
    %v1026 = vlaneseq
    %v1027 = vshrl.u32 %v1026, 7
    %v1028 = vsub.s32 1, %v1027
    %v1029 = vrot.slane %v156, %v1028
    %v1030 = vlaneseq
    %v1031 = vshrl.u32 %v1030, 7
    %v1032 = vsub.s32 1, %v1031
    %v1033 = vrot.slane %v157, %v1032
    %v1034 = vsel %vm1021, %v1033, %v1029
    %1035 = vrot.lane.b32.xlu0 %v1034, 17
    %v1036 = vpop.permute.xlu0 %1035
    %v1037 = vsel %vm230, %v1036, %v1024
    %v1040 = vsel %vm230, %v1024, %v1036
    %v1041 = vsel %vm237, %v1040, 0.0
    %v1042 = vsel %vm238, %v1037, 0.0
    %1043 = vrot.lane.b32.xlu0 %v1022, 16
    %v1044 = vpop.permute.xlu0 %1043
    %1046 = vrot.lane.b32.xlu0 %v1034, 16
    %v1047 = vpop.permute.xlu0 %1046
    %v1048 = vsel %vm312, %v1047, %v1044
    %v1051 = vsel %vm312, %v1044, %v1047
    %v1052 = vsel %vm319, %v1051, 0.0
    %v1053 = vsel %vm320, %v1048, 0.0
    %1054 = vrot.lane.b32.xlu0 %v1022, 15
    %v1055 = vpop.permute.xlu0 %1054
    %1057 = vrot.lane.b32.xlu0 %v1034, 15
    %v1058 = vpop.permute.xlu0 %1057
    %v1059 = vsel %vm396, %v1058, %v1055
    %v1062 = vsel %vm396, %v1055, %v1058
    %v1063 = vsel %vm403, %v1062, 0.0
    %v1064 = vsel %vm404, %v1059, 0.0
    %1065 = vrot.lane.b32.xlu0 %v1022, 1
    %v1066 = vpop.permute.xlu0 %1065
    %1068 = vrot.lane.b32.xlu0 %v1034, 1
    %v1069 = vpop.permute.xlu0 %1068
    %v1070 = vsel %vm480, %v1069, %v1066
    %v1073 = vsel %vm480, %v1066, %v1069
    %v1074 = vsel %vm487, %v1073, 0.0
    %v1075 = vsel %vm488, %v1070, 0.0
    %1076 = vrot.lane.b32.xlu0 %v1034, 127
    %v1077 = vpop.permute.xlu0 %1076
    %1078 = vrot.lane.b32.xlu0 %v1022, 127
    %v1079 = vpop.permute.xlu0 %1078
    %v1080 = vsel %vm633, %v1077, %v1079
    %v1084 = vsel %vm633, %v1079, %v1077
    %v1085 = vsel %vm641, %v1080, 0.0
    %v1086 = vsel %vm642, %v1084, 0.0
    %1087 = vrot.lane.b32.xlu0 %v1034, 113
    %v1088 = vpop.permute.xlu0 %1087
    %1089 = vrot.lane.b32.xlu0 %v1022, 113
    %v1090 = vpop.permute.xlu0 %1089
    %v1091 = vsel %vm717, %v1088, %v1090
    %v1095 = vsel %vm717, %v1090, %v1088
    %v1096 = vsel %vm725, %v1091, 0.0
    %v1097 = vsel %vm726, %v1095, 0.0
    %1098 = vrot.lane.b32.xlu0 %v1034, 112
    %v1099 = vpop.permute.xlu0 %1098
    %1100 = vrot.lane.b32.xlu0 %v1022, 112
    %v1101 = vpop.permute.xlu0 %1100
    %v1102 = vsel %vm801, %v1099, %v1101
    %v1106 = vsel %vm801, %v1101, %v1099
    %v1107 = vsel %vm809, %v1102, 0.0
    %v1108 = vsel %vm810, %v1106, 0.0
    %1109 = vrot.lane.b32.xlu0 %v1034, 111
    %v1110 = vpop.permute.xlu0 %1109
    %1111 = vrot.lane.b32.xlu0 %v1022, 111
    %v1112 = vpop.permute.xlu0 %1111
    %v1113 = vsel %vm885, %v1110, %v1112
    %v1117 = vsel %vm885, %v1112, %v1110
    %v1118 = vsel %vm893, %v1113, 0.0
    %v1119 = vsel %vm894, %v1117, 0.0
    %v1120 = vlaneseq
    %v1121 = vshrl.u32 %v1120, 7
    %v1122 = vsub.s32 6, %v1121
    %v1123 = vrot.slane %v156, %v1122
    %v1124 = vlaneseq
    %v1125 = vshrl.u32 %v1124, 7
    %v1126 = vsub.s32 6, %v1125
    %v1127 = vrot.slane %v157, %v1126
    %vm1128 = vcmask 1043459
    %v1129 = vsel %vm1128, %v1127, %v1123
    %1130 = vrot.lane.b32.xlu0 %v1129, 17
    %v1131 = vpop.permute.xlu0 %1130
    %v1133 = vlaneseq
    %v1134 = vshrl.u32 %v1133, 7
    %v1135 = vsub.s32 2, %v1134
    %v1136 = vrot.slane %v156, %v1135
    %v1137 = vlaneseq
    %v1138 = vshrl.u32 %v1137, 7
    %v1139 = vsub.s32 2, %v1138
    %v1140 = vrot.slane %v157, %v1139
    %v1141 = vsel %vm1128, %v1140, %v1136
    %1142 = vrot.lane.b32.xlu0 %v1141, 17
    %v1143 = vpop.permute.xlu0 %1142
    %v1144 = vsel %vm230, %v1143, %v1131
    %v1147 = vsel %vm230, %v1131, %v1143
    %v1148 = vsel %vm237, %v1147, 0.0
    %v1149 = vsel %vm238, %v1144, 0.0
    %1150 = vrot.lane.b32.xlu0 %v1129, 16
    %v1151 = vpop.permute.xlu0 %1150
    %1153 = vrot.lane.b32.xlu0 %v1141, 16
    %v1154 = vpop.permute.xlu0 %1153
    %v1155 = vsel %vm312, %v1154, %v1151
    %v1158 = vsel %vm312, %v1151, %v1154
    %v1159 = vsel %vm319, %v1158, 0.0
    %v1160 = vsel %vm320, %v1155, 0.0
    %1161 = vrot.lane.b32.xlu0 %v1129, 15
    %v1162 = vpop.permute.xlu0 %1161
    %1164 = vrot.lane.b32.xlu0 %v1141, 15
    %v1165 = vpop.permute.xlu0 %1164
    %v1166 = vsel %vm396, %v1165, %v1162
    %v1169 = vsel %vm396, %v1162, %v1165
    %v1170 = vsel %vm403, %v1169, 0.0
    %v1171 = vsel %vm404, %v1166, 0.0
    %1172 = vrot.lane.b32.xlu0 %v1129, 1
    %v1173 = vpop.permute.xlu0 %1172
    %1175 = vrot.lane.b32.xlu0 %v1141, 1
    %v1176 = vpop.permute.xlu0 %1175
    %v1177 = vsel %vm480, %v1176, %v1173
    %v1180 = vsel %vm480, %v1173, %v1176
    %v1181 = vsel %vm487, %v1180, 0.0
    %v1182 = vsel %vm488, %v1177, 0.0
    %1183 = vrot.lane.b32.xlu0 %v1141, 127
    %v1184 = vpop.permute.xlu0 %1183
    %1185 = vrot.lane.b32.xlu0 %v1129, 127
    %v1186 = vpop.permute.xlu0 %1185
    %v1187 = vsel %vm633, %v1184, %v1186
    %v1191 = vsel %vm633, %v1186, %v1184
    %v1192 = vsel %vm641, %v1187, 0.0
    %v1193 = vsel %vm642, %v1191, 0.0
    %1194 = vrot.lane.b32.xlu0 %v1141, 113
    %v1195 = vpop.permute.xlu0 %1194
    %1196 = vrot.lane.b32.xlu0 %v1129, 113
    %v1197 = vpop.permute.xlu0 %1196
    %v1198 = vsel %vm717, %v1195, %v1197
    %v1202 = vsel %vm717, %v1197, %v1195
    %v1203 = vsel %vm725, %v1198, 0.0
    %v1204 = vsel %vm726, %v1202, 0.0
    %1205 = vrot.lane.b32.xlu0 %v1141, 112
    %v1206 = vpop.permute.xlu0 %1205
    %1207 = vrot.lane.b32.xlu0 %v1129, 112
    %v1208 = vpop.permute.xlu0 %1207
    %v1209 = vsel %vm801, %v1206, %v1208
    %v1213 = vsel %vm801, %v1208, %v1206
    %v1214 = vsel %vm809, %v1209, 0.0
    %v1215 = vsel %vm810, %v1213, 0.0
    %1216 = vrot.lane.b32.xlu0 %v1141, 111
    %v1217 = vpop.permute.xlu0 %1216
    %1218 = vrot.lane.b32.xlu0 %v1129, 111
    %v1219 = vpop.permute.xlu0 %1218
    %v1220 = vsel %vm885, %v1217, %v1219
    %v1224 = vsel %vm885, %v1219, %v1217
    %v1225 = vsel %vm893, %v1220, 0.0
    %v1226 = vsel %vm894, %v1224, 0.0
    %v1227 = vlaneseq
    %v1228 = vshrl.u32 %v1227, 7
    %v1229 = vsub.s32 7, %v1228
    %v1230 = vrot.slane %v156, %v1229
    %v1231 = vlaneseq
    %v1232 = vshrl.u32 %v1231, 7
    %v1233 = vsub.s32 7, %v1232
    %v1234 = vrot.slane %v157, %v1233
    %vm1235 = vcmask 1044484
    %v1236 = vsel %vm1235, %v1234, %v1230
    %1237 = vrot.lane.b32.xlu0 %v1236, 17
    %v1238 = vpop.permute.xlu0 %1237
    %v1240 = vlaneseq
    %v1241 = vshrl.u32 %v1240, 7
    %v1242 = vsub.s32 3, %v1241
    %v1243 = vrot.slane %v156, %v1242
    %v1244 = vlaneseq
    %v1245 = vshrl.u32 %v1244, 7
    %v1246 = vsub.s32 3, %v1245
    %v1247 = vrot.slane %v157, %v1246
    %v1248 = vsel %vm1235, %v1247, %v1243
    %1249 = vrot.lane.b32.xlu0 %v1248, 17
    %v1250 = vpop.permute.xlu0 %1249
    %v1251 = vsel %vm230, %v1250, %v1238
    %v1254 = vsel %vm230, %v1238, %v1250
    %v1255 = vsel %vm237, %v1254, 0.0
    %v1256 = vsel %vm238, %v1251, 0.0
    %1257 = vrot.lane.b32.xlu0 %v1236, 16
    %v1258 = vpop.permute.xlu0 %1257
    %1260 = vrot.lane.b32.xlu0 %v1248, 16
    %v1261 = vpop.permute.xlu0 %1260
    %v1262 = vsel %vm312, %v1261, %v1258
    %v1265 = vsel %vm312, %v1258, %v1261
    %v1266 = vsel %vm319, %v1265, 0.0
    %v1267 = vsel %vm320, %v1262, 0.0
    %1268 = vrot.lane.b32.xlu0 %v1236, 15
    %v1269 = vpop.permute.xlu0 %1268
    %1271 = vrot.lane.b32.xlu0 %v1248, 15
    %v1272 = vpop.permute.xlu0 %1271
    %v1273 = vsel %vm396, %v1272, %v1269
    %v1276 = vsel %vm396, %v1269, %v1272
    %v1277 = vsel %vm403, %v1276, 0.0
    %v1278 = vsel %vm404, %v1273, 0.0
    %1279 = vrot.lane.b32.xlu0 %v1236, 1
    %v1280 = vpop.permute.xlu0 %1279
    %1282 = vrot.lane.b32.xlu0 %v1248, 1
    %v1283 = vpop.permute.xlu0 %1282
    %v1284 = vsel %vm480, %v1283, %v1280
    %v1287 = vsel %vm480, %v1280, %v1283
    %v1288 = vsel %vm487, %v1287, 0.0
    %v1289 = vsel %vm488, %v1284, 0.0
    %1290 = vrot.lane.b32.xlu0 %v1248, 127
    %v1291 = vpop.permute.xlu0 %1290
    %1292 = vrot.lane.b32.xlu0 %v1236, 127
    %v1293 = vpop.permute.xlu0 %1292
    %v1294 = vsel %vm633, %v1291, %v1293
    %v1298 = vsel %vm633, %v1293, %v1291
    %v1299 = vsel %vm641, %v1294, 0.0
    %v1300 = vsel %vm642, %v1298, 0.0
    %1301 = vrot.lane.b32.xlu0 %v1248, 113
    %v1302 = vpop.permute.xlu0 %1301
    %1303 = vrot.lane.b32.xlu0 %v1236, 113
    %v1304 = vpop.permute.xlu0 %1303
    %v1305 = vsel %vm717, %v1302, %v1304
    %v1309 = vsel %vm717, %v1304, %v1302
    %v1310 = vsel %vm725, %v1305, 0.0
    %v1311 = vsel %vm726, %v1309, 0.0
    %1312 = vrot.lane.b32.xlu0 %v1248, 112
    %v1313 = vpop.permute.xlu0 %1312
    %1314 = vrot.lane.b32.xlu0 %v1236, 112
    %v1315 = vpop.permute.xlu0 %1314
    %v1316 = vsel %vm801, %v1313, %v1315
    %v1320 = vsel %vm801, %v1315, %v1313
    %v1321 = vsel %vm809, %v1316, 0.0
    %v1322 = vsel %vm810, %v1320, 0.0
    %1323 = vrot.lane.b32.xlu0 %v1248, 111
    %v1324 = vpop.permute.xlu0 %1323
    %1325 = vrot.lane.b32.xlu0 %v1236, 111
    %v1326 = vpop.permute.xlu0 %1325
    %v1327 = vsel %vm885, %v1324, %v1326
    %v1331 = vsel %vm885, %v1326, %v1324
    %v1332 = vsel %vm893, %v1327, 0.0
    %v1333 = vsel %vm894, %v1331, 0.0
    %s1334 = sld [smem:[#allocation6]]
    %v1335 = vstv %s1334
    %v1336 = vmul.f32 %v934, %v1335
    %v1337 = vmul.f32 %v935, %v1335
    %s1338 = sld [smem:[#allocation6 + $0x8]]
    %v1339 = vstv %s1338
    %v1340 = vmul.f32 %v1041, %v1339
    %v1341 = vmul.f32 %v1042, %v1339
    %v1344 = vrot.slane %v1340, 1
    %v1345 = vrot.slane %v1341, 1
    %v1348 = vadd.f32 %v1336, %v1344
    %v1349 = vadd.f32 %v1337, %v1345
    %s1350 = sld [smem:[#allocation6 + $0x10]]
    %v1351 = vstv %s1350
    %v1352 = vmul.f32 %v1148, %v1351
    %v1353 = vmul.f32 %v1149, %v1351
    %v1356 = vrot.slane %v1352, 2
    %v1357 = vrot.slane %v1353, 2
    %v1360 = vadd.f32 %v1348, %v1356
    %v1361 = vadd.f32 %v1349, %v1357
    %s1362 = sld [smem:[#allocation6 + $0x18]]
    %v1363 = vstv %s1362
    %v1364 = vmul.f32 %v1255, %v1363
    %v1365 = vmul.f32 %v1256, %v1363
    %v1368 = vrot.slane %v1364, 3
    %v1369 = vrot.slane %v1365, 3
    %v1372 = vadd.f32 %v1360, %v1368
    %v1373 = vadd.f32 %v1361, %v1369
    %s1374 = sld [smem:[#allocation6 + $0x20]]
    %v1375 = vstv %s1374
    %v1376 = vmul.f32 %v945, %v1375
    %v1377 = vmul.f32 %v946, %v1375
    %v1378 = vadd.f32 %v1372, %v1376
    %v1379 = vadd.f32 %v1373, %v1377
    %s1380 = sld [smem:[#allocation6 + $0x28]]
    %v1381 = vstv %s1380
    %v1382 = vmul.f32 %v1052, %v1381
    %v1383 = vmul.f32 %v1053, %v1381
    %v1386 = vrot.slane %v1382, 1
    %v1387 = vrot.slane %v1383, 1
    %v1390 = vadd.f32 %v1378, %v1386
    %v1391 = vadd.f32 %v1379, %v1387
    %s1392 = sld [smem:[#allocation6 + $0x30]]
    %v1393 = vstv %s1392
    %v1394 = vmul.f32 %v1159, %v1393
    %v1395 = vmul.f32 %v1160, %v1393
    %v1398 = vrot.slane %v1394, 2
    %v1399 = vrot.slane %v1395, 2
    %v1402 = vadd.f32 %v1390, %v1398
    %v1403 = vadd.f32 %v1391, %v1399
    %s1404 = sld [smem:[#allocation6 + $0x38]]
    %v1405 = vstv %s1404
    %v1406 = vmul.f32 %v1266, %v1405
    %v1407 = vmul.f32 %v1267, %v1405
    %v1410 = vrot.slane %v1406, 3
    %v1411 = vrot.slane %v1407, 3
    %v1414 = vadd.f32 %v1402, %v1410
    %v1415 = vadd.f32 %v1403, %v1411
    %s1416 = sld [smem:[#allocation6 + $0x40]]
    %v1417 = vstv %s1416
    %v1418 = vmul.f32 %v956, %v1417
    %v1419 = vmul.f32 %v957, %v1417
    %v1420 = vadd.f32 %v1414, %v1418
    %v1421 = vadd.f32 %v1415, %v1419
    %s1422 = sld [smem:[#allocation6 + $0x48]]
    %v1423 = vstv %s1422
    %v1424 = vmul.f32 %v1063, %v1423
    %v1425 = vmul.f32 %v1064, %v1423
    %v1428 = vrot.slane %v1424, 1
    %v1429 = vrot.slane %v1425, 1
    %v1432 = vadd.f32 %v1420, %v1428
    %v1433 = vadd.f32 %v1421, %v1429
    %s1434 = sld [smem:[#allocation6 + $0x50]]
    %v1435 = vstv %s1434
    %v1436 = vmul.f32 %v1170, %v1435
    %v1437 = vmul.f32 %v1171, %v1435
    %v1440 = vrot.slane %v1436, 2
    %v1441 = vrot.slane %v1437, 2
    %v1444 = vadd.f32 %v1432, %v1440
    %v1445 = vadd.f32 %v1433, %v1441
    %s1446 = sld [smem:[#allocation6 + $0x58]]
    %v1447 = vstv %s1446
    %v1448 = vmul.f32 %v1277, %v1447
    %v1449 = vmul.f32 %v1278, %v1447
    %v1452 = vrot.slane %v1448, 3
    %v1453 = vrot.slane %v1449, 3
    %v1456 = vadd.f32 %v1444, %v1452
    %v1457 = vadd.f32 %v1445, %v1453
    %s1458 = sld [smem:[#allocation6 + $0x60]]
    %v1459 = vstv %s1458
    %v1460 = vmul.f32 %v967, %v1459
    %v1461 = vmul.f32 %v968, %v1459
    %v1462 = vadd.f32 %v1456, %v1460
    %v1463 = vadd.f32 %v1457, %v1461
    %s1464 = sld [smem:[#allocation6 + $0x68]]
    %v1465 = vstv %s1464
    %v1466 = vmul.f32 %v1074, %v1465
    %v1467 = vmul.f32 %v1075, %v1465
    %v1470 = vrot.slane %v1466, 1
    %v1471 = vrot.slane %v1467, 1
    %v1474 = vadd.f32 %v1462, %v1470
    %v1475 = vadd.f32 %v1463, %v1471
    %s1476 = sld [smem:[#allocation6 + $0x70]]
    %v1477 = vstv %s1476
    %v1478 = vmul.f32 %v1181, %v1477
    %v1479 = vmul.f32 %v1182, %v1477
    %v1482 = vrot.slane %v1478, 2
    %v1483 = vrot.slane %v1479, 2
    %v1486 = vadd.f32 %v1474, %v1482
    %v1487 = vadd.f32 %v1475, %v1483
    %s1488 = sld [smem:[#allocation6 + $0x78]]
    %v1489 = vstv %s1488
    %v1490 = vmul.f32 %v1288, %v1489
    %v1491 = vmul.f32 %v1289, %v1489
    %v1494 = vrot.slane %v1490, 3
    %v1495 = vrot.slane %v1491, 3
    %v1498 = vadd.f32 %v1486, %v1494
    %v1499 = vadd.f32 %v1487, %v1495
    %s1500 = sld [smem:[#allocation6 + $0x80]]
    %v1501 = vstv %s1500
    %v1502 = vmul.f32 %v156, %v1501
    %v1503 = vmul.f32 %v157, %v1501
    %v1506 = vlaneseq
    %v1507 = vshrl.u32 %v1506, 7
    %v1508 = vsub.s32 0, %v1507
    %v1509 = vrot.slane %v1502, %v1508
    %v1510 = vlaneseq
    %v1511 = vshrl.u32 %v1510, 7
    %v1512 = vsub.s32 4, %v1511
    %v1513 = vrot.slane %v1502, %v1512
    %v1514 = vlaneseq
    %v1515 = vshrl.u32 %v1514, 7
    %v1516 = vsub.s32 0, %v1515
    %v1517 = vrot.slane %v1503, %v1516
    %v1518 = vlaneseq
    %v1519 = vshrl.u32 %v1518, 7
    %v1520 = vsub.s32 4, %v1519
    %v1521 = vrot.slane %v1503, %v1520
    %v1522 = vsel %vm214, %v1517, %v1509
    %v1523 = vsel %vm214, %v1521, %v1513
    %v1526 = vadd.f32 %v1498, %v1522
    %v1527 = vadd.f32 %v1499, %v1523
    %s1528 = sld [smem:[#allocation6 + $0x88]]
    %v1529 = vstv %s1528
    %v1530 = vmul.f32 %v156, %v1529
    %v1531 = vmul.f32 %v157, %v1529
    %v1534 = vlaneseq
    %v1535 = vshrl.u32 %v1534, 7
    %v1536 = vsub.s32 1, %v1535
    %v1537 = vrot.slane %v1530, %v1536
    %v1538 = vlaneseq
    %v1539 = vshrl.u32 %v1538, 7
    %v1540 = vsub.s32 5, %v1539
    %v1541 = vrot.slane %v1530, %v1540
    %v1542 = vlaneseq
    %v1543 = vshrl.u32 %v1542, 7
    %v1544 = vsub.s32 1, %v1543
    %v1545 = vrot.slane %v1531, %v1544
    %v1546 = vlaneseq
    %v1547 = vshrl.u32 %v1546, 7
    %v1548 = vsub.s32 5, %v1547
    %v1549 = vrot.slane %v1531, %v1548
    %v1550 = vsel %vm214, %v1545, %v1537
    %v1551 = vsel %vm214, %v1549, %v1541
    %v1554 = vadd.f32 %v1526, %v1550
    %v1555 = vadd.f32 %v1527, %v1551
    %s1556 = sld [smem:[#allocation6 + $0x90]]
    %v1557 = vstv %s1556
    %v1558 = vmul.f32 %v156, %v1557
    %v1559 = vmul.f32 %v157, %v1557
    %v1562 = vlaneseq
    %v1563 = vshrl.u32 %v1562, 7
    %v1564 = vsub.s32 2, %v1563
    %v1565 = vrot.slane %v1558, %v1564
    %v1566 = vlaneseq
    %v1567 = vshrl.u32 %v1566, 7
    %v1568 = vsub.s32 6, %v1567
    %v1569 = vrot.slane %v1558, %v1568
    %v1570 = vlaneseq
    %v1571 = vshrl.u32 %v1570, 7
    %v1572 = vsub.s32 2, %v1571
    %v1573 = vrot.slane %v1559, %v1572
    %v1574 = vlaneseq
    %v1575 = vshrl.u32 %v1574, 7
    %v1576 = vsub.s32 6, %v1575
    %v1577 = vrot.slane %v1559, %v1576
    %v1578 = vsel %vm214, %v1573, %v1565
    %v1579 = vsel %vm214, %v1577, %v1569
    %v1582 = vadd.f32 %v1554, %v1578
    %v1583 = vadd.f32 %v1555, %v1579
    %s1584 = sld [smem:[#allocation6 + $0x98]]
    %v1585 = vstv %s1584
    %v1586 = vmul.f32 %v156, %v1585
    %v1587 = vmul.f32 %v157, %v1585
    %v1590 = vlaneseq
    %v1591 = vshrl.u32 %v1590, 7
    %v1592 = vsub.s32 3, %v1591
    %v1593 = vrot.slane %v1586, %v1592
    %v1594 = vlaneseq
    %v1595 = vshrl.u32 %v1594, 7
    %v1596 = vsub.s32 7, %v1595
    %v1597 = vrot.slane %v1586, %v1596
    %v1598 = vlaneseq
    %v1599 = vshrl.u32 %v1598, 7
    %v1600 = vsub.s32 3, %v1599
    %v1601 = vrot.slane %v1587, %v1600
    %v1602 = vlaneseq
    %v1603 = vshrl.u32 %v1602, 7
    %v1604 = vsub.s32 7, %v1603
    %v1605 = vrot.slane %v1587, %v1604
    %v1606 = vsel %vm214, %v1601, %v1593
    %v1607 = vsel %vm214, %v1605, %v1597
    %v1610 = vadd.f32 %v1582, %v1606
    %v1611 = vadd.f32 %v1583, %v1607
    %s1612 = sld [smem:[#allocation6 + $0xa0]]
    %v1613 = vstv %s1612
    %v1614 = vmul.f32 %v978, %v1613
    %v1615 = vmul.f32 %v979, %v1613
    %v1616 = vadd.f32 %v1610, %v1614
    %v1617 = vadd.f32 %v1611, %v1615
    %s1618 = sld [smem:[#allocation6 + $0xa8]]
    %v1619 = vstv %s1618
    %v1620 = vmul.f32 %v1085, %v1619
    %v1621 = vmul.f32 %v1086, %v1619
    %v1624 = vrot.slane %v1620, 1
    %v1625 = vrot.slane %v1621, 1
    %v1628 = vadd.f32 %v1616, %v1624
    %v1629 = vadd.f32 %v1617, %v1625
    %s1630 = sld [smem:[#allocation6 + $0xb0]]
    %v1631 = vstv %s1630
    %v1632 = vmul.f32 %v1192, %v1631
    %v1633 = vmul.f32 %v1193, %v1631
    %v1636 = vrot.slane %v1632, 2
    %v1637 = vrot.slane %v1633, 2
    %v1640 = vadd.f32 %v1628, %v1636
    %v1641 = vadd.f32 %v1629, %v1637
    %s1642 = sld [smem:[#allocation6 + $0xb8]]
    %v1643 = vstv %s1642
    %v1644 = vmul.f32 %v1299, %v1643
    %v1645 = vmul.f32 %v1300, %v1643
    %v1648 = vrot.slane %v1644, 3
    %v1649 = vrot.slane %v1645, 3
    %v1652 = vadd.f32 %v1640, %v1648
    %v1653 = vadd.f32 %v1641, %v1649
    %s1654 = sld [smem:[#allocation6 + $0xc0]]
    %v1655 = vstv %s1654
    %v1656 = vmul.f32 %v989, %v1655
    %v1657 = vmul.f32 %v990, %v1655
    %v1658 = vadd.f32 %v1652, %v1656
    %v1659 = vadd.f32 %v1653, %v1657
    %s1660 = sld [smem:[#allocation6 + $0xc8]]
    %v1661 = vstv %s1660
    %v1662 = vmul.f32 %v1096, %v1661
    %v1663 = vmul.f32 %v1097, %v1661
    %v1666 = vrot.slane %v1662, 1
    %v1667 = vrot.slane %v1663, 1
    %v1670 = vadd.f32 %v1658, %v1666
    %v1671 = vadd.f32 %v1659, %v1667
    %s1672 = sld [smem:[#allocation6 + $0xd0]]
    %v1673 = vstv %s1672
    %v1674 = vmul.f32 %v1203, %v1673
    %v1675 = vmul.f32 %v1204, %v1673
    %v1678 = vrot.slane %v1674, 2
    %v1679 = vrot.slane %v1675, 2
    %v1682 = vadd.f32 %v1670, %v1678
    %v1683 = vadd.f32 %v1671, %v1679
    %s1684 = sld [smem:[#allocation6 + $0xd8]]
    %v1685 = vstv %s1684
    %v1686 = vmul.f32 %v1310, %v1685
    %v1687 = vmul.f32 %v1311, %v1685
    %v1690 = vrot.slane %v1686, 3
    %v1691 = vrot.slane %v1687, 3
    %v1694 = vadd.f32 %v1682, %v1690
    %v1695 = vadd.f32 %v1683, %v1691
    %s1696 = sld [smem:[#allocation6 + $0xe0]]
    %v1697 = vstv %s1696
    %v1698 = vmul.f32 %v1000, %v1697
    %v1699 = vmul.f32 %v1001, %v1697
    %v1700 = vadd.f32 %v1694, %v1698
    %v1701 = vadd.f32 %v1695, %v1699
    %s1702 = sld [smem:[#allocation6 + $0xe8]]
    %v1703 = vstv %s1702
    %v1704 = vmul.f32 %v1107, %v1703
    %v1705 = vmul.f32 %v1108, %v1703
    %v1708 = vrot.slane %v1704, 1
    %v1709 = vrot.slane %v1705, 1
    %v1712 = vadd.f32 %v1700, %v1708
    %v1713 = vadd.f32 %v1701, %v1709
    %s1714 = sld [smem:[#allocation6 + $0xf0]]
    %v1715 = vstv %s1714
    %v1716 = vmul.f32 %v1214, %v1715
    %v1717 = vmul.f32 %v1215, %v1715
    %v1720 = vrot.slane %v1716, 2
    %v1721 = vrot.slane %v1717, 2
    %v1724 = vadd.f32 %v1712, %v1720
    %v1725 = vadd.f32 %v1713, %v1721
    %s1726 = sld [smem:[#allocation6 + $0xf8]]
    %v1727 = vstv %s1726
    %v1728 = vmul.f32 %v1321, %v1727
    %v1729 = vmul.f32 %v1322, %v1727
    %v1732 = vrot.slane %v1728, 3
    %v1733 = vrot.slane %v1729, 3
    %v1736 = vadd.f32 %v1724, %v1732
    %v1737 = vadd.f32 %v1725, %v1733
    %s1738 = sld [smem:[#allocation6 + $0x100]]
    %v1739 = vstv %s1738
    %v1740 = vmul.f32 %v1011, %v1739
    %v1741 = vmul.f32 %v1012, %v1739
    %v1742 = vadd.f32 %v1736, %v1740
    %v1743 = vadd.f32 %v1737, %v1741
    %s1744 = sld [smem:[#allocation6 + $0x108]]
    %v1745 = vstv %s1744
    %v1746 = vmul.f32 %v1118, %v1745
    %v1747 = vmul.f32 %v1119, %v1745
    %v1750 = vrot.slane %v1746, 1
    %v1751 = vrot.slane %v1747, 1
    %v1754 = vadd.f32 %v1742, %v1750
    %v1755 = vadd.f32 %v1743, %v1751
    %s1756 = sld [smem:[#allocation6 + $0x110]]
    %v1757 = vstv %s1756
    %v1758 = vmul.f32 %v1225, %v1757
    %v1759 = vmul.f32 %v1226, %v1757
    %v1762 = vrot.slane %v1758, 2
    %v1763 = vrot.slane %v1759, 2
    %v1766 = vadd.f32 %v1754, %v1762
    %v1767 = vadd.f32 %v1755, %v1763
    %s1768 = sld [smem:[#allocation6 + $0x118]]
    %v1769 = vstv %s1768
    %v1770 = vmul.f32 %v1332, %v1769
    %v1771 = vmul.f32 %v1333, %v1769
    %v1774 = vrot.slane %v1770, 3
    %v1775 = vrot.slane %v1771, 3
    %v1778 = vadd.f32 %v1766, %v1774
    %v1779 = vadd.f32 %v1767, %v1775
    %s1780 = sld [smem:[#allocation8]]
    %v1781 = vstv %s1780
    %v1782 = vadd.f32 %v1778, %v1781
    %v1783 = vadd.f32 %v1779, %v1781
    %v1784 = vmax.f32 %v1782, 0.0
    %v1785 = vmax.f32 %v1783, 0.0
    %s1786 = sld [smem:[#allocation6 + $0x1]]
    %v1787 = vstv %s1786
    %v1788 = vmul.f32 %v934, %v1787
    %v1789 = vmul.f32 %v935, %v1787
    %s1790 = sld [smem:[#allocation6 + $0x9]]
    %v1791 = vstv %s1790
    %v1792 = vmul.f32 %v1041, %v1791
    %v1793 = vmul.f32 %v1042, %v1791
    %v1796 = vrot.slane %v1792, 1
    %v1797 = vrot.slane %v1793, 1
    %v1800 = vadd.f32 %v1788, %v1796
    %v1801 = vadd.f32 %v1789, %v1797
    %s1802 = sld [smem:[#allocation6 + $0x11]]
    %v1803 = vstv %s1802
    %v1804 = vmul.f32 %v1148, %v1803
    %v1805 = vmul.f32 %v1149, %v1803
    %v1808 = vrot.slane %v1804, 2
    %v1809 = vrot.slane %v1805, 2
    %v1812 = vadd.f32 %v1800, %v1808
    %v1813 = vadd.f32 %v1801, %v1809
    %s1814 = sld [smem:[#allocation6 + $0x19]]
    %v1815 = vstv %s1814
    %v1816 = vmul.f32 %v1255, %v1815
    %v1817 = vmul.f32 %v1256, %v1815
    %v1820 = vrot.slane %v1816, 3
    %v1821 = vrot.slane %v1817, 3
    %v1824 = vadd.f32 %v1812, %v1820
    %v1825 = vadd.f32 %v1813, %v1821
    %s1826 = sld [smem:[#allocation6 + $0x21]]
    %v1827 = vstv %s1826
    %v1828 = vmul.f32 %v945, %v1827
    %v1829 = vmul.f32 %v946, %v1827
    %v1830 = vadd.f32 %v1824, %v1828
    %v1831 = vadd.f32 %v1825, %v1829
    %s1832 = sld [smem:[#allocation6 + $0x29]]
    %v1833 = vstv %s1832
    %v1834 = vmul.f32 %v1052, %v1833
    %v1835 = vmul.f32 %v1053, %v1833
    %v1838 = vrot.slane %v1834, 1
    %v1839 = vrot.slane %v1835, 1
    %v1842 = vadd.f32 %v1830, %v1838
    %v1843 = vadd.f32 %v1831, %v1839
    %s1844 = sld [smem:[#allocation6 + $0x31]]
    %v1845 = vstv %s1844
    %v1846 = vmul.f32 %v1159, %v1845
    %v1847 = vmul.f32 %v1160, %v1845
    %v1850 = vrot.slane %v1846, 2
    %v1851 = vrot.slane %v1847, 2
    %v1854 = vadd.f32 %v1842, %v1850
    %v1855 = vadd.f32 %v1843, %v1851
    %s1856 = sld [smem:[#allocation6 + $0x39]]
    %v1857 = vstv %s1856
    %v1858 = vmul.f32 %v1266, %v1857
    %v1859 = vmul.f32 %v1267, %v1857
    %v1862 = vrot.slane %v1858, 3
    %v1863 = vrot.slane %v1859, 3
    %v1866 = vadd.f32 %v1854, %v1862
    %v1867 = vadd.f32 %v1855, %v1863
    %s1868 = sld [smem:[#allocation6 + $0x41]]
    %v1869 = vstv %s1868
    %v1870 = vmul.f32 %v956, %v1869
    %v1871 = vmul.f32 %v957, %v1869
    %v1872 = vadd.f32 %v1866, %v1870
    %v1873 = vadd.f32 %v1867, %v1871
    %s1874 = sld [smem:[#allocation6 + $0x49]]
    %v1875 = vstv %s1874
    %v1876 = vmul.f32 %v1063, %v1875
    %v1877 = vmul.f32 %v1064, %v1875
    %v1880 = vrot.slane %v1876, 1
    %v1881 = vrot.slane %v1877, 1
    %v1884 = vadd.f32 %v1872, %v1880
    %v1885 = vadd.f32 %v1873, %v1881
    %s1886 = sld [smem:[#allocation6 + $0x51]]
    %v1887 = vstv %s1886
    %v1888 = vmul.f32 %v1170, %v1887
    %v1889 = vmul.f32 %v1171, %v1887
    %v1892 = vrot.slane %v1888, 2
    %v1893 = vrot.slane %v1889, 2
    %v1896 = vadd.f32 %v1884, %v1892
    %v1897 = vadd.f32 %v1885, %v1893
    %s1898 = sld [smem:[#allocation6 + $0x59]]
    %v1899 = vstv %s1898
    %v1900 = vmul.f32 %v1277, %v1899
    %v1901 = vmul.f32 %v1278, %v1899
    %v1904 = vrot.slane %v1900, 3
    %v1905 = vrot.slane %v1901, 3
    %v1908 = vadd.f32 %v1896, %v1904
    %v1909 = vadd.f32 %v1897, %v1905
    %s1910 = sld [smem:[#allocation6 + $0x61]]
    %v1911 = vstv %s1910
    %v1912 = vmul.f32 %v967, %v1911
    %v1913 = vmul.f32 %v968, %v1911
    %v1914 = vadd.f32 %v1908, %v1912
    %v1915 = vadd.f32 %v1909, %v1913
    %s1916 = sld [smem:[#allocation6 + $0x69]]
    %v1917 = vstv %s1916
    %v1918 = vmul.f32 %v1074, %v1917
    %v1919 = vmul.f32 %v1075, %v1917
    %v1922 = vrot.slane %v1918, 1
    %v1923 = vrot.slane %v1919, 1
    %v1926 = vadd.f32 %v1914, %v1922
    %v1927 = vadd.f32 %v1915, %v1923
    %s1928 = sld [smem:[#allocation6 + $0x71]]
    %v1929 = vstv %s1928
    %v1930 = vmul.f32 %v1181, %v1929
    %v1931 = vmul.f32 %v1182, %v1929
    %v1934 = vrot.slane %v1930, 2
    %v1935 = vrot.slane %v1931, 2
    %v1938 = vadd.f32 %v1926, %v1934
    %v1939 = vadd.f32 %v1927, %v1935
    %s1940 = sld [smem:[#allocation6 + $0x79]]
    %v1941 = vstv %s1940
    %v1942 = vmul.f32 %v1288, %v1941
    %v1943 = vmul.f32 %v1289, %v1941
    %v1946 = vrot.slane %v1942, 3
    %v1947 = vrot.slane %v1943, 3
    %v1950 = vadd.f32 %v1938, %v1946
    %v1951 = vadd.f32 %v1939, %v1947
    %s1952 = sld [smem:[#allocation6 + $0x81]]
    %v1953 = vstv %s1952
    %v1954 = vmul.f32 %v156, %v1953
    %v1955 = vmul.f32 %v157, %v1953
    %v1958 = vlaneseq
    %v1959 = vshrl.u32 %v1958, 7
    %v1960 = vsub.s32 0, %v1959
    %v1961 = vrot.slane %v1954, %v1960
    %v1962 = vlaneseq
    %v1963 = vshrl.u32 %v1962, 7
    %v1964 = vsub.s32 4, %v1963
    %v1965 = vrot.slane %v1954, %v1964
    %v1966 = vlaneseq
    %v1967 = vshrl.u32 %v1966, 7
    %v1968 = vsub.s32 0, %v1967
    %v1969 = vrot.slane %v1955, %v1968
    %v1970 = vlaneseq
    %v1971 = vshrl.u32 %v1970, 7
    %v1972 = vsub.s32 4, %v1971
    %v1973 = vrot.slane %v1955, %v1972
    %v1974 = vsel %vm214, %v1969, %v1961
    %v1975 = vsel %vm214, %v1973, %v1965
    %v1978 = vadd.f32 %v1950, %v1974
    %v1979 = vadd.f32 %v1951, %v1975
    %s1980 = sld [smem:[#allocation6 + $0x89]]
    %v1981 = vstv %s1980
    %v1982 = vmul.f32 %v156, %v1981
    %v1983 = vmul.f32 %v157, %v1981
    %v1986 = vlaneseq
    %v1987 = vshrl.u32 %v1986, 7
    %v1988 = vsub.s32 1, %v1987
    %v1989 = vrot.slane %v1982, %v1988
    %v1990 = vlaneseq
    %v1991 = vshrl.u32 %v1990, 7
    %v1992 = vsub.s32 5, %v1991
    %v1993 = vrot.slane %v1982, %v1992
    %v1994 = vlaneseq
    %v1995 = vshrl.u32 %v1994, 7
    %v1996 = vsub.s32 1, %v1995
    %v1997 = vrot.slane %v1983, %v1996
    %v1998 = vlaneseq
    %v1999 = vshrl.u32 %v1998, 7
    %v2000 = vsub.s32 5, %v1999
    %v2001 = vrot.slane %v1983, %v2000
    %v2002 = vsel %vm214, %v1997, %v1989
    %v2003 = vsel %vm214, %v2001, %v1993
    %v2006 = vadd.f32 %v1978, %v2002
    %v2007 = vadd.f32 %v1979, %v2003
    %s2008 = sld [smem:[#allocation6 + $0x91]]
    %v2009 = vstv %s2008
    %v2010 = vmul.f32 %v156, %v2009
    %v2011 = vmul.f32 %v157, %v2009
    %v2014 = vlaneseq
    %v2015 = vshrl.u32 %v2014, 7
    %v2016 = vsub.s32 2, %v2015
    %v2017 = vrot.slane %v2010, %v2016
    %v2018 = vlaneseq
    %v2019 = vshrl.u32 %v2018, 7
    %v2020 = vsub.s32 6, %v2019
    %v2021 = vrot.slane %v2010, %v2020
    %v2022 = vlaneseq
    %v2023 = vshrl.u32 %v2022, 7
    %v2024 = vsub.s32 2, %v2023
    %v2025 = vrot.slane %v2011, %v2024
    %v2026 = vlaneseq
    %v2027 = vshrl.u32 %v2026, 7
    %v2028 = vsub.s32 6, %v2027
    %v2029 = vrot.slane %v2011, %v2028
    %v2030 = vsel %vm214, %v2025, %v2017
    %v2031 = vsel %vm214, %v2029, %v2021
    %v2034 = vadd.f32 %v2006, %v2030
    %v2035 = vadd.f32 %v2007, %v2031
    %s2036 = sld [smem:[#allocation6 + $0x99]]
    %v2037 = vstv %s2036
    %v2038 = vmul.f32 %v156, %v2037
    %v2039 = vmul.f32 %v157, %v2037
    %v2042 = vlaneseq
    %v2043 = vshrl.u32 %v2042, 7
    %v2044 = vsub.s32 3, %v2043
    %v2045 = vrot.slane %v2038, %v2044
    %v2046 = vlaneseq
    %v2047 = vshrl.u32 %v2046, 7
    %v2048 = vsub.s32 7, %v2047
    %v2049 = vrot.slane %v2038, %v2048
    %v2050 = vlaneseq
    %v2051 = vshrl.u32 %v2050, 7
    %v2052 = vsub.s32 3, %v2051
    %v2053 = vrot.slane %v2039, %v2052
    %v2054 = vlaneseq
    %v2055 = vshrl.u32 %v2054, 7
    %v2056 = vsub.s32 7, %v2055
    %v2057 = vrot.slane %v2039, %v2056
    %v2058 = vsel %vm214, %v2053, %v2045
    %v2059 = vsel %vm214, %v2057, %v2049
    %v2062 = vadd.f32 %v2034, %v2058
    %v2063 = vadd.f32 %v2035, %v2059
    %s2064 = sld [smem:[#allocation6 + $0xa1]]
    %v2065 = vstv %s2064
    %v2066 = vmul.f32 %v978, %v2065
    %v2067 = vmul.f32 %v979, %v2065
    %v2068 = vadd.f32 %v2062, %v2066
    %v2069 = vadd.f32 %v2063, %v2067
    %s2070 = sld [smem:[#allocation6 + $0xa9]]
    %v2071 = vstv %s2070
    %v2072 = vmul.f32 %v1085, %v2071
    %v2073 = vmul.f32 %v1086, %v2071
    %v2076 = vrot.slane %v2072, 1
    %v2077 = vrot.slane %v2073, 1
    %v2080 = vadd.f32 %v2068, %v2076
    %v2081 = vadd.f32 %v2069, %v2077
    %s2082 = sld [smem:[#allocation6 + $0xb1]]
    %v2083 = vstv %s2082
    %v2084 = vmul.f32 %v1192, %v2083
    %v2085 = vmul.f32 %v1193, %v2083
    %v2088 = vrot.slane %v2084, 2
    %v2089 = vrot.slane %v2085, 2
    %v2092 = vadd.f32 %v2080, %v2088
    %v2093 = vadd.f32 %v2081, %v2089
    %s2094 = sld [smem:[#allocation6 + $0xb9]]
    %v2095 = vstv %s2094
    %v2096 = vmul.f32 %v1299, %v2095
    %v2097 = vmul.f32 %v1300, %v2095
    %v2100 = vrot.slane %v2096, 3
    %v2101 = vrot.slane %v2097, 3
    %v2104 = vadd.f32 %v2092, %v2100
    %v2105 = vadd.f32 %v2093, %v2101
    %s2106 = sld [smem:[#allocation6 + $0xc1]]
    %v2107 = vstv %s2106
    %v2108 = vmul.f32 %v989, %v2107
    %v2109 = vmul.f32 %v990, %v2107
    %v2110 = vadd.f32 %v2104, %v2108
    %v2111 = vadd.f32 %v2105, %v2109
    %s2112 = sld [smem:[#allocation6 + $0xc9]]
    %v2113 = vstv %s2112
    %v2114 = vmul.f32 %v1096, %v2113
    %v2115 = vmul.f32 %v1097, %v2113
    %v2118 = vrot.slane %v2114, 1
    %v2119 = vrot.slane %v2115, 1
    %v2122 = vadd.f32 %v2110, %v2118
    %v2123 = vadd.f32 %v2111, %v2119
    %s2124 = sld [smem:[#allocation6 + $0xd1]]
    %v2125 = vstv %s2124
    %v2126 = vmul.f32 %v1203, %v2125
    %v2127 = vmul.f32 %v1204, %v2125
    %v2130 = vrot.slane %v2126, 2
    %v2131 = vrot.slane %v2127, 2
    %v2134 = vadd.f32 %v2122, %v2130
    %v2135 = vadd.f32 %v2123, %v2131
    %s2136 = sld [smem:[#allocation6 + $0xd9]]
    %v2137 = vstv %s2136
    %v2138 = vmul.f32 %v1310, %v2137
    %v2139 = vmul.f32 %v1311, %v2137
    %v2142 = vrot.slane %v2138, 3
    %v2143 = vrot.slane %v2139, 3
    %v2146 = vadd.f32 %v2134, %v2142
    %v2147 = vadd.f32 %v2135, %v2143
    %s2148 = sld [smem:[#allocation6 + $0xe1]]
    %v2149 = vstv %s2148
    %v2150 = vmul.f32 %v1000, %v2149
    %v2151 = vmul.f32 %v1001, %v2149
    %v2152 = vadd.f32 %v2146, %v2150
    %v2153 = vadd.f32 %v2147, %v2151
    %s2154 = sld [smem:[#allocation6 + $0xe9]]
    %v2155 = vstv %s2154
    %v2156 = vmul.f32 %v1107, %v2155
    %v2157 = vmul.f32 %v1108, %v2155
    %v2160 = vrot.slane %v2156, 1
    %v2161 = vrot.slane %v2157, 1
    %v2164 = vadd.f32 %v2152, %v2160
    %v2165 = vadd.f32 %v2153, %v2161
    %s2166 = sld [smem:[#allocation6 + $0xf1]]
    %v2167 = vstv %s2166
    %v2168 = vmul.f32 %v1214, %v2167
    %v2169 = vmul.f32 %v1215, %v2167
    %v2172 = vrot.slane %v2168, 2
    %v2173 = vrot.slane %v2169, 2
    %v2176 = vadd.f32 %v2164, %v2172
    %v2177 = vadd.f32 %v2165, %v2173
    %s2178 = sld [smem:[#allocation6 + $0xf9]]
    %v2179 = vstv %s2178
    %v2180 = vmul.f32 %v1321, %v2179
    %v2181 = vmul.f32 %v1322, %v2179
    %v2184 = vrot.slane %v2180, 3
    %v2185 = vrot.slane %v2181, 3
    %v2188 = vadd.f32 %v2176, %v2184
    %v2189 = vadd.f32 %v2177, %v2185
    %s2190 = sld [smem:[#allocation6 + $0x101]]
    %v2191 = vstv %s2190
    %v2192 = vmul.f32 %v1011, %v2191
    %v2193 = vmul.f32 %v1012, %v2191
    %v2194 = vadd.f32 %v2188, %v2192
    %v2195 = vadd.f32 %v2189, %v2193
    %s2196 = sld [smem:[#allocation6 + $0x109]]
    %v2197 = vstv %s2196
    %v2198 = vmul.f32 %v1118, %v2197
    %v2199 = vmul.f32 %v1119, %v2197
    %v2202 = vrot.slane %v2198, 1
    %v2203 = vrot.slane %v2199, 1
    %v2206 = vadd.f32 %v2194, %v2202
    %v2207 = vadd.f32 %v2195, %v2203
    %s2208 = sld [smem:[#allocation6 + $0x111]]
    %v2209 = vstv %s2208
    %v2210 = vmul.f32 %v1225, %v2209
    %v2211 = vmul.f32 %v1226, %v2209
    %v2214 = vrot.slane %v2210, 2
    %v2215 = vrot.slane %v2211, 2
    %v2218 = vadd.f32 %v2206, %v2214
    %v2219 = vadd.f32 %v2207, %v2215
    %s2220 = sld [smem:[#allocation6 + $0x119]]
    %v2221 = vstv %s2220
    %v2222 = vmul.f32 %v1332, %v2221
    %v2223 = vmul.f32 %v1333, %v2221
    %v2226 = vrot.slane %v2222, 3
    %v2227 = vrot.slane %v2223, 3
    %v2230 = vadd.f32 %v2218, %v2226
    %v2231 = vadd.f32 %v2219, %v2227
    %s2232 = sld [smem:[#allocation8 + $0x1]]
    %v2233 = vstv %s2232
    %v2234 = vadd.f32 %v2230, %v2233
    %v2235 = vadd.f32 %v2231, %v2233
    %v2236 = vmax.f32 %v2234, 0.0
    %v2237 = vmax.f32 %v2235, 0.0
    %s2238 = sld [smem:[#allocation6 + $0x2]]
    %v2239 = vstv %s2238
    %v2240 = vmul.f32 %v934, %v2239
    %v2241 = vmul.f32 %v935, %v2239
    %s2242 = sld [smem:[#allocation6 + $0xa]]
    %v2243 = vstv %s2242
    %v2244 = vmul.f32 %v1041, %v2243
    %v2245 = vmul.f32 %v1042, %v2243
    %v2248 = vrot.slane %v2244, 1
    %v2249 = vrot.slane %v2245, 1
    %v2252 = vadd.f32 %v2240, %v2248
    %v2253 = vadd.f32 %v2241, %v2249
    %s2254 = sld [smem:[#allocation6 + $0x12]]
    %v2255 = vstv %s2254
    %v2256 = vmul.f32 %v1148, %v2255
    %v2257 = vmul.f32 %v1149, %v2255
    %v2260 = vrot.slane %v2256, 2
    %v2261 = vrot.slane %v2257, 2
    %v2264 = vadd.f32 %v2252, %v2260
    %v2265 = vadd.f32 %v2253, %v2261
    %s2266 = sld [smem:[#allocation6 + $0x1a]]
    %v2267 = vstv %s2266
    %v2268 = vmul.f32 %v1255, %v2267
    %v2269 = vmul.f32 %v1256, %v2267
    %v2272 = vrot.slane %v2268, 3
    %v2273 = vrot.slane %v2269, 3
    %v2276 = vadd.f32 %v2264, %v2272
    %v2277 = vadd.f32 %v2265, %v2273
    %s2278 = sld [smem:[#allocation6 + $0x22]]
    %v2279 = vstv %s2278
    %v2280 = vmul.f32 %v945, %v2279
    %v2281 = vmul.f32 %v946, %v2279
    %v2282 = vadd.f32 %v2276, %v2280
    %v2283 = vadd.f32 %v2277, %v2281
    %s2284 = sld [smem:[#allocation6 + $0x2a]]
    %v2285 = vstv %s2284
    %v2286 = vmul.f32 %v1052, %v2285
    %v2287 = vmul.f32 %v1053, %v2285
    %v2290 = vrot.slane %v2286, 1
    %v2291 = vrot.slane %v2287, 1
    %v2294 = vadd.f32 %v2282, %v2290
    %v2295 = vadd.f32 %v2283, %v2291
    %s2296 = sld [smem:[#allocation6 + $0x32]]
    %v2297 = vstv %s2296
    %v2298 = vmul.f32 %v1159, %v2297
    %v2299 = vmul.f32 %v1160, %v2297
    %v2302 = vrot.slane %v2298, 2
    %v2303 = vrot.slane %v2299, 2
    %v2306 = vadd.f32 %v2294, %v2302
    %v2307 = vadd.f32 %v2295, %v2303
    %s2308 = sld [smem:[#allocation6 + $0x3a]]
    %v2309 = vstv %s2308
    %v2310 = vmul.f32 %v1266, %v2309
    %v2311 = vmul.f32 %v1267, %v2309
    %v2314 = vrot.slane %v2310, 3
    %v2315 = vrot.slane %v2311, 3
    %v2318 = vadd.f32 %v2306, %v2314
    %v2319 = vadd.f32 %v2307, %v2315
    %s2320 = sld [smem:[#allocation6 + $0x42]]
    %v2321 = vstv %s2320
    %v2322 = vmul.f32 %v956, %v2321
    %v2323 = vmul.f32 %v957, %v2321
    %v2324 = vadd.f32 %v2318, %v2322
    %v2325 = vadd.f32 %v2319, %v2323
    %s2326 = sld [smem:[#allocation6 + $0x4a]]
    %v2327 = vstv %s2326
    %v2328 = vmul.f32 %v1063, %v2327
    %v2329 = vmul.f32 %v1064, %v2327
    %v2332 = vrot.slane %v2328, 1
    %v2333 = vrot.slane %v2329, 1
    %v2336 = vadd.f32 %v2324, %v2332
    %v2337 = vadd.f32 %v2325, %v2333
    %s2338 = sld [smem:[#allocation6 + $0x52]]
    %v2339 = vstv %s2338
    %v2340 = vmul.f32 %v1170, %v2339
    %v2341 = vmul.f32 %v1171, %v2339
    %v2344 = vrot.slane %v2340, 2
    %v2345 = vrot.slane %v2341, 2
    %v2348 = vadd.f32 %v2336, %v2344
    %v2349 = vadd.f32 %v2337, %v2345
    %s2350 = sld [smem:[#allocation6 + $0x5a]]
    %v2351 = vstv %s2350
    %v2352 = vmul.f32 %v1277, %v2351
    %v2353 = vmul.f32 %v1278, %v2351
    %v2356 = vrot.slane %v2352, 3
    %v2357 = vrot.slane %v2353, 3
    %v2360 = vadd.f32 %v2348, %v2356
    %v2361 = vadd.f32 %v2349, %v2357
    %s2362 = sld [smem:[#allocation6 + $0x62]]
    %v2363 = vstv %s2362
    %v2364 = vmul.f32 %v967, %v2363
    %v2365 = vmul.f32 %v968, %v2363
    %v2366 = vadd.f32 %v2360, %v2364
    %v2367 = vadd.f32 %v2361, %v2365
    %s2368 = sld [smem:[#allocation6 + $0x6a]]
    %v2369 = vstv %s2368
    %v2370 = vmul.f32 %v1074, %v2369
    %v2371 = vmul.f32 %v1075, %v2369
    %v2374 = vrot.slane %v2370, 1
    %v2375 = vrot.slane %v2371, 1
    %v2378 = vadd.f32 %v2366, %v2374
    %v2379 = vadd.f32 %v2367, %v2375
    %s2380 = sld [smem:[#allocation6 + $0x72]]
    %v2381 = vstv %s2380
    %v2382 = vmul.f32 %v1181, %v2381
    %v2383 = vmul.f32 %v1182, %v2381
    %v2386 = vrot.slane %v2382, 2
    %v2387 = vrot.slane %v2383, 2
    %v2390 = vadd.f32 %v2378, %v2386
    %v2391 = vadd.f32 %v2379, %v2387
    %s2392 = sld [smem:[#allocation6 + $0x7a]]
    %v2393 = vstv %s2392
    %v2394 = vmul.f32 %v1288, %v2393
    %v2395 = vmul.f32 %v1289, %v2393
    %v2398 = vrot.slane %v2394, 3
    %v2399 = vrot.slane %v2395, 3
    %v2402 = vadd.f32 %v2390, %v2398
    %v2403 = vadd.f32 %v2391, %v2399
    %s2404 = sld [smem:[#allocation6 + $0x82]]
    %v2405 = vstv %s2404
    %v2406 = vmul.f32 %v156, %v2405
    %v2407 = vmul.f32 %v157, %v2405
    %v2410 = vlaneseq
    %v2411 = vshrl.u32 %v2410, 7
    %v2412 = vsub.s32 0, %v2411
    %v2413 = vrot.slane %v2406, %v2412
    %v2414 = vlaneseq
    %v2415 = vshrl.u32 %v2414, 7
    %v2416 = vsub.s32 4, %v2415
    %v2417 = vrot.slane %v2406, %v2416
    %v2418 = vlaneseq
    %v2419 = vshrl.u32 %v2418, 7
    %v2420 = vsub.s32 0, %v2419
    %v2421 = vrot.slane %v2407, %v2420
    %v2422 = vlaneseq
    %v2423 = vshrl.u32 %v2422, 7
    %v2424 = vsub.s32 4, %v2423
    %v2425 = vrot.slane %v2407, %v2424
    %v2426 = vsel %vm214, %v2421, %v2413
    %v2427 = vsel %vm214, %v2425, %v2417
    %v2430 = vadd.f32 %v2402, %v2426
    %v2431 = vadd.f32 %v2403, %v2427
    %s2432 = sld [smem:[#allocation6 + $0x8a]]
    %v2433 = vstv %s2432
    %v2434 = vmul.f32 %v156, %v2433
    %v2435 = vmul.f32 %v157, %v2433
    %v2438 = vlaneseq
    %v2439 = vshrl.u32 %v2438, 7
    %v2440 = vsub.s32 1, %v2439
    %v2441 = vrot.slane %v2434, %v2440
    %v2442 = vlaneseq
    %v2443 = vshrl.u32 %v2442, 7
    %v2444 = vsub.s32 5, %v2443
    %v2445 = vrot.slane %v2434, %v2444
    %v2446 = vlaneseq
    %v2447 = vshrl.u32 %v2446, 7
    %v2448 = vsub.s32 1, %v2447
    %v2449 = vrot.slane %v2435, %v2448
    %v2450 = vlaneseq
    %v2451 = vshrl.u32 %v2450, 7
    %v2452 = vsub.s32 5, %v2451
    %v2453 = vrot.slane %v2435, %v2452
    %v2454 = vsel %vm214, %v2449, %v2441
    %v2455 = vsel %vm214, %v2453, %v2445
    %v2458 = vadd.f32 %v2430, %v2454
    %v2459 = vadd.f32 %v2431, %v2455
    %s2460 = sld [smem:[#allocation6 + $0x92]]
    %v2461 = vstv %s2460
    %v2462 = vmul.f32 %v156, %v2461
    %v2463 = vmul.f32 %v157, %v2461
    %v2466 = vlaneseq
    %v2467 = vshrl.u32 %v2466, 7
    %v2468 = vsub.s32 2, %v2467
    %v2469 = vrot.slane %v2462, %v2468
    %v2470 = vlaneseq
    %v2471 = vshrl.u32 %v2470, 7
    %v2472 = vsub.s32 6, %v2471
    %v2473 = vrot.slane %v2462, %v2472
    %v2474 = vlaneseq
    %v2475 = vshrl.u32 %v2474, 7
    %v2476 = vsub.s32 2, %v2475
    %v2477 = vrot.slane %v2463, %v2476
    %v2478 = vlaneseq
    %v2479 = vshrl.u32 %v2478, 7
    %v2480 = vsub.s32 6, %v2479
    %v2481 = vrot.slane %v2463, %v2480
    %v2482 = vsel %vm214, %v2477, %v2469
    %v2483 = vsel %vm214, %v2481, %v2473
    %v2486 = vadd.f32 %v2458, %v2482
    %v2487 = vadd.f32 %v2459, %v2483
    %s2488 = sld [smem:[#allocation6 + $0x9a]]
    %v2489 = vstv %s2488
    %v2490 = vmul.f32 %v156, %v2489
    %v2491 = vmul.f32 %v157, %v2489
    %v2494 = vlaneseq
    %v2495 = vshrl.u32 %v2494, 7
    %v2496 = vsub.s32 3, %v2495
    %v2497 = vrot.slane %v2490, %v2496
    %v2498 = vlaneseq
    %v2499 = vshrl.u32 %v2498, 7
    %v2500 = vsub.s32 7, %v2499
    %v2501 = vrot.slane %v2490, %v2500
    %v2502 = vlaneseq
    %v2503 = vshrl.u32 %v2502, 7
    %v2504 = vsub.s32 3, %v2503
    %v2505 = vrot.slane %v2491, %v2504
    %v2506 = vlaneseq
    %v2507 = vshrl.u32 %v2506, 7
    %v2508 = vsub.s32 7, %v2507
    %v2509 = vrot.slane %v2491, %v2508
    %v2510 = vsel %vm214, %v2505, %v2497
    %v2511 = vsel %vm214, %v2509, %v2501
    %v2514 = vadd.f32 %v2486, %v2510
    %v2515 = vadd.f32 %v2487, %v2511
    %s2516 = sld [smem:[#allocation6 + $0xa2]]
    %v2517 = vstv %s2516
    %v2518 = vmul.f32 %v978, %v2517
    %v2519 = vmul.f32 %v979, %v2517
    %v2520 = vadd.f32 %v2514, %v2518
    %v2521 = vadd.f32 %v2515, %v2519
    %s2522 = sld [smem:[#allocation6 + $0xaa]]
    %v2523 = vstv %s2522
    %v2524 = vmul.f32 %v1085, %v2523
    %v2525 = vmul.f32 %v1086, %v2523
    %v2528 = vrot.slane %v2524, 1
    %v2529 = vrot.slane %v2525, 1
    %v2532 = vadd.f32 %v2520, %v2528
    %v2533 = vadd.f32 %v2521, %v2529
    %s2534 = sld [smem:[#allocation6 + $0xb2]]
    %v2535 = vstv %s2534
    %v2536 = vmul.f32 %v1192, %v2535
    %v2537 = vmul.f32 %v1193, %v2535
    %v2540 = vrot.slane %v2536, 2
    %v2541 = vrot.slane %v2537, 2
    %v2544 = vadd.f32 %v2532, %v2540
    %v2545 = vadd.f32 %v2533, %v2541
    %s2546 = sld [smem:[#allocation6 + $0xba]]
    %v2547 = vstv %s2546
    %v2548 = vmul.f32 %v1299, %v2547
    %v2549 = vmul.f32 %v1300, %v2547
    %v2552 = vrot.slane %v2548, 3
    %v2553 = vrot.slane %v2549, 3
    %v2556 = vadd.f32 %v2544, %v2552
    %v2557 = vadd.f32 %v2545, %v2553
    %s2558 = sld [smem:[#allocation6 + $0xc2]]
    %v2559 = vstv %s2558
    %v2560 = vmul.f32 %v989, %v2559
    %v2561 = vmul.f32 %v990, %v2559
    %v2562 = vadd.f32 %v2556, %v2560
    %v2563 = vadd.f32 %v2557, %v2561
    %s2564 = sld [smem:[#allocation6 + $0xca]]
    %v2565 = vstv %s2564
    %v2566 = vmul.f32 %v1096, %v2565
    %v2567 = vmul.f32 %v1097, %v2565
    %v2570 = vrot.slane %v2566, 1
    %v2571 = vrot.slane %v2567, 1
    %v2574 = vadd.f32 %v2562, %v2570
    %v2575 = vadd.f32 %v2563, %v2571
    %s2576 = sld [smem:[#allocation6 + $0xd2]]
    %v2577 = vstv %s2576
    %v2578 = vmul.f32 %v1203, %v2577
    %v2579 = vmul.f32 %v1204, %v2577
    %v2582 = vrot.slane %v2578, 2
    %v2583 = vrot.slane %v2579, 2
    %v2586 = vadd.f32 %v2574, %v2582
    %v2587 = vadd.f32 %v2575, %v2583
    %s2588 = sld [smem:[#allocation6 + $0xda]]
    %v2589 = vstv %s2588
    %v2590 = vmul.f32 %v1310, %v2589
    %v2591 = vmul.f32 %v1311, %v2589
    %v2594 = vrot.slane %v2590, 3
    %v2595 = vrot.slane %v2591, 3
    %v2598 = vadd.f32 %v2586, %v2594
    %v2599 = vadd.f32 %v2587, %v2595
    %s2600 = sld [smem:[#allocation6 + $0xe2]]
    %v2601 = vstv %s2600
    %v2602 = vmul.f32 %v1000, %v2601
    %v2603 = vmul.f32 %v1001, %v2601
    %v2604 = vadd.f32 %v2598, %v2602
    %v2605 = vadd.f32 %v2599, %v2603
    %s2606 = sld [smem:[#allocation6 + $0xea]]
    %v2607 = vstv %s2606
    %v2608 = vmul.f32 %v1107, %v2607
    %v2609 = vmul.f32 %v1108, %v2607
    %v2612 = vrot.slane %v2608, 1
    %v2613 = vrot.slane %v2609, 1
    %v2616 = vadd.f32 %v2604, %v2612
    %v2617 = vadd.f32 %v2605, %v2613
    %s2618 = sld [smem:[#allocation6 + $0xf2]]
    %v2619 = vstv %s2618
    %v2620 = vmul.f32 %v1214, %v2619
    %v2621 = vmul.f32 %v1215, %v2619
    %v2624 = vrot.slane %v2620, 2
    %v2625 = vrot.slane %v2621, 2
    %v2628 = vadd.f32 %v2616, %v2624
    %v2629 = vadd.f32 %v2617, %v2625
    %s2630 = sld [smem:[#allocation6 + $0xfa]]
    %v2631 = vstv %s2630
    %v2632 = vmul.f32 %v1321, %v2631
    %v2633 = vmul.f32 %v1322, %v2631
    %v2636 = vrot.slane %v2632, 3
    %v2637 = vrot.slane %v2633, 3
    %v2640 = vadd.f32 %v2628, %v2636
    %v2641 = vadd.f32 %v2629, %v2637
    %s2642 = sld [smem:[#allocation6 + $0x102]]
    %v2643 = vstv %s2642
    %v2644 = vmul.f32 %v1011, %v2643
    %v2645 = vmul.f32 %v1012, %v2643
    %v2646 = vadd.f32 %v2640, %v2644
    %v2647 = vadd.f32 %v2641, %v2645
    %s2648 = sld [smem:[#allocation6 + $0x10a]]
    %v2649 = vstv %s2648
    %v2650 = vmul.f32 %v1118, %v2649
    %v2651 = vmul.f32 %v1119, %v2649
    %v2654 = vrot.slane %v2650, 1
    %v2655 = vrot.slane %v2651, 1
    %v2658 = vadd.f32 %v2646, %v2654
    %v2659 = vadd.f32 %v2647, %v2655
    %s2660 = sld [smem:[#allocation6 + $0x112]]
    %v2661 = vstv %s2660
    %v2662 = vmul.f32 %v1225, %v2661
    %v2663 = vmul.f32 %v1226, %v2661
    %v2666 = vrot.slane %v2662, 2
    %v2667 = vrot.slane %v2663, 2
    %v2670 = vadd.f32 %v2658, %v2666
    %v2671 = vadd.f32 %v2659, %v2667
    %s2672 = sld [smem:[#allocation6 + $0x11a]]
    %v2673 = vstv %s2672
    %v2674 = vmul.f32 %v1332, %v2673
    %v2675 = vmul.f32 %v1333, %v2673
    %v2678 = vrot.slane %v2674, 3
    %v2679 = vrot.slane %v2675, 3
    %v2682 = vadd.f32 %v2670, %v2678
    %v2683 = vadd.f32 %v2671, %v2679
    %s2684 = sld [smem:[#allocation8 + $0x2]]
    %v2685 = vstv %s2684
    %v2686 = vadd.f32 %v2682, %v2685
    %v2687 = vadd.f32 %v2683, %v2685
    %v2688 = vmax.f32 %v2686, 0.0
    %v2689 = vmax.f32 %v2687, 0.0
    %s2690 = sld [smem:[#allocation6 + $0x3]]
    %v2691 = vstv %s2690
    %v2692 = vmul.f32 %v934, %v2691
    %v2693 = vmul.f32 %v935, %v2691
    %s2694 = sld [smem:[#allocation6 + $0xb]]
    %v2695 = vstv %s2694
    %v2696 = vmul.f32 %v1041, %v2695
    %v2697 = vmul.f32 %v1042, %v2695
    %v2700 = vrot.slane %v2696, 1
    %v2701 = vrot.slane %v2697, 1
    %v2704 = vadd.f32 %v2692, %v2700
    %v2705 = vadd.f32 %v2693, %v2701
    %s2706 = sld [smem:[#allocation6 + $0x13]]
    %v2707 = vstv %s2706
    %v2708 = vmul.f32 %v1148, %v2707
    %v2709 = vmul.f32 %v1149, %v2707
    %v2712 = vrot.slane %v2708, 2
    %v2713 = vrot.slane %v2709, 2
    %v2716 = vadd.f32 %v2704, %v2712
    %v2717 = vadd.f32 %v2705, %v2713
    %s2718 = sld [smem:[#allocation6 + $0x1b]]
    %v2719 = vstv %s2718
    %v2720 = vmul.f32 %v1255, %v2719
    %v2721 = vmul.f32 %v1256, %v2719
    %v2724 = vrot.slane %v2720, 3
    %v2725 = vrot.slane %v2721, 3
    %v2728 = vadd.f32 %v2716, %v2724
    %v2729 = vadd.f32 %v2717, %v2725
    %s2730 = sld [smem:[#allocation6 + $0x23]]
    %v2731 = vstv %s2730
    %v2732 = vmul.f32 %v945, %v2731
    %v2733 = vmul.f32 %v946, %v2731
    %v2734 = vadd.f32 %v2728, %v2732
    %v2735 = vadd.f32 %v2729, %v2733
    %s2736 = sld [smem:[#allocation6 + $0x2b]]
    %v2737 = vstv %s2736
    %v2738 = vmul.f32 %v1052, %v2737
    %v2739 = vmul.f32 %v1053, %v2737
    %v2742 = vrot.slane %v2738, 1
    %v2743 = vrot.slane %v2739, 1
    %v2746 = vadd.f32 %v2734, %v2742
    %v2747 = vadd.f32 %v2735, %v2743
    %s2748 = sld [smem:[#allocation6 + $0x33]]
    %v2749 = vstv %s2748
    %v2750 = vmul.f32 %v1159, %v2749
    %v2751 = vmul.f32 %v1160, %v2749
    %v2754 = vrot.slane %v2750, 2
    %v2755 = vrot.slane %v2751, 2
    %v2758 = vadd.f32 %v2746, %v2754
    %v2759 = vadd.f32 %v2747, %v2755
    %s2760 = sld [smem:[#allocation6 + $0x3b]]
    %v2761 = vstv %s2760
    %v2762 = vmul.f32 %v1266, %v2761
    %v2763 = vmul.f32 %v1267, %v2761
    %v2766 = vrot.slane %v2762, 3
    %v2767 = vrot.slane %v2763, 3
    %v2770 = vadd.f32 %v2758, %v2766
    %v2771 = vadd.f32 %v2759, %v2767
    %s2772 = sld [smem:[#allocation6 + $0x43]]
    %v2773 = vstv %s2772
    %v2774 = vmul.f32 %v956, %v2773
    %v2775 = vmul.f32 %v957, %v2773
    %v2776 = vadd.f32 %v2770, %v2774
    %v2777 = vadd.f32 %v2771, %v2775
    %s2778 = sld [smem:[#allocation6 + $0x4b]]
    %v2779 = vstv %s2778
    %v2780 = vmul.f32 %v1063, %v2779
    %v2781 = vmul.f32 %v1064, %v2779
    %v2784 = vrot.slane %v2780, 1
    %v2785 = vrot.slane %v2781, 1
    %v2788 = vadd.f32 %v2776, %v2784
    %v2789 = vadd.f32 %v2777, %v2785
    %s2790 = sld [smem:[#allocation6 + $0x53]]
    %v2791 = vstv %s2790
    %v2792 = vmul.f32 %v1170, %v2791
    %v2793 = vmul.f32 %v1171, %v2791
    %v2796 = vrot.slane %v2792, 2
    %v2797 = vrot.slane %v2793, 2
    %v2800 = vadd.f32 %v2788, %v2796
    %v2801 = vadd.f32 %v2789, %v2797
    %s2802 = sld [smem:[#allocation6 + $0x5b]]
    %v2803 = vstv %s2802
    %v2804 = vmul.f32 %v1277, %v2803
    %v2805 = vmul.f32 %v1278, %v2803
    %v2808 = vrot.slane %v2804, 3
    %v2809 = vrot.slane %v2805, 3
    %v2812 = vadd.f32 %v2800, %v2808
    %v2813 = vadd.f32 %v2801, %v2809
    %s2814 = sld [smem:[#allocation6 + $0x63]]
    %v2815 = vstv %s2814
    %v2816 = vmul.f32 %v967, %v2815
    %v2817 = vmul.f32 %v968, %v2815
    %v2818 = vadd.f32 %v2812, %v2816
    %v2819 = vadd.f32 %v2813, %v2817
    %s2820 = sld [smem:[#allocation6 + $0x6b]]
    %v2821 = vstv %s2820
    %v2822 = vmul.f32 %v1074, %v2821
    %v2823 = vmul.f32 %v1075, %v2821
    %v2826 = vrot.slane %v2822, 1
    %v2827 = vrot.slane %v2823, 1
    %v2830 = vadd.f32 %v2818, %v2826
    %v2831 = vadd.f32 %v2819, %v2827
    %s2832 = sld [smem:[#allocation6 + $0x73]]
    %v2833 = vstv %s2832
    %v2834 = vmul.f32 %v1181, %v2833
    %v2835 = vmul.f32 %v1182, %v2833
    %v2838 = vrot.slane %v2834, 2
    %v2839 = vrot.slane %v2835, 2
    %v2842 = vadd.f32 %v2830, %v2838
    %v2843 = vadd.f32 %v2831, %v2839
    %s2844 = sld [smem:[#allocation6 + $0x7b]]
    %v2845 = vstv %s2844
    %v2846 = vmul.f32 %v1288, %v2845
    %v2847 = vmul.f32 %v1289, %v2845
    %v2850 = vrot.slane %v2846, 3
    %v2851 = vrot.slane %v2847, 3
    %v2854 = vadd.f32 %v2842, %v2850
    %v2855 = vadd.f32 %v2843, %v2851
    %s2856 = sld [smem:[#allocation6 + $0x83]]
    %v2857 = vstv %s2856
    %v2858 = vmul.f32 %v156, %v2857
    %v2859 = vmul.f32 %v157, %v2857
    %v2862 = vlaneseq
    %v2863 = vshrl.u32 %v2862, 7
    %v2864 = vsub.s32 0, %v2863
    %v2865 = vrot.slane %v2858, %v2864
    %v2866 = vlaneseq
    %v2867 = vshrl.u32 %v2866, 7
    %v2868 = vsub.s32 4, %v2867
    %v2869 = vrot.slane %v2858, %v2868
    %v2870 = vlaneseq
    %v2871 = vshrl.u32 %v2870, 7
    %v2872 = vsub.s32 0, %v2871
    %v2873 = vrot.slane %v2859, %v2872
    %v2874 = vlaneseq
    %v2875 = vshrl.u32 %v2874, 7
    %v2876 = vsub.s32 4, %v2875
    %v2877 = vrot.slane %v2859, %v2876
    %v2878 = vsel %vm214, %v2873, %v2865
    %v2879 = vsel %vm214, %v2877, %v2869
    %v2882 = vadd.f32 %v2854, %v2878
    %v2883 = vadd.f32 %v2855, %v2879
    %s2884 = sld [smem:[#allocation6 + $0x8b]]
    %v2885 = vstv %s2884
    %v2886 = vmul.f32 %v156, %v2885
    %v2887 = vmul.f32 %v157, %v2885
    %v2890 = vlaneseq
    %v2891 = vshrl.u32 %v2890, 7
    %v2892 = vsub.s32 1, %v2891
    %v2893 = vrot.slane %v2886, %v2892
    %v2894 = vlaneseq
    %v2895 = vshrl.u32 %v2894, 7
    %v2896 = vsub.s32 5, %v2895
    %v2897 = vrot.slane %v2886, %v2896
    %v2898 = vlaneseq
    %v2899 = vshrl.u32 %v2898, 7
    %v2900 = vsub.s32 1, %v2899
    %v2901 = vrot.slane %v2887, %v2900
    %v2902 = vlaneseq
    %v2903 = vshrl.u32 %v2902, 7
    %v2904 = vsub.s32 5, %v2903
    %v2905 = vrot.slane %v2887, %v2904
    %v2906 = vsel %vm214, %v2901, %v2893
    %v2907 = vsel %vm214, %v2905, %v2897
    %v2910 = vadd.f32 %v2882, %v2906
    %v2911 = vadd.f32 %v2883, %v2907
    %s2912 = sld [smem:[#allocation6 + $0x93]]
    %v2913 = vstv %s2912
    %v2914 = vmul.f32 %v156, %v2913
    %v2915 = vmul.f32 %v157, %v2913
    %v2918 = vlaneseq
    %v2919 = vshrl.u32 %v2918, 7
    %v2920 = vsub.s32 2, %v2919
    %v2921 = vrot.slane %v2914, %v2920
    %v2922 = vlaneseq
    %v2923 = vshrl.u32 %v2922, 7
    %v2924 = vsub.s32 6, %v2923
    %v2925 = vrot.slane %v2914, %v2924
    %v2926 = vlaneseq
    %v2927 = vshrl.u32 %v2926, 7
    %v2928 = vsub.s32 2, %v2927
    %v2929 = vrot.slane %v2915, %v2928
    %v2930 = vlaneseq
    %v2931 = vshrl.u32 %v2930, 7
    %v2932 = vsub.s32 6, %v2931
    %v2933 = vrot.slane %v2915, %v2932
    %v2934 = vsel %vm214, %v2929, %v2921
    %v2935 = vsel %vm214, %v2933, %v2925
    %v2938 = vadd.f32 %v2910, %v2934
    %v2939 = vadd.f32 %v2911, %v2935
    %s2940 = sld [smem:[#allocation6 + $0x9b]]
    %v2941 = vstv %s2940
    %v2942 = vmul.f32 %v156, %v2941
    %v2943 = vmul.f32 %v157, %v2941
    %v2946 = vlaneseq
    %v2947 = vshrl.u32 %v2946, 7
    %v2948 = vsub.s32 3, %v2947
    %v2949 = vrot.slane %v2942, %v2948
    %v2950 = vlaneseq
    %v2951 = vshrl.u32 %v2950, 7
    %v2952 = vsub.s32 7, %v2951
    %v2953 = vrot.slane %v2942, %v2952
    %v2954 = vlaneseq
    %v2955 = vshrl.u32 %v2954, 7
    %v2956 = vsub.s32 3, %v2955
    %v2957 = vrot.slane %v2943, %v2956
    %v2958 = vlaneseq
    %v2959 = vshrl.u32 %v2958, 7
    %v2960 = vsub.s32 7, %v2959
    %v2961 = vrot.slane %v2943, %v2960
    %v2962 = vsel %vm214, %v2957, %v2949
    %v2963 = vsel %vm214, %v2961, %v2953
    %v2966 = vadd.f32 %v2938, %v2962
    %v2967 = vadd.f32 %v2939, %v2963
    %s2968 = sld [smem:[#allocation6 + $0xa3]]
    %v2969 = vstv %s2968
    %v2970 = vmul.f32 %v978, %v2969
    %v2971 = vmul.f32 %v979, %v2969
    %v2972 = vadd.f32 %v2966, %v2970
    %v2973 = vadd.f32 %v2967, %v2971
    %s2974 = sld [smem:[#allocation6 + $0xab]]
    %v2975 = vstv %s2974
    %v2976 = vmul.f32 %v1085, %v2975
    %v2977 = vmul.f32 %v1086, %v2975
    %v2980 = vrot.slane %v2976, 1
    %v2981 = vrot.slane %v2977, 1
    %v2984 = vadd.f32 %v2972, %v2980
    %v2985 = vadd.f32 %v2973, %v2981
    %s2986 = sld [smem:[#allocation6 + $0xb3]]
    %v2987 = vstv %s2986
    %v2988 = vmul.f32 %v1192, %v2987
    %v2989 = vmul.f32 %v1193, %v2987
    %v2992 = vrot.slane %v2988, 2
    %v2993 = vrot.slane %v2989, 2
    %v2996 = vadd.f32 %v2984, %v2992
    %v2997 = vadd.f32 %v2985, %v2993
    %s2998 = sld [smem:[#allocation6 + $0xbb]]
    %v2999 = vstv %s2998
    %v3000 = vmul.f32 %v1299, %v2999
    %v3001 = vmul.f32 %v1300, %v2999
    %v3004 = vrot.slane %v3000, 3
    %v3005 = vrot.slane %v3001, 3
    %v3008 = vadd.f32 %v2996, %v3004
    %v3009 = vadd.f32 %v2997, %v3005
    %s3010 = sld [smem:[#allocation6 + $0xc3]]
    %v3011 = vstv %s3010
    %v3012 = vmul.f32 %v989, %v3011
    %v3013 = vmul.f32 %v990, %v3011
    %v3014 = vadd.f32 %v3008, %v3012
    %v3015 = vadd.f32 %v3009, %v3013
    %s3016 = sld [smem:[#allocation6 + $0xcb]]
    %v3017 = vstv %s3016
    %v3018 = vmul.f32 %v1096, %v3017
    %v3019 = vmul.f32 %v1097, %v3017
    %v3022 = vrot.slane %v3018, 1
    %v3023 = vrot.slane %v3019, 1
    %v3026 = vadd.f32 %v3014, %v3022
    %v3027 = vadd.f32 %v3015, %v3023
    %s3028 = sld [smem:[#allocation6 + $0xd3]]
    %v3029 = vstv %s3028
    %v3030 = vmul.f32 %v1203, %v3029
    %v3031 = vmul.f32 %v1204, %v3029
    %v3034 = vrot.slane %v3030, 2
    %v3035 = vrot.slane %v3031, 2
    %v3038 = vadd.f32 %v3026, %v3034
    %v3039 = vadd.f32 %v3027, %v3035
    %s3040 = sld [smem:[#allocation6 + $0xdb]]
    %v3041 = vstv %s3040
    %v3042 = vmul.f32 %v1310, %v3041
    %v3043 = vmul.f32 %v1311, %v3041
    %v3046 = vrot.slane %v3042, 3
    %v3047 = vrot.slane %v3043, 3
    %v3050 = vadd.f32 %v3038, %v3046
    %v3051 = vadd.f32 %v3039, %v3047
    %s3052 = sld [smem:[#allocation6 + $0xe3]]
    %v3053 = vstv %s3052
    %v3054 = vmul.f32 %v1000, %v3053
    %v3055 = vmul.f32 %v1001, %v3053
    %v3056 = vadd.f32 %v3050, %v3054
    %v3057 = vadd.f32 %v3051, %v3055
    %s3058 = sld [smem:[#allocation6 + $0xeb]]
    %v3059 = vstv %s3058
    %v3060 = vmul.f32 %v1107, %v3059
    %v3061 = vmul.f32 %v1108, %v3059
    %v3064 = vrot.slane %v3060, 1
    %v3065 = vrot.slane %v3061, 1
    %v3068 = vadd.f32 %v3056, %v3064
    %v3069 = vadd.f32 %v3057, %v3065
    %s3070 = sld [smem:[#allocation6 + $0xf3]]
    %v3071 = vstv %s3070
    %v3072 = vmul.f32 %v1214, %v3071
    %v3073 = vmul.f32 %v1215, %v3071
    %v3076 = vrot.slane %v3072, 2
    %v3077 = vrot.slane %v3073, 2
    %v3080 = vadd.f32 %v3068, %v3076
    %v3081 = vadd.f32 %v3069, %v3077
    %s3082 = sld [smem:[#allocation6 + $0xfb]]
    %v3083 = vstv %s3082
    %v3084 = vmul.f32 %v1321, %v3083
    %v3085 = vmul.f32 %v1322, %v3083
    %v3088 = vrot.slane %v3084, 3
    %v3089 = vrot.slane %v3085, 3
    %v3092 = vadd.f32 %v3080, %v3088
    %v3093 = vadd.f32 %v3081, %v3089
    %s3094 = sld [smem:[#allocation6 + $0x103]]
    %v3095 = vstv %s3094
    %v3096 = vmul.f32 %v1011, %v3095
    %v3097 = vmul.f32 %v1012, %v3095
    %v3098 = vadd.f32 %v3092, %v3096
    %v3099 = vadd.f32 %v3093, %v3097
    %s3100 = sld [smem:[#allocation6 + $0x10b]]
    %v3101 = vstv %s3100
    %v3102 = vmul.f32 %v1118, %v3101
    %v3103 = vmul.f32 %v1119, %v3101
    %v3106 = vrot.slane %v3102, 1
    %v3107 = vrot.slane %v3103, 1
    %v3110 = vadd.f32 %v3098, %v3106
    %v3111 = vadd.f32 %v3099, %v3107
    %s3112 = sld [smem:[#allocation6 + $0x113]]
    %v3113 = vstv %s3112
    %v3114 = vmul.f32 %v1225, %v3113
    %v3115 = vmul.f32 %v1226, %v3113
    %v3118 = vrot.slane %v3114, 2
    %v3119 = vrot.slane %v3115, 2
    %v3122 = vadd.f32 %v3110, %v3118
    %v3123 = vadd.f32 %v3111, %v3119
    %s3124 = sld [smem:[#allocation6 + $0x11b]]
    %v3125 = vstv %s3124
    %v3126 = vmul.f32 %v1332, %v3125
    %v3127 = vmul.f32 %v1333, %v3125
    %v3130 = vrot.slane %v3126, 3
    %v3131 = vrot.slane %v3127, 3
    %v3134 = vadd.f32 %v3122, %v3130
    %v3135 = vadd.f32 %v3123, %v3131
    %s3136 = sld [smem:[#allocation8 + $0x3]]
    %v3137 = vstv %s3136
    %v3138 = vadd.f32 %v3134, %v3137
    %v3139 = vadd.f32 %v3135, %v3137
    %v3140 = vmax.f32 %v3138, 0.0
    %v3141 = vmax.f32 %v3139, 0.0
    %s3142 = sld [smem:[#allocation6 + $0x4]]
    %v3143 = vstv %s3142
    %v3144 = vmul.f32 %v934, %v3143
    %v3145 = vmul.f32 %v935, %v3143
    %s3146 = sld [smem:[#allocation6 + $0xc]]
    %v3147 = vstv %s3146
    %v3148 = vmul.f32 %v1041, %v3147
    %v3149 = vmul.f32 %v1042, %v3147
    %v3152 = vrot.slane %v3148, 1
    %v3153 = vrot.slane %v3149, 1
    %v3156 = vadd.f32 %v3144, %v3152
    %v3157 = vadd.f32 %v3145, %v3153
    %s3158 = sld [smem:[#allocation6 + $0x14]]
    %v3159 = vstv %s3158
    %v3160 = vmul.f32 %v1148, %v3159
    %v3161 = vmul.f32 %v1149, %v3159
    %v3164 = vrot.slane %v3160, 2
    %v3165 = vrot.slane %v3161, 2
    %v3168 = vadd.f32 %v3156, %v3164
    %v3169 = vadd.f32 %v3157, %v3165
    %s3170 = sld [smem:[#allocation6 + $0x1c]]
    %v3171 = vstv %s3170
    %v3172 = vmul.f32 %v1255, %v3171
    %v3173 = vmul.f32 %v1256, %v3171
    %v3176 = vrot.slane %v3172, 3
    %v3177 = vrot.slane %v3173, 3
    %v3180 = vadd.f32 %v3168, %v3176
    %v3181 = vadd.f32 %v3169, %v3177
    %s3182 = sld [smem:[#allocation6 + $0x24]]
    %v3183 = vstv %s3182
    %v3184 = vmul.f32 %v945, %v3183
    %v3185 = vmul.f32 %v946, %v3183
    %v3186 = vadd.f32 %v3180, %v3184
    %v3187 = vadd.f32 %v3181, %v3185
    %s3188 = sld [smem:[#allocation6 + $0x2c]]
    %v3189 = vstv %s3188
    %v3190 = vmul.f32 %v1052, %v3189
    %v3191 = vmul.f32 %v1053, %v3189
    %v3194 = vrot.slane %v3190, 1
    %v3195 = vrot.slane %v3191, 1
    %v3198 = vadd.f32 %v3186, %v3194
    %v3199 = vadd.f32 %v3187, %v3195
    %s3200 = sld [smem:[#allocation6 + $0x34]]
    %v3201 = vstv %s3200
    %v3202 = vmul.f32 %v1159, %v3201
    %v3203 = vmul.f32 %v1160, %v3201
    %v3206 = vrot.slane %v3202, 2
    %v3207 = vrot.slane %v3203, 2
    %v3210 = vadd.f32 %v3198, %v3206
    %v3211 = vadd.f32 %v3199, %v3207
    %s3212 = sld [smem:[#allocation6 + $0x3c]]
    %v3213 = vstv %s3212
    %v3214 = vmul.f32 %v1266, %v3213
    %v3215 = vmul.f32 %v1267, %v3213
    %v3218 = vrot.slane %v3214, 3
    %v3219 = vrot.slane %v3215, 3
    %v3222 = vadd.f32 %v3210, %v3218
    %v3223 = vadd.f32 %v3211, %v3219
    %s3224 = sld [smem:[#allocation6 + $0x44]]
    %v3225 = vstv %s3224
    %v3226 = vmul.f32 %v956, %v3225
    %v3227 = vmul.f32 %v957, %v3225
    %v3228 = vadd.f32 %v3222, %v3226
    %v3229 = vadd.f32 %v3223, %v3227
    %s3230 = sld [smem:[#allocation6 + $0x4c]]
    %v3231 = vstv %s3230
    %v3232 = vmul.f32 %v1063, %v3231
    %v3233 = vmul.f32 %v1064, %v3231
    %v3236 = vrot.slane %v3232, 1
    %v3237 = vrot.slane %v3233, 1
    %v3240 = vadd.f32 %v3228, %v3236
    %v3241 = vadd.f32 %v3229, %v3237
    %s3242 = sld [smem:[#allocation6 + $0x54]]
    %v3243 = vstv %s3242
    %v3244 = vmul.f32 %v1170, %v3243
    %v3245 = vmul.f32 %v1171, %v3243
    %v3248 = vrot.slane %v3244, 2
    %v3249 = vrot.slane %v3245, 2
    %v3252 = vadd.f32 %v3240, %v3248
    %v3253 = vadd.f32 %v3241, %v3249
    %s3254 = sld [smem:[#allocation6 + $0x5c]]
    %v3255 = vstv %s3254
    %v3256 = vmul.f32 %v1277, %v3255
    %v3257 = vmul.f32 %v1278, %v3255
    %v3260 = vrot.slane %v3256, 3
    %v3261 = vrot.slane %v3257, 3
    %v3264 = vadd.f32 %v3252, %v3260
    %v3265 = vadd.f32 %v3253, %v3261
    %s3266 = sld [smem:[#allocation6 + $0x64]]
    %v3267 = vstv %s3266
    %v3268 = vmul.f32 %v967, %v3267
    %v3269 = vmul.f32 %v968, %v3267
    %v3270 = vadd.f32 %v3264, %v3268
    %v3271 = vadd.f32 %v3265, %v3269
    %s3272 = sld [smem:[#allocation6 + $0x6c]]
    %v3273 = vstv %s3272
    %v3274 = vmul.f32 %v1074, %v3273
    %v3275 = vmul.f32 %v1075, %v3273
    %v3278 = vrot.slane %v3274, 1
    %v3279 = vrot.slane %v3275, 1
    %v3282 = vadd.f32 %v3270, %v3278
    %v3283 = vadd.f32 %v3271, %v3279
    %s3284 = sld [smem:[#allocation6 + $0x74]]
    %v3285 = vstv %s3284
    %v3286 = vmul.f32 %v1181, %v3285
    %v3287 = vmul.f32 %v1182, %v3285
    %v3290 = vrot.slane %v3286, 2
    %v3291 = vrot.slane %v3287, 2
    %v3294 = vadd.f32 %v3282, %v3290
    %v3295 = vadd.f32 %v3283, %v3291
    %s3296 = sld [smem:[#allocation6 + $0x7c]]
    %v3297 = vstv %s3296
    %v3298 = vmul.f32 %v1288, %v3297
    %v3299 = vmul.f32 %v1289, %v3297
    %v3302 = vrot.slane %v3298, 3
    %v3303 = vrot.slane %v3299, 3
    %v3306 = vadd.f32 %v3294, %v3302
    %v3307 = vadd.f32 %v3295, %v3303
    %s3308 = sld [smem:[#allocation6 + $0x84]]
    %v3309 = vstv %s3308
    %v3310 = vmul.f32 %v156, %v3309
    %v3311 = vmul.f32 %v157, %v3309
    %v3314 = vlaneseq
    %v3315 = vshrl.u32 %v3314, 7
    %v3316 = vsub.s32 0, %v3315
    %v3317 = vrot.slane %v3310, %v3316
    %v3318 = vlaneseq
    %v3319 = vshrl.u32 %v3318, 7
    %v3320 = vsub.s32 4, %v3319
    %v3321 = vrot.slane %v3310, %v3320
    %v3322 = vlaneseq
    %v3323 = vshrl.u32 %v3322, 7
    %v3324 = vsub.s32 0, %v3323
    %v3325 = vrot.slane %v3311, %v3324
    %v3326 = vlaneseq
    %v3327 = vshrl.u32 %v3326, 7
    %v3328 = vsub.s32 4, %v3327
    %v3329 = vrot.slane %v3311, %v3328
    %v3330 = vsel %vm214, %v3325, %v3317
    %v3331 = vsel %vm214, %v3329, %v3321
    %v3334 = vadd.f32 %v3306, %v3330
    %v3335 = vadd.f32 %v3307, %v3331
    %s3336 = sld [smem:[#allocation6 + $0x8c]]
    %v3337 = vstv %s3336
    %v3338 = vmul.f32 %v156, %v3337
    %v3339 = vmul.f32 %v157, %v3337
    %v3342 = vlaneseq
    %v3343 = vshrl.u32 %v3342, 7
    %v3344 = vsub.s32 1, %v3343
    %v3345 = vrot.slane %v3338, %v3344
    %v3346 = vlaneseq
    %v3347 = vshrl.u32 %v3346, 7
    %v3348 = vsub.s32 5, %v3347
    %v3349 = vrot.slane %v3338, %v3348
    %v3350 = vlaneseq
    %v3351 = vshrl.u32 %v3350, 7
    %v3352 = vsub.s32 1, %v3351
    %v3353 = vrot.slane %v3339, %v3352
    %v3354 = vlaneseq
    %v3355 = vshrl.u32 %v3354, 7
    %v3356 = vsub.s32 5, %v3355
    %v3357 = vrot.slane %v3339, %v3356
    %v3358 = vsel %vm214, %v3353, %v3345
    %v3359 = vsel %vm214, %v3357, %v3349
    %v3362 = vadd.f32 %v3334, %v3358
    %v3363 = vadd.f32 %v3335, %v3359
    %s3364 = sld [smem:[#allocation6 + $0x94]]
    %v3365 = vstv %s3364
    %v3366 = vmul.f32 %v156, %v3365
    %v3367 = vmul.f32 %v157, %v3365
    %v3370 = vlaneseq
    %v3371 = vshrl.u32 %v3370, 7
    %v3372 = vsub.s32 2, %v3371
    %v3373 = vrot.slane %v3366, %v3372
    %v3374 = vlaneseq
    %v3375 = vshrl.u32 %v3374, 7
    %v3376 = vsub.s32 6, %v3375
    %v3377 = vrot.slane %v3366, %v3376
    %v3378 = vlaneseq
    %v3379 = vshrl.u32 %v3378, 7
    %v3380 = vsub.s32 2, %v3379
    %v3381 = vrot.slane %v3367, %v3380
    %v3382 = vlaneseq
    %v3383 = vshrl.u32 %v3382, 7
    %v3384 = vsub.s32 6, %v3383
    %v3385 = vrot.slane %v3367, %v3384
    %v3386 = vsel %vm214, %v3381, %v3373
    %v3387 = vsel %vm214, %v3385, %v3377
    %v3390 = vadd.f32 %v3362, %v3386
    %v3391 = vadd.f32 %v3363, %v3387
    %s3392 = sld [smem:[#allocation6 + $0x9c]]
    %v3393 = vstv %s3392
    %v3394 = vmul.f32 %v156, %v3393
    %v3395 = vmul.f32 %v157, %v3393
    %v3398 = vlaneseq
    %v3399 = vshrl.u32 %v3398, 7
    %v3400 = vsub.s32 3, %v3399
    %v3401 = vrot.slane %v3394, %v3400
    %v3402 = vlaneseq
    %v3403 = vshrl.u32 %v3402, 7
    %v3404 = vsub.s32 7, %v3403
    %v3405 = vrot.slane %v3394, %v3404
    %v3406 = vlaneseq
    %v3407 = vshrl.u32 %v3406, 7
    %v3408 = vsub.s32 3, %v3407
    %v3409 = vrot.slane %v3395, %v3408
    %v3410 = vlaneseq
    %v3411 = vshrl.u32 %v3410, 7
    %v3412 = vsub.s32 7, %v3411
    %v3413 = vrot.slane %v3395, %v3412
    %v3414 = vsel %vm214, %v3409, %v3401
    %v3415 = vsel %vm214, %v3413, %v3405
    %v3418 = vadd.f32 %v3390, %v3414
    %v3419 = vadd.f32 %v3391, %v3415
    %s3420 = sld [smem:[#allocation6 + $0xa4]]
    %v3421 = vstv %s3420
    %v3422 = vmul.f32 %v978, %v3421
    %v3423 = vmul.f32 %v979, %v3421
    %v3424 = vadd.f32 %v3418, %v3422
    %v3425 = vadd.f32 %v3419, %v3423
    %s3426 = sld [smem:[#allocation6 + $0xac]]
    %v3427 = vstv %s3426
    %v3428 = vmul.f32 %v1085, %v3427
    %v3429 = vmul.f32 %v1086, %v3427
    %v3432 = vrot.slane %v3428, 1
    %v3433 = vrot.slane %v3429, 1
    %v3436 = vadd.f32 %v3424, %v3432
    %v3437 = vadd.f32 %v3425, %v3433
    %s3438 = sld [smem:[#allocation6 + $0xb4]]
    %v3439 = vstv %s3438
    %v3440 = vmul.f32 %v1192, %v3439
    %v3441 = vmul.f32 %v1193, %v3439
    %v3444 = vrot.slane %v3440, 2
    %v3445 = vrot.slane %v3441, 2
    %v3448 = vadd.f32 %v3436, %v3444
    %v3449 = vadd.f32 %v3437, %v3445
    %s3450 = sld [smem:[#allocation6 + $0xbc]]
    %v3451 = vstv %s3450
    %v3452 = vmul.f32 %v1299, %v3451
    %v3453 = vmul.f32 %v1300, %v3451
    %v3456 = vrot.slane %v3452, 3
    %v3457 = vrot.slane %v3453, 3
    %v3460 = vadd.f32 %v3448, %v3456
    %v3461 = vadd.f32 %v3449, %v3457
    %s3462 = sld [smem:[#allocation6 + $0xc4]]
    %v3463 = vstv %s3462
    %v3464 = vmul.f32 %v989, %v3463
    %v3465 = vmul.f32 %v990, %v3463
    %v3466 = vadd.f32 %v3460, %v3464
    %v3467 = vadd.f32 %v3461, %v3465
    %s3468 = sld [smem:[#allocation6 + $0xcc]]
    %v3469 = vstv %s3468
    %v3470 = vmul.f32 %v1096, %v3469
    %v3471 = vmul.f32 %v1097, %v3469
    %v3474 = vrot.slane %v3470, 1
    %v3475 = vrot.slane %v3471, 1
    %v3478 = vadd.f32 %v3466, %v3474
    %v3479 = vadd.f32 %v3467, %v3475
    %s3480 = sld [smem:[#allocation6 + $0xd4]]
    %v3481 = vstv %s3480
    %v3482 = vmul.f32 %v1203, %v3481
    %v3483 = vmul.f32 %v1204, %v3481
    %v3486 = vrot.slane %v3482, 2
    %v3487 = vrot.slane %v3483, 2
    %v3490 = vadd.f32 %v3478, %v3486
    %v3491 = vadd.f32 %v3479, %v3487
    %s3492 = sld [smem:[#allocation6 + $0xdc]]
    %v3493 = vstv %s3492
    %v3494 = vmul.f32 %v1310, %v3493
    %v3495 = vmul.f32 %v1311, %v3493
    %v3498 = vrot.slane %v3494, 3
    %v3499 = vrot.slane %v3495, 3
    %v3502 = vadd.f32 %v3490, %v3498
    %v3503 = vadd.f32 %v3491, %v3499
    %s3504 = sld [smem:[#allocation6 + $0xe4]]
    %v3505 = vstv %s3504
    %v3506 = vmul.f32 %v1000, %v3505
    %v3507 = vmul.f32 %v1001, %v3505
    %v3508 = vadd.f32 %v3502, %v3506
    %v3509 = vadd.f32 %v3503, %v3507
    %s3510 = sld [smem:[#allocation6 + $0xec]]
    %v3511 = vstv %s3510
    %v3512 = vmul.f32 %v1107, %v3511
    %v3513 = vmul.f32 %v1108, %v3511
    %v3516 = vrot.slane %v3512, 1
    %v3517 = vrot.slane %v3513, 1
    %v3520 = vadd.f32 %v3508, %v3516
    %v3521 = vadd.f32 %v3509, %v3517
    %s3522 = sld [smem:[#allocation6 + $0xf4]]
    %v3523 = vstv %s3522
    %v3524 = vmul.f32 %v1214, %v3523
    %v3525 = vmul.f32 %v1215, %v3523
    %v3528 = vrot.slane %v3524, 2
    %v3529 = vrot.slane %v3525, 2
    %v3532 = vadd.f32 %v3520, %v3528
    %v3533 = vadd.f32 %v3521, %v3529
    %s3534 = sld [smem:[#allocation6 + $0xfc]]
    %v3535 = vstv %s3534
    %v3536 = vmul.f32 %v1321, %v3535
    %v3537 = vmul.f32 %v1322, %v3535
    %v3540 = vrot.slane %v3536, 3
    %v3541 = vrot.slane %v3537, 3
    %v3544 = vadd.f32 %v3532, %v3540
    %v3545 = vadd.f32 %v3533, %v3541
    %s3546 = sld [smem:[#allocation6 + $0x104]]
    %v3547 = vstv %s3546
    %v3548 = vmul.f32 %v1011, %v3547
    %v3549 = vmul.f32 %v1012, %v3547
    %v3550 = vadd.f32 %v3544, %v3548
    %v3551 = vadd.f32 %v3545, %v3549
    %s3552 = sld [smem:[#allocation6 + $0x10c]]
    %v3553 = vstv %s3552
    %v3554 = vmul.f32 %v1118, %v3553
    %v3555 = vmul.f32 %v1119, %v3553
    %v3558 = vrot.slane %v3554, 1
    %v3559 = vrot.slane %v3555, 1
    %v3562 = vadd.f32 %v3550, %v3558
    %v3563 = vadd.f32 %v3551, %v3559
    %s3564 = sld [smem:[#allocation6 + $0x114]]
    %v3565 = vstv %s3564
    %v3566 = vmul.f32 %v1225, %v3565
    %v3567 = vmul.f32 %v1226, %v3565
    %v3570 = vrot.slane %v3566, 2
    %v3571 = vrot.slane %v3567, 2
    %v3574 = vadd.f32 %v3562, %v3570
    %v3575 = vadd.f32 %v3563, %v3571
    %s3576 = sld [smem:[#allocation6 + $0x11c]]
    %v3577 = vstv %s3576
    %v3578 = vmul.f32 %v1332, %v3577
    %v3579 = vmul.f32 %v1333, %v3577
    %v3582 = vrot.slane %v3578, 3
    %v3583 = vrot.slane %v3579, 3
    %v3586 = vadd.f32 %v3574, %v3582
    %v3587 = vadd.f32 %v3575, %v3583
    %s3588 = sld [smem:[#allocation8 + $0x4]]
    %v3589 = vstv %s3588
    %v3590 = vadd.f32 %v3586, %v3589
    %v3591 = vadd.f32 %v3587, %v3589
    %v3592 = vmax.f32 %v3590, 0.0
    %v3593 = vmax.f32 %v3591, 0.0
    %s3594 = sld [smem:[#allocation6 + $0x5]]
    %v3595 = vstv %s3594
    %v3596 = vmul.f32 %v934, %v3595
    %v3597 = vmul.f32 %v935, %v3595
    %s3598 = sld [smem:[#allocation6 + $0xd]]
    %v3599 = vstv %s3598
    %v3600 = vmul.f32 %v1041, %v3599
    %v3601 = vmul.f32 %v1042, %v3599
    %v3604 = vrot.slane %v3600, 1
    %v3605 = vrot.slane %v3601, 1
    %v3608 = vadd.f32 %v3596, %v3604
    %v3609 = vadd.f32 %v3597, %v3605
    %s3610 = sld [smem:[#allocation6 + $0x15]]
    %v3611 = vstv %s3610
    %v3612 = vmul.f32 %v1148, %v3611
    %v3613 = vmul.f32 %v1149, %v3611
    %v3616 = vrot.slane %v3612, 2
    %v3617 = vrot.slane %v3613, 2
    %v3620 = vadd.f32 %v3608, %v3616
    %v3621 = vadd.f32 %v3609, %v3617
    %s3622 = sld [smem:[#allocation6 + $0x1d]]
    %v3623 = vstv %s3622
    %v3624 = vmul.f32 %v1255, %v3623
    %v3625 = vmul.f32 %v1256, %v3623
    %v3628 = vrot.slane %v3624, 3
    %v3629 = vrot.slane %v3625, 3
    %v3632 = vadd.f32 %v3620, %v3628
    %v3633 = vadd.f32 %v3621, %v3629
    %s3634 = sld [smem:[#allocation6 + $0x25]]
    %v3635 = vstv %s3634
    %v3636 = vmul.f32 %v945, %v3635
    %v3637 = vmul.f32 %v946, %v3635
    %v3638 = vadd.f32 %v3632, %v3636
    %v3639 = vadd.f32 %v3633, %v3637
    %s3640 = sld [smem:[#allocation6 + $0x2d]]
    %v3641 = vstv %s3640
    %v3642 = vmul.f32 %v1052, %v3641
    %v3643 = vmul.f32 %v1053, %v3641
    %v3646 = vrot.slane %v3642, 1
    %v3647 = vrot.slane %v3643, 1
    %v3650 = vadd.f32 %v3638, %v3646
    %v3651 = vadd.f32 %v3639, %v3647
    %s3652 = sld [smem:[#allocation6 + $0x35]]
    %v3653 = vstv %s3652
    %v3654 = vmul.f32 %v1159, %v3653
    %v3655 = vmul.f32 %v1160, %v3653
    %v3658 = vrot.slane %v3654, 2
    %v3659 = vrot.slane %v3655, 2
    %v3662 = vadd.f32 %v3650, %v3658
    %v3663 = vadd.f32 %v3651, %v3659
    %s3664 = sld [smem:[#allocation6 + $0x3d]]
    %v3665 = vstv %s3664
    %v3666 = vmul.f32 %v1266, %v3665
    %v3667 = vmul.f32 %v1267, %v3665
    %v3670 = vrot.slane %v3666, 3
    %v3671 = vrot.slane %v3667, 3
    %v3674 = vadd.f32 %v3662, %v3670
    %v3675 = vadd.f32 %v3663, %v3671
    %s3676 = sld [smem:[#allocation6 + $0x45]]
    %v3677 = vstv %s3676
    %v3678 = vmul.f32 %v956, %v3677
    %v3679 = vmul.f32 %v957, %v3677
    %v3680 = vadd.f32 %v3674, %v3678
    %v3681 = vadd.f32 %v3675, %v3679
    %s3682 = sld [smem:[#allocation6 + $0x4d]]
    %v3683 = vstv %s3682
    %v3684 = vmul.f32 %v1063, %v3683
    %v3685 = vmul.f32 %v1064, %v3683
    %v3688 = vrot.slane %v3684, 1
    %v3689 = vrot.slane %v3685, 1
    %v3692 = vadd.f32 %v3680, %v3688
    %v3693 = vadd.f32 %v3681, %v3689
    %s3694 = sld [smem:[#allocation6 + $0x55]]
    %v3695 = vstv %s3694
    %v3696 = vmul.f32 %v1170, %v3695
    %v3697 = vmul.f32 %v1171, %v3695
    %v3700 = vrot.slane %v3696, 2
    %v3701 = vrot.slane %v3697, 2
    %v3704 = vadd.f32 %v3692, %v3700
    %v3705 = vadd.f32 %v3693, %v3701
    %s3706 = sld [smem:[#allocation6 + $0x5d]]
    %v3707 = vstv %s3706
    %v3708 = vmul.f32 %v1277, %v3707
    %v3709 = vmul.f32 %v1278, %v3707
    %v3712 = vrot.slane %v3708, 3
    %v3713 = vrot.slane %v3709, 3
    %v3716 = vadd.f32 %v3704, %v3712
    %v3717 = vadd.f32 %v3705, %v3713
    %s3718 = sld [smem:[#allocation6 + $0x65]]
    %v3719 = vstv %s3718
    %v3720 = vmul.f32 %v967, %v3719
    %v3721 = vmul.f32 %v968, %v3719
    %v3722 = vadd.f32 %v3716, %v3720
    %v3723 = vadd.f32 %v3717, %v3721
    %s3724 = sld [smem:[#allocation6 + $0x6d]]
    %v3725 = vstv %s3724
    %v3726 = vmul.f32 %v1074, %v3725
    %v3727 = vmul.f32 %v1075, %v3725
    %v3730 = vrot.slane %v3726, 1
    %v3731 = vrot.slane %v3727, 1
    %v3734 = vadd.f32 %v3722, %v3730
    %v3735 = vadd.f32 %v3723, %v3731
    %s3736 = sld [smem:[#allocation6 + $0x75]]
    %v3737 = vstv %s3736
    %v3738 = vmul.f32 %v1181, %v3737
    %v3739 = vmul.f32 %v1182, %v3737
    %v3742 = vrot.slane %v3738, 2
    %v3743 = vrot.slane %v3739, 2
    %v3746 = vadd.f32 %v3734, %v3742
    %v3747 = vadd.f32 %v3735, %v3743
    %s3748 = sld [smem:[#allocation6 + $0x7d]]
    %v3749 = vstv %s3748
    %v3750 = vmul.f32 %v1288, %v3749
    %v3751 = vmul.f32 %v1289, %v3749
    %v3754 = vrot.slane %v3750, 3
    %v3755 = vrot.slane %v3751, 3
    %v3758 = vadd.f32 %v3746, %v3754
    %v3759 = vadd.f32 %v3747, %v3755
    %s3760 = sld [smem:[#allocation6 + $0x85]]
    %v3761 = vstv %s3760
    %v3762 = vmul.f32 %v156, %v3761
    %v3763 = vmul.f32 %v157, %v3761
    %v3766 = vlaneseq
    %v3767 = vshrl.u32 %v3766, 7
    %v3768 = vsub.s32 0, %v3767
    %v3769 = vrot.slane %v3762, %v3768
    %v3770 = vlaneseq
    %v3771 = vshrl.u32 %v3770, 7
    %v3772 = vsub.s32 4, %v3771
    %v3773 = vrot.slane %v3762, %v3772
    %v3774 = vlaneseq
    %v3775 = vshrl.u32 %v3774, 7
    %v3776 = vsub.s32 0, %v3775
    %v3777 = vrot.slane %v3763, %v3776
    %v3778 = vlaneseq
    %v3779 = vshrl.u32 %v3778, 7
    %v3780 = vsub.s32 4, %v3779
    %v3781 = vrot.slane %v3763, %v3780
    %v3782 = vsel %vm214, %v3777, %v3769
    %v3783 = vsel %vm214, %v3781, %v3773
    %v3786 = vadd.f32 %v3758, %v3782
    %v3787 = vadd.f32 %v3759, %v3783
    %s3788 = sld [smem:[#allocation6 + $0x8d]]
    %v3789 = vstv %s3788
    %v3790 = vmul.f32 %v156, %v3789
    %v3791 = vmul.f32 %v157, %v3789
    %v3794 = vlaneseq
    %v3795 = vshrl.u32 %v3794, 7
    %v3796 = vsub.s32 1, %v3795
    %v3797 = vrot.slane %v3790, %v3796
    %v3798 = vlaneseq
    %v3799 = vshrl.u32 %v3798, 7
    %v3800 = vsub.s32 5, %v3799
    %v3801 = vrot.slane %v3790, %v3800
    %v3802 = vlaneseq
    %v3803 = vshrl.u32 %v3802, 7
    %v3804 = vsub.s32 1, %v3803
    %v3805 = vrot.slane %v3791, %v3804
    %v3806 = vlaneseq
    %v3807 = vshrl.u32 %v3806, 7
    %v3808 = vsub.s32 5, %v3807
    %v3809 = vrot.slane %v3791, %v3808
    %v3810 = vsel %vm214, %v3805, %v3797
    %v3811 = vsel %vm214, %v3809, %v3801
    %v3814 = vadd.f32 %v3786, %v3810
    %v3815 = vadd.f32 %v3787, %v3811
    %s3816 = sld [smem:[#allocation6 + $0x95]]
    %v3817 = vstv %s3816
    %v3818 = vmul.f32 %v156, %v3817
    %v3819 = vmul.f32 %v157, %v3817
    %v3822 = vlaneseq
    %v3823 = vshrl.u32 %v3822, 7
    %v3824 = vsub.s32 2, %v3823
    %v3825 = vrot.slane %v3818, %v3824
    %v3826 = vlaneseq
    %v3827 = vshrl.u32 %v3826, 7
    %v3828 = vsub.s32 6, %v3827
    %v3829 = vrot.slane %v3818, %v3828
    %v3830 = vlaneseq
    %v3831 = vshrl.u32 %v3830, 7
    %v3832 = vsub.s32 2, %v3831
    %v3833 = vrot.slane %v3819, %v3832
    %v3834 = vlaneseq
    %v3835 = vshrl.u32 %v3834, 7
    %v3836 = vsub.s32 6, %v3835
    %v3837 = vrot.slane %v3819, %v3836
    %v3838 = vsel %vm214, %v3833, %v3825
    %v3839 = vsel %vm214, %v3837, %v3829
    %v3842 = vadd.f32 %v3814, %v3838
    %v3843 = vadd.f32 %v3815, %v3839
    %s3844 = sld [smem:[#allocation6 + $0x9d]]
    %v3845 = vstv %s3844
    %v3846 = vmul.f32 %v156, %v3845
    %v3847 = vmul.f32 %v157, %v3845
    %v3850 = vlaneseq
    %v3851 = vshrl.u32 %v3850, 7
    %v3852 = vsub.s32 3, %v3851
    %v3853 = vrot.slane %v3846, %v3852
    %v3854 = vlaneseq
    %v3855 = vshrl.u32 %v3854, 7
    %v3856 = vsub.s32 7, %v3855
    %v3857 = vrot.slane %v3846, %v3856
    %v3858 = vlaneseq
    %v3859 = vshrl.u32 %v3858, 7
    %v3860 = vsub.s32 3, %v3859
    %v3861 = vrot.slane %v3847, %v3860
    %v3862 = vlaneseq
    %v3863 = vshrl.u32 %v3862, 7
    %v3864 = vsub.s32 7, %v3863
    %v3865 = vrot.slane %v3847, %v3864
    %v3866 = vsel %vm214, %v3861, %v3853
    %v3867 = vsel %vm214, %v3865, %v3857
    %v3870 = vadd.f32 %v3842, %v3866
    %v3871 = vadd.f32 %v3843, %v3867
    %s3872 = sld [smem:[#allocation6 + $0xa5]]
    %v3873 = vstv %s3872
    %v3874 = vmul.f32 %v978, %v3873
    %v3875 = vmul.f32 %v979, %v3873
    %v3876 = vadd.f32 %v3870, %v3874
    %v3877 = vadd.f32 %v3871, %v3875
    %s3878 = sld [smem:[#allocation6 + $0xad]]
    %v3879 = vstv %s3878
    %v3880 = vmul.f32 %v1085, %v3879
    %v3881 = vmul.f32 %v1086, %v3879
    %v3884 = vrot.slane %v3880, 1
    %v3885 = vrot.slane %v3881, 1
    %v3888 = vadd.f32 %v3876, %v3884
    %v3889 = vadd.f32 %v3877, %v3885
    %s3890 = sld [smem:[#allocation6 + $0xb5]]
    %v3891 = vstv %s3890
    %v3892 = vmul.f32 %v1192, %v3891
    %v3893 = vmul.f32 %v1193, %v3891
    %v3896 = vrot.slane %v3892, 2
    %v3897 = vrot.slane %v3893, 2
    %v3900 = vadd.f32 %v3888, %v3896
    %v3901 = vadd.f32 %v3889, %v3897
    %s3902 = sld [smem:[#allocation6 + $0xbd]]
    %v3903 = vstv %s3902
    %v3904 = vmul.f32 %v1299, %v3903
    %v3905 = vmul.f32 %v1300, %v3903
    %v3908 = vrot.slane %v3904, 3
    %v3909 = vrot.slane %v3905, 3
    %v3912 = vadd.f32 %v3900, %v3908
    %v3913 = vadd.f32 %v3901, %v3909
    %s3914 = sld [smem:[#allocation6 + $0xc5]]
    %v3915 = vstv %s3914
    %v3916 = vmul.f32 %v989, %v3915
    %v3917 = vmul.f32 %v990, %v3915
    %v3918 = vadd.f32 %v3912, %v3916
    %v3919 = vadd.f32 %v3913, %v3917
    %s3920 = sld [smem:[#allocation6 + $0xcd]]
    %v3921 = vstv %s3920
    %v3922 = vmul.f32 %v1096, %v3921
    %v3923 = vmul.f32 %v1097, %v3921
    %v3926 = vrot.slane %v3922, 1
    %v3927 = vrot.slane %v3923, 1
    %v3930 = vadd.f32 %v3918, %v3926
    %v3931 = vadd.f32 %v3919, %v3927
    %s3932 = sld [smem:[#allocation6 + $0xd5]]
    %v3933 = vstv %s3932
    %v3934 = vmul.f32 %v1203, %v3933
    %v3935 = vmul.f32 %v1204, %v3933
    %v3938 = vrot.slane %v3934, 2
    %v3939 = vrot.slane %v3935, 2
    %v3942 = vadd.f32 %v3930, %v3938
    %v3943 = vadd.f32 %v3931, %v3939
    %s3944 = sld [smem:[#allocation6 + $0xdd]]
    %v3945 = vstv %s3944
    %v3946 = vmul.f32 %v1310, %v3945
    %v3947 = vmul.f32 %v1311, %v3945
    %v3950 = vrot.slane %v3946, 3
    %v3951 = vrot.slane %v3947, 3
    %v3954 = vadd.f32 %v3942, %v3950
    %v3955 = vadd.f32 %v3943, %v3951
    %s3956 = sld [smem:[#allocation6 + $0xe5]]
    %v3957 = vstv %s3956
    %v3958 = vmul.f32 %v1000, %v3957
    %v3959 = vmul.f32 %v1001, %v3957
    %v3960 = vadd.f32 %v3954, %v3958
    %v3961 = vadd.f32 %v3955, %v3959
    %s3962 = sld [smem:[#allocation6 + $0xed]]
    %v3963 = vstv %s3962
    %v3964 = vmul.f32 %v1107, %v3963
    %v3965 = vmul.f32 %v1108, %v3963
    %v3968 = vrot.slane %v3964, 1
    %v3969 = vrot.slane %v3965, 1
    %v3972 = vadd.f32 %v3960, %v3968
    %v3973 = vadd.f32 %v3961, %v3969
    %s3974 = sld [smem:[#allocation6 + $0xf5]]
    %v3975 = vstv %s3974
    %v3976 = vmul.f32 %v1214, %v3975
    %v3977 = vmul.f32 %v1215, %v3975
    %v3980 = vrot.slane %v3976, 2
    %v3981 = vrot.slane %v3977, 2
    %v3984 = vadd.f32 %v3972, %v3980
    %v3985 = vadd.f32 %v3973, %v3981
    %s3986 = sld [smem:[#allocation6 + $0xfd]]
    %v3987 = vstv %s3986
    %v3988 = vmul.f32 %v1321, %v3987
    %v3989 = vmul.f32 %v1322, %v3987
    %v3992 = vrot.slane %v3988, 3
    %v3993 = vrot.slane %v3989, 3
    %v3996 = vadd.f32 %v3984, %v3992
    %v3997 = vadd.f32 %v3985, %v3993
    %s3998 = sld [smem:[#allocation6 + $0x105]]
    %v3999 = vstv %s3998
    %v4000 = vmul.f32 %v1011, %v3999
    %v4001 = vmul.f32 %v1012, %v3999
    %v4002 = vadd.f32 %v3996, %v4000
    %v4003 = vadd.f32 %v3997, %v4001
    %s4004 = sld [smem:[#allocation6 + $0x10d]]
    %v4005 = vstv %s4004
    %v4006 = vmul.f32 %v1118, %v4005
    %v4007 = vmul.f32 %v1119, %v4005
    %v4010 = vrot.slane %v4006, 1
    %v4011 = vrot.slane %v4007, 1
    %v4014 = vadd.f32 %v4002, %v4010
    %v4015 = vadd.f32 %v4003, %v4011
    %s4016 = sld [smem:[#allocation6 + $0x115]]
    %v4017 = vstv %s4016
    %v4018 = vmul.f32 %v1225, %v4017
    %v4019 = vmul.f32 %v1226, %v4017
    %v4022 = vrot.slane %v4018, 2
    %v4023 = vrot.slane %v4019, 2
    %v4026 = vadd.f32 %v4014, %v4022
    %v4027 = vadd.f32 %v4015, %v4023
    %s4028 = sld [smem:[#allocation6 + $0x11d]]
    %v4029 = vstv %s4028
    %v4030 = vmul.f32 %v1332, %v4029
    %v4031 = vmul.f32 %v1333, %v4029
    %v4034 = vrot.slane %v4030, 3
    %v4035 = vrot.slane %v4031, 3
    %v4038 = vadd.f32 %v4026, %v4034
    %v4039 = vadd.f32 %v4027, %v4035
    %s4040 = sld [smem:[#allocation8 + $0x5]]
    %v4041 = vstv %s4040
    %v4042 = vadd.f32 %v4038, %v4041
    %v4043 = vadd.f32 %v4039, %v4041
    %v4044 = vmax.f32 %v4042, 0.0
    %v4045 = vmax.f32 %v4043, 0.0
    %s4046 = sld [smem:[#allocation6 + $0x6]]
    %v4047 = vstv %s4046
    %v4048 = vmul.f32 %v934, %v4047
    %v4049 = vmul.f32 %v935, %v4047
    %s4050 = sld [smem:[#allocation6 + $0xe]]
    %v4051 = vstv %s4050
    %v4052 = vmul.f32 %v1041, %v4051
    %v4053 = vmul.f32 %v1042, %v4051
    %v4056 = vrot.slane %v4052, 1
    %v4057 = vrot.slane %v4053, 1
    %v4060 = vadd.f32 %v4048, %v4056
    %v4061 = vadd.f32 %v4049, %v4057
    %s4062 = sld [smem:[#allocation6 + $0x16]]
    %v4063 = vstv %s4062
    %v4064 = vmul.f32 %v1148, %v4063
    %v4065 = vmul.f32 %v1149, %v4063
    %v4068 = vrot.slane %v4064, 2
    %v4069 = vrot.slane %v4065, 2
    %v4072 = vadd.f32 %v4060, %v4068
    %v4073 = vadd.f32 %v4061, %v4069
    %s4074 = sld [smem:[#allocation6 + $0x1e]]
    %v4075 = vstv %s4074
    %v4076 = vmul.f32 %v1255, %v4075
    %v4077 = vmul.f32 %v1256, %v4075
    %v4080 = vrot.slane %v4076, 3
    %v4081 = vrot.slane %v4077, 3
    %v4084 = vadd.f32 %v4072, %v4080
    %v4085 = vadd.f32 %v4073, %v4081
    %s4086 = sld [smem:[#allocation6 + $0x26]]
    %v4087 = vstv %s4086
    %v4088 = vmul.f32 %v945, %v4087
    %v4089 = vmul.f32 %v946, %v4087
    %v4090 = vadd.f32 %v4084, %v4088
    %v4091 = vadd.f32 %v4085, %v4089
    %s4092 = sld [smem:[#allocation6 + $0x2e]]
    %v4093 = vstv %s4092
    %v4094 = vmul.f32 %v1052, %v4093
    %v4095 = vmul.f32 %v1053, %v4093
    %v4098 = vrot.slane %v4094, 1
    %v4099 = vrot.slane %v4095, 1
    %v4102 = vadd.f32 %v4090, %v4098
    %v4103 = vadd.f32 %v4091, %v4099
    %s4104 = sld [smem:[#allocation6 + $0x36]]
    %v4105 = vstv %s4104
    %v4106 = vmul.f32 %v1159, %v4105
    %v4107 = vmul.f32 %v1160, %v4105
    %v4110 = vrot.slane %v4106, 2
    %v4111 = vrot.slane %v4107, 2
    %v4114 = vadd.f32 %v4102, %v4110
    %v4115 = vadd.f32 %v4103, %v4111
    %s4116 = sld [smem:[#allocation6 + $0x3e]]
    %v4117 = vstv %s4116
    %v4118 = vmul.f32 %v1266, %v4117
    %v4119 = vmul.f32 %v1267, %v4117
    %v4122 = vrot.slane %v4118, 3
    %v4123 = vrot.slane %v4119, 3
    %v4126 = vadd.f32 %v4114, %v4122
    %v4127 = vadd.f32 %v4115, %v4123
    %s4128 = sld [smem:[#allocation6 + $0x46]]
    %v4129 = vstv %s4128
    %v4130 = vmul.f32 %v956, %v4129
    %v4131 = vmul.f32 %v957, %v4129
    %v4132 = vadd.f32 %v4126, %v4130
    %v4133 = vadd.f32 %v4127, %v4131
    %s4134 = sld [smem:[#allocation6 + $0x4e]]
    %v4135 = vstv %s4134
    %v4136 = vmul.f32 %v1063, %v4135
    %v4137 = vmul.f32 %v1064, %v4135
    %v4140 = vrot.slane %v4136, 1
    %v4141 = vrot.slane %v4137, 1
    %v4144 = vadd.f32 %v4132, %v4140
    %v4145 = vadd.f32 %v4133, %v4141
    %s4146 = sld [smem:[#allocation6 + $0x56]]
    %v4147 = vstv %s4146
    %v4148 = vmul.f32 %v1170, %v4147
    %v4149 = vmul.f32 %v1171, %v4147
    %v4152 = vrot.slane %v4148, 2
    %v4153 = vrot.slane %v4149, 2
    %v4156 = vadd.f32 %v4144, %v4152
    %v4157 = vadd.f32 %v4145, %v4153
    %s4158 = sld [smem:[#allocation6 + $0x5e]]
    %v4159 = vstv %s4158
    %v4160 = vmul.f32 %v1277, %v4159
    %v4161 = vmul.f32 %v1278, %v4159
    %v4164 = vrot.slane %v4160, 3
    %v4165 = vrot.slane %v4161, 3
    %v4168 = vadd.f32 %v4156, %v4164
    %v4169 = vadd.f32 %v4157, %v4165
    %s4170 = sld [smem:[#allocation6 + $0x66]]
    %v4171 = vstv %s4170
    %v4172 = vmul.f32 %v967, %v4171
    %v4173 = vmul.f32 %v968, %v4171
    %v4174 = vadd.f32 %v4168, %v4172
    %v4175 = vadd.f32 %v4169, %v4173
    %s4176 = sld [smem:[#allocation6 + $0x6e]]
    %v4177 = vstv %s4176
    %v4178 = vmul.f32 %v1074, %v4177
    %v4179 = vmul.f32 %v1075, %v4177
    %v4182 = vrot.slane %v4178, 1
    %v4183 = vrot.slane %v4179, 1
    %v4186 = vadd.f32 %v4174, %v4182
    %v4187 = vadd.f32 %v4175, %v4183
    %s4188 = sld [smem:[#allocation6 + $0x76]]
    %v4189 = vstv %s4188
    %v4190 = vmul.f32 %v1181, %v4189
    %v4191 = vmul.f32 %v1182, %v4189
    %v4194 = vrot.slane %v4190, 2
    %v4195 = vrot.slane %v4191, 2
    %v4198 = vadd.f32 %v4186, %v4194
    %v4199 = vadd.f32 %v4187, %v4195
    %s4200 = sld [smem:[#allocation6 + $0x7e]]
    %v4201 = vstv %s4200
    %v4202 = vmul.f32 %v1288, %v4201
    %v4203 = vmul.f32 %v1289, %v4201
    %v4206 = vrot.slane %v4202, 3
    %v4207 = vrot.slane %v4203, 3
    %v4210 = vadd.f32 %v4198, %v4206
    %v4211 = vadd.f32 %v4199, %v4207
    %s4212 = sld [smem:[#allocation6 + $0x86]]
    %v4213 = vstv %s4212
    %v4214 = vmul.f32 %v156, %v4213
    %v4215 = vmul.f32 %v157, %v4213
    %v4218 = vlaneseq
    %v4219 = vshrl.u32 %v4218, 7
    %v4220 = vsub.s32 0, %v4219
    %v4221 = vrot.slane %v4214, %v4220
    %v4222 = vlaneseq
    %v4223 = vshrl.u32 %v4222, 7
    %v4224 = vsub.s32 4, %v4223
    %v4225 = vrot.slane %v4214, %v4224
    %v4226 = vlaneseq
    %v4227 = vshrl.u32 %v4226, 7
    %v4228 = vsub.s32 0, %v4227
    %v4229 = vrot.slane %v4215, %v4228
    %v4230 = vlaneseq
    %v4231 = vshrl.u32 %v4230, 7
    %v4232 = vsub.s32 4, %v4231
    %v4233 = vrot.slane %v4215, %v4232
    %v4234 = vsel %vm214, %v4229, %v4221
    %v4235 = vsel %vm214, %v4233, %v4225
    %v4238 = vadd.f32 %v4210, %v4234
    %v4239 = vadd.f32 %v4211, %v4235
    %s4240 = sld [smem:[#allocation6 + $0x8e]]
    %v4241 = vstv %s4240
    %v4242 = vmul.f32 %v156, %v4241
    %v4243 = vmul.f32 %v157, %v4241
    %v4246 = vlaneseq
    %v4247 = vshrl.u32 %v4246, 7
    %v4248 = vsub.s32 1, %v4247
    %v4249 = vrot.slane %v4242, %v4248
    %v4250 = vlaneseq
    %v4251 = vshrl.u32 %v4250, 7
    %v4252 = vsub.s32 5, %v4251
    %v4253 = vrot.slane %v4242, %v4252
    %v4254 = vlaneseq
    %v4255 = vshrl.u32 %v4254, 7
    %v4256 = vsub.s32 1, %v4255
    %v4257 = vrot.slane %v4243, %v4256
    %v4258 = vlaneseq
    %v4259 = vshrl.u32 %v4258, 7
    %v4260 = vsub.s32 5, %v4259
    %v4261 = vrot.slane %v4243, %v4260
    %v4262 = vsel %vm214, %v4257, %v4249
    %v4263 = vsel %vm214, %v4261, %v4253
    %v4266 = vadd.f32 %v4238, %v4262
    %v4267 = vadd.f32 %v4239, %v4263
    %s4268 = sld [smem:[#allocation6 + $0x96]]
    %v4269 = vstv %s4268
    %v4270 = vmul.f32 %v156, %v4269
    %v4271 = vmul.f32 %v157, %v4269
    %v4274 = vlaneseq
    %v4275 = vshrl.u32 %v4274, 7
    %v4276 = vsub.s32 2, %v4275
    %v4277 = vrot.slane %v4270, %v4276
    %v4278 = vlaneseq
    %v4279 = vshrl.u32 %v4278, 7
    %v4280 = vsub.s32 6, %v4279
    %v4281 = vrot.slane %v4270, %v4280
    %v4282 = vlaneseq
    %v4283 = vshrl.u32 %v4282, 7
    %v4284 = vsub.s32 2, %v4283
    %v4285 = vrot.slane %v4271, %v4284
    %v4286 = vlaneseq
    %v4287 = vshrl.u32 %v4286, 7
    %v4288 = vsub.s32 6, %v4287
    %v4289 = vrot.slane %v4271, %v4288
    %v4290 = vsel %vm214, %v4285, %v4277
    %v4291 = vsel %vm214, %v4289, %v4281
    %v4294 = vadd.f32 %v4266, %v4290
    %v4295 = vadd.f32 %v4267, %v4291
    %s4296 = sld [smem:[#allocation6 + $0x9e]]
    %v4297 = vstv %s4296
    %v4298 = vmul.f32 %v156, %v4297
    %v4299 = vmul.f32 %v157, %v4297
    %v4302 = vlaneseq
    %v4303 = vshrl.u32 %v4302, 7
    %v4304 = vsub.s32 3, %v4303
    %v4305 = vrot.slane %v4298, %v4304
    %v4306 = vlaneseq
    %v4307 = vshrl.u32 %v4306, 7
    %v4308 = vsub.s32 7, %v4307
    %v4309 = vrot.slane %v4298, %v4308
    %v4310 = vlaneseq
    %v4311 = vshrl.u32 %v4310, 7
    %v4312 = vsub.s32 3, %v4311
    %v4313 = vrot.slane %v4299, %v4312
    %v4314 = vlaneseq
    %v4315 = vshrl.u32 %v4314, 7
    %v4316 = vsub.s32 7, %v4315
    %v4317 = vrot.slane %v4299, %v4316
    %v4318 = vsel %vm214, %v4313, %v4305
    %v4319 = vsel %vm214, %v4317, %v4309
    %v4322 = vadd.f32 %v4294, %v4318
    %v4323 = vadd.f32 %v4295, %v4319
    %s4324 = sld [smem:[#allocation6 + $0xa6]]
    %v4325 = vstv %s4324
    %v4326 = vmul.f32 %v978, %v4325
    %v4327 = vmul.f32 %v979, %v4325
    %v4328 = vadd.f32 %v4322, %v4326
    %v4329 = vadd.f32 %v4323, %v4327
    %s4330 = sld [smem:[#allocation6 + $0xae]]
    %v4331 = vstv %s4330
    %v4332 = vmul.f32 %v1085, %v4331
    %v4333 = vmul.f32 %v1086, %v4331
    %v4336 = vrot.slane %v4332, 1
    %v4337 = vrot.slane %v4333, 1
    %v4340 = vadd.f32 %v4328, %v4336
    %v4341 = vadd.f32 %v4329, %v4337
    %s4342 = sld [smem:[#allocation6 + $0xb6]]
    %v4343 = vstv %s4342
    %v4344 = vmul.f32 %v1192, %v4343
    %v4345 = vmul.f32 %v1193, %v4343
    %v4348 = vrot.slane %v4344, 2
    %v4349 = vrot.slane %v4345, 2
    %v4352 = vadd.f32 %v4340, %v4348
    %v4353 = vadd.f32 %v4341, %v4349
    %s4354 = sld [smem:[#allocation6 + $0xbe]]
    %v4355 = vstv %s4354
    %v4356 = vmul.f32 %v1299, %v4355
    %v4357 = vmul.f32 %v1300, %v4355
    %v4360 = vrot.slane %v4356, 3
    %v4361 = vrot.slane %v4357, 3
    %v4364 = vadd.f32 %v4352, %v4360
    %v4365 = vadd.f32 %v4353, %v4361
    %s4366 = sld [smem:[#allocation6 + $0xc6]]
    %v4367 = vstv %s4366
    %v4368 = vmul.f32 %v989, %v4367
    %v4369 = vmul.f32 %v990, %v4367
    %v4370 = vadd.f32 %v4364, %v4368
    %v4371 = vadd.f32 %v4365, %v4369
    %s4372 = sld [smem:[#allocation6 + $0xce]]
    %v4373 = vstv %s4372
    %v4374 = vmul.f32 %v1096, %v4373
    %v4375 = vmul.f32 %v1097, %v4373
    %v4378 = vrot.slane %v4374, 1
    %v4379 = vrot.slane %v4375, 1
    %v4382 = vadd.f32 %v4370, %v4378
    %v4383 = vadd.f32 %v4371, %v4379
    %s4384 = sld [smem:[#allocation6 + $0xd6]]
    %v4385 = vstv %s4384
    %v4386 = vmul.f32 %v1203, %v4385
    %v4387 = vmul.f32 %v1204, %v4385
    %v4390 = vrot.slane %v4386, 2
    %v4391 = vrot.slane %v4387, 2
    %v4394 = vadd.f32 %v4382, %v4390
    %v4395 = vadd.f32 %v4383, %v4391
    %s4396 = sld [smem:[#allocation6 + $0xde]]
    %v4397 = vstv %s4396
    %v4398 = vmul.f32 %v1310, %v4397
    %v4399 = vmul.f32 %v1311, %v4397
    %v4402 = vrot.slane %v4398, 3
    %v4403 = vrot.slane %v4399, 3
    %v4406 = vadd.f32 %v4394, %v4402
    %v4407 = vadd.f32 %v4395, %v4403
    %s4408 = sld [smem:[#allocation6 + $0xe6]]
    %v4409 = vstv %s4408
    %v4410 = vmul.f32 %v1000, %v4409
    %v4411 = vmul.f32 %v1001, %v4409
    %v4412 = vadd.f32 %v4406, %v4410
    %v4413 = vadd.f32 %v4407, %v4411
    %s4414 = sld [smem:[#allocation6 + $0xee]]
    %v4415 = vstv %s4414
    %v4416 = vmul.f32 %v1107, %v4415
    %v4417 = vmul.f32 %v1108, %v4415
    %v4420 = vrot.slane %v4416, 1
    %v4421 = vrot.slane %v4417, 1
    %v4424 = vadd.f32 %v4412, %v4420
    %v4425 = vadd.f32 %v4413, %v4421
    %s4426 = sld [smem:[#allocation6 + $0xf6]]
    %v4427 = vstv %s4426
    %v4428 = vmul.f32 %v1214, %v4427
    %v4429 = vmul.f32 %v1215, %v4427
    %v4432 = vrot.slane %v4428, 2
    %v4433 = vrot.slane %v4429, 2
    %v4436 = vadd.f32 %v4424, %v4432
    %v4437 = vadd.f32 %v4425, %v4433
    %s4438 = sld [smem:[#allocation6 + $0xfe]]
    %v4439 = vstv %s4438
    %v4440 = vmul.f32 %v1321, %v4439
    %v4441 = vmul.f32 %v1322, %v4439
    %v4444 = vrot.slane %v4440, 3
    %v4445 = vrot.slane %v4441, 3
    %v4448 = vadd.f32 %v4436, %v4444
    %v4449 = vadd.f32 %v4437, %v4445
    %s4450 = sld [smem:[#allocation6 + $0x106]]
    %v4451 = vstv %s4450
    %v4452 = vmul.f32 %v1011, %v4451
    %v4453 = vmul.f32 %v1012, %v4451
    %v4454 = vadd.f32 %v4448, %v4452
    %v4455 = vadd.f32 %v4449, %v4453
    %s4456 = sld [smem:[#allocation6 + $0x10e]]
    %v4457 = vstv %s4456
    %v4458 = vmul.f32 %v1118, %v4457
    %v4459 = vmul.f32 %v1119, %v4457
    %v4462 = vrot.slane %v4458, 1
    %v4463 = vrot.slane %v4459, 1
    %v4466 = vadd.f32 %v4454, %v4462
    %v4467 = vadd.f32 %v4455, %v4463
    %s4468 = sld [smem:[#allocation6 + $0x116]]
    %v4469 = vstv %s4468
    %v4470 = vmul.f32 %v1225, %v4469
    %v4471 = vmul.f32 %v1226, %v4469
    %v4474 = vrot.slane %v4470, 2
    %v4475 = vrot.slane %v4471, 2
    %v4478 = vadd.f32 %v4466, %v4474
    %v4479 = vadd.f32 %v4467, %v4475
    %s4480 = sld [smem:[#allocation6 + $0x11e]]
    %v4481 = vstv %s4480
    %v4482 = vmul.f32 %v1332, %v4481
    %v4483 = vmul.f32 %v1333, %v4481
    %v4486 = vrot.slane %v4482, 3
    %v4487 = vrot.slane %v4483, 3
    %v4490 = vadd.f32 %v4478, %v4486
    %v4491 = vadd.f32 %v4479, %v4487
    %s4492 = sld [smem:[#allocation8 + $0x6]]
    %v4493 = vstv %s4492
    %v4494 = vadd.f32 %v4490, %v4493
    %v4495 = vadd.f32 %v4491, %v4493
    %v4496 = vmax.f32 %v4494, 0.0
    %v4497 = vmax.f32 %v4495, 0.0
    %s4498 = sld [smem:[#allocation6 + $0x7]]
    %v4499 = vstv %s4498
    %v4500 = vmul.f32 %v934, %v4499
    %v4501 = vmul.f32 %v935, %v4499
    %s4502 = sld [smem:[#allocation6 + $0xf]]
    %v4503 = vstv %s4502
    %v4504 = vmul.f32 %v1041, %v4503
    %v4505 = vmul.f32 %v1042, %v4503
    %v4508 = vrot.slane %v4504, 1
    %v4509 = vrot.slane %v4505, 1
    %v4512 = vadd.f32 %v4500, %v4508
    %v4513 = vadd.f32 %v4501, %v4509
    %s4514 = sld [smem:[#allocation6 + $0x17]]
    %v4515 = vstv %s4514
    %v4516 = vmul.f32 %v1148, %v4515
    %v4517 = vmul.f32 %v1149, %v4515
    %v4520 = vrot.slane %v4516, 2
    %v4521 = vrot.slane %v4517, 2
    %v4524 = vadd.f32 %v4512, %v4520
    %v4525 = vadd.f32 %v4513, %v4521
    %s4526 = sld [smem:[#allocation6 + $0x1f]]
    %v4527 = vstv %s4526
    %v4528 = vmul.f32 %v1255, %v4527
    %v4529 = vmul.f32 %v1256, %v4527
    %v4532 = vrot.slane %v4528, 3
    %v4533 = vrot.slane %v4529, 3
    %v4536 = vadd.f32 %v4524, %v4532
    %v4537 = vadd.f32 %v4525, %v4533
    %s4538 = sld [smem:[#allocation6 + $0x27]]
    %v4539 = vstv %s4538
    %v4540 = vmul.f32 %v945, %v4539
    %v4541 = vmul.f32 %v946, %v4539
    %v4542 = vadd.f32 %v4536, %v4540
    %v4543 = vadd.f32 %v4537, %v4541
    %s4544 = sld [smem:[#allocation6 + $0x2f]]
    %v4545 = vstv %s4544
    %v4546 = vmul.f32 %v1052, %v4545
    %v4547 = vmul.f32 %v1053, %v4545
    %v4550 = vrot.slane %v4546, 1
    %v4551 = vrot.slane %v4547, 1
    %v4554 = vadd.f32 %v4542, %v4550
    %v4555 = vadd.f32 %v4543, %v4551
    %s4556 = sld [smem:[#allocation6 + $0x37]]
    %v4557 = vstv %s4556
    %v4558 = vmul.f32 %v1159, %v4557
    %v4559 = vmul.f32 %v1160, %v4557
    %v4562 = vrot.slane %v4558, 2
    %v4563 = vrot.slane %v4559, 2
    %v4566 = vadd.f32 %v4554, %v4562
    %v4567 = vadd.f32 %v4555, %v4563
    %s4568 = sld [smem:[#allocation6 + $0x3f]]
    %v4569 = vstv %s4568
    %v4570 = vmul.f32 %v1266, %v4569
    %v4571 = vmul.f32 %v1267, %v4569
    %v4574 = vrot.slane %v4570, 3
    %v4575 = vrot.slane %v4571, 3
    %v4578 = vadd.f32 %v4566, %v4574
    %v4579 = vadd.f32 %v4567, %v4575
    %s4580 = sld [smem:[#allocation6 + $0x47]]
    %v4581 = vstv %s4580
    %v4582 = vmul.f32 %v956, %v4581
    %v4583 = vmul.f32 %v957, %v4581
    %v4584 = vadd.f32 %v4578, %v4582
    %v4585 = vadd.f32 %v4579, %v4583
    %s4586 = sld [smem:[#allocation6 + $0x4f]]
    %v4587 = vstv %s4586
    %v4588 = vmul.f32 %v1063, %v4587
    %v4589 = vmul.f32 %v1064, %v4587
    %v4592 = vrot.slane %v4588, 1
    %v4593 = vrot.slane %v4589, 1
    %v4596 = vadd.f32 %v4584, %v4592
    %v4597 = vadd.f32 %v4585, %v4593
    %s4598 = sld [smem:[#allocation6 + $0x57]]
    %v4599 = vstv %s4598
    %v4600 = vmul.f32 %v1170, %v4599
    %v4601 = vmul.f32 %v1171, %v4599
    %v4604 = vrot.slane %v4600, 2
    %v4605 = vrot.slane %v4601, 2
    %v4608 = vadd.f32 %v4596, %v4604
    %v4609 = vadd.f32 %v4597, %v4605
    %s4610 = sld [smem:[#allocation6 + $0x5f]]
    %v4611 = vstv %s4610
    %v4612 = vmul.f32 %v1277, %v4611
    %v4613 = vmul.f32 %v1278, %v4611
    %v4616 = vrot.slane %v4612, 3
    %v4617 = vrot.slane %v4613, 3
    %v4620 = vadd.f32 %v4608, %v4616
    %v4621 = vadd.f32 %v4609, %v4617
    %s4622 = sld [smem:[#allocation6 + $0x67]]
    %v4623 = vstv %s4622
    %v4624 = vmul.f32 %v967, %v4623
    %v4625 = vmul.f32 %v968, %v4623
    %v4626 = vadd.f32 %v4620, %v4624
    %v4627 = vadd.f32 %v4621, %v4625
    %s4628 = sld [smem:[#allocation6 + $0x6f]]
    %v4629 = vstv %s4628
    %v4630 = vmul.f32 %v1074, %v4629
    %v4631 = vmul.f32 %v1075, %v4629
    %v4634 = vrot.slane %v4630, 1
    %v4635 = vrot.slane %v4631, 1
    %v4638 = vadd.f32 %v4626, %v4634
    %v4639 = vadd.f32 %v4627, %v4635
    %s4640 = sld [smem:[#allocation6 + $0x77]]
    %v4641 = vstv %s4640
    %v4642 = vmul.f32 %v1181, %v4641
    %v4643 = vmul.f32 %v1182, %v4641
    %v4646 = vrot.slane %v4642, 2
    %v4647 = vrot.slane %v4643, 2
    %v4650 = vadd.f32 %v4638, %v4646
    %v4651 = vadd.f32 %v4639, %v4647
    %s4652 = sld [smem:[#allocation6 + $0x7f]]
    %v4653 = vstv %s4652
    %v4654 = vmul.f32 %v1288, %v4653
    %v4655 = vmul.f32 %v1289, %v4653
    %v4658 = vrot.slane %v4654, 3
    %v4659 = vrot.slane %v4655, 3
    %v4662 = vadd.f32 %v4650, %v4658
    %v4663 = vadd.f32 %v4651, %v4659
    %s4664 = sld [smem:[#allocation6 + $0x87]]
    %v4665 = vstv %s4664
    %v4666 = vmul.f32 %v156, %v4665
    %v4667 = vmul.f32 %v157, %v4665
    %v4670 = vlaneseq
    %v4671 = vshrl.u32 %v4670, 7
    %v4672 = vsub.s32 0, %v4671
    %v4673 = vrot.slane %v4666, %v4672
    %v4674 = vlaneseq
    %v4675 = vshrl.u32 %v4674, 7
    %v4676 = vsub.s32 4, %v4675
    %v4677 = vrot.slane %v4666, %v4676
    %v4678 = vlaneseq
    %v4679 = vshrl.u32 %v4678, 7
    %v4680 = vsub.s32 0, %v4679
    %v4681 = vrot.slane %v4667, %v4680
    %v4682 = vlaneseq
    %v4683 = vshrl.u32 %v4682, 7
    %v4684 = vsub.s32 4, %v4683
    %v4685 = vrot.slane %v4667, %v4684
    %v4686 = vsel %vm214, %v4681, %v4673
    %v4687 = vsel %vm214, %v4685, %v4677
    %v4690 = vadd.f32 %v4662, %v4686
    %v4691 = vadd.f32 %v4663, %v4687
    %s4692 = sld [smem:[#allocation6 + $0x8f]]
    %v4693 = vstv %s4692
    %v4694 = vmul.f32 %v156, %v4693
    %v4695 = vmul.f32 %v157, %v4693
    %v4698 = vlaneseq
    %v4699 = vshrl.u32 %v4698, 7
    %v4700 = vsub.s32 1, %v4699
    %v4701 = vrot.slane %v4694, %v4700
    %v4702 = vlaneseq
    %v4703 = vshrl.u32 %v4702, 7
    %v4704 = vsub.s32 5, %v4703
    %v4705 = vrot.slane %v4694, %v4704
    %v4706 = vlaneseq
    %v4707 = vshrl.u32 %v4706, 7
    %v4708 = vsub.s32 1, %v4707
    %v4709 = vrot.slane %v4695, %v4708
    %v4710 = vlaneseq
    %v4711 = vshrl.u32 %v4710, 7
    %v4712 = vsub.s32 5, %v4711
    %v4713 = vrot.slane %v4695, %v4712
    %v4714 = vsel %vm214, %v4709, %v4701
    %v4715 = vsel %vm214, %v4713, %v4705
    %v4718 = vadd.f32 %v4690, %v4714
    %v4719 = vadd.f32 %v4691, %v4715
    %s4720 = sld [smem:[#allocation6 + $0x97]]
    %v4721 = vstv %s4720
    %v4722 = vmul.f32 %v156, %v4721
    %v4723 = vmul.f32 %v157, %v4721
    %v4726 = vlaneseq
    %v4727 = vshrl.u32 %v4726, 7
    %v4728 = vsub.s32 2, %v4727
    %v4729 = vrot.slane %v4722, %v4728
    %v4730 = vlaneseq
    %v4731 = vshrl.u32 %v4730, 7
    %v4732 = vsub.s32 6, %v4731
    %v4733 = vrot.slane %v4722, %v4732
    %v4734 = vlaneseq
    %v4735 = vshrl.u32 %v4734, 7
    %v4736 = vsub.s32 2, %v4735
    %v4737 = vrot.slane %v4723, %v4736
    %v4738 = vlaneseq
    %v4739 = vshrl.u32 %v4738, 7
    %v4740 = vsub.s32 6, %v4739
    %v4741 = vrot.slane %v4723, %v4740
    %v4742 = vsel %vm214, %v4737, %v4729
    %v4743 = vsel %vm214, %v4741, %v4733
    %v4746 = vadd.f32 %v4718, %v4742
    %v4747 = vadd.f32 %v4719, %v4743
    %s4748 = sld [smem:[#allocation6 + $0x9f]]
    %v4749 = vstv %s4748
    %v4750 = vmul.f32 %v156, %v4749
    %v4751 = vmul.f32 %v157, %v4749
    %v4754 = vlaneseq
    %v4755 = vshrl.u32 %v4754, 7
    %v4756 = vsub.s32 3, %v4755
    %v4757 = vrot.slane %v4750, %v4756
    %v4758 = vlaneseq
    %v4759 = vshrl.u32 %v4758, 7
    %v4760 = vsub.s32 7, %v4759
    %v4761 = vrot.slane %v4750, %v4760
    %v4762 = vlaneseq
    %v4763 = vshrl.u32 %v4762, 7
    %v4764 = vsub.s32 3, %v4763
    %v4765 = vrot.slane %v4751, %v4764
    %v4766 = vlaneseq
    %v4767 = vshrl.u32 %v4766, 7
    %v4768 = vsub.s32 7, %v4767
    %v4769 = vrot.slane %v4751, %v4768
    %v4770 = vsel %vm214, %v4765, %v4757
    %v4771 = vsel %vm214, %v4769, %v4761
    %v4774 = vadd.f32 %v4746, %v4770
    %v4775 = vadd.f32 %v4747, %v4771
    %s4776 = sld [smem:[#allocation6 + $0xa7]]
    %v4777 = vstv %s4776
    %v4778 = vmul.f32 %v978, %v4777
    %v4779 = vmul.f32 %v979, %v4777
    %v4780 = vadd.f32 %v4774, %v4778
    %v4781 = vadd.f32 %v4775, %v4779
    %s4782 = sld [smem:[#allocation6 + $0xaf]]
    %v4783 = vstv %s4782
    %v4784 = vmul.f32 %v1085, %v4783
    %v4785 = vmul.f32 %v1086, %v4783
    %v4788 = vrot.slane %v4784, 1
    %v4789 = vrot.slane %v4785, 1
    %v4792 = vadd.f32 %v4780, %v4788
    %v4793 = vadd.f32 %v4781, %v4789
    %s4794 = sld [smem:[#allocation6 + $0xb7]]
    %v4795 = vstv %s4794
    %v4796 = vmul.f32 %v1192, %v4795
    %v4797 = vmul.f32 %v1193, %v4795
    %v4800 = vrot.slane %v4796, 2
    %v4801 = vrot.slane %v4797, 2
    %v4804 = vadd.f32 %v4792, %v4800
    %v4805 = vadd.f32 %v4793, %v4801
    %s4806 = sld [smem:[#allocation6 + $0xbf]]
    %v4807 = vstv %s4806
    %v4808 = vmul.f32 %v1299, %v4807
    %v4809 = vmul.f32 %v1300, %v4807
    %v4812 = vrot.slane %v4808, 3
    %v4813 = vrot.slane %v4809, 3
    %v4816 = vadd.f32 %v4804, %v4812
    %v4817 = vadd.f32 %v4805, %v4813
    %s4818 = sld [smem:[#allocation6 + $0xc7]]
    %v4819 = vstv %s4818
    %v4820 = vmul.f32 %v989, %v4819
    %v4821 = vmul.f32 %v990, %v4819
    %v4822 = vadd.f32 %v4816, %v4820
    %v4823 = vadd.f32 %v4817, %v4821
    %s4824 = sld [smem:[#allocation6 + $0xcf]]
    %v4825 = vstv %s4824
    %v4826 = vmul.f32 %v1096, %v4825
    %v4827 = vmul.f32 %v1097, %v4825
    %v4830 = vrot.slane %v4826, 1
    %v4831 = vrot.slane %v4827, 1
    %v4834 = vadd.f32 %v4822, %v4830
    %v4835 = vadd.f32 %v4823, %v4831
    %s4836 = sld [smem:[#allocation6 + $0xd7]]
    %v4837 = vstv %s4836
    %v4838 = vmul.f32 %v1203, %v4837
    %v4839 = vmul.f32 %v1204, %v4837
    %v4842 = vrot.slane %v4838, 2
    %v4843 = vrot.slane %v4839, 2
    %v4846 = vadd.f32 %v4834, %v4842
    %v4847 = vadd.f32 %v4835, %v4843
    %s4848 = sld [smem:[#allocation6 + $0xdf]]
    %v4849 = vstv %s4848
    %v4850 = vmul.f32 %v1310, %v4849
    %v4851 = vmul.f32 %v1311, %v4849
    %v4854 = vrot.slane %v4850, 3
    %v4855 = vrot.slane %v4851, 3
    %v4858 = vadd.f32 %v4846, %v4854
    %v4859 = vadd.f32 %v4847, %v4855
    %s4860 = sld [smem:[#allocation6 + $0xe7]]
    %v4861 = vstv %s4860
    %v4862 = vmul.f32 %v1000, %v4861
    %v4863 = vmul.f32 %v1001, %v4861
    %v4864 = vadd.f32 %v4858, %v4862
    %v4865 = vadd.f32 %v4859, %v4863
    %s4866 = sld [smem:[#allocation6 + $0xef]]
    %v4867 = vstv %s4866
    %v4868 = vmul.f32 %v1107, %v4867
    %v4869 = vmul.f32 %v1108, %v4867
    %v4872 = vrot.slane %v4868, 1
    %v4873 = vrot.slane %v4869, 1
    %v4876 = vadd.f32 %v4864, %v4872
    %v4877 = vadd.f32 %v4865, %v4873
    %s4878 = sld [smem:[#allocation6 + $0xf7]]
    %v4879 = vstv %s4878
    %v4880 = vmul.f32 %v1214, %v4879
    %v4881 = vmul.f32 %v1215, %v4879
    %v4884 = vrot.slane %v4880, 2
    %v4885 = vrot.slane %v4881, 2
    %v4888 = vadd.f32 %v4876, %v4884
    %v4889 = vadd.f32 %v4877, %v4885
    %s4890 = sld [smem:[#allocation6 + $0xff]]
    %v4891 = vstv %s4890
    %v4892 = vmul.f32 %v1321, %v4891
    %v4893 = vmul.f32 %v1322, %v4891
    %v4896 = vrot.slane %v4892, 3
    %v4897 = vrot.slane %v4893, 3
    %v4900 = vadd.f32 %v4888, %v4896
    %v4901 = vadd.f32 %v4889, %v4897
    %s4902 = sld [smem:[#allocation6 + $0x107]]
    %v4903 = vstv %s4902
    %v4904 = vmul.f32 %v1011, %v4903
    %v4905 = vmul.f32 %v1012, %v4903
    %v4906 = vadd.f32 %v4900, %v4904
    %v4907 = vadd.f32 %v4901, %v4905
    %s4908 = sld [smem:[#allocation6 + $0x10f]]
    %v4909 = vstv %s4908
    %v4910 = vmul.f32 %v1118, %v4909
    %v4911 = vmul.f32 %v1119, %v4909
    %v4914 = vrot.slane %v4910, 1
    %v4915 = vrot.slane %v4911, 1
    %v4918 = vadd.f32 %v4906, %v4914
    %v4919 = vadd.f32 %v4907, %v4915
    %s4920 = sld [smem:[#allocation6 + $0x117]]
    %v4921 = vstv %s4920
    %v4922 = vmul.f32 %v1225, %v4921
    %v4923 = vmul.f32 %v1226, %v4921
    %v4926 = vrot.slane %v4922, 2
    %v4927 = vrot.slane %v4923, 2
    %v4930 = vadd.f32 %v4918, %v4926
    %v4931 = vadd.f32 %v4919, %v4927
    %s4932 = sld [smem:[#allocation6 + $0x11f]]
    %v4933 = vstv %s4932
    %v4934 = vmul.f32 %v1332, %v4933
    %v4935 = vmul.f32 %v1333, %v4933
    %v4938 = vrot.slane %v4934, 3
    %v4939 = vrot.slane %v4935, 3
    %v4942 = vadd.f32 %v4930, %v4938
    %v4943 = vadd.f32 %v4931, %v4939
    %s4944 = sld [smem:[#allocation8 + $0x7]]
    %v4945 = vstv %s4944
    %v4946 = vadd.f32 %v4942, %v4945
    %v4947 = vadd.f32 %v4943, %v4945
    %v4948 = vmax.f32 %v4946, 0.0
    %v4949 = vmax.f32 %v4947, 0.0
    %v4950 = vld [vmem:[%s2] sm:$0x3]
    %4952 = vset.pattern.permute.xlu0 0
    %4953 = vperm.xlu0 %4952, %v4950
    %v4954 = vpop.permute.xlu0 %4953
    %v4956 = vmul.f32 %v1784, %v4954
    %v4957 = vmul.f32 %v1785, %v4954
    %4958 = vset.pattern.permute.xlu0 1
    %4959 = vperm.xlu0 %4958, %v4950
    %v4960 = vpop.permute.xlu0 %4959
    %v4962 = vmul.f32 %v2236, %v4960
    %v4963 = vmul.f32 %v2237, %v4960
    %v4964 = vadd.f32 %v4956, %v4962
    %v4965 = vadd.f32 %v4957, %v4963
    %4966 = vset.pattern.permute.xlu0 2
    %4967 = vperm.xlu0 %4966, %v4950
    %v4968 = vpop.permute.xlu0 %4967
    %v4970 = vmul.f32 %v2688, %v4968
    %v4971 = vmul.f32 %v2689, %v4968
    %v4972 = vadd.f32 %v4964, %v4970
    %v4973 = vadd.f32 %v4965, %v4971
    %4974 = vset.pattern.permute.xlu0 3
    %4975 = vperm.xlu0 %4974, %v4950
    %v4976 = vpop.permute.xlu0 %4975
    %v4978 = vmul.f32 %v3140, %v4976
    %v4979 = vmul.f32 %v3141, %v4976
    %v4980 = vadd.f32 %v4972, %v4978
    %v4981 = vadd.f32 %v4973, %v4979
    %4982 = vset.pattern.permute.xlu0 4
    %4983 = vperm.xlu0 %4982, %v4950
    %v4984 = vpop.permute.xlu0 %4983
    %v4986 = vmul.f32 %v3592, %v4984
    %v4987 = vmul.f32 %v3593, %v4984
    %v4988 = vadd.f32 %v4980, %v4986
    %v4989 = vadd.f32 %v4981, %v4987
    %4990 = vset.pattern.permute.xlu0 5
    %4991 = vperm.xlu0 %4990, %v4950
    %v4992 = vpop.permute.xlu0 %4991
    %v4994 = vmul.f32 %v4044, %v4992
    %v4995 = vmul.f32 %v4045, %v4992
    %v4996 = vadd.f32 %v4988, %v4994
    %v4997 = vadd.f32 %v4989, %v4995
    %4998 = vset.pattern.permute.xlu0 6
    %4999 = vperm.xlu0 %4998, %v4950
    %v5000 = vpop.permute.xlu0 %4999
    %v5002 = vmul.f32 %v4496, %v5000
    %v5003 = vmul.f32 %v4497, %v5000
    %v5004 = vadd.f32 %v4996, %v5002
    %v5005 = vadd.f32 %v4997, %v5003
    %5006 = vset.pattern.permute.xlu0 7
    %5007 = vperm.xlu0 %5006, %v4950
    %v5008 = vpop.permute.xlu0 %5007
    %v5010 = vmul.f32 %v4948, %v5008
    %v5011 = vmul.f32 %v4949, %v5008
    %v5012 = vadd.f32 %v5004, %v5010
    %v5013 = vadd.f32 %v5005, %v5011
    %5015 = vrot.lane.b32.xlu0 %v904, 17
    %v5016 = vpop.permute.xlu0 %5015
    %5019 = vrot.lane.b32.xlu0 %v903, 17
    %v5020 = vpop.permute.xlu0 %5019
    %v5021 = vsel %vm230, %v5020, %v5016
    %v5024 = vsel %vm230, %v5016, %v5020
    %v5025 = vsel %vm237, %v5024, 0.0
    %v5026 = vsel %vm238, %v5021, 0.0
    %5027 = vrot.lane.b32.xlu0 %v904, 16
    %v5028 = vpop.permute.xlu0 %5027
    %5030 = vrot.lane.b32.xlu0 %v903, 16
    %v5031 = vpop.permute.xlu0 %5030
    %v5032 = vsel %vm312, %v5031, %v5028
    %v5035 = vsel %vm312, %v5028, %v5031
    %v5036 = vsel %vm319, %v5035, 0.0
    %v5037 = vsel %vm320, %v5032, 0.0
    %5038 = vrot.lane.b32.xlu0 %v904, 15
    %v5039 = vpop.permute.xlu0 %5038
    %5041 = vrot.lane.b32.xlu0 %v903, 15
    %v5042 = vpop.permute.xlu0 %5041
    %v5043 = vsel %vm396, %v5042, %v5039
    %v5046 = vsel %vm396, %v5039, %v5042
    %v5047 = vsel %vm403, %v5046, 0.0
    %v5048 = vsel %vm404, %v5043, 0.0
    %5049 = vrot.lane.b32.xlu0 %v904, 1
    %v5050 = vpop.permute.xlu0 %5049
    %5052 = vrot.lane.b32.xlu0 %v903, 1
    %v5053 = vpop.permute.xlu0 %5052
    %v5054 = vsel %vm480, %v5053, %v5050
    %v5057 = vsel %vm480, %v5050, %v5053
    %v5058 = vsel %vm487, %v5057, 0.0
    %v5059 = vsel %vm488, %v5054, 0.0
    %5060 = vrot.lane.b32.xlu0 %v903, 127
    %v5061 = vpop.permute.xlu0 %5060
    %5062 = vrot.lane.b32.xlu0 %v904, 127
    %v5063 = vpop.permute.xlu0 %5062
    %v5064 = vsel %vm633, %v5061, %v5063
    %v5068 = vsel %vm633, %v5063, %v5061
    %v5069 = vsel %vm641, %v5064, 0.0
    %v5070 = vsel %vm642, %v5068, 0.0
    %5071 = vrot.lane.b32.xlu0 %v903, 113
    %v5072 = vpop.permute.xlu0 %5071
    %5073 = vrot.lane.b32.xlu0 %v904, 113
    %v5074 = vpop.permute.xlu0 %5073
    %v5075 = vsel %vm717, %v5072, %v5074
    %v5079 = vsel %vm717, %v5074, %v5072
    %v5080 = vsel %vm725, %v5075, 0.0
    %v5081 = vsel %vm726, %v5079, 0.0
    %5082 = vrot.lane.b32.xlu0 %v903, 112
    %v5083 = vpop.permute.xlu0 %5082
    %5084 = vrot.lane.b32.xlu0 %v904, 112
    %v5085 = vpop.permute.xlu0 %5084
    %v5086 = vsel %vm801, %v5083, %v5085
    %v5090 = vsel %vm801, %v5085, %v5083
    %v5091 = vsel %vm809, %v5086, 0.0
    %v5092 = vsel %vm810, %v5090, 0.0
    %5093 = vrot.lane.b32.xlu0 %v903, 111
    %v5094 = vpop.permute.xlu0 %5093
    %5095 = vrot.lane.b32.xlu0 %v904, 111
    %v5096 = vpop.permute.xlu0 %5095
    %v5097 = vsel %vm885, %v5094, %v5096
    %v5101 = vsel %vm885, %v5096, %v5094
    %v5102 = vsel %vm893, %v5097, 0.0
    %v5103 = vsel %vm894, %v5101, 0.0
    %5105 = vrot.lane.b32.xlu0 %v5013, 17
    %v5106 = vpop.permute.xlu0 %5105
    %5109 = vrot.lane.b32.xlu0 %v5012, 17
    %v5110 = vpop.permute.xlu0 %5109
    %v5111 = vsel %vm230, %v5110, %v5106
    %v5114 = vsel %vm230, %v5106, %v5110
    %v5115 = vsel %vm237, %v5114, 0.0
    %v5116 = vsel %vm238, %v5111, 0.0
    %5117 = vrot.lane.b32.xlu0 %v5013, 16
    %v5118 = vpop.permute.xlu0 %5117
    %5120 = vrot.lane.b32.xlu0 %v5012, 16
    %v5121 = vpop.permute.xlu0 %5120
    %v5122 = vsel %vm312, %v5121, %v5118
    %v5125 = vsel %vm312, %v5118, %v5121
    %v5126 = vsel %vm319, %v5125, 0.0
    %v5127 = vsel %vm320, %v5122, 0.0
    %5128 = vrot.lane.b32.xlu0 %v5013, 15
    %v5129 = vpop.permute.xlu0 %5128
    %5131 = vrot.lane.b32.xlu0 %v5012, 15
    %v5132 = vpop.permute.xlu0 %5131
    %v5133 = vsel %vm396, %v5132, %v5129
    %v5136 = vsel %vm396, %v5129, %v5132
    %v5137 = vsel %vm403, %v5136, 0.0
    %v5138 = vsel %vm404, %v5133, 0.0
    %5139 = vrot.lane.b32.xlu0 %v5013, 1
    %v5140 = vpop.permute.xlu0 %5139
    %5142 = vrot.lane.b32.xlu0 %v5012, 1
    %v5143 = vpop.permute.xlu0 %5142
    %v5144 = vsel %vm480, %v5143, %v5140
    %v5147 = vsel %vm480, %v5140, %v5143
    %v5148 = vsel %vm487, %v5147, 0.0
    %v5149 = vsel %vm488, %v5144, 0.0
    %5150 = vrot.lane.b32.xlu0 %v5012, 127
    %v5151 = vpop.permute.xlu0 %5150
    %5152 = vrot.lane.b32.xlu0 %v5013, 127
    %v5153 = vpop.permute.xlu0 %5152
    %v5154 = vsel %vm633, %v5151, %v5153
    %v5158 = vsel %vm633, %v5153, %v5151
    %v5159 = vsel %vm641, %v5154, 0.0
    %v5160 = vsel %vm642, %v5158, 0.0
    %5161 = vrot.lane.b32.xlu0 %v5012, 113
    %v5162 = vpop.permute.xlu0 %5161
    %5163 = vrot.lane.b32.xlu0 %v5013, 113
    %v5164 = vpop.permute.xlu0 %5163
    %v5165 = vsel %vm717, %v5162, %v5164
    %v5169 = vsel %vm717, %v5164, %v5162
    %v5170 = vsel %vm725, %v5165, 0.0
    %v5171 = vsel %vm726, %v5169, 0.0
    %5172 = vrot.lane.b32.xlu0 %v5012, 112
    %v5173 = vpop.permute.xlu0 %5172
    %5174 = vrot.lane.b32.xlu0 %v5013, 112
    %v5175 = vpop.permute.xlu0 %5174
    %v5176 = vsel %vm801, %v5173, %v5175
    %v5180 = vsel %vm801, %v5175, %v5173
    %v5181 = vsel %vm809, %v5176, 0.0
    %v5182 = vsel %vm810, %v5180, 0.0
    %5183 = vrot.lane.b32.xlu0 %v5012, 111
    %v5184 = vpop.permute.xlu0 %5183
    %5185 = vrot.lane.b32.xlu0 %v5013, 111
    %v5186 = vpop.permute.xlu0 %5185
    %v5187 = vsel %vm885, %v5184, %v5186
    %v5191 = vsel %vm885, %v5186, %v5184
    %v5192 = vsel %vm893, %v5187, 0.0
    %v5193 = vsel %vm894, %v5191, 0.0
    %s5194 = sld [smem:[#allocation9]]
    %v5195 = vstv %s5194
    %v5196 = vmul.f32 %v5025, %v5195
    %v5197 = vmul.f32 %v5026, %v5195
    %s5198 = sld [smem:[#allocation9 + $0x8]]
    %v5199 = vstv %s5198
    %v5200 = vmul.f32 %v5115, %v5199
    %v5201 = vmul.f32 %v5116, %v5199
    %v5202 = vadd.f32 %v5196, %v5200
    %v5203 = vadd.f32 %v5197, %v5201
    %s5204 = sld [smem:[#allocation9 + $0x10]]
    %v5205 = vstv %s5204
    %v5206 = vmul.f32 %v5036, %v5205
    %v5207 = vmul.f32 %v5037, %v5205
    %v5208 = vadd.f32 %v5202, %v5206
    %v5209 = vadd.f32 %v5203, %v5207
    %s5210 = sld [smem:[#allocation9 + $0x18]]
    %v5211 = vstv %s5210
    %v5212 = vmul.f32 %v5126, %v5211
    %v5213 = vmul.f32 %v5127, %v5211
    %v5214 = vadd.f32 %v5208, %v5212
    %v5215 = vadd.f32 %v5209, %v5213
    %s5216 = sld [smem:[#allocation9 + $0x20]]
    %v5217 = vstv %s5216
    %v5218 = vmul.f32 %v5047, %v5217
    %v5219 = vmul.f32 %v5048, %v5217
    %v5220 = vadd.f32 %v5214, %v5218
    %v5221 = vadd.f32 %v5215, %v5219
    %s5222 = sld [smem:[#allocation9 + $0x28]]
    %v5223 = vstv %s5222
    %v5224 = vmul.f32 %v5137, %v5223
    %v5225 = vmul.f32 %v5138, %v5223
    %v5226 = vadd.f32 %v5220, %v5224
    %v5227 = vadd.f32 %v5221, %v5225
    %s5228 = sld [smem:[#allocation9 + $0x30]]
    %v5229 = vstv %s5228
    %v5230 = vmul.f32 %v5058, %v5229
    %v5231 = vmul.f32 %v5059, %v5229
    %v5232 = vadd.f32 %v5226, %v5230
    %v5233 = vadd.f32 %v5227, %v5231
    %s5234 = sld [smem:[#allocation9 + $0x38]]
    %v5235 = vstv %s5234
    %v5236 = vmul.f32 %v5148, %v5235
    %v5237 = vmul.f32 %v5149, %v5235
    %v5238 = vadd.f32 %v5232, %v5236
    %v5239 = vadd.f32 %v5233, %v5237
    %s5240 = sld [smem:[#allocation9 + $0x40]]
    %v5241 = vstv %s5240
    %v5242 = vmul.f32 %v903, %v5241
    %v5243 = vmul.f32 %v904, %v5241
    %v5244 = vadd.f32 %v5238, %v5242
    %v5245 = vadd.f32 %v5239, %v5243
    %s5246 = sld [smem:[#allocation9 + $0x48]]
    %v5247 = vstv %s5246
    %v5248 = vmul.f32 %v5012, %v5247
    %v5249 = vmul.f32 %v5013, %v5247
    %v5250 = vadd.f32 %v5244, %v5248
    %v5251 = vadd.f32 %v5245, %v5249
    %s5252 = sld [smem:[#allocation9 + $0x50]]
    %v5253 = vstv %s5252
    %v5254 = vmul.f32 %v5069, %v5253
    %v5255 = vmul.f32 %v5070, %v5253
    %v5256 = vadd.f32 %v5250, %v5254
    %v5257 = vadd.f32 %v5251, %v5255
    %s5258 = sld [smem:[#allocation9 + $0x58]]
    %v5259 = vstv %s5258
    %v5260 = vmul.f32 %v5159, %v5259
    %v5261 = vmul.f32 %v5160, %v5259
    %v5262 = vadd.f32 %v5256, %v5260
    %v5263 = vadd.f32 %v5257, %v5261
    %s5264 = sld [smem:[#allocation9 + $0x60]]
    %v5265 = vstv %s5264
    %v5266 = vmul.f32 %v5080, %v5265
    %v5267 = vmul.f32 %v5081, %v5265
    %v5268 = vadd.f32 %v5262, %v5266
    %v5269 = vadd.f32 %v5263, %v5267
    %s5270 = sld [smem:[#allocation9 + $0x68]]
    %v5271 = vstv %s5270
    %v5272 = vmul.f32 %v5170, %v5271
    %v5273 = vmul.f32 %v5171, %v5271
    %v5274 = vadd.f32 %v5268, %v5272
    %v5275 = vadd.f32 %v5269, %v5273
    %s5276 = sld [smem:[#allocation9 + $0x70]]
    %v5277 = vstv %s5276
    %v5278 = vmul.f32 %v5091, %v5277
    %v5279 = vmul.f32 %v5092, %v5277
    %v5280 = vadd.f32 %v5274, %v5278
    %v5281 = vadd.f32 %v5275, %v5279
    %s5282 = sld [smem:[#allocation9 + $0x78]]
    %v5283 = vstv %s5282
    %v5284 = vmul.f32 %v5181, %v5283
    %v5285 = vmul.f32 %v5182, %v5283
    %v5286 = vadd.f32 %v5280, %v5284
    %v5287 = vadd.f32 %v5281, %v5285
    %s5288 = sld [smem:[#allocation9 + $0x80]]
    %v5289 = vstv %s5288
    %v5290 = vmul.f32 %v5102, %v5289
    %v5291 = vmul.f32 %v5103, %v5289
    %v5292 = vadd.f32 %v5286, %v5290
    %v5293 = vadd.f32 %v5287, %v5291
    %s5294 = sld [smem:[#allocation9 + $0x88]]
    %v5295 = vstv %s5294
    %v5296 = vmul.f32 %v5192, %v5295
    %v5297 = vmul.f32 %v5193, %v5295
    %v5298 = vadd.f32 %v5292, %v5296
    %v5299 = vadd.f32 %v5293, %v5297
    %s5300 = sld [smem:[#allocation11]]
    %v5301 = vstv %s5300
    %v5302 = vadd.f32 %v5298, %v5301
    %v5303 = vadd.f32 %v5299, %v5301
    %v5304 = vmax.f32 %v5302, 0.0
    %v5305 = vmax.f32 %v5303, 0.0
    %s5306 = sld [smem:[#allocation9 + $0x1]]
    %v5307 = vstv %s5306
    %v5308 = vmul.f32 %v5025, %v5307
    %v5309 = vmul.f32 %v5026, %v5307
    %s5310 = sld [smem:[#allocation9 + $0x9]]
    %v5311 = vstv %s5310
    %v5312 = vmul.f32 %v5115, %v5311
    %v5313 = vmul.f32 %v5116, %v5311
    %v5314 = vadd.f32 %v5308, %v5312
    %v5315 = vadd.f32 %v5309, %v5313
    %s5316 = sld [smem:[#allocation9 + $0x11]]
    %v5317 = vstv %s5316
    %v5318 = vmul.f32 %v5036, %v5317
    %v5319 = vmul.f32 %v5037, %v5317
    %v5320 = vadd.f32 %v5314, %v5318
    %v5321 = vadd.f32 %v5315, %v5319
    %s5322 = sld [smem:[#allocation9 + $0x19]]
    %v5323 = vstv %s5322
    %v5324 = vmul.f32 %v5126, %v5323
    %v5325 = vmul.f32 %v5127, %v5323
    %v5326 = vadd.f32 %v5320, %v5324
    %v5327 = vadd.f32 %v5321, %v5325
    %s5328 = sld [smem:[#allocation9 + $0x21]]
    %v5329 = vstv %s5328
    %v5330 = vmul.f32 %v5047, %v5329
    %v5331 = vmul.f32 %v5048, %v5329
    %v5332 = vadd.f32 %v5326, %v5330
    %v5333 = vadd.f32 %v5327, %v5331
    %s5334 = sld [smem:[#allocation9 + $0x29]]
    %v5335 = vstv %s5334
    %v5336 = vmul.f32 %v5137, %v5335
    %v5337 = vmul.f32 %v5138, %v5335
    %v5338 = vadd.f32 %v5332, %v5336
    %v5339 = vadd.f32 %v5333, %v5337
    %s5340 = sld [smem:[#allocation9 + $0x31]]
    %v5341 = vstv %s5340
    %v5342 = vmul.f32 %v5058, %v5341
    %v5343 = vmul.f32 %v5059, %v5341
    %v5344 = vadd.f32 %v5338, %v5342
    %v5345 = vadd.f32 %v5339, %v5343
    %s5346 = sld [smem:[#allocation9 + $0x39]]
    %v5347 = vstv %s5346
    %v5348 = vmul.f32 %v5148, %v5347
    %v5349 = vmul.f32 %v5149, %v5347
    %v5350 = vadd.f32 %v5344, %v5348
    %v5351 = vadd.f32 %v5345, %v5349
    %s5352 = sld [smem:[#allocation9 + $0x41]]
    %v5353 = vstv %s5352
    %v5354 = vmul.f32 %v903, %v5353
    %v5355 = vmul.f32 %v904, %v5353
    %v5356 = vadd.f32 %v5350, %v5354
    %v5357 = vadd.f32 %v5351, %v5355
    %s5358 = sld [smem:[#allocation9 + $0x49]]
    %v5359 = vstv %s5358
    %v5360 = vmul.f32 %v5012, %v5359
    %v5361 = vmul.f32 %v5013, %v5359
    %v5362 = vadd.f32 %v5356, %v5360
    %v5363 = vadd.f32 %v5357, %v5361
    %s5364 = sld [smem:[#allocation9 + $0x51]]
    %v5365 = vstv %s5364
    %v5366 = vmul.f32 %v5069, %v5365
    %v5367 = vmul.f32 %v5070, %v5365
    %v5368 = vadd.f32 %v5362, %v5366
    %v5369 = vadd.f32 %v5363, %v5367
    %s5370 = sld [smem:[#allocation9 + $0x59]]
    %v5371 = vstv %s5370
    %v5372 = vmul.f32 %v5159, %v5371
    %v5373 = vmul.f32 %v5160, %v5371
    %v5374 = vadd.f32 %v5368, %v5372
    %v5375 = vadd.f32 %v5369, %v5373
    %s5376 = sld [smem:[#allocation9 + $0x61]]
    %v5377 = vstv %s5376
    %v5378 = vmul.f32 %v5080, %v5377
    %v5379 = vmul.f32 %v5081, %v5377
    %v5380 = vadd.f32 %v5374, %v5378
    %v5381 = vadd.f32 %v5375, %v5379
    %s5382 = sld [smem:[#allocation9 + $0x69]]
    %v5383 = vstv %s5382
    %v5384 = vmul.f32 %v5170, %v5383
    %v5385 = vmul.f32 %v5171, %v5383
    %v5386 = vadd.f32 %v5380, %v5384
    %v5387 = vadd.f32 %v5381, %v5385
    %s5388 = sld [smem:[#allocation9 + $0x71]]
    %v5389 = vstv %s5388
    %v5390 = vmul.f32 %v5091, %v5389
    %v5391 = vmul.f32 %v5092, %v5389
    %v5392 = vadd.f32 %v5386, %v5390
    %v5393 = vadd.f32 %v5387, %v5391
    %s5394 = sld [smem:[#allocation9 + $0x79]]
    %v5395 = vstv %s5394
    %v5396 = vmul.f32 %v5181, %v5395
    %v5397 = vmul.f32 %v5182, %v5395
    %v5398 = vadd.f32 %v5392, %v5396
    %v5399 = vadd.f32 %v5393, %v5397
    %s5400 = sld [smem:[#allocation9 + $0x81]]
    %v5401 = vstv %s5400
    %v5402 = vmul.f32 %v5102, %v5401
    %v5403 = vmul.f32 %v5103, %v5401
    %v5404 = vadd.f32 %v5398, %v5402
    %v5405 = vadd.f32 %v5399, %v5403
    %s5406 = sld [smem:[#allocation9 + $0x89]]
    %v5407 = vstv %s5406
    %v5408 = vmul.f32 %v5192, %v5407
    %v5409 = vmul.f32 %v5193, %v5407
    %v5410 = vadd.f32 %v5404, %v5408
    %v5411 = vadd.f32 %v5405, %v5409
    %s5412 = sld [smem:[#allocation11 + $0x1]]
    %v5413 = vstv %s5412
    %v5414 = vadd.f32 %v5410, %v5413
    %v5415 = vadd.f32 %v5411, %v5413
    %v5416 = vmax.f32 %v5414, 0.0
    %v5417 = vmax.f32 %v5415, 0.0
    %s5418 = sld [smem:[#allocation9 + $0x2]]
    %v5419 = vstv %s5418
    %v5420 = vmul.f32 %v5025, %v5419
    %v5421 = vmul.f32 %v5026, %v5419
    %s5422 = sld [smem:[#allocation9 + $0xa]]
    %v5423 = vstv %s5422
    %v5424 = vmul.f32 %v5115, %v5423
    %v5425 = vmul.f32 %v5116, %v5423
    %v5426 = vadd.f32 %v5420, %v5424
    %v5427 = vadd.f32 %v5421, %v5425
    %s5428 = sld [smem:[#allocation9 + $0x12]]
    %v5429 = vstv %s5428
    %v5430 = vmul.f32 %v5036, %v5429
    %v5431 = vmul.f32 %v5037, %v5429
    %v5432 = vadd.f32 %v5426, %v5430
    %v5433 = vadd.f32 %v5427, %v5431
    %s5434 = sld [smem:[#allocation9 + $0x1a]]
    %v5435 = vstv %s5434
    %v5436 = vmul.f32 %v5126, %v5435
    %v5437 = vmul.f32 %v5127, %v5435
    %v5438 = vadd.f32 %v5432, %v5436
    %v5439 = vadd.f32 %v5433, %v5437
    %s5440 = sld [smem:[#allocation9 + $0x22]]
    %v5441 = vstv %s5440
    %v5442 = vmul.f32 %v5047, %v5441
    %v5443 = vmul.f32 %v5048, %v5441
    %v5444 = vadd.f32 %v5438, %v5442
    %v5445 = vadd.f32 %v5439, %v5443
    %s5446 = sld [smem:[#allocation9 + $0x2a]]
    %v5447 = vstv %s5446
    %v5448 = vmul.f32 %v5137, %v5447
    %v5449 = vmul.f32 %v5138, %v5447
    %v5450 = vadd.f32 %v5444, %v5448
    %v5451 = vadd.f32 %v5445, %v5449
    %s5452 = sld [smem:[#allocation9 + $0x32]]
    %v5453 = vstv %s5452
    %v5454 = vmul.f32 %v5058, %v5453
    %v5455 = vmul.f32 %v5059, %v5453
    %v5456 = vadd.f32 %v5450, %v5454
    %v5457 = vadd.f32 %v5451, %v5455
    %s5458 = sld [smem:[#allocation9 + $0x3a]]
    %v5459 = vstv %s5458
    %v5460 = vmul.f32 %v5148, %v5459
    %v5461 = vmul.f32 %v5149, %v5459
    %v5462 = vadd.f32 %v5456, %v5460
    %v5463 = vadd.f32 %v5457, %v5461
    %s5464 = sld [smem:[#allocation9 + $0x42]]
    %v5465 = vstv %s5464
    %v5466 = vmul.f32 %v903, %v5465
    %v5467 = vmul.f32 %v904, %v5465
    %v5468 = vadd.f32 %v5462, %v5466
    %v5469 = vadd.f32 %v5463, %v5467
    %s5470 = sld [smem:[#allocation9 + $0x4a]]
    %v5471 = vstv %s5470
    %v5472 = vmul.f32 %v5012, %v5471
    %v5473 = vmul.f32 %v5013, %v5471
    %v5474 = vadd.f32 %v5468, %v5472
    %v5475 = vadd.f32 %v5469, %v5473
    %s5476 = sld [smem:[#allocation9 + $0x52]]
    %v5477 = vstv %s5476
    %v5478 = vmul.f32 %v5069, %v5477
    %v5479 = vmul.f32 %v5070, %v5477
    %v5480 = vadd.f32 %v5474, %v5478
    %v5481 = vadd.f32 %v5475, %v5479
    %s5482 = sld [smem:[#allocation9 + $0x5a]]
    %v5483 = vstv %s5482
    %v5484 = vmul.f32 %v5159, %v5483
    %v5485 = vmul.f32 %v5160, %v5483
    %v5486 = vadd.f32 %v5480, %v5484
    %v5487 = vadd.f32 %v5481, %v5485
    %s5488 = sld [smem:[#allocation9 + $0x62]]
    %v5489 = vstv %s5488
    %v5490 = vmul.f32 %v5080, %v5489
    %v5491 = vmul.f32 %v5081, %v5489
    %v5492 = vadd.f32 %v5486, %v5490
    %v5493 = vadd.f32 %v5487, %v5491
    %s5494 = sld [smem:[#allocation9 + $0x6a]]
    %v5495 = vstv %s5494
    %v5496 = vmul.f32 %v5170, %v5495
    %v5497 = vmul.f32 %v5171, %v5495
    %v5498 = vadd.f32 %v5492, %v5496
    %v5499 = vadd.f32 %v5493, %v5497
    %s5500 = sld [smem:[#allocation9 + $0x72]]
    %v5501 = vstv %s5500
    %v5502 = vmul.f32 %v5091, %v5501
    %v5503 = vmul.f32 %v5092, %v5501
    %v5504 = vadd.f32 %v5498, %v5502
    %v5505 = vadd.f32 %v5499, %v5503
    %s5506 = sld [smem:[#allocation9 + $0x7a]]
    %v5507 = vstv %s5506
    %v5508 = vmul.f32 %v5181, %v5507
    %v5509 = vmul.f32 %v5182, %v5507
    %v5510 = vadd.f32 %v5504, %v5508
    %v5511 = vadd.f32 %v5505, %v5509
    %s5512 = sld [smem:[#allocation9 + $0x82]]
    %v5513 = vstv %s5512
    %v5514 = vmul.f32 %v5102, %v5513
    %v5515 = vmul.f32 %v5103, %v5513
    %v5516 = vadd.f32 %v5510, %v5514
    %v5517 = vadd.f32 %v5511, %v5515
    %s5518 = sld [smem:[#allocation9 + $0x8a]]
    %v5519 = vstv %s5518
    %v5520 = vmul.f32 %v5192, %v5519
    %v5521 = vmul.f32 %v5193, %v5519
    %v5522 = vadd.f32 %v5516, %v5520
    %v5523 = vadd.f32 %v5517, %v5521
    %s5524 = sld [smem:[#allocation11 + $0x2]]
    %v5525 = vstv %s5524
    %v5526 = vadd.f32 %v5522, %v5525
    %v5527 = vadd.f32 %v5523, %v5525
    %v5528 = vmax.f32 %v5526, 0.0
    %v5529 = vmax.f32 %v5527, 0.0
    %s5530 = sld [smem:[#allocation9 + $0x3]]
    %v5531 = vstv %s5530
    %v5532 = vmul.f32 %v5025, %v5531
    %v5533 = vmul.f32 %v5026, %v5531
    %s5534 = sld [smem:[#allocation9 + $0xb]]
    %v5535 = vstv %s5534
    %v5536 = vmul.f32 %v5115, %v5535
    %v5537 = vmul.f32 %v5116, %v5535
    %v5538 = vadd.f32 %v5532, %v5536
    %v5539 = vadd.f32 %v5533, %v5537
    %s5540 = sld [smem:[#allocation9 + $0x13]]
    %v5541 = vstv %s5540
    %v5542 = vmul.f32 %v5036, %v5541
    %v5543 = vmul.f32 %v5037, %v5541
    %v5544 = vadd.f32 %v5538, %v5542
    %v5545 = vadd.f32 %v5539, %v5543
    %s5546 = sld [smem:[#allocation9 + $0x1b]]
    %v5547 = vstv %s5546
    %v5548 = vmul.f32 %v5126, %v5547
    %v5549 = vmul.f32 %v5127, %v5547
    %v5550 = vadd.f32 %v5544, %v5548
    %v5551 = vadd.f32 %v5545, %v5549
    %s5552 = sld [smem:[#allocation9 + $0x23]]
    %v5553 = vstv %s5552
    %v5554 = vmul.f32 %v5047, %v5553
    %v5555 = vmul.f32 %v5048, %v5553
    %v5556 = vadd.f32 %v5550, %v5554
    %v5557 = vadd.f32 %v5551, %v5555
    %s5558 = sld [smem:[#allocation9 + $0x2b]]
    %v5559 = vstv %s5558
    %v5560 = vmul.f32 %v5137, %v5559
    %v5561 = vmul.f32 %v5138, %v5559
    %v5562 = vadd.f32 %v5556, %v5560
    %v5563 = vadd.f32 %v5557, %v5561
    %s5564 = sld [smem:[#allocation9 + $0x33]]
    %v5565 = vstv %s5564
    %v5566 = vmul.f32 %v5058, %v5565
    %v5567 = vmul.f32 %v5059, %v5565
    %v5568 = vadd.f32 %v5562, %v5566
    %v5569 = vadd.f32 %v5563, %v5567
    %s5570 = sld [smem:[#allocation9 + $0x3b]]
    %v5571 = vstv %s5570
    %v5572 = vmul.f32 %v5148, %v5571
    %v5573 = vmul.f32 %v5149, %v5571
    %v5574 = vadd.f32 %v5568, %v5572
    %v5575 = vadd.f32 %v5569, %v5573
    %s5576 = sld [smem:[#allocation9 + $0x43]]
    %v5577 = vstv %s5576
    %v5578 = vmul.f32 %v903, %v5577
    %v5579 = vmul.f32 %v904, %v5577
    %v5580 = vadd.f32 %v5574, %v5578
    %v5581 = vadd.f32 %v5575, %v5579
    %s5582 = sld [smem:[#allocation9 + $0x4b]]
    %v5583 = vstv %s5582
    %v5584 = vmul.f32 %v5012, %v5583
    %v5585 = vmul.f32 %v5013, %v5583
    %v5586 = vadd.f32 %v5580, %v5584
    %v5587 = vadd.f32 %v5581, %v5585
    %s5588 = sld [smem:[#allocation9 + $0x53]]
    %v5589 = vstv %s5588
    %v5590 = vmul.f32 %v5069, %v5589
    %v5591 = vmul.f32 %v5070, %v5589
    %v5592 = vadd.f32 %v5586, %v5590
    %v5593 = vadd.f32 %v5587, %v5591
    %s5594 = sld [smem:[#allocation9 + $0x5b]]
    %v5595 = vstv %s5594
    %v5596 = vmul.f32 %v5159, %v5595
    %v5597 = vmul.f32 %v5160, %v5595
    %v5598 = vadd.f32 %v5592, %v5596
    %v5599 = vadd.f32 %v5593, %v5597
    %s5600 = sld [smem:[#allocation9 + $0x63]]
    %v5601 = vstv %s5600
    %v5602 = vmul.f32 %v5080, %v5601
    %v5603 = vmul.f32 %v5081, %v5601
    %v5604 = vadd.f32 %v5598, %v5602
    %v5605 = vadd.f32 %v5599, %v5603
    %s5606 = sld [smem:[#allocation9 + $0x6b]]
    %v5607 = vstv %s5606
    %v5608 = vmul.f32 %v5170, %v5607
    %v5609 = vmul.f32 %v5171, %v5607
    %v5610 = vadd.f32 %v5604, %v5608
    %v5611 = vadd.f32 %v5605, %v5609
    %s5612 = sld [smem:[#allocation9 + $0x73]]
    %v5613 = vstv %s5612
    %v5614 = vmul.f32 %v5091, %v5613
    %v5615 = vmul.f32 %v5092, %v5613
    %v5616 = vadd.f32 %v5610, %v5614
    %v5617 = vadd.f32 %v5611, %v5615
    %s5618 = sld [smem:[#allocation9 + $0x7b]]
    %v5619 = vstv %s5618
    %v5620 = vmul.f32 %v5181, %v5619
    %v5621 = vmul.f32 %v5182, %v5619
    %v5622 = vadd.f32 %v5616, %v5620
    %v5623 = vadd.f32 %v5617, %v5621
    %s5624 = sld [smem:[#allocation9 + $0x83]]
    %v5625 = vstv %s5624
    %v5626 = vmul.f32 %v5102, %v5625
    %v5627 = vmul.f32 %v5103, %v5625
    %v5628 = vadd.f32 %v5622, %v5626
    %v5629 = vadd.f32 %v5623, %v5627
    %s5630 = sld [smem:[#allocation9 + $0x8b]]
    %v5631 = vstv %s5630
    %v5632 = vmul.f32 %v5192, %v5631
    %v5633 = vmul.f32 %v5193, %v5631
    %v5634 = vadd.f32 %v5628, %v5632
    %v5635 = vadd.f32 %v5629, %v5633
    %s5636 = sld [smem:[#allocation11 + $0x3]]
    %v5637 = vstv %s5636
    %v5638 = vadd.f32 %v5634, %v5637
    %v5639 = vadd.f32 %v5635, %v5637
    %v5640 = vmax.f32 %v5638, 0.0
    %v5641 = vmax.f32 %v5639, 0.0
    %s5642 = sld [smem:[#allocation9 + $0x4]]
    %v5643 = vstv %s5642
    %v5644 = vmul.f32 %v5025, %v5643
    %v5645 = vmul.f32 %v5026, %v5643
    %s5646 = sld [smem:[#allocation9 + $0xc]]
    %v5647 = vstv %s5646
    %v5648 = vmul.f32 %v5115, %v5647
    %v5649 = vmul.f32 %v5116, %v5647
    %v5650 = vadd.f32 %v5644, %v5648
    %v5651 = vadd.f32 %v5645, %v5649
    %s5652 = sld [smem:[#allocation9 + $0x14]]
    %v5653 = vstv %s5652
    %v5654 = vmul.f32 %v5036, %v5653
    %v5655 = vmul.f32 %v5037, %v5653
    %v5656 = vadd.f32 %v5650, %v5654
    %v5657 = vadd.f32 %v5651, %v5655
    %s5658 = sld [smem:[#allocation9 + $0x1c]]
    %v5659 = vstv %s5658
    %v5660 = vmul.f32 %v5126, %v5659
    %v5661 = vmul.f32 %v5127, %v5659
    %v5662 = vadd.f32 %v5656, %v5660
    %v5663 = vadd.f32 %v5657, %v5661
    %s5664 = sld [smem:[#allocation9 + $0x24]]
    %v5665 = vstv %s5664
    %v5666 = vmul.f32 %v5047, %v5665
    %v5667 = vmul.f32 %v5048, %v5665
    %v5668 = vadd.f32 %v5662, %v5666
    %v5669 = vadd.f32 %v5663, %v5667
    %s5670 = sld [smem:[#allocation9 + $0x2c]]
    %v5671 = vstv %s5670
    %v5672 = vmul.f32 %v5137, %v5671
    %v5673 = vmul.f32 %v5138, %v5671
    %v5674 = vadd.f32 %v5668, %v5672
    %v5675 = vadd.f32 %v5669, %v5673
    %s5676 = sld [smem:[#allocation9 + $0x34]]
    %v5677 = vstv %s5676
    %v5678 = vmul.f32 %v5058, %v5677
    %v5679 = vmul.f32 %v5059, %v5677
    %v5680 = vadd.f32 %v5674, %v5678
    %v5681 = vadd.f32 %v5675, %v5679
    %s5682 = sld [smem:[#allocation9 + $0x3c]]
    %v5683 = vstv %s5682
    %v5684 = vmul.f32 %v5148, %v5683
    %v5685 = vmul.f32 %v5149, %v5683
    %v5686 = vadd.f32 %v5680, %v5684
    %v5687 = vadd.f32 %v5681, %v5685
    %s5688 = sld [smem:[#allocation9 + $0x44]]
    %v5689 = vstv %s5688
    %v5690 = vmul.f32 %v903, %v5689
    %v5691 = vmul.f32 %v904, %v5689
    %v5692 = vadd.f32 %v5686, %v5690
    %v5693 = vadd.f32 %v5687, %v5691
    %s5694 = sld [smem:[#allocation9 + $0x4c]]
    %v5695 = vstv %s5694
    %v5696 = vmul.f32 %v5012, %v5695
    %v5697 = vmul.f32 %v5013, %v5695
    %v5698 = vadd.f32 %v5692, %v5696
    %v5699 = vadd.f32 %v5693, %v5697
    %s5700 = sld [smem:[#allocation9 + $0x54]]
    %v5701 = vstv %s5700
    %v5702 = vmul.f32 %v5069, %v5701
    %v5703 = vmul.f32 %v5070, %v5701
    %v5704 = vadd.f32 %v5698, %v5702
    %v5705 = vadd.f32 %v5699, %v5703
    %s5706 = sld [smem:[#allocation9 + $0x5c]]
    %v5707 = vstv %s5706
    %v5708 = vmul.f32 %v5159, %v5707
    %v5709 = vmul.f32 %v5160, %v5707
    %v5710 = vadd.f32 %v5704, %v5708
    %v5711 = vadd.f32 %v5705, %v5709
    %s5712 = sld [smem:[#allocation9 + $0x64]]
    %v5713 = vstv %s5712
    %v5714 = vmul.f32 %v5080, %v5713
    %v5715 = vmul.f32 %v5081, %v5713
    %v5716 = vadd.f32 %v5710, %v5714
    %v5717 = vadd.f32 %v5711, %v5715
    %s5718 = sld [smem:[#allocation9 + $0x6c]]
    %v5719 = vstv %s5718
    %v5720 = vmul.f32 %v5170, %v5719
    %v5721 = vmul.f32 %v5171, %v5719
    %v5722 = vadd.f32 %v5716, %v5720
    %v5723 = vadd.f32 %v5717, %v5721
    %s5724 = sld [smem:[#allocation9 + $0x74]]
    %v5725 = vstv %s5724
    %v5726 = vmul.f32 %v5091, %v5725
    %v5727 = vmul.f32 %v5092, %v5725
    %v5728 = vadd.f32 %v5722, %v5726
    %v5729 = vadd.f32 %v5723, %v5727
    %s5730 = sld [smem:[#allocation9 + $0x7c]]
    %v5731 = vstv %s5730
    %v5732 = vmul.f32 %v5181, %v5731
    %v5733 = vmul.f32 %v5182, %v5731
    %v5734 = vadd.f32 %v5728, %v5732
    %v5735 = vadd.f32 %v5729, %v5733
    %s5736 = sld [smem:[#allocation9 + $0x84]]
    %v5737 = vstv %s5736
    %v5738 = vmul.f32 %v5102, %v5737
    %v5739 = vmul.f32 %v5103, %v5737
    %v5740 = vadd.f32 %v5734, %v5738
    %v5741 = vadd.f32 %v5735, %v5739
    %s5742 = sld [smem:[#allocation9 + $0x8c]]
    %v5743 = vstv %s5742
    %v5744 = vmul.f32 %v5192, %v5743
    %v5745 = vmul.f32 %v5193, %v5743
    %v5746 = vadd.f32 %v5740, %v5744
    %v5747 = vadd.f32 %v5741, %v5745
    %s5748 = sld [smem:[#allocation11 + $0x4]]
    %v5749 = vstv %s5748
    %v5750 = vadd.f32 %v5746, %v5749
    %v5751 = vadd.f32 %v5747, %v5749
    %v5752 = vmax.f32 %v5750, 0.0
    %v5753 = vmax.f32 %v5751, 0.0
    %s5754 = sld [smem:[#allocation9 + $0x5]]
    %v5755 = vstv %s5754
    %v5756 = vmul.f32 %v5025, %v5755
    %v5757 = vmul.f32 %v5026, %v5755
    %s5758 = sld [smem:[#allocation9 + $0xd]]
    %v5759 = vstv %s5758
    %v5760 = vmul.f32 %v5115, %v5759
    %v5761 = vmul.f32 %v5116, %v5759
    %v5762 = vadd.f32 %v5756, %v5760
    %v5763 = vadd.f32 %v5757, %v5761
    %s5764 = sld [smem:[#allocation9 + $0x15]]
    %v5765 = vstv %s5764
    %v5766 = vmul.f32 %v5036, %v5765
    %v5767 = vmul.f32 %v5037, %v5765
    %v5768 = vadd.f32 %v5762, %v5766
    %v5769 = vadd.f32 %v5763, %v5767
    %s5770 = sld [smem:[#allocation9 + $0x1d]]
    %v5771 = vstv %s5770
    %v5772 = vmul.f32 %v5126, %v5771
    %v5773 = vmul.f32 %v5127, %v5771
    %v5774 = vadd.f32 %v5768, %v5772
    %v5775 = vadd.f32 %v5769, %v5773
    %s5776 = sld [smem:[#allocation9 + $0x25]]
    %v5777 = vstv %s5776
    %v5778 = vmul.f32 %v5047, %v5777
    %v5779 = vmul.f32 %v5048, %v5777
    %v5780 = vadd.f32 %v5774, %v5778
    %v5781 = vadd.f32 %v5775, %v5779
    %s5782 = sld [smem:[#allocation9 + $0x2d]]
    %v5783 = vstv %s5782
    %v5784 = vmul.f32 %v5137, %v5783
    %v5785 = vmul.f32 %v5138, %v5783
    %v5786 = vadd.f32 %v5780, %v5784
    %v5787 = vadd.f32 %v5781, %v5785
    %s5788 = sld [smem:[#allocation9 + $0x35]]
    %v5789 = vstv %s5788
    %v5790 = vmul.f32 %v5058, %v5789
    %v5791 = vmul.f32 %v5059, %v5789
    %v5792 = vadd.f32 %v5786, %v5790
    %v5793 = vadd.f32 %v5787, %v5791
    %s5794 = sld [smem:[#allocation9 + $0x3d]]
    %v5795 = vstv %s5794
    %v5796 = vmul.f32 %v5148, %v5795
    %v5797 = vmul.f32 %v5149, %v5795
    %v5798 = vadd.f32 %v5792, %v5796
    %v5799 = vadd.f32 %v5793, %v5797
    %s5800 = sld [smem:[#allocation9 + $0x45]]
    %v5801 = vstv %s5800
    %v5802 = vmul.f32 %v903, %v5801
    %v5803 = vmul.f32 %v904, %v5801
    %v5804 = vadd.f32 %v5798, %v5802
    %v5805 = vadd.f32 %v5799, %v5803
    %s5806 = sld [smem:[#allocation9 + $0x4d]]
    %v5807 = vstv %s5806
    %v5808 = vmul.f32 %v5012, %v5807
    %v5809 = vmul.f32 %v5013, %v5807
    %v5810 = vadd.f32 %v5804, %v5808
    %v5811 = vadd.f32 %v5805, %v5809
    %s5812 = sld [smem:[#allocation9 + $0x55]]
    %v5813 = vstv %s5812
    %v5814 = vmul.f32 %v5069, %v5813
    %v5815 = vmul.f32 %v5070, %v5813
    %v5816 = vadd.f32 %v5810, %v5814
    %v5817 = vadd.f32 %v5811, %v5815
    %s5818 = sld [smem:[#allocation9 + $0x5d]]
    %v5819 = vstv %s5818
    %v5820 = vmul.f32 %v5159, %v5819
    %v5821 = vmul.f32 %v5160, %v5819
    %v5822 = vadd.f32 %v5816, %v5820
    %v5823 = vadd.f32 %v5817, %v5821
    %s5824 = sld [smem:[#allocation9 + $0x65]]
    %v5825 = vstv %s5824
    %v5826 = vmul.f32 %v5080, %v5825
    %v5827 = vmul.f32 %v5081, %v5825
    %v5828 = vadd.f32 %v5822, %v5826
    %v5829 = vadd.f32 %v5823, %v5827
    %s5830 = sld [smem:[#allocation9 + $0x6d]]
    %v5831 = vstv %s5830
    %v5832 = vmul.f32 %v5170, %v5831
    %v5833 = vmul.f32 %v5171, %v5831
    %v5834 = vadd.f32 %v5828, %v5832
    %v5835 = vadd.f32 %v5829, %v5833
    %s5836 = sld [smem:[#allocation9 + $0x75]]
    %v5837 = vstv %s5836
    %v5838 = vmul.f32 %v5091, %v5837
    %v5839 = vmul.f32 %v5092, %v5837
    %v5840 = vadd.f32 %v5834, %v5838
    %v5841 = vadd.f32 %v5835, %v5839
    %s5842 = sld [smem:[#allocation9 + $0x7d]]
    %v5843 = vstv %s5842
    %v5844 = vmul.f32 %v5181, %v5843
    %v5845 = vmul.f32 %v5182, %v5843
    %v5846 = vadd.f32 %v5840, %v5844
    %v5847 = vadd.f32 %v5841, %v5845
    %s5848 = sld [smem:[#allocation9 + $0x85]]
    %v5849 = vstv %s5848
    %v5850 = vmul.f32 %v5102, %v5849
    %v5851 = vmul.f32 %v5103, %v5849
    %v5852 = vadd.f32 %v5846, %v5850
    %v5853 = vadd.f32 %v5847, %v5851
    %s5854 = sld [smem:[#allocation9 + $0x8d]]
    %v5855 = vstv %s5854
    %v5856 = vmul.f32 %v5192, %v5855
    %v5857 = vmul.f32 %v5193, %v5855
    %v5858 = vadd.f32 %v5852, %v5856
    %v5859 = vadd.f32 %v5853, %v5857
    %s5860 = sld [smem:[#allocation11 + $0x5]]
    %v5861 = vstv %s5860
    %v5862 = vadd.f32 %v5858, %v5861
    %v5863 = vadd.f32 %v5859, %v5861
    %v5864 = vmax.f32 %v5862, 0.0
    %v5865 = vmax.f32 %v5863, 0.0
    %s5866 = sld [smem:[#allocation9 + $0x6]]
    %v5867 = vstv %s5866
    %v5868 = vmul.f32 %v5025, %v5867
    %v5869 = vmul.f32 %v5026, %v5867
    %s5870 = sld [smem:[#allocation9 + $0xe]]
    %v5871 = vstv %s5870
    %v5872 = vmul.f32 %v5115, %v5871
    %v5873 = vmul.f32 %v5116, %v5871
    %v5874 = vadd.f32 %v5868, %v5872
    %v5875 = vadd.f32 %v5869, %v5873
    %s5876 = sld [smem:[#allocation9 + $0x16]]
    %v5877 = vstv %s5876
    %v5878 = vmul.f32 %v5036, %v5877
    %v5879 = vmul.f32 %v5037, %v5877
    %v5880 = vadd.f32 %v5874, %v5878
    %v5881 = vadd.f32 %v5875, %v5879
    %s5882 = sld [smem:[#allocation9 + $0x1e]]
    %v5883 = vstv %s5882
    %v5884 = vmul.f32 %v5126, %v5883
    %v5885 = vmul.f32 %v5127, %v5883
    %v5886 = vadd.f32 %v5880, %v5884
    %v5887 = vadd.f32 %v5881, %v5885
    %s5888 = sld [smem:[#allocation9 + $0x26]]
    %v5889 = vstv %s5888
    %v5890 = vmul.f32 %v5047, %v5889
    %v5891 = vmul.f32 %v5048, %v5889
    %v5892 = vadd.f32 %v5886, %v5890
    %v5893 = vadd.f32 %v5887, %v5891
    %s5894 = sld [smem:[#allocation9 + $0x2e]]
    %v5895 = vstv %s5894
    %v5896 = vmul.f32 %v5137, %v5895
    %v5897 = vmul.f32 %v5138, %v5895
    %v5898 = vadd.f32 %v5892, %v5896
    %v5899 = vadd.f32 %v5893, %v5897
    %s5900 = sld [smem:[#allocation9 + $0x36]]
    %v5901 = vstv %s5900
    %v5902 = vmul.f32 %v5058, %v5901
    %v5903 = vmul.f32 %v5059, %v5901
    %v5904 = vadd.f32 %v5898, %v5902
    %v5905 = vadd.f32 %v5899, %v5903
    %s5906 = sld [smem:[#allocation9 + $0x3e]]
    %v5907 = vstv %s5906
    %v5908 = vmul.f32 %v5148, %v5907
    %v5909 = vmul.f32 %v5149, %v5907
    %v5910 = vadd.f32 %v5904, %v5908
    %v5911 = vadd.f32 %v5905, %v5909
    %s5912 = sld [smem:[#allocation9 + $0x46]]
    %v5913 = vstv %s5912
    %v5914 = vmul.f32 %v903, %v5913
    %v5915 = vmul.f32 %v904, %v5913
    %v5916 = vadd.f32 %v5910, %v5914
    %v5917 = vadd.f32 %v5911, %v5915
    %s5918 = sld [smem:[#allocation9 + $0x4e]]
    %v5919 = vstv %s5918
    %v5920 = vmul.f32 %v5012, %v5919
    %v5921 = vmul.f32 %v5013, %v5919
    %v5922 = vadd.f32 %v5916, %v5920
    %v5923 = vadd.f32 %v5917, %v5921
    %s5924 = sld [smem:[#allocation9 + $0x56]]
    %v5925 = vstv %s5924
    %v5926 = vmul.f32 %v5069, %v5925
    %v5927 = vmul.f32 %v5070, %v5925
    %v5928 = vadd.f32 %v5922, %v5926
    %v5929 = vadd.f32 %v5923, %v5927
    %s5930 = sld [smem:[#allocation9 + $0x5e]]
    %v5931 = vstv %s5930
    %v5932 = vmul.f32 %v5159, %v5931
    %v5933 = vmul.f32 %v5160, %v5931
    %v5934 = vadd.f32 %v5928, %v5932
    %v5935 = vadd.f32 %v5929, %v5933
    %s5936 = sld [smem:[#allocation9 + $0x66]]
    %v5937 = vstv %s5936
    %v5938 = vmul.f32 %v5080, %v5937
    %v5939 = vmul.f32 %v5081, %v5937
    %v5940 = vadd.f32 %v5934, %v5938
    %v5941 = vadd.f32 %v5935, %v5939
    %s5942 = sld [smem:[#allocation9 + $0x6e]]
    %v5943 = vstv %s5942
    %v5944 = vmul.f32 %v5170, %v5943
    %v5945 = vmul.f32 %v5171, %v5943
    %v5946 = vadd.f32 %v5940, %v5944
    %v5947 = vadd.f32 %v5941, %v5945
    %s5948 = sld [smem:[#allocation9 + $0x76]]
    %v5949 = vstv %s5948
    %v5950 = vmul.f32 %v5091, %v5949
    %v5951 = vmul.f32 %v5092, %v5949
    %v5952 = vadd.f32 %v5946, %v5950
    %v5953 = vadd.f32 %v5947, %v5951
    %s5954 = sld [smem:[#allocation9 + $0x7e]]
    %v5955 = vstv %s5954
    %v5956 = vmul.f32 %v5181, %v5955
    %v5957 = vmul.f32 %v5182, %v5955
    %v5958 = vadd.f32 %v5952, %v5956
    %v5959 = vadd.f32 %v5953, %v5957
    %s5960 = sld [smem:[#allocation9 + $0x86]]
    %v5961 = vstv %s5960
    %v5962 = vmul.f32 %v5102, %v5961
    %v5963 = vmul.f32 %v5103, %v5961
    %v5964 = vadd.f32 %v5958, %v5962
    %v5965 = vadd.f32 %v5959, %v5963
    %s5966 = sld [smem:[#allocation9 + $0x8e]]
    %v5967 = vstv %s5966
    %v5968 = vmul.f32 %v5192, %v5967
    %v5969 = vmul.f32 %v5193, %v5967
    %v5970 = vadd.f32 %v5964, %v5968
    %v5971 = vadd.f32 %v5965, %v5969
    %s5972 = sld [smem:[#allocation11 + $0x6]]
    %v5973 = vstv %s5972
    %v5974 = vadd.f32 %v5970, %v5973
    %v5975 = vadd.f32 %v5971, %v5973
    %v5976 = vmax.f32 %v5974, 0.0
    %v5977 = vmax.f32 %v5975, 0.0
    %s5978 = sld [smem:[#allocation9 + $0x7]]
    %v5979 = vstv %s5978
    %v5980 = vmul.f32 %v5025, %v5979
    %v5981 = vmul.f32 %v5026, %v5979
    %s5982 = sld [smem:[#allocation9 + $0xf]]
    %v5983 = vstv %s5982
    %v5984 = vmul.f32 %v5115, %v5983
    %v5985 = vmul.f32 %v5116, %v5983
    %v5986 = vadd.f32 %v5980, %v5984
    %v5987 = vadd.f32 %v5981, %v5985
    %s5988 = sld [smem:[#allocation9 + $0x17]]
    %v5989 = vstv %s5988
    %v5990 = vmul.f32 %v5036, %v5989
    %v5991 = vmul.f32 %v5037, %v5989
    %v5992 = vadd.f32 %v5986, %v5990
    %v5993 = vadd.f32 %v5987, %v5991
    %s5994 = sld [smem:[#allocation9 + $0x1f]]
    %v5995 = vstv %s5994
    %v5996 = vmul.f32 %v5126, %v5995
    %v5997 = vmul.f32 %v5127, %v5995
    %v5998 = vadd.f32 %v5992, %v5996
    %v5999 = vadd.f32 %v5993, %v5997
    %s6000 = sld [smem:[#allocation9 + $0x27]]
    %v6001 = vstv %s6000
    %v6002 = vmul.f32 %v5047, %v6001
    %v6003 = vmul.f32 %v5048, %v6001
    %v6004 = vadd.f32 %v5998, %v6002
    %v6005 = vadd.f32 %v5999, %v6003
    %s6006 = sld [smem:[#allocation9 + $0x2f]]
    %v6007 = vstv %s6006
    %v6008 = vmul.f32 %v5137, %v6007
    %v6009 = vmul.f32 %v5138, %v6007
    %v6010 = vadd.f32 %v6004, %v6008
    %v6011 = vadd.f32 %v6005, %v6009
    %s6012 = sld [smem:[#allocation9 + $0x37]]
    %v6013 = vstv %s6012
    %v6014 = vmul.f32 %v5058, %v6013
    %v6015 = vmul.f32 %v5059, %v6013
    %v6016 = vadd.f32 %v6010, %v6014
    %v6017 = vadd.f32 %v6011, %v6015
    %s6018 = sld [smem:[#allocation9 + $0x3f]]
    %v6019 = vstv %s6018
    %v6020 = vmul.f32 %v5148, %v6019
    %v6021 = vmul.f32 %v5149, %v6019
    %v6022 = vadd.f32 %v6016, %v6020
    %v6023 = vadd.f32 %v6017, %v6021
    %s6024 = sld [smem:[#allocation9 + $0x47]]
    %v6025 = vstv %s6024
    %v6026 = vmul.f32 %v903, %v6025
    %v6027 = vmul.f32 %v904, %v6025
    %v6028 = vadd.f32 %v6022, %v6026
    %v6029 = vadd.f32 %v6023, %v6027
    %s6030 = sld [smem:[#allocation9 + $0x4f]]
    %v6031 = vstv %s6030
    %v6032 = vmul.f32 %v5012, %v6031
    %v6033 = vmul.f32 %v5013, %v6031
    %v6034 = vadd.f32 %v6028, %v6032
    %v6035 = vadd.f32 %v6029, %v6033
    %s6036 = sld [smem:[#allocation9 + $0x57]]
    %v6037 = vstv %s6036
    %v6038 = vmul.f32 %v5069, %v6037
    %v6039 = vmul.f32 %v5070, %v6037
    %v6040 = vadd.f32 %v6034, %v6038
    %v6041 = vadd.f32 %v6035, %v6039
    %s6042 = sld [smem:[#allocation9 + $0x5f]]
    %v6043 = vstv %s6042
    %v6044 = vmul.f32 %v5159, %v6043
    %v6045 = vmul.f32 %v5160, %v6043
    %v6046 = vadd.f32 %v6040, %v6044
    %v6047 = vadd.f32 %v6041, %v6045
    %s6048 = sld [smem:[#allocation9 + $0x67]]
    %v6049 = vstv %s6048
    %v6050 = vmul.f32 %v5080, %v6049
    %v6051 = vmul.f32 %v5081, %v6049
    %v6052 = vadd.f32 %v6046, %v6050
    %v6053 = vadd.f32 %v6047, %v6051
    %s6054 = sld [smem:[#allocation9 + $0x6f]]
    %v6055 = vstv %s6054
    %v6056 = vmul.f32 %v5170, %v6055
    %v6057 = vmul.f32 %v5171, %v6055
    %v6058 = vadd.f32 %v6052, %v6056
    %v6059 = vadd.f32 %v6053, %v6057
    %s6060 = sld [smem:[#allocation9 + $0x77]]
    %v6061 = vstv %s6060
    %v6062 = vmul.f32 %v5091, %v6061
    %v6063 = vmul.f32 %v5092, %v6061
    %v6064 = vadd.f32 %v6058, %v6062
    %v6065 = vadd.f32 %v6059, %v6063
    %s6066 = sld [smem:[#allocation9 + $0x7f]]
    %v6067 = vstv %s6066
    %v6068 = vmul.f32 %v5181, %v6067
    %v6069 = vmul.f32 %v5182, %v6067
    %v6070 = vadd.f32 %v6064, %v6068
    %v6071 = vadd.f32 %v6065, %v6069
    %s6072 = sld [smem:[#allocation9 + $0x87]]
    %v6073 = vstv %s6072
    %v6074 = vmul.f32 %v5102, %v6073
    %v6075 = vmul.f32 %v5103, %v6073
    %v6076 = vadd.f32 %v6070, %v6074
    %v6077 = vadd.f32 %v6071, %v6075
    %s6078 = sld [smem:[#allocation9 + $0x8f]]
    %v6079 = vstv %s6078
    %v6080 = vmul.f32 %v5192, %v6079
    %v6081 = vmul.f32 %v5193, %v6079
    %v6082 = vadd.f32 %v6076, %v6080
    %v6083 = vadd.f32 %v6077, %v6081
    %s6084 = sld [smem:[#allocation11 + $0x7]]
    %v6085 = vstv %s6084
    %v6086 = vadd.f32 %v6082, %v6085
    %v6087 = vadd.f32 %v6083, %v6085
    %v6088 = vmax.f32 %v6086, 0.0
    %v6089 = vmax.f32 %v6087, 0.0
    %s6090 = sld [smem:[#allocation12]]
    %v6091 = vstv %s6090
    %v6092 = vmul.f32 %v5304, %v6091
    %v6093 = vmul.f32 %v5305, %v6091
    %s6094 = sld [smem:[#allocation12 + $0x1]]
    %v6095 = vstv %s6094
    %v6096 = vmul.f32 %v5416, %v6095
    %v6097 = vmul.f32 %v5417, %v6095
    %v6098 = vadd.f32 %v6092, %v6096
    %v6099 = vadd.f32 %v6093, %v6097
    %s6100 = sld [smem:[#allocation12 + $0x2]]
    %v6101 = vstv %s6100
    %v6102 = vmul.f32 %v5528, %v6101
    %v6103 = vmul.f32 %v5529, %v6101
    %v6104 = vadd.f32 %v6098, %v6102
    %v6105 = vadd.f32 %v6099, %v6103
    %s6106 = sld [smem:[#allocation12 + $0x3]]
    %v6107 = vstv %s6106
    %v6108 = vmul.f32 %v5640, %v6107
    %v6109 = vmul.f32 %v5641, %v6107
    %v6110 = vadd.f32 %v6104, %v6108
    %v6111 = vadd.f32 %v6105, %v6109
    %s6112 = sld [smem:[#allocation12 + $0x4]]
    %v6113 = vstv %s6112
    %v6114 = vmul.f32 %v5752, %v6113
    %v6115 = vmul.f32 %v5753, %v6113
    %v6116 = vadd.f32 %v6110, %v6114
    %v6117 = vadd.f32 %v6111, %v6115
    %s6118 = sld [smem:[#allocation12 + $0x5]]
    %v6119 = vstv %s6118
    %v6120 = vmul.f32 %v5864, %v6119
    %v6121 = vmul.f32 %v5865, %v6119
    %v6122 = vadd.f32 %v6116, %v6120
    %v6123 = vadd.f32 %v6117, %v6121
    %s6124 = sld [smem:[#allocation12 + $0x6]]
    %v6125 = vstv %s6124
    %v6126 = vmul.f32 %v5976, %v6125
    %v6127 = vmul.f32 %v5977, %v6125
    %v6128 = vadd.f32 %v6122, %v6126
    %v6129 = vadd.f32 %v6123, %v6127
    %s6130 = sld [smem:[#allocation12 + $0x7]]
    %v6131 = vstv %s6130
    %v6132 = vmul.f32 %v6088, %v6131
    %v6133 = vmul.f32 %v6089, %v6131
    %v6134 = vadd.f32 %v6128, %v6132
    %v6135 = vadd.f32 %v6129, %v6133
    %6137 = vrot.lane.b32.xlu0 %v6135, 17
    %v6138 = vpop.permute.xlu0 %6137
    %6141 = vrot.lane.b32.xlu0 %v6134, 17
    %v6142 = vpop.permute.xlu0 %6141
    %v6143 = vsel %vm230, %v6142, %v6138
    %v6146 = vsel %vm230, %v6138, %v6142
    %v6147 = vsel %vm237, %v6146, 0.0
    %v6148 = vsel %vm238, %v6143, 0.0
    %s6149 = sld [smem:[#allocation12 + $0x8]]
    %v6150 = vstv %s6149
    %v6151 = vmul.f32 %v5304, %v6150
    %v6152 = vmul.f32 %v5305, %v6150
    %s6153 = sld [smem:[#allocation12 + $0x9]]
    %v6154 = vstv %s6153
    %v6155 = vmul.f32 %v5416, %v6154
    %v6156 = vmul.f32 %v5417, %v6154
    %v6157 = vadd.f32 %v6151, %v6155
    %v6158 = vadd.f32 %v6152, %v6156
    %s6159 = sld [smem:[#allocation12 + $0xa]]
    %v6160 = vstv %s6159
    %v6161 = vmul.f32 %v5528, %v6160
    %v6162 = vmul.f32 %v5529, %v6160
    %v6163 = vadd.f32 %v6157, %v6161
    %v6164 = vadd.f32 %v6158, %v6162
    %s6165 = sld [smem:[#allocation12 + $0xb]]
    %v6166 = vstv %s6165
    %v6167 = vmul.f32 %v5640, %v6166
    %v6168 = vmul.f32 %v5641, %v6166
    %v6169 = vadd.f32 %v6163, %v6167
    %v6170 = vadd.f32 %v6164, %v6168
    %s6171 = sld [smem:[#allocation12 + $0xc]]
    %v6172 = vstv %s6171
    %v6173 = vmul.f32 %v5752, %v6172
    %v6174 = vmul.f32 %v5753, %v6172
    %v6175 = vadd.f32 %v6169, %v6173
    %v6176 = vadd.f32 %v6170, %v6174
    %s6177 = sld [smem:[#allocation12 + $0xd]]
    %v6178 = vstv %s6177
    %v6179 = vmul.f32 %v5864, %v6178
    %v6180 = vmul.f32 %v5865, %v6178
    %v6181 = vadd.f32 %v6175, %v6179
    %v6182 = vadd.f32 %v6176, %v6180
    %s6183 = sld [smem:[#allocation12 + $0xe]]
    %v6184 = vstv %s6183
    %v6185 = vmul.f32 %v5976, %v6184
    %v6186 = vmul.f32 %v5977, %v6184
    %v6187 = vadd.f32 %v6181, %v6185
    %v6188 = vadd.f32 %v6182, %v6186
    %s6189 = sld [smem:[#allocation12 + $0xf]]
    %v6190 = vstv %s6189
    %v6191 = vmul.f32 %v6088, %v6190
    %v6192 = vmul.f32 %v6089, %v6190
    %v6193 = vadd.f32 %v6187, %v6191
    %v6194 = vadd.f32 %v6188, %v6192
    %6196 = vrot.lane.b32.xlu0 %v6194, 16
    %v6197 = vpop.permute.xlu0 %6196
    %6200 = vrot.lane.b32.xlu0 %v6193, 16
    %v6201 = vpop.permute.xlu0 %6200
    %v6202 = vsel %vm312, %v6201, %v6197
    %v6205 = vsel %vm312, %v6197, %v6201
    %v6206 = vsel %vm319, %v6205, 0.0
    %v6207 = vsel %vm320, %v6202, 0.0
    %v6208 = vadd.f32 %v6147, %v6206
    %v6209 = vadd.f32 %v6148, %v6207
    %s6210 = sld [smem:[#allocation12 + $0x10]]
    %v6211 = vstv %s6210
    %v6212 = vmul.f32 %v5304, %v6211
    %v6213 = vmul.f32 %v5305, %v6211
    %s6214 = sld [smem:[#allocation12 + $0x11]]
    %v6215 = vstv %s6214
    %v6216 = vmul.f32 %v5416, %v6215
    %v6217 = vmul.f32 %v5417, %v6215
    %v6218 = vadd.f32 %v6212, %v6216
    %v6219 = vadd.f32 %v6213, %v6217
    %s6220 = sld [smem:[#allocation12 + $0x12]]
    %v6221 = vstv %s6220
    %v6222 = vmul.f32 %v5528, %v6221
    %v6223 = vmul.f32 %v5529, %v6221
    %v6224 = vadd.f32 %v6218, %v6222
    %v6225 = vadd.f32 %v6219, %v6223
    %s6226 = sld [smem:[#allocation12 + $0x13]]
    %v6227 = vstv %s6226
    %v6228 = vmul.f32 %v5640, %v6227
    %v6229 = vmul.f32 %v5641, %v6227
    %v6230 = vadd.f32 %v6224, %v6228
    %v6231 = vadd.f32 %v6225, %v6229
    %s6232 = sld [smem:[#allocation12 + $0x14]]
    %v6233 = vstv %s6232
    %v6234 = vmul.f32 %v5752, %v6233
    %v6235 = vmul.f32 %v5753, %v6233
    %v6236 = vadd.f32 %v6230, %v6234
    %v6237 = vadd.f32 %v6231, %v6235
    %s6238 = sld [smem:[#allocation12 + $0x15]]
    %v6239 = vstv %s6238
    %v6240 = vmul.f32 %v5864, %v6239
    %v6241 = vmul.f32 %v5865, %v6239
    %v6242 = vadd.f32 %v6236, %v6240
    %v6243 = vadd.f32 %v6237, %v6241
    %s6244 = sld [smem:[#allocation12 + $0x16]]
    %v6245 = vstv %s6244
    %v6246 = vmul.f32 %v5976, %v6245
    %v6247 = vmul.f32 %v5977, %v6245
    %v6248 = vadd.f32 %v6242, %v6246
    %v6249 = vadd.f32 %v6243, %v6247
    %s6250 = sld [smem:[#allocation12 + $0x17]]
    %v6251 = vstv %s6250
    %v6252 = vmul.f32 %v6088, %v6251
    %v6253 = vmul.f32 %v6089, %v6251
    %v6254 = vadd.f32 %v6248, %v6252
    %v6255 = vadd.f32 %v6249, %v6253
    %6257 = vrot.lane.b32.xlu0 %v6255, 15
    %v6258 = vpop.permute.xlu0 %6257
    %6261 = vrot.lane.b32.xlu0 %v6254, 15
    %v6262 = vpop.permute.xlu0 %6261
    %v6263 = vsel %vm396, %v6262, %v6258
    %v6266 = vsel %vm396, %v6258, %v6262
    %v6267 = vsel %vm403, %v6266, 0.0
    %v6268 = vsel %vm404, %v6263, 0.0
    %v6269 = vadd.f32 %v6208, %v6267
    %v6270 = vadd.f32 %v6209, %v6268
    %s6271 = sld [smem:[#allocation12 + $0x18]]
    %v6272 = vstv %s6271
    %v6273 = vmul.f32 %v5304, %v6272
    %v6274 = vmul.f32 %v5305, %v6272
    %s6275 = sld [smem:[#allocation12 + $0x19]]
    %v6276 = vstv %s6275
    %v6277 = vmul.f32 %v5416, %v6276
    %v6278 = vmul.f32 %v5417, %v6276
    %v6279 = vadd.f32 %v6273, %v6277
    %v6280 = vadd.f32 %v6274, %v6278
    %s6281 = sld [smem:[#allocation12 + $0x1a]]
    %v6282 = vstv %s6281
    %v6283 = vmul.f32 %v5528, %v6282
    %v6284 = vmul.f32 %v5529, %v6282
    %v6285 = vadd.f32 %v6279, %v6283
    %v6286 = vadd.f32 %v6280, %v6284
    %s6287 = sld [smem:[#allocation12 + $0x1b]]
    %v6288 = vstv %s6287
    %v6289 = vmul.f32 %v5640, %v6288
    %v6290 = vmul.f32 %v5641, %v6288
    %v6291 = vadd.f32 %v6285, %v6289
    %v6292 = vadd.f32 %v6286, %v6290
    %s6293 = sld [smem:[#allocation12 + $0x1c]]
    %v6294 = vstv %s6293
    %v6295 = vmul.f32 %v5752, %v6294
    %v6296 = vmul.f32 %v5753, %v6294
    %v6297 = vadd.f32 %v6291, %v6295
    %v6298 = vadd.f32 %v6292, %v6296
    %s6299 = sld [smem:[#allocation12 + $0x1d]]
    %v6300 = vstv %s6299
    %v6301 = vmul.f32 %v5864, %v6300
    %v6302 = vmul.f32 %v5865, %v6300
    %v6303 = vadd.f32 %v6297, %v6301
    %v6304 = vadd.f32 %v6298, %v6302
    %s6305 = sld [smem:[#allocation12 + $0x1e]]
    %v6306 = vstv %s6305
    %v6307 = vmul.f32 %v5976, %v6306
    %v6308 = vmul.f32 %v5977, %v6306
    %v6309 = vadd.f32 %v6303, %v6307
    %v6310 = vadd.f32 %v6304, %v6308
    %s6311 = sld [smem:[#allocation12 + $0x1f]]
    %v6312 = vstv %s6311
    %v6313 = vmul.f32 %v6088, %v6312
    %v6314 = vmul.f32 %v6089, %v6312
    %v6315 = vadd.f32 %v6309, %v6313
    %v6316 = vadd.f32 %v6310, %v6314
    %6318 = vrot.lane.b32.xlu0 %v6316, 1
    %v6319 = vpop.permute.xlu0 %6318
    %6322 = vrot.lane.b32.xlu0 %v6315, 1
    %v6323 = vpop.permute.xlu0 %6322
    %v6324 = vsel %vm480, %v6323, %v6319
    %v6327 = vsel %vm480, %v6319, %v6323
    %v6328 = vsel %vm487, %v6327, 0.0
    %v6329 = vsel %vm488, %v6324, 0.0
    %v6330 = vadd.f32 %v6269, %v6328
    %v6331 = vadd.f32 %v6270, %v6329
    %s6332 = sld [smem:[#allocation12 + $0x20]]
    %v6333 = vstv %s6332
    %v6334 = vmul.f32 %v5304, %v6333
    %v6335 = vmul.f32 %v5305, %v6333
    %s6336 = sld [smem:[#allocation12 + $0x21]]
    %v6337 = vstv %s6336
    %v6338 = vmul.f32 %v5416, %v6337
    %v6339 = vmul.f32 %v5417, %v6337
    %v6340 = vadd.f32 %v6334, %v6338
    %v6341 = vadd.f32 %v6335, %v6339
    %s6342 = sld [smem:[#allocation12 + $0x22]]
    %v6343 = vstv %s6342
    %v6344 = vmul.f32 %v5528, %v6343
    %v6345 = vmul.f32 %v5529, %v6343
    %v6346 = vadd.f32 %v6340, %v6344
    %v6347 = vadd.f32 %v6341, %v6345
    %s6348 = sld [smem:[#allocation12 + $0x23]]
    %v6349 = vstv %s6348
    %v6350 = vmul.f32 %v5640, %v6349
    %v6351 = vmul.f32 %v5641, %v6349
    %v6352 = vadd.f32 %v6346, %v6350
    %v6353 = vadd.f32 %v6347, %v6351
    %s6354 = sld [smem:[#allocation12 + $0x24]]
    %v6355 = vstv %s6354
    %v6356 = vmul.f32 %v5752, %v6355
    %v6357 = vmul.f32 %v5753, %v6355
    %v6358 = vadd.f32 %v6352, %v6356
    %v6359 = vadd.f32 %v6353, %v6357
    %s6360 = sld [smem:[#allocation12 + $0x25]]
    %v6361 = vstv %s6360
    %v6362 = vmul.f32 %v5864, %v6361
    %v6363 = vmul.f32 %v5865, %v6361
    %v6364 = vadd.f32 %v6358, %v6362
    %v6365 = vadd.f32 %v6359, %v6363
    %s6366 = sld [smem:[#allocation12 + $0x26]]
    %v6367 = vstv %s6366
    %v6368 = vmul.f32 %v5976, %v6367
    %v6369 = vmul.f32 %v5977, %v6367
    %v6370 = vadd.f32 %v6364, %v6368
    %v6371 = vadd.f32 %v6365, %v6369
    %s6372 = sld [smem:[#allocation12 + $0x27]]
    %v6373 = vstv %s6372
    %v6374 = vmul.f32 %v6088, %v6373
    %v6375 = vmul.f32 %v6089, %v6373
    %v6376 = vadd.f32 %v6370, %v6374
    %v6377 = vadd.f32 %v6371, %v6375
    %v6378 = vadd.f32 %v6330, %v6376
    %v6379 = vadd.f32 %v6331, %v6377
    %s6380 = sld [smem:[#allocation12 + $0x28]]
    %v6381 = vstv %s6380
    %v6382 = vmul.f32 %v5304, %v6381
    %v6383 = vmul.f32 %v5305, %v6381
    %s6384 = sld [smem:[#allocation12 + $0x29]]
    %v6385 = vstv %s6384
    %v6386 = vmul.f32 %v5416, %v6385
    %v6387 = vmul.f32 %v5417, %v6385
    %v6388 = vadd.f32 %v6382, %v6386
    %v6389 = vadd.f32 %v6383, %v6387
    %s6390 = sld [smem:[#allocation12 + $0x2a]]
    %v6391 = vstv %s6390
    %v6392 = vmul.f32 %v5528, %v6391
    %v6393 = vmul.f32 %v5529, %v6391
    %v6394 = vadd.f32 %v6388, %v6392
    %v6395 = vadd.f32 %v6389, %v6393
    %s6396 = sld [smem:[#allocation12 + $0x2b]]
    %v6397 = vstv %s6396
    %v6398 = vmul.f32 %v5640, %v6397
    %v6399 = vmul.f32 %v5641, %v6397
    %v6400 = vadd.f32 %v6394, %v6398
    %v6401 = vadd.f32 %v6395, %v6399
    %s6402 = sld [smem:[#allocation12 + $0x2c]]
    %v6403 = vstv %s6402
    %v6404 = vmul.f32 %v5752, %v6403
    %v6405 = vmul.f32 %v5753, %v6403
    %v6406 = vadd.f32 %v6400, %v6404
    %v6407 = vadd.f32 %v6401, %v6405
    %s6408 = sld [smem:[#allocation12 + $0x2d]]
    %v6409 = vstv %s6408
    %v6410 = vmul.f32 %v5864, %v6409
    %v6411 = vmul.f32 %v5865, %v6409
    %v6412 = vadd.f32 %v6406, %v6410
    %v6413 = vadd.f32 %v6407, %v6411
    %s6414 = sld [smem:[#allocation12 + $0x2e]]
    %v6415 = vstv %s6414
    %v6416 = vmul.f32 %v5976, %v6415
    %v6417 = vmul.f32 %v5977, %v6415
    %v6418 = vadd.f32 %v6412, %v6416
    %v6419 = vadd.f32 %v6413, %v6417
    %s6420 = sld [smem:[#allocation12 + $0x2f]]
    %v6421 = vstv %s6420
    %v6422 = vmul.f32 %v6088, %v6421
    %v6423 = vmul.f32 %v6089, %v6421
    %v6424 = vadd.f32 %v6418, %v6422
    %v6425 = vadd.f32 %v6419, %v6423
    %6428 = vrot.lane.b32.xlu0 %v6424, 127
    %v6429 = vpop.permute.xlu0 %6428
    %6430 = vrot.lane.b32.xlu0 %v6425, 127
    %v6431 = vpop.permute.xlu0 %6430
    %v6432 = vsel %vm633, %v6429, %v6431
    %v6436 = vsel %vm633, %v6431, %v6429
    %v6437 = vsel %vm641, %v6432, 0.0
    %v6438 = vsel %vm642, %v6436, 0.0
    %v6439 = vadd.f32 %v6378, %v6437
    %v6440 = vadd.f32 %v6379, %v6438
    %s6441 = sld [smem:[#allocation12 + $0x30]]
    %v6442 = vstv %s6441
    %v6443 = vmul.f32 %v5304, %v6442
    %v6444 = vmul.f32 %v5305, %v6442
    %s6445 = sld [smem:[#allocation12 + $0x31]]
    %v6446 = vstv %s6445
    %v6447 = vmul.f32 %v5416, %v6446
    %v6448 = vmul.f32 %v5417, %v6446
    %v6449 = vadd.f32 %v6443, %v6447
    %v6450 = vadd.f32 %v6444, %v6448
    %s6451 = sld [smem:[#allocation12 + $0x32]]
    %v6452 = vstv %s6451
    %v6453 = vmul.f32 %v5528, %v6452
    %v6454 = vmul.f32 %v5529, %v6452
    %v6455 = vadd.f32 %v6449, %v6453
    %v6456 = vadd.f32 %v6450, %v6454
    %s6457 = sld [smem:[#allocation12 + $0x33]]
    %v6458 = vstv %s6457
    %v6459 = vmul.f32 %v5640, %v6458
    %v6460 = vmul.f32 %v5641, %v6458
    %v6461 = vadd.f32 %v6455, %v6459
    %v6462 = vadd.f32 %v6456, %v6460
    %s6463 = sld [smem:[#allocation12 + $0x34]]
    %v6464 = vstv %s6463
    %v6465 = vmul.f32 %v5752, %v6464
    %v6466 = vmul.f32 %v5753, %v6464
    %v6467 = vadd.f32 %v6461, %v6465
    %v6468 = vadd.f32 %v6462, %v6466
    %s6469 = sld [smem:[#allocation12 + $0x35]]
    %v6470 = vstv %s6469
    %v6471 = vmul.f32 %v5864, %v6470
    %v6472 = vmul.f32 %v5865, %v6470
    %v6473 = vadd.f32 %v6467, %v6471
    %v6474 = vadd.f32 %v6468, %v6472
    %s6475 = sld [smem:[#allocation12 + $0x36]]
    %v6476 = vstv %s6475
    %v6477 = vmul.f32 %v5976, %v6476
    %v6478 = vmul.f32 %v5977, %v6476
    %v6479 = vadd.f32 %v6473, %v6477
    %v6480 = vadd.f32 %v6474, %v6478
    %s6481 = sld [smem:[#allocation12 + $0x37]]
    %v6482 = vstv %s6481
    %v6483 = vmul.f32 %v6088, %v6482
    %v6484 = vmul.f32 %v6089, %v6482
    %v6485 = vadd.f32 %v6479, %v6483
    %v6486 = vadd.f32 %v6480, %v6484
    %6489 = vrot.lane.b32.xlu0 %v6485, 113
    %v6490 = vpop.permute.xlu0 %6489
    %6491 = vrot.lane.b32.xlu0 %v6486, 113
    %v6492 = vpop.permute.xlu0 %6491
    %v6493 = vsel %vm717, %v6490, %v6492
    %v6497 = vsel %vm717, %v6492, %v6490
    %v6498 = vsel %vm725, %v6493, 0.0
    %v6499 = vsel %vm726, %v6497, 0.0
    %v6500 = vadd.f32 %v6439, %v6498
    %v6501 = vadd.f32 %v6440, %v6499
    %s6502 = sld [smem:[#allocation12 + $0x38]]
    %v6503 = vstv %s6502
    %v6504 = vmul.f32 %v5304, %v6503
    %v6505 = vmul.f32 %v5305, %v6503
    %s6506 = sld [smem:[#allocation12 + $0x39]]
    %v6507 = vstv %s6506
    %v6508 = vmul.f32 %v5416, %v6507
    %v6509 = vmul.f32 %v5417, %v6507
    %v6510 = vadd.f32 %v6504, %v6508
    %v6511 = vadd.f32 %v6505, %v6509
    %s6512 = sld [smem:[#allocation12 + $0x3a]]
    %v6513 = vstv %s6512
    %v6514 = vmul.f32 %v5528, %v6513
    %v6515 = vmul.f32 %v5529, %v6513
    %v6516 = vadd.f32 %v6510, %v6514
    %v6517 = vadd.f32 %v6511, %v6515
    %s6518 = sld [smem:[#allocation12 + $0x3b]]
    %v6519 = vstv %s6518
    %v6520 = vmul.f32 %v5640, %v6519
    %v6521 = vmul.f32 %v5641, %v6519
    %v6522 = vadd.f32 %v6516, %v6520
    %v6523 = vadd.f32 %v6517, %v6521
    %s6524 = sld [smem:[#allocation12 + $0x3c]]
    %v6525 = vstv %s6524
    %v6526 = vmul.f32 %v5752, %v6525
    %v6527 = vmul.f32 %v5753, %v6525
    %v6528 = vadd.f32 %v6522, %v6526
    %v6529 = vadd.f32 %v6523, %v6527
    %s6530 = sld [smem:[#allocation12 + $0x3d]]
    %v6531 = vstv %s6530
    %v6532 = vmul.f32 %v5864, %v6531
    %v6533 = vmul.f32 %v5865, %v6531
    %v6534 = vadd.f32 %v6528, %v6532
    %v6535 = vadd.f32 %v6529, %v6533
    %s6536 = sld [smem:[#allocation12 + $0x3e]]
    %v6537 = vstv %s6536
    %v6538 = vmul.f32 %v5976, %v6537
    %v6539 = vmul.f32 %v5977, %v6537
    %v6540 = vadd.f32 %v6534, %v6538
    %v6541 = vadd.f32 %v6535, %v6539
    %s6542 = sld [smem:[#allocation12 + $0x3f]]
    %v6543 = vstv %s6542
    %v6544 = vmul.f32 %v6088, %v6543
    %v6545 = vmul.f32 %v6089, %v6543
    %v6546 = vadd.f32 %v6540, %v6544
    %v6547 = vadd.f32 %v6541, %v6545
    %6550 = vrot.lane.b32.xlu0 %v6546, 112
    %v6551 = vpop.permute.xlu0 %6550
    %6552 = vrot.lane.b32.xlu0 %v6547, 112
    %v6553 = vpop.permute.xlu0 %6552
    %v6554 = vsel %vm801, %v6551, %v6553
    %v6558 = vsel %vm801, %v6553, %v6551
    %v6559 = vsel %vm809, %v6554, 0.0
    %v6560 = vsel %vm810, %v6558, 0.0
    %v6561 = vadd.f32 %v6500, %v6559
    %v6562 = vadd.f32 %v6501, %v6560
    %s6563 = sld [smem:[#allocation12 + $0x40]]
    %v6564 = vstv %s6563
    %v6565 = vmul.f32 %v5304, %v6564
    %v6566 = vmul.f32 %v5305, %v6564
    %s6567 = sld [smem:[#allocation12 + $0x41]]
    %v6568 = vstv %s6567
    %v6569 = vmul.f32 %v5416, %v6568
    %v6570 = vmul.f32 %v5417, %v6568
    %v6571 = vadd.f32 %v6565, %v6569
    %v6572 = vadd.f32 %v6566, %v6570
    %s6573 = sld [smem:[#allocation12 + $0x42]]
    %v6574 = vstv %s6573
    %v6575 = vmul.f32 %v5528, %v6574
    %v6576 = vmul.f32 %v5529, %v6574
    %v6577 = vadd.f32 %v6571, %v6575
    %v6578 = vadd.f32 %v6572, %v6576
    %s6579 = sld [smem:[#allocation12 + $0x43]]
    %v6580 = vstv %s6579
    %v6581 = vmul.f32 %v5640, %v6580
    %v6582 = vmul.f32 %v5641, %v6580
    %v6583 = vadd.f32 %v6577, %v6581
    %v6584 = vadd.f32 %v6578, %v6582
    %s6585 = sld [smem:[#allocation12 + $0x44]]
    %v6586 = vstv %s6585
    %v6587 = vmul.f32 %v5752, %v6586
    %v6588 = vmul.f32 %v5753, %v6586
    %v6589 = vadd.f32 %v6583, %v6587
    %v6590 = vadd.f32 %v6584, %v6588
    %s6591 = sld [smem:[#allocation12 + $0x45]]
    %v6592 = vstv %s6591
    %v6593 = vmul.f32 %v5864, %v6592
    %v6594 = vmul.f32 %v5865, %v6592
    %v6595 = vadd.f32 %v6589, %v6593
    %v6596 = vadd.f32 %v6590, %v6594
    %s6597 = sld [smem:[#allocation12 + $0x46]]
    %v6598 = vstv %s6597
    %v6599 = vmul.f32 %v5976, %v6598
    %v6600 = vmul.f32 %v5977, %v6598
    %v6601 = vadd.f32 %v6595, %v6599
    %v6602 = vadd.f32 %v6596, %v6600
    %s6603 = sld [smem:[#allocation12 + $0x47]]
    %v6604 = vstv %s6603
    %v6605 = vmul.f32 %v6088, %v6604
    %v6606 = vmul.f32 %v6089, %v6604
    %v6607 = vadd.f32 %v6601, %v6605
    %v6608 = vadd.f32 %v6602, %v6606
    %6611 = vrot.lane.b32.xlu0 %v6607, 111
    %v6612 = vpop.permute.xlu0 %6611
    %6613 = vrot.lane.b32.xlu0 %v6608, 111
    %v6614 = vpop.permute.xlu0 %6613
    %v6615 = vsel %vm885, %v6612, %v6614
    %v6619 = vsel %vm885, %v6614, %v6612
    %v6620 = vsel %vm893, %v6615, 0.0
    %v6621 = vsel %vm894, %v6619, 0.0
    %v6622 = vadd.f32 %v6561, %v6620
    %v6623 = vadd.f32 %v6562, %v6621
    %s6624 = sld [smem:[#allocation3]]
    %v6625 = vstv %s6624
    %v6626 = vadd.f32 %v6622, %v6625
    %v6627 = vadd.f32 %v6623, %v6625
    %v6630 = vcombine.low %v6626, %v6627
    %v6632 = vunpack.c.l.s4 1983009808
    %v6633 = vunpack.c.0.s8 %v6632
    %v6634 = vlaneseq
    %v6635 = vshrl.u32 %v6634, 7
    %v6636 = vsub.s32 %v6633, %v6635
    %v6637 = vrot.slane %v6630, %v6636
    %6639 = vst [vmem:[%s11] sm:$0xf] %v6637
    // Predicated region
    $region70: #{multi_nobases_forward.1} parent=1 // pred_check
      _
    $region71: #{multi_nobases_forward.1} parent=1 // pred_check_branch
      %6641 = sbr.rel (0) target = $region73
    $region72: #{multi_nobases_forward.1} parent=1 // pred_region
      _
    $region73: #{multi_nobases_forward.1} parent=1 // pred_fallthru
      _
    // Predicated region
    $region74: #{multi_nobases_forward.1} parent=1 // pred_check
      _
    $region75: #{multi_nobases_forward.1} parent=1 // pred_check_branch
      %6643 = sbr.rel (0) target = $region77
    $region76: #{multi_nobases_forward.1} parent=1 // pred_region
      _
    $region77: #{multi_nobases_forward.1} parent=1 // pred_fallthru
      _
    %6644 = vsyncpa [#allocation5], 1
    %6645 = vsyncpa [#allocation7], 1
    %6646 = vsyncpa [#allocation10], 1
    %6647 = vsyncpa [#allocation13], 1

</llo_original>
